<compile_context>
chip_gen: v7x
topology: tpu7x:2x2x1
jax: 0.10.0
libtpu: 0.0.40
codegen_flags: <defaults>
</compile_context>

<pallas_src>
import functools

import jax
import jax.numpy as jnp
from jax import lax
from jax.experimental import pallas as pl
from jax.experimental.pallas import tpu as pltpu

HALO = 8            # halo rows/side; 3 chained k=5 convs need 6, 8 keeps loads aligned
CONF_EPS = 1e-5     # eps used in the torch forward
BN_EPS = 1e-5       # nn.BatchNorm1d default eps
EMB_ROWS = 64       # 50-row ConfNN table zero-padded to 64 sublanes
VOCAB_PAD = 128     # vocab padded to a full 128-lane register (lane-dense stores)
NEG_BIG = -1e30     # bias of padded vocab columns -> exp() == 0 in the softmax


# ---------------------------------------------------------------------------
# Fused kernel
# ---------------------------------------------------------------------------
def _cnn_decoder2_kernel(hv_ref, lg_ref, emb_ref,
                         w1_ref, s1_ref, t1_ref,
                         w2_ref, s2_ref, t2_ref,
                         w3_ref, s3_ref, t3_ref,
                         wr_ref, br_ref,
                         logits_ref, logp_ref,
                         x0_buf, z1_buf, z2_buf,
                         *, T, L, use_bf16):
    i = pl.program_id(0)
    base = pl.multiple_of(i * T, 8)       # row offset into the HALO-padded inputs
    W = T + 2 * HALO                      # window rows per tile
    mdt = jnp.bfloat16 if use_bf16 else jnp.float32

    def mm(a, b):                         # MXU matmul, f32 accumulation
        return jnp.dot(a, b, preferred_element_type=jnp.float32)

    # ---- window loads: padded rows [i*T, i*T+W) == global rows [i*T-8, i*T+T+8)
    hv = hv_ref[pl.ds(base, W), :]                                    # [W, Dv] f32
    lg = lg_ref[pl.ds(base, W), :]                                    # [W, V]  f32

    # ---- Conf = clamp(trunc(top1 / (top2 + eps)), 0, 49)  (per row, f32) ----
    m1 = jnp.max(lg, axis=-1, keepdims=True)
    is_max = lg == m1
    n_max = jnp.sum(is_max.astype(jnp.float32), axis=-1, keepdims=True)
    m2_strict = jnp.max(jnp.where(is_max, -jnp.inf, lg), axis=-1, keepdims=True)
    m2 = jnp.where(n_max > 1.5, m1, m2_strict)     # duplicated max -> top2 == top1
    ratio = m1 / (m2 + CONF_EPS)
    ratio = jnp.where(jnp.isnan(ratio), 0.0, ratio)
    conf = jnp.clip(ratio, 0.0, 49.0).astype(jnp.int32)   # clamp in float first

    # ---- ConfNN embedding as one-hot @ table (table resident in VMEM) ----
    onehot = (lax.broadcasted_iota(jnp.int32, (W, EMB_ROWS), 1) == conf).astype(mdt)
    h_c = mm(onehot, emb_ref[...])                                    # [W, H] f32

    # ---- zero rows outside [0, L) (== Conv1d zero padding of layer-1 input) ----
    grow0 = base - HALO + lax.broadcasted_iota(jnp.int32, (W, 1), 0)  # global rows
    v0 = jnp.logical_and(grow0 >= 0, grow0 < L)
    h_c = jnp.where(v0, h_c, 0.0)
    # hv rows outside [0, L) are already exact zeros (wrapper padding).

    # Stage the conv-1 input window once, already in matmul dtype (single cast).
    x0_buf[...] = jnp.concatenate([hv.astype(mdt), h_c.astype(mdt)], axis=-1)

    # ---- k=5 conv as shifted ref-window matmuls; eval-BN folded to affine ----
    def conv5(buf, in_off, rows, w_ref, s_ref, t_ref, relu, valid, pair):
        cin = buf.shape[1]
        # pair=True: taps (0,1),(2,3),(4) -> K = 2*cin, 2*cin, cin  (v6e/v7x MXU fill)
        groups = [(0, 2), (2, 2), (4, 1)] if pair else [(k, 1) for k in range(5)]
        acc = None
        for k0, g in groups:
            xs = [buf[in_off + k0 + j: in_off + k0 + j + rows, :] for j in range(g)]
            x = xs[0] if g == 1 else jnp.concatenate(xs, axis=-1)
            w = w_ref[k0 * cin:(k0 + g) * cin, :]
            p = mm(x, w)
            acc = p if acc is None else acc + p        # adjacent chain (MRB accumulate)
        y = acc * s_ref[...] + t_ref[...]
        if relu:
            y = jnp.maximum(y, 0.0)
        if valid is not None:                          # zero-pad the NEXT conv's input
            y = jnp.where(valid, y, 0.0)
        return y

    # Window-row bookkeeping (window row w <-> global row base - 8 + w):
    #   z1 covers w in [4, T+12), z2 covers [6, T+10), y3 covers [8, T+8).
    rows1 = T + 8
    grow1 = base - 4 + lax.broadcasted_iota(jnp.int32, (rows1, 1), 0)
    v1 = jnp.logical_and(grow1 >= 0, grow1 < L)
    z1 = conv5(x0_buf, 2, rows1, w1_ref, s1_ref, t1_ref, relu=True, valid=v1,
               pair=False)                             # K = C0 already fills the MXU
    z1_buf[...] = z1.astype(mdt)                       # single cast, staged for conv2

    rows2 = T + 4
    grow2 = base - 2 + lax.broadcasted_iota(jnp.int32, (rows2, 1), 0)
    v2 = jnp.logical_and(grow2 >= 0, grow2 < L)
    z2 = conv5(z1_buf, 0, rows2, w2_ref, s2_ref, t2_ref, relu=True, valid=v2,
               pair=True)
    z2_buf[0:rows2, :] = z2.astype(mdt)

    y3 = conv5(z2_buf, 0, T, w3_ref, s3_ref, t3_ref, relu=False, valid=None,
               pair=True)                              # [T, H] f32

    # ---- readout + log_softmax over the vocab-padded lane-dense columns ----
    logits = mm(y3.astype(mdt), wr_ref[...]) + br_ref[...]            # [T, VOCAB_PAD]
    logits_ref[...] = logits
    m = jnp.max(logits, axis=-1, keepdims=True)
    lse = m + jnp.log(jnp.sum(jnp.exp(logits - m), axis=-1, keepdims=True))
    logp_ref[...] = logits - lse


# ---------------------------------------------------------------------------
# Parameter preparation (torch layout -> kernel layout)
# ---------------------------------------------------------------------------
def prepare_params(raw, use_bf16):
    H = raw["emb"].shape[1]
    V = raw["ro_w"].shape[0]
    wdt = jnp.bfloat16 if use_bf16 else jnp.float32

    def conv_stack(w):                         # [Cout, Cin, K] -> [K*Cin, Cout]
        return jnp.concatenate([w[:, :, k].T for k in range(w.shape[2])],
                               axis=0).astype(wdt)

    def bn_fold(g, be, m, v, conv_b):          # conv-bias + eval-mode BN -> affine
        scale = g / jnp.sqrt(v + BN_EPS)
        shift = be + scale * (conv_b - m)
        return scale[None, :].astype(jnp.float32), shift[None, :].astype(jnp.float32)

    s1, t1 = bn_fold(raw["bn1_g"], raw["bn1_b"], raw["bn1_m"], raw["bn1_v"], raw["c1_b"])
    s2, t2 = bn_fold(raw["bn2_g"], raw["bn2_b"], raw["bn2_m"], raw["bn2_v"], raw["c2_b"])
    s3 = jnp.ones((1, H), jnp.float32)
    t3 = raw["c3_b"][None, :].astype(jnp.float32)

    emb = jnp.pad(raw["emb"], ((0, EMB_ROWS - raw["emb"].shape[0]), (0, 0))).astype(wdt)
    wr = jnp.pad(raw["ro_w"].T, ((0, 0), (0, VOCAB_PAD - V))).astype(wdt)
    br = jnp.concatenate(
        [raw["ro_b"].astype(jnp.float32),
         jnp.full((VOCAB_PAD - V,), NEG_BIG, jnp.float32)])[None, :]

    return dict(emb=emb,
                w1=conv_stack(raw["c1_w"]), s1=s1, t1=t1,
                w2=conv_stack(raw["c2_w"]), s2=s2, t2=t2,
                w3=conv_stack(raw["c3_w"]), s3=s3, t3=t3,
                wr=wr, br=br)


# ---------------------------------------------------------------------------
# Wrapper
# ---------------------------------------------------------------------------
def cnn_decoder2_forward(raw_params, h_V, logits, batch_id=None, *,
                         tile_rows=None, use_bf16=True):
    """Returns (log_probs, logits) like the torch module."""
    del batch_id  # unused by the torch forward as well
    L, Dv = h_V.shape
    V = logits.shape[1]
    H = raw_params["emb"].shape[1]
    C0 = Dv + H
    assert V <= VOCAB_PAD and raw_params["emb"].shape[0] <= EMB_ROWS
    assert H % 8 == 0 and Dv % 8 == 0 and C0 % 8 == 0

    if tile_rows is None:
        # <=128 rows (vreg pressure) and >=2 grid steps when possible (v7x megacore).
        T = min(128, max(8, (((L + 1) // 2) + 7) // 8 * 8))
    else:
        T = int(tile_rows)
    assert T % 8 == 0 and T >= 8
    n_tiles = (L + T - 1) // T
    Lp = n_tiles * T

    # HALO rows of zeros each side (+ tail padding up to a tile multiple).
    hv_p = jnp.pad(h_V.astype(jnp.float32), ((HALO, Lp - L + HALO), (0, 0)))
    lg_p = jnp.pad(logits.astype(jnp.float32), ((HALO, Lp - L + HALO), (0, 0)))

    p = prepare_params(raw_params, use_bf16)
    wdt = jnp.bfloat16 if use_bf16 else jnp.float32
    kernel = functools.partial(_cnn_decoder2_kernel, T=T, L=L, use_bf16=use_bf16)

    const = lambda i: (0, 0)   # resident in VMEM, DMA'd once (constant block index)
    row = lambda i: (i, 0)

    def build_in_specs(single_buffer):
        kw = dict(pipeline_mode=pl.Buffered(1)) if single_buffer else {}
        return [
            pl.BlockSpec((Lp + 2 * HALO, Dv), const, **kw),
            pl.BlockSpec((Lp + 2 * HALO, V), const, **kw),
            pl.BlockSpec((EMB_ROWS, H), const),
            pl.BlockSpec((5 * C0, H), const),
            pl.BlockSpec((1, H), const),
            pl.BlockSpec((1, H), const),
            pl.BlockSpec((5 * H, H), const),
            pl.BlockSpec((1, H), const),
            pl.BlockSpec((1, H), const),
            pl.BlockSpec((5 * H, H), const),
            pl.BlockSpec((1, H), const),
            pl.BlockSpec((1, H), const),
            pl.BlockSpec((H, VOCAB_PAD), const),
            pl.BlockSpec((1, VOCAB_PAD), const),
        ]

    def run(single_buffer):
        out = pl.pallas_call(
            kernel,
            grid=(n_tiles,),
            in_specs=build_in_specs(single_buffer),
            out_specs=[
                pl.BlockSpec((T, VOCAB_PAD), row),
                pl.BlockSpec((T, VOCAB_PAD), row),
            ],
            out_shape=(
                jax.ShapeDtypeStruct((Lp, VOCAB_PAD), jnp.float32),
                jax.ShapeDtypeStruct((Lp, VOCAB_PAD), jnp.float32),
            ),
            scratch_shapes=[
                pltpu.VMEM((T + 2 * HALO, C0), wdt),   # staged conv-1 input window
                pltpu.VMEM((T + 8, H), wdt),           # staged z1
                pltpu.VMEM((T + 8, H), wdt),           # staged z2
            ],
            compiler_params=pltpu.CompilerParams(
                dimension_semantics=("parallel",),
                vmem_limit_bytes=48 * 1024 * 1024,
            ),
        )(hv_p, lg_p, p["emb"], p["w1"], p["s1"], p["t1"],
          p["w2"], p["s2"], p["t2"], p["w3"], p["s3"], p["t3"], p["wr"], p["br"])
        jax.block_until_ready(out)
        return out

    try:
        logits_pad, logp_pad = run(single_buffer=True)
    except Exception:
        # Fallback if pipeline_mode=pl.Buffered(1) is rejected by this JAX build.
        logits_pad, logp_pad = run(single_buffer=False)

    return logp_pad[:L, :V], logits_pad[:L, :V]


# ---------------------------------------------------------------------------
# Pure-JAX reference (inference-mode BN), independent of the kernel structure.
# ---------------------------------------------------------------------------
def reference_forward(raw, h_V, logits):
    top2 = lax.top_k(logits, 2)[0]
    conf = jnp.clip(top2[:, 0] / (top2[:, 1] + CONF_EPS), 0.0, 49.0).astype(jnp.int32)
    h_C = raw["emb"][conf]
    x = jnp.concatenate([h_V, h_C], axis=-1)           # [L, C0]
    y = x.T[None]                                      # [1, C0, L]

    def conv_bn_relu(y, w, b, g, be, m, v, relu):
        y = lax.conv_general_dilated(y, w, (1,), [(2, 2)],
                                     dimension_numbers=("NCH", "OIH", "NCH"))
        y = y + b[None, :, None]
        if g is not None:
            y = (g[None, :, None] * (y - m[None, :, None])
                 / jnp.sqrt(v[None, :, None] + BN_EPS) + be[None, :, None])
        return jnp.maximum(y, 0.0) if relu else y

    y = conv_bn_relu(y, raw["c1_w"], raw["c1_b"], raw["bn1_g"], raw["bn1_b"],
                     raw["bn1_m"], raw["bn1_v"], True)
    y = conv_bn_relu(y, raw["c2_w"], raw["c2_b"], raw["bn2_g"], raw["bn2_b"],
                     raw["bn2_m"], raw["bn2_v"], True)
    y = conv_bn_relu(y, raw["c3_w"], raw["c3_b"], None, None, None, None, False)
    hidden = y[0].T                                    # [L, H]
    lg = hidden @ raw["ro_w"].T + raw["ro_b"]
    return jax.nn.log_softmax(lg, axis=-1), lg


def init_raw_params(key, hidden_dim, input_dim, vocab):
    H, Dv, V = hidden_dim, input_dim, vocab
    C0 = H + Dv
    ks = jax.random.split(key, 17)
    n = lambda k, shape, s=1.0: s * jax.random.normal(k, shape, jnp.float32)
    return dict(
        emb=n(ks[0], (50, H), 0.5),
        c1_w=n(ks[1], (H, C0, 5), 1.0 / (5 * C0) ** 0.5),
        c1_b=n(ks[2], (H,), 0.1),
        bn1_g=1.0 + n(ks[3], (H,), 0.1),
        bn1_b=n(ks[4], (H,), 0.1),
        bn1_m=n(ks[5], (H,), 0.1),
        bn1_v=0.5 + jnp.abs(n(ks[6], (H,), 0.2)),
        c2_w=n(ks[7], (H, H, 5), 1.0 / (5 * H) ** 0.5),
        c2_b=n(ks[8], (H,), 0.1),
        bn2_g=1.0 + n(ks[9], (H,), 0.1),
        bn2_b=n(ks[10], (H,), 0.1),
        bn2_m=n(ks[11], (H,), 0.1),
        bn2_v=0.5 + jnp.abs(n(ks[12], (H,), 0.2)),
        c3_w=n(ks[13], (H, H, 5), 1.0 / (5 * H) ** 0.5),
        c3_b=n(ks[14], (H,), 0.1),
        ro_w=n(ks[15], (V, H), 1.0 / H ** 0.5),
        ro_b=n(ks[16], (V,), 0.1),
    )


if __name__ == "__main__":
    hidden_dim = 128
    input_dim = 128
    vocab = 33
    L = 200                      # not a tile multiple -> exercises padding/masking

    key = jax.random.PRNGKey(0)
    k_p, k_hv, k_lg = jax.random.split(key, 3)
    raw = init_raw_params(k_p, hidden_dim, input_dim, vocab)
    h_V = jax.random.normal(k_hv, (L, input_dim), jnp.float32)
    logits_in = jax.random.normal(k_lg, (L, vocab), jnp.float32)

    ref_logp, ref_logits = jax.block_until_ready(
        reference_forward(raw, h_V, logits_in))

    # Default path: bf16 MXU operands, auto tile (>=2 grid steps for megacore).
    log_probs, logits_out = jax.block_until_ready(
        cnn_decoder2_forward(raw, h_V, logits_in))
    assert log_probs.shape == (L, vocab) and logits_out.shape == (L, vocab)
    assert bool(jnp.all(jnp.isfinite(log_probs)))
    err_lg = float(jnp.max(jnp.abs(logits_out - ref_logits)))
    err_lp = float(jnp.max(jnp.abs(log_probs - ref_logp)))
    assert jnp.allclose(logits_out, ref_logits, atol=0.5, rtol=0.5), err_lg
    assert jnp.allclose(log_probs, ref_logp, atol=0.5, rtol=0.5), err_lp

    # f32 path: tight check (including sequence-edge rows, which exercise the
    # per-layer zero-padding masks).
    logp32, logits32 = jax.block_until_ready(
        cnn_decoder2_forward(raw, h_V, logits_in, tile_rows=128, use_bf16=False))
    err_lg32 = float(jnp.max(jnp.abs(logits32 - ref_logits)))
    err_lp32 = float(jnp.max(jnp.abs(logp32 - ref_logp)))
    assert jnp.allclose(logits32, ref_logits, atol=5e-2, rtol=5e-2), err_lg32
    assert jnp.allclose(logp32, ref_logp, atol=5e-2, rtol=5e-2), err_lp32

    print("KERNEL_OK")
</pallas_src>

<mosaic_0001>
module attributes {stable_mosaic.version = 11 : i64} {
  func.func @_cnn_decoder2_kernel(%arg0: i32, %arg1: memref<224x128xf32, #tpu.memory_space<vmem>>, %arg2: memref<224x33xf32, #tpu.memory_space<vmem>>, %arg3: memref<64x128xbf16, #tpu.memory_space<vmem>>, %arg4: memref<1280x128xbf16, #tpu.memory_space<vmem>>, %arg5: memref<1x128xf32, #tpu.memory_space<vmem>>, %arg6: memref<1x128xf32, #tpu.memory_space<vmem>>, %arg7: memref<640x128xbf16, #tpu.memory_space<vmem>>, %arg8: memref<1x128xf32, #tpu.memory_space<vmem>>, %arg9: memref<1x128xf32, #tpu.memory_space<vmem>>, %arg10: memref<640x128xbf16, #tpu.memory_space<vmem>>, %arg11: memref<1x128xf32, #tpu.memory_space<vmem>>, %arg12: memref<1x128xf32, #tpu.memory_space<vmem>>, %arg13: memref<128x128xbf16, #tpu.memory_space<vmem>>, %arg14: memref<1x128xf32, #tpu.memory_space<vmem>>, %arg15: memref<104x128xf32, #tpu.memory_space<vmem>>, %arg16: memref<104x128xf32, #tpu.memory_space<vmem>>, %arg17: memref<120x256xbf16, #tpu.memory_space<vmem>>, %arg18: memref<112x128xbf16, #tpu.memory_space<vmem>>, %arg19: memref<112x128xbf16, #tpu.memory_space<vmem>>) attributes {dimension_semantics = [#tpu.dimension_semantics<parallel>], iteration_bounds = array<i64: 2>, scalar_prefetch = 0 : i64, scratch_operands = 3 : i64, tpu.core_type = #tpu.core_type<tc>, window_params = [{pipeline_mode = #tpu.pipeline_mode<synchronous>, transform_indices = @transform_0, window_bounds = array<i64: 224, 128>}, {pipeline_mode = #tpu.pipeline_mode<synchronous>, transform_indices = @transform_1, window_bounds = array<i64: 224, 33>}, {pipeline_mode = #tpu.pipeline_mode<synchronous>, transform_indices = @transform_2, window_bounds = array<i64: 64, 128>}, {pipeline_mode = #tpu.pipeline_mode<synchronous>, transform_indices = @transform_3, window_bounds = array<i64: 1280, 128>}, {pipeline_mode = #tpu.pipeline_mode<synchronous>, transform_indices = @transform_4, window_bounds = array<i64: 1, 128>}, {pipeline_mode = #tpu.pipeline_mode<synchronous>, transform_indices = @transform_5, window_bounds = array<i64: 1, 128>}, {pipeline_mode = #tpu.pipeline_mode<synchronous>, transform_indices = @transform_6, window_bounds = array<i64: 640, 128>}, {pipeline_mode = #tpu.pipeline_mode<synchronous>, transform_indices = @transform_7, window_bounds = array<i64: 1, 128>}, {pipeline_mode = #tpu.pipeline_mode<synchronous>, transform_indices = @transform_8, window_bounds = array<i64: 1, 128>}, {pipeline_mode = #tpu.pipeline_mode<synchronous>, transform_indices = @transform_9, window_bounds = array<i64: 640, 128>}, {pipeline_mode = #tpu.pipeline_mode<synchronous>, transform_indices = @transform_10, window_bounds = array<i64: 1, 128>}, {pipeline_mode = #tpu.pipeline_mode<synchronous>, transform_indices = @transform_11, window_bounds = array<i64: 1, 128>}, {pipeline_mode = #tpu.pipeline_mode<synchronous>, transform_indices = @transform_12, window_bounds = array<i64: 128, 128>}, {pipeline_mode = #tpu.pipeline_mode<synchronous>, transform_indices = @transform_13, window_bounds = array<i64: 1, 128>}, {transform_indices = @transform_14, window_bounds = array<i64: 104, 128>}, {transform_indices = @transform_15, window_bounds = array<i64: 104, 128>}]} {
    %c104_i32 = arith.constant 104 : i32
    %0 = arith.muli %arg0, %c104_i32 : i32
    %1 = tpu.assume_multiple %0, 8 : i32
    %2 = arith.index_cast %1 : i32 to index
    %c0 = arith.constant 0 : index
    %3 = vector.load %arg1[%2, %c0] : memref<224x128xf32, #tpu.memory_space<vmem>>, vector<120x128xf32>
    %4 = arith.index_cast %1 : i32 to index
    %c0_0 = arith.constant 0 : index
    %5 = vector.load %arg2[%4, %c0_0] : memref<224x33xf32, #tpu.memory_space<vmem>>, vector<120x33xf32>
    %cst = arith.constant dense<0xFF800000> : vector<120xf32>
    %6 = vector.multi_reduction <maximumf>, %5, %cst [1] : vector<120x33xf32> to vector<120xf32>
    %7 = vector.shape_cast %6 : vector<120xf32> to vector<120x1xf32>
    %8 = vector.broadcast %7 : vector<120x1xf32> to vector<120x33xf32>
    %9 = arith.cmpf oeq, %5, %8 : vector<120x33xf32>
    %10 = arith.extui %9 : vector<120x33xi1> to vector<120x33xi32>
    %11 = arith.sitofp %10 : vector<120x33xi32> to vector<120x33xf32>
    %cst_1 = arith.constant dense<0.000000e+00> : vector<120xf32>
    %12 = vector.multi_reduction <add>, %11, %cst_1 [1] : vector<120x33xf32> to vector<120xf32>
    %13 = vector.shape_cast %12 : vector<120xf32> to vector<120x1xf32>
    %cst_2 = arith.constant 0xFF800000 : f32
    %14 = vector.broadcast %cst_2 : f32 to vector<120x33xf32>
    %15 = arith.select %9, %14, %5 : vector<120x33xi1>, vector<120x33xf32>
    %cst_3 = arith.constant dense<0xFF800000> : vector<120xf32>
    %16 = vector.multi_reduction <maximumf>, %15, %cst_3 [1] : vector<120x33xf32> to vector<120xf32>
    %17 = vector.shape_cast %16 : vector<120xf32> to vector<120x1xf32>
    %cst_4 = arith.constant 1.500000e+00 : f32
    %18 = vector.broadcast %cst_4 : f32 to vector<120x1xf32>
    %19 = arith.cmpf ogt, %13, %18 : vector<120x1xf32>
    %20 = arith.select %19, %7, %17 : vector<120x1xi1>, vector<120x1xf32>
    %cst_5 = arith.constant 9.99999974E-6 : f32
    %21 = vector.broadcast %cst_5 : f32 to vector<120x1xf32>
    %22 = arith.addf %20, %21 : vector<120x1xf32>
    %23 = arith.divf %7, %22 : vector<120x1xf32>
    %24 = arith.cmpf one, %23, %23 : vector<120x1xf32>
    %cst_6 = arith.constant 0.000000e+00 : f32
    %25 = vector.broadcast %cst_6 : f32 to vector<120x1xf32>
    %26 = arith.select %24, %25, %23 : vector<120x1xi1>, vector<120x1xf32>
    %cst_7 = arith.constant 0.000000e+00 : f32
    %cst_8 = arith.constant 4.900000e+01 : f32
    %27 = vector.broadcast %cst_7 : f32 to vector<120x1xf32>
    %28 = arith.maximumf %27, %26 : vector<120x1xf32>
    %29 = vector.broadcast %cst_8 : f32 to vector<120x1xf32>
    %30 = arith.minimumf %29, %28 : vector<120x1xf32>
    %31 = arith.fptosi %30 : vector<120x1xf32> to vector<120x1xi32>
    %32 = tpu.iota {dimensions = array<i32: 1>} : vector<120x64xi32>
    %33 = vector.broadcast %31 : vector<120x1xi32> to vector<120x64xi32>
    %34 = arith.cmpi eq, %32, %33 : vector<120x64xi32>
    %35 = arith.extui %34 : vector<120x64xi1> to vector<120x64xi32>
    %36 = arith.sitofp %35 : vector<120x64xi32> to vector<120x64xf32>
    %37 = arith.truncf %36 : vector<120x64xf32> to vector<120x64xbf16>
    %c0_9 = arith.constant 0 : index
    %c0_10 = arith.constant 0 : index
    %38 = vector.load %arg3[%c0_9, %c0_10] : memref<64x128xbf16, #tpu.memory_space<vmem>>, vector<64x128xbf16>
    %cst_11 = arith.constant dense<0.000000e+00> : vector<120x128xf32>
    %39 = tpu.matmul %37, %38, %cst_11 {dimension_numbers = #tpu.dot_dimension_numbers<[1], [0], [0], [1], [0, 0, 1, 1], [], []>} : vector<120x64xbf16>, vector<64x128xbf16>, vector<120x128xf32> -> vector<120x128xf32>
    %c8_i32 = arith.constant 8 : i32
    %40 = arith.subi %1, %c8_i32 : i32
    %41 = tpu.iota {dimensions = array<i32: 0>} : vector<120x1xi32>
    %42 = vector.broadcast %40 : i32 to vector<120x1xi32>
    %43 = arith.addi %42, %41 : vector<120x1xi32>
    %c0_i32 = arith.constant 0 : i32
    %44 = vector.broadcast %c0_i32 : i32 to vector<120x1xi32>
    %45 = arith.cmpi sge, %43, %44 : vector<120x1xi32>
    %c200_i32 = arith.constant 200 : i32
    %46 = vector.broadcast %c200_i32 : i32 to vector<120x1xi32>
    %47 = arith.cmpi slt, %43, %46 : vector<120x1xi32>
    %48 = arith.andi %45, %47 : vector<120x1xi1>
    %cst_12 = arith.constant 0.000000e+00 : f32
    %49 = vector.shape_cast %48 : vector<120x1xi1> to vector<120x1xi1>
    %50 = vector.broadcast %49 : vector<120x1xi1> to vector<120x128xi1>
    %51 = vector.broadcast %cst_12 : f32 to vector<120x128xf32>
    %52 = arith.select %50, %39, %51 : vector<120x128xi1>, vector<120x128xf32>
    %53 = arith.truncf %3 : vector<120x128xf32> to vector<120x128xbf16>
    %54 = arith.truncf %52 : vector<120x128xf32> to vector<120x128xbf16>
    %55 = tpu.concatenate %53, %54 in 1 : vector<120x128xbf16>, vector<120x128xbf16> -> vector<120x256xbf16>
    %c0_13 = arith.constant 0 : index
    %c0_14 = arith.constant 0 : index
    %56 = vector.load %arg17[%c0_13, %c0_14] : memref<120x256xbf16, #tpu.memory_space<vmem>>, vector<120x256xbf16>
    tpu.vector_store %arg17[%c0_13, %c0_14], %55 {strides = array<i32>} : memref<120x256xbf16, #tpu.memory_space<vmem>>, vector<120x256xbf16>,
    %c4_i32 = arith.constant 4 : i32
    %57 = arith.subi %1, %c4_i32 : i32
    %58 = tpu.iota {dimensions = array<i32: 0>} : vector<112x1xi32>
    %59 = vector.broadcast %57 : i32 to vector<112x1xi32>
    %60 = arith.addi %59, %58 : vector<112x1xi32>
    %c0_i32_15 = arith.constant 0 : i32
    %61 = vector.broadcast %c0_i32_15 : i32 to vector<112x1xi32>
    %62 = arith.cmpi sge, %60, %61 : vector<112x1xi32>
    %c200_i32_16 = arith.constant 200 : i32
    %63 = vector.broadcast %c200_i32_16 : i32 to vector<112x1xi32>
    %64 = arith.cmpi slt, %60, %63 : vector<112x1xi32>
    %65 = arith.andi %62, %64 : vector<112x1xi1>
    %c2 = arith.constant 2 : index
    %c0_17 = arith.constant 0 : index
    %66 = vector.load %arg17[%c2, %c0_17] : memref<120x256xbf16, #tpu.memory_space<vmem>>, vector<112x256xbf16>
    %c0_18 = arith.constant 0 : index
    %c0_19 = arith.constant 0 : index
    %67 = vector.load %arg4[%c0_18, %c0_19] : memref<1280x128xbf16, #tpu.memory_space<vmem>>, vector<256x128xbf16>
    %cst_20 = arith.constant dense<0.000000e+00> : vector<112x128xf32>
    %68 = tpu.matmul %66, %67, %cst_20 {dimension_numbers = #tpu.dot_dimension_numbers<[1], [0], [0], [1], [0, 0, 1, 1], [], []>} : vector<112x256xbf16>, vector<256x128xbf16>, vector<112x128xf32> -> vector<112x128xf32>
    %c3 = arith.constant 3 : index
    %c0_21 = arith.constant 0 : index
    %69 = vector.load %arg17[%c3, %c0_21] : memref<120x256xbf16, #tpu.memory_space<vmem>>, vector<112x256xbf16>
    %c256 = arith.constant 256 : index
    %c0_22 = arith.constant 0 : index
    %70 = vector.load %arg4[%c256, %c0_22] : memref<1280x128xbf16, #tpu.memory_space<vmem>>, vector<256x128xbf16>
    %cst_23 = arith.constant dense<0.000000e+00> : vector<112x128xf32>
    %71 = tpu.matmul %69, %70, %cst_23 {dimension_numbers = #tpu.dot_dimension_numbers<[1], [0], [0], [1], [0, 0, 1, 1], [], []>} : vector<112x256xbf16>, vector<256x128xbf16>, vector<112x128xf32> -> vector<112x128xf32>
    %72 = arith.addf %68, %71 : vector<112x128xf32>
    %c4 = arith.constant 4 : index
    %c0_24 = arith.constant 0 : index
    %73 = vector.load %arg17[%c4, %c0_24] : memref<120x256xbf16, #tpu.memory_space<vmem>>, vector<112x256xbf16>
    %c512 = arith.constant 512 : index
    %c0_25 = arith.constant 0 : index
    %74 = vector.load %arg4[%c512, %c0_25] : memref<1280x128xbf16, #tpu.memory_space<vmem>>, vector<256x128xbf16>
    %cst_26 = arith.constant dense<0.000000e+00> : vector<112x128xf32>
    %75 = tpu.matmul %73, %74, %cst_26 {dimension_numbers = #tpu.dot_dimension_numbers<[1], [0], [0], [1], [0, 0, 1, 1], [], []>} : vector<112x256xbf16>, vector<256x128xbf16>, vector<112x128xf32> -> vector<112x128xf32>
    %76 = arith.addf %72, %75 : vector<112x128xf32>
    %c5 = arith.constant 5 : index
    %c0_27 = arith.constant 0 : index
    %77 = vector.load %arg17[%c5, %c0_27] : memref<120x256xbf16, #tpu.memory_space<vmem>>, vector<112x256xbf16>
    %c768 = arith.constant 768 : index
    %c0_28 = arith.constant 0 : index
    %78 = vector.load %arg4[%c768, %c0_28] : memref<1280x128xbf16, #tpu.memory_space<vmem>>, vector<256x128xbf16>
    %cst_29 = arith.constant dense<0.000000e+00> : vector<112x128xf32>
    %79 = tpu.matmul %77, %78, %cst_29 {dimension_numbers = #tpu.dot_dimension_numbers<[1], [0], [0], [1], [0, 0, 1, 1], [], []>} : vector<112x256xbf16>, vector<256x128xbf16>, vector<112x128xf32> -> vector<112x128xf32>
    %80 = arith.addf %76, %79 : vector<112x128xf32>
    %c6 = arith.constant 6 : index
    %c0_30 = arith.constant 0 : index
    %81 = vector.load %arg17[%c6, %c0_30] : memref<120x256xbf16, #tpu.memory_space<vmem>>, vector<112x256xbf16>
    %c1024 = arith.constant 1024 : index
    %c0_31 = arith.constant 0 : index
    %82 = vector.load %arg4[%c1024, %c0_31] : memref<1280x128xbf16, #tpu.memory_space<vmem>>, vector<256x128xbf16>
    %cst_32 = arith.constant dense<0.000000e+00> : vector<112x128xf32>
    %83 = tpu.matmul %81, %82, %cst_32 {dimension_numbers = #tpu.dot_dimension_numbers<[1], [0], [0], [1], [0, 0, 1, 1], [], []>} : vector<112x256xbf16>, vector<256x128xbf16>, vector<112x128xf32> -> vector<112x128xf32>
    %84 = arith.addf %80, %83 : vector<112x128xf32>
    %c0_33 = arith.constant 0 : index
    %c0_34 = arith.constant 0 : index
    %85 = vector.load %arg5[%c0_33, %c0_34] : memref<1x128xf32, #tpu.memory_space<vmem>>, vector<1x128xf32>
    %86 = vector.broadcast %85 : vector<1x128xf32> to vector<112x128xf32>
    %87 = arith.mulf %84, %86 : vector<112x128xf32>
    %c0_35 = arith.constant 0 : index
    %c0_36 = arith.constant 0 : index
    %88 = vector.load %arg6[%c0_35, %c0_36] : memref<1x128xf32, #tpu.memory_space<vmem>>, vector<1x128xf32>
    %89 = vector.broadcast %88 : vector<1x128xf32> to vector<112x128xf32>
    %90 = arith.addf %87, %89 : vector<112x128xf32>
    %cst_37 = arith.constant 0.000000e+00 : f32
    %91 = vector.broadcast %cst_37 : f32 to vector<112x128xf32>
    %92 = arith.maximumf %90, %91 : vector<112x128xf32>
    %cst_38 = arith.constant 0.000000e+00 : f32
    %93 = vector.shape_cast %65 : vector<112x1xi1> to vector<112x1xi1>
    %94 = vector.broadcast %93 : vector<112x1xi1> to vector<112x128xi1>
    %95 = vector.broadcast %cst_38 : f32 to vector<112x128xf32>
    %96 = arith.select %94, %92, %95 : vector<112x128xi1>, vector<112x128xf32>
    %97 = arith.truncf %96 : vector<112x128xf32> to vector<112x128xbf16>
    %c0_39 = arith.constant 0 : index
    %c0_40 = arith.constant 0 : index
    %98 = vector.load %arg18[%c0_39, %c0_40] : memref<112x128xbf16, #tpu.memory_space<vmem>>, vector<112x128xbf16>
    tpu.vector_store %arg18[%c0_39, %c0_40], %97 {strides = array<i32>} : memref<112x128xbf16, #tpu.memory_space<vmem>>, vector<112x128xbf16>,
    %c2_i32 = arith.constant 2 : i32
    %99 = arith.subi %1, %c2_i32 : i32
    %100 = tpu.iota {dimensions = array<i32: 0>} : vector<108x1xi32>
    %101 = vector.broadcast %99 : i32 to vector<108x1xi32>
    %102 = arith.addi %101, %100 : vector<108x1xi32>
    %c0_i32_41 = arith.constant 0 : i32
    %103 = vector.broadcast %c0_i32_41 : i32 to vector<108x1xi32>
    %104 = arith.cmpi sge, %102, %103 : vector<108x1xi32>
    %c200_i32_42 = arith.constant 200 : i32
    %105 = vector.broadcast %c200_i32_42 : i32 to vector<108x1xi32>
    %106 = arith.cmpi slt, %102, %105 : vector<108x1xi32>
    %107 = arith.andi %104, %106 : vector<108x1xi1>
    %c0_43 = arith.constant 0 : index
    %c0_44 = arith.constant 0 : index
    %108 = vector.load %arg18[%c0_43, %c0_44] : memref<112x128xbf16, #tpu.memory_space<vmem>>, vector<108x128xbf16>
    %c1 = arith.constant 1 : index
    %c0_45 = arith.constant 0 : index
    %109 = vector.load %arg18[%c1, %c0_45] : memref<112x128xbf16, #tpu.memory_space<vmem>>, vector<108x128xbf16>
    %110 = tpu.concatenate %108, %109 in 1 : vector<108x128xbf16>, vector<108x128xbf16> -> vector<108x256xbf16>
    %c0_46 = arith.constant 0 : index
    %c0_47 = arith.constant 0 : index
    %111 = vector.load %arg7[%c0_46, %c0_47] : memref<640x128xbf16, #tpu.memory_space<vmem>>, vector<256x128xbf16>
    %cst_48 = arith.constant dense<0.000000e+00> : vector<108x128xf32>
    %112 = tpu.matmul %110, %111, %cst_48 {dimension_numbers = #tpu.dot_dimension_numbers<[1], [0], [0], [1], [0, 0, 1, 1], [], []>} : vector<108x256xbf16>, vector<256x128xbf16>, vector<108x128xf32> -> vector<108x128xf32>
    %c2_49 = arith.constant 2 : index
    %c0_50 = arith.constant 0 : index
    %113 = vector.load %arg18[%c2_49, %c0_50] : memref<112x128xbf16, #tpu.memory_space<vmem>>, vector<108x128xbf16>
    %c3_51 = arith.constant 3 : index
    %c0_52 = arith.constant 0 : index
    %114 = vector.load %arg18[%c3_51, %c0_52] : memref<112x128xbf16, #tpu.memory_space<vmem>>, vector<108x128xbf16>
    %115 = tpu.concatenate %113, %114 in 1 : vector<108x128xbf16>, vector<108x128xbf16> -> vector<108x256xbf16>
    %c256_53 = arith.constant 256 : index
    %c0_54 = arith.constant 0 : index
    %116 = vector.load %arg7[%c256_53, %c0_54] : memref<640x128xbf16, #tpu.memory_space<vmem>>, vector<256x128xbf16>
    %cst_55 = arith.constant dense<0.000000e+00> : vector<108x128xf32>
    %117 = tpu.matmul %115, %116, %cst_55 {dimension_numbers = #tpu.dot_dimension_numbers<[1], [0], [0], [1], [0, 0, 1, 1], [], []>} : vector<108x256xbf16>, vector<256x128xbf16>, vector<108x128xf32> -> vector<108x128xf32>
    %118 = arith.addf %112, %117 : vector<108x128xf32>
    %c4_56 = arith.constant 4 : index
    %c0_57 = arith.constant 0 : index
    %119 = vector.load %arg18[%c4_56, %c0_57] : memref<112x128xbf16, #tpu.memory_space<vmem>>, vector<108x128xbf16>
    %c512_58 = arith.constant 512 : index
    %c0_59 = arith.constant 0 : index
    %120 = vector.load %arg7[%c512_58, %c0_59] : memref<640x128xbf16, #tpu.memory_space<vmem>>, vector<128x128xbf16>
    %cst_60 = arith.constant dense<0.000000e+00> : vector<108x128xf32>
    %121 = tpu.matmul %119, %120, %cst_60 {dimension_numbers = #tpu.dot_dimension_numbers<[1], [0], [0], [1], [0, 0, 1, 1], [], []>} : vector<108x128xbf16>, vector<128x128xbf16>, vector<108x128xf32> -> vector<108x128xf32>
    %122 = arith.addf %118, %121 : vector<108x128xf32>
    %c0_61 = arith.constant 0 : index
    %c0_62 = arith.constant 0 : index
    %123 = vector.load %arg8[%c0_61, %c0_62] : memref<1x128xf32, #tpu.memory_space<vmem>>, vector<1x128xf32>
    %124 = vector.broadcast %123 : vector<1x128xf32> to vector<108x128xf32>
    %125 = arith.mulf %122, %124 : vector<108x128xf32>
    %c0_63 = arith.constant 0 : index
    %c0_64 = arith.constant 0 : index
    %126 = vector.load %arg9[%c0_63, %c0_64] : memref<1x128xf32, #tpu.memory_space<vmem>>, vector<1x128xf32>
    %127 = vector.broadcast %126 : vector<1x128xf32> to vector<108x128xf32>
    %128 = arith.addf %125, %127 : vector<108x128xf32>
    %cst_65 = arith.constant 0.000000e+00 : f32
    %129 = vector.broadcast %cst_65 : f32 to vector<108x128xf32>
    %130 = arith.maximumf %128, %129 : vector<108x128xf32>
    %cst_66 = arith.constant 0.000000e+00 : f32
    %131 = vector.shape_cast %107 : vector<108x1xi1> to vector<108x1xi1>
    %132 = vector.broadcast %131 : vector<108x1xi1> to vector<108x128xi1>
    %133 = vector.broadcast %cst_66 : f32 to vector<108x128xf32>
    %134 = arith.select %132, %130, %133 : vector<108x128xi1>, vector<108x128xf32>
    %135 = arith.truncf %134 : vector<108x128xf32> to vector<108x128xbf16>
    %c0_67 = arith.constant 0 : index
    %c0_68 = arith.constant 0 : index
    %136 = vector.load %arg19[%c0_67, %c0_68] : memref<112x128xbf16, #tpu.memory_space<vmem>>, vector<108x128xbf16>
    tpu.vector_store %arg19[%c0_67, %c0_68], %135 {strides = array<i32>} : memref<112x128xbf16, #tpu.memory_space<vmem>>, vector<108x128xbf16>,
    %c0_69 = arith.constant 0 : index
    %c0_70 = arith.constant 0 : index
    %137 = vector.load %arg19[%c0_69, %c0_70] : memref<112x128xbf16, #tpu.memory_space<vmem>>, vector<104x128xbf16>
    %c1_71 = arith.constant 1 : index
    %c0_72 = arith.constant 0 : index
    %138 = vector.load %arg19[%c1_71, %c0_72] : memref<112x128xbf16, #tpu.memory_space<vmem>>, vector<104x128xbf16>
    %139 = tpu.concatenate %137, %138 in 1 : vector<104x128xbf16>, vector<104x128xbf16> -> vector<104x256xbf16>
    %c0_73 = arith.constant 0 : index
    %c0_74 = arith.constant 0 : index
    %140 = vector.load %arg10[%c0_73, %c0_74] : memref<640x128xbf16, #tpu.memory_space<vmem>>, vector<256x128xbf16>
    %cst_75 = arith.constant dense<0.000000e+00> : vector<104x128xf32>
    %141 = tpu.matmul %139, %140, %cst_75 {dimension_numbers = #tpu.dot_dimension_numbers<[1], [0], [0], [1], [0, 0, 1, 1], [], []>} : vector<104x256xbf16>, vector<256x128xbf16>, vector<104x128xf32> -> vector<104x128xf32>
    %c2_76 = arith.constant 2 : index
    %c0_77 = arith.constant 0 : index
    %142 = vector.load %arg19[%c2_76, %c0_77] : memref<112x128xbf16, #tpu.memory_space<vmem>>, vector<104x128xbf16>
    %c3_78 = arith.constant 3 : index
    %c0_79 = arith.constant 0 : index
    %143 = vector.load %arg19[%c3_78, %c0_79] : memref<112x128xbf16, #tpu.memory_space<vmem>>, vector<104x128xbf16>
    %144 = tpu.concatenate %142, %143 in 1 : vector<104x128xbf16>, vector<104x128xbf16> -> vector<104x256xbf16>
    %c256_80 = arith.constant 256 : index
    %c0_81 = arith.constant 0 : index
    %145 = vector.load %arg10[%c256_80, %c0_81] : memref<640x128xbf16, #tpu.memory_space<vmem>>, vector<256x128xbf16>
    %cst_82 = arith.constant dense<0.000000e+00> : vector<104x128xf32>
    %146 = tpu.matmul %144, %145, %cst_82 {dimension_numbers = #tpu.dot_dimension_numbers<[1], [0], [0], [1], [0, 0, 1, 1], [], []>} : vector<104x256xbf16>, vector<256x128xbf16>, vector<104x128xf32> -> vector<104x128xf32>
    %147 = arith.addf %141, %146 : vector<104x128xf32>
    %c4_83 = arith.constant 4 : index
    %c0_84 = arith.constant 0 : index
    %148 = vector.load %arg19[%c4_83, %c0_84] : memref<112x128xbf16, #tpu.memory_space<vmem>>, vector<104x128xbf16>
    %c512_85 = arith.constant 512 : index
    %c0_86 = arith.constant 0 : index
    %149 = vector.load %arg10[%c512_85, %c0_86] : memref<640x128xbf16, #tpu.memory_space<vmem>>, vector<128x128xbf16>
    %cst_87 = arith.constant dense<0.000000e+00> : vector<104x128xf32>
    %150 = tpu.matmul %148, %149, %cst_87 {dimension_numbers = #tpu.dot_dimension_numbers<[1], [0], [0], [1], [0, 0, 1, 1], [], []>} : vector<104x128xbf16>, vector<128x128xbf16>, vector<104x128xf32> -> vector<104x128xf32>
    %151 = arith.addf %147, %150 : vector<104x128xf32>
    %c0_88 = arith.constant 0 : index
    %c0_89 = arith.constant 0 : index
    %152 = vector.load %arg11[%c0_88, %c0_89] : memref<1x128xf32, #tpu.memory_space<vmem>>, vector<1x128xf32>
    %153 = vector.broadcast %152 : vector<1x128xf32> to vector<104x128xf32>
    %154 = arith.mulf %151, %153 : vector<104x128xf32>
    %c0_90 = arith.constant 0 : index
    %c0_91 = arith.constant 0 : index
    %155 = vector.load %arg12[%c0_90, %c0_91] : memref<1x128xf32, #tpu.memory_space<vmem>>, vector<1x128xf32>
    %156 = vector.broadcast %155 : vector<1x128xf32> to vector<104x128xf32>
    %157 = arith.addf %154, %156 : vector<104x128xf32>
    %158 = arith.truncf %157 : vector<104x128xf32> to vector<104x128xbf16>
    %c0_92 = arith.constant 0 : index
    %c0_93 = arith.constant 0 : index
    %159 = vector.load %arg13[%c0_92, %c0_93] : memref<128x128xbf16, #tpu.memory_space<vmem>>, vector<128x128xbf16>
    %cst_94 = arith.constant dense<0.000000e+00> : vector<104x128xf32>
    %160 = tpu.matmul %158, %159, %cst_94 {dimension_numbers = #tpu.dot_dimension_numbers<[1], [0], [0], [1], [0, 0, 1, 1], [], []>} : vector<104x128xbf16>, vector<128x128xbf16>, vector<104x128xf32> -> vector<104x128xf32>
    %c0_95 = arith.constant 0 : index
    %c0_96 = arith.constant 0 : index
    %161 = vector.load %arg14[%c0_95, %c0_96] : memref<1x128xf32, #tpu.memory_space<vmem>>, vector<1x128xf32>
    %162 = vector.broadcast %161 : vector<1x128xf32> to vector<104x128xf32>
    %163 = arith.addf %160, %162 : vector<104x128xf32>
    %c0_97 = arith.constant 0 : index
    %c0_98 = arith.constant 0 : index
    %164 = vector.load %arg15[%c0_97, %c0_98] : memref<104x128xf32, #tpu.memory_space<vmem>>, vector<104x128xf32>
    tpu.vector_store %arg15[%c0_97, %c0_98], %163 {strides = array<i32>} : memref<104x128xf32, #tpu.memory_space<vmem>>, vector<104x128xf32>,
    %cst_99 = arith.constant dense<0xFF800000> : vector<104xf32>
    %165 = vector.multi_reduction <maximumf>, %163, %cst_99 [1] : vector<104x128xf32> to vector<104xf32>
    %166 = vector.shape_cast %165 : vector<104xf32> to vector<104x1xf32>
    %167 = vector.broadcast %166 : vector<104x1xf32> to vector<104x128xf32>
    %168 = arith.subf %163, %167 : vector<104x128xf32>
    %169 = math.exp %168 : vector<104x128xf32>
    %cst_100 = arith.constant dense<0.000000e+00> : vector<104xf32>
    %170 = vector.multi_reduction <add>, %169, %cst_100 [1] : vector<104x128xf32> to vector<104xf32>
    %171 = vector.shape_cast %170 : vector<104xf32> to vector<104x1xf32>
    %172 = math.log %171 : vector<104x1xf32>
    %173 = arith.addf %166, %172 : vector<104x1xf32>
    %174 = vector.broadcast %173 : vector<104x1xf32> to vector<104x128xf32>
    %175 = arith.subf %163, %174 : vector<104x128xf32>
    %c0_101 = arith.constant 0 : index
    %c0_102 = arith.constant 0 : index
    %176 = vector.load %arg16[%c0_101, %c0_102] : memref<104x128xf32, #tpu.memory_space<vmem>>, vector<104x128xf32>
    tpu.vector_store %arg16[%c0_101, %c0_102], %175 {strides = array<i32>} : memref<104x128xf32, #tpu.memory_space<vmem>>, vector<104x128xf32>,
    return
  }
  func.func @transform_0(%arg0: i32) -> (i32, i32) {
    %c0_i32 = arith.constant 0 : i32
    %c0_i32_0 = arith.constant 0 : i32
    %c0_i32_1 = arith.constant 0 : i32
    return %c0_i32, %c0_i32_0 : i32, i32
  }
  func.func @transform_1(%arg0: i32) -> (i32, i32) {
    %c0_i32 = arith.constant 0 : i32
    %c0_i32_0 = arith.constant 0 : i32
    %c0_i32_1 = arith.constant 0 : i32
    return %c0_i32, %c0_i32_0 : i32, i32
  }
  func.func @transform_2(%arg0: i32) -> (i32, i32) {
    %c0_i32 = arith.constant 0 : i32
    %c0_i32_0 = arith.constant 0 : i32
    %c0_i32_1 = arith.constant 0 : i32
    return %c0_i32, %c0_i32_0 : i32, i32
  }
  func.func @transform_3(%arg0: i32) -> (i32, i32) {
    %c0_i32 = arith.constant 0 : i32
    %c0_i32_0 = arith.constant 0 : i32
    %c0_i32_1 = arith.constant 0 : i32
    return %c0_i32, %c0_i32_0 : i32, i32
  }
  func.func @transform_4(%arg0: i32) -> (i32, i32) {
    %c0_i32 = arith.constant 0 : i32
    %c0_i32_0 = arith.constant 0 : i32
    %c0_i32_1 = arith.constant 0 : i32
    return %c0_i32, %c0_i32_0 : i32, i32
  }
  func.func @transform_5(%arg0: i32) -> (i32, i32) {
    %c0_i32 = arith.constant 0 : i32
    %c0_i32_0 = arith.constant 0 : i32
    %c0_i32_1 = arith.constant 0 : i32
    return %c0_i32, %c0_i32_0 : i32, i32
  }
  func.func @transform_6(%arg0: i32) -> (i32, i32) {
    %c0_i32 = arith.constant 0 : i32
    %c0_i32_0 = arith.constant 0 : i32
    %c0_i32_1 = arith.constant 0 : i32
    return %c0_i32, %c0_i32_0 : i32, i32
  }
  func.func @transform_7(%arg0: i32) -> (i32, i32) {
    %c0_i32 = arith.constant 0 : i32
    %c0_i32_0 = arith.constant 0 : i32
    %c0_i32_1 = arith.constant 0 : i32
    return %c0_i32, %c0_i32_0 : i32, i32
  }
  func.func @transform_8(%arg0: i32) -> (i32, i32) {
    %c0_i32 = arith.constant 0 : i32
    %c0_i32_0 = arith.constant 0 : i32
    %c0_i32_1 = arith.constant 0 : i32
    return %c0_i32, %c0_i32_0 : i32, i32
  }
  func.func @transform_9(%arg0: i32) -> (i32, i32) {
    %c0_i32 = arith.constant 0 : i32
    %c0_i32_0 = arith.constant 0 : i32
    %c0_i32_1 = arith.constant 0 : i32
    return %c0_i32, %c0_i32_0 : i32, i32
  }
  func.func @transform_10(%arg0: i32) -> (i32, i32) {
    %c0_i32 = arith.constant 0 : i32
    %c0_i32_0 = arith.constant 0 : i32
    %c0_i32_1 = arith.constant 0 : i32
    return %c0_i32, %c0_i32_0 : i32, i32
  }
  func.func @transform_11(%arg0: i32) -> (i32, i32) {
    %c0_i32 = arith.constant 0 : i32
    %c0_i32_0 = arith.constant 0 : i32
    %c0_i32_1 = arith.constant 0 : i32
    return %c0_i32, %c0_i32_0 : i32, i32
  }
  func.func @transform_12(%arg0: i32) -> (i32, i32) {
    %c0_i32 = arith.constant 0 : i32
    %c0_i32_0 = arith.constant 0 : i32
    %c0_i32_1 = arith.constant 0 : i32
    return %c0_i32, %c0_i32_0 : i32, i32
  }
  func.func @transform_13(%arg0: i32) -> (i32, i32) {
    %c0_i32 = arith.constant 0 : i32
    %c0_i32_0 = arith.constant 0 : i32
    %c0_i32_1 = arith.constant 0 : i32
    return %c0_i32, %c0_i32_0 : i32, i32
  }
  func.func @transform_14(%arg0: i32) -> (i32, i32) {
    %c0_i32 = arith.constant 0 : i32
    %c0_i32_0 = arith.constant 0 : i32
    return %arg0, %c0_i32 : i32, i32
  }
  func.func @transform_15(%arg0: i32) -> (i32, i32) {
    %c0_i32 = arith.constant 0 : i32
    %c0_i32_0 = arith.constant 0 : i32
    return %arg0, %c0_i32 : i32, i32
  }
}

module attributes {stable_mosaic.version = 11 : i64} {
  func.func @_cnn_decoder2_kernel(%arg0: i32, %arg1: memref<224x128xf32, #tpu.memory_space<vmem>>, %arg2: memref<224x33xf32, #tpu.memory_space<vmem>>, %arg3: memref<64x128xbf16, #tpu.memory_space<vmem>>, %arg4: memref<1280x128xbf16, #tpu.memory_space<vmem>>, %arg5: memref<1x128xf32, #tpu.memory_space<vmem>>, %arg6: memref<1x128xf32, #tpu.memory_space<vmem>>, %arg7: memref<640x128xbf16, #tpu.memory_space<vmem>>, %arg8: memref<1x128xf32, #tpu.memory_space<vmem>>, %arg9: memref<1x128xf32, #tpu.memory_space<vmem>>, %arg10: memref<640x128xbf16, #tpu.memory_space<vmem>>, %arg11: memref<1x128xf32, #tpu.memory_space<vmem>>, %arg12: memref<1x128xf32, #tpu.memory_space<vmem>>, %arg13: memref<128x128xbf16, #tpu.memory_space<vmem>>, %arg14: memref<1x128xf32, #tpu.memory_space<vmem>>, %arg15: memref<104x128xf32, #tpu.memory_space<vmem>>, %arg16: memref<104x128xf32, #tpu.memory_space<vmem>>, %arg17: memref<120x256xbf16, #tpu.memory_space<vmem>>, %arg18: memref<112x128xbf16, #tpu.memory_space<vmem>>, %arg19: memref<112x128xbf16, #tpu.memory_space<vmem>>) attributes {dimension_semantics = [#tpu.dimension_semantics<parallel>], iteration_bounds = array<i64: 2>, scalar_prefetch = 0 : i64, scratch_operands = 3 : i64, tpu.core_type = #tpu.core_type<tc>, window_params = [{pipeline_mode = #tpu.pipeline_mode<synchronous>, transform_indices = @transform_0, window_bounds = array<i64: 224, 128>}, {pipeline_mode = #tpu.pipeline_mode<synchronous>, transform_indices = @transform_1, window_bounds = array<i64: 224, 33>}, {pipeline_mode = #tpu.pipeline_mode<synchronous>, transform_indices = @transform_2, window_bounds = array<i64: 64, 128>}, {pipeline_mode = #tpu.pipeline_mode<synchronous>, transform_indices = @transform_3, window_bounds = array<i64: 1280, 128>}, {pipeline_mode = #tpu.pipeline_mode<synchronous>, transform_indices = @transform_4, window_bounds = array<i64: 1, 128>}, {pipeline_mode = #tpu.pipeline_mode<synchronous>, transform_indices = @transform_5, window_bounds = array<i64: 1, 128>}, {pipeline_mode = #tpu.pipeline_mode<synchronous>, transform_indices = @transform_6, window_bounds = array<i64: 640, 128>}, {pipeline_mode = #tpu.pipeline_mode<synchronous>, transform_indices = @transform_7, window_bounds = array<i64: 1, 128>}, {pipeline_mode = #tpu.pipeline_mode<synchronous>, transform_indices = @transform_8, window_bounds = array<i64: 1, 128>}, {pipeline_mode = #tpu.pipeline_mode<synchronous>, transform_indices = @transform_9, window_bounds = array<i64: 640, 128>}, {pipeline_mode = #tpu.pipeline_mode<synchronous>, transform_indices = @transform_10, window_bounds = array<i64: 1, 128>}, {pipeline_mode = #tpu.pipeline_mode<synchronous>, transform_indices = @transform_11, window_bounds = array<i64: 1, 128>}, {pipeline_mode = #tpu.pipeline_mode<synchronous>, transform_indices = @transform_12, window_bounds = array<i64: 128, 128>}, {pipeline_mode = #tpu.pipeline_mode<synchronous>, transform_indices = @transform_13, window_bounds = array<i64: 1, 128>}, {transform_indices = @transform_14, window_bounds = array<i64: 104, 128>}, {transform_indices = @transform_15, window_bounds = array<i64: 104, 128>}]} {
    %c104_i32 = arith.constant 104 : i32
    %0 = arith.muli %arg0, %c104_i32 : i32
    %1 = tpu.assume_multiple %0, 8 : i32
    %2 = arith.index_cast %1 : i32 to index
    %c0 = arith.constant 0 : index
    %3 = vector.load %arg1[%2, %c0] : memref<224x128xf32, #tpu.memory_space<vmem>>, vector<120x128xf32>
    %4 = arith.index_cast %1 : i32 to index
    %c0_0 = arith.constant 0 : index
    %5 = vector.load %arg2[%4, %c0_0] : memref<224x33xf32, #tpu.memory_space<vmem>>, vector<120x33xf32>
    %cst = arith.constant dense<0xFF800000> : vector<120xf32>
    %6 = vector.multi_reduction <maximumf>, %5, %cst [1] : vector<120x33xf32> to vector<120xf32>
    %7 = vector.shape_cast %6 : vector<120xf32> to vector<120x1xf32>
    %8 = vector.broadcast %7 : vector<120x1xf32> to vector<120x33xf32>
    %9 = arith.cmpf oeq, %5, %8 : vector<120x33xf32>
    %10 = arith.extui %9 : vector<120x33xi1> to vector<120x33xi32>
    %11 = arith.sitofp %10 : vector<120x33xi32> to vector<120x33xf32>
    %cst_1 = arith.constant dense<0.000000e+00> : vector<120xf32>
    %12 = vector.multi_reduction <add>, %11, %cst_1 [1] : vector<120x33xf32> to vector<120xf32>
    %13 = vector.shape_cast %12 : vector<120xf32> to vector<120x1xf32>
    %cst_2 = arith.constant 0xFF800000 : f32
    %14 = vector.broadcast %cst_2 : f32 to vector<120x33xf32>
    %15 = arith.select %9, %14, %5 : vector<120x33xi1>, vector<120x33xf32>
    %cst_3 = arith.constant dense<0xFF800000> : vector<120xf32>
    %16 = vector.multi_reduction <maximumf>, %15, %cst_3 [1] : vector<120x33xf32> to vector<120xf32>
    %17 = vector.shape_cast %16 : vector<120xf32> to vector<120x1xf32>
    %cst_4 = arith.constant 1.500000e+00 : f32
    %18 = vector.broadcast %cst_4 : f32 to vector<120x1xf32>
    %19 = arith.cmpf ogt, %13, %18 : vector<120x1xf32>
    %20 = arith.select %19, %7, %17 : vector<120x1xi1>, vector<120x1xf32>
    %cst_5 = arith.constant 9.99999974E-6 : f32
    %21 = vector.broadcast %cst_5 : f32 to vector<120x1xf32>
    %22 = arith.addf %20, %21 : vector<120x1xf32>
    %23 = arith.divf %7, %22 : vector<120x1xf32>
    %24 = arith.cmpf one, %23, %23 : vector<120x1xf32>
    %cst_6 = arith.constant 0.000000e+00 : f32
    %25 = vector.broadcast %cst_6 : f32 to vector<120x1xf32>
    %26 = arith.select %24, %25, %23 : vector<120x1xi1>, vector<120x1xf32>
    %cst_7 = arith.constant 0.000000e+00 : f32
    %cst_8 = arith.constant 4.900000e+01 : f32
    %27 = vector.broadcast %cst_7 : f32 to vector<120x1xf32>
    %28 = arith.maximumf %27, %26 : vector<120x1xf32>
    %29 = vector.broadcast %cst_8 : f32 to vector<120x1xf32>
    %30 = arith.minimumf %29, %28 : vector<120x1xf32>
    %31 = arith.fptosi %30 : vector<120x1xf32> to vector<120x1xi32>
    %32 = tpu.iota {dimensions = array<i32: 1>} : vector<120x64xi32>
    %33 = vector.broadcast %31 : vector<120x1xi32> to vector<120x64xi32>
    %34 = arith.cmpi eq, %32, %33 : vector<120x64xi32>
    %35 = arith.extui %34 : vector<120x64xi1> to vector<120x64xi32>
    %36 = arith.sitofp %35 : vector<120x64xi32> to vector<120x64xf32>
    %37 = arith.truncf %36 : vector<120x64xf32> to vector<120x64xbf16>
    %c0_9 = arith.constant 0 : index
    %c0_10 = arith.constant 0 : index
    %38 = vector.load %arg3[%c0_9, %c0_10] : memref<64x128xbf16, #tpu.memory_space<vmem>>, vector<64x128xbf16>
    %cst_11 = arith.constant dense<0.000000e+00> : vector<120x128xf32>
    %39 = tpu.matmul %37, %38, %cst_11 {dimension_numbers = #tpu.dot_dimension_numbers<[1], [0], [0], [1], [0, 0, 1, 1], [], []>} : vector<120x64xbf16>, vector<64x128xbf16>, vector<120x128xf32> -> vector<120x128xf32>
    %c8_i32 = arith.constant 8 : i32
    %40 = arith.subi %1, %c8_i32 : i32
    %41 = tpu.iota {dimensions = array<i32: 0>} : vector<120x1xi32>
    %42 = vector.broadcast %40 : i32 to vector<120x1xi32>
    %43 = arith.addi %42, %41 : vector<120x1xi32>
    %c0_i32 = arith.constant 0 : i32
    %44 = vector.broadcast %c0_i32 : i32 to vector<120x1xi32>
    %45 = arith.cmpi sge, %43, %44 : vector<120x1xi32>
    %c200_i32 = arith.constant 200 : i32
    %46 = vector.broadcast %c200_i32 : i32 to vector<120x1xi32>
    %47 = arith.cmpi slt, %43, %46 : vector<120x1xi32>
    %48 = arith.andi %45, %47 : vector<120x1xi1>
    %cst_12 = arith.constant 0.000000e+00 : f32
    %49 = vector.shape_cast %48 : vector<120x1xi1> to vector<120x1xi1>
    %50 = vector.broadcast %49 : vector<120x1xi1> to vector<120x128xi1>
    %51 = vector.broadcast %cst_12 : f32 to vector<120x128xf32>
    %52 = arith.select %50, %39, %51 : vector<120x128xi1>, vector<120x128xf32>
    %53 = arith.truncf %3 : vector<120x128xf32> to vector<120x128xbf16>
    %54 = arith.truncf %52 : vector<120x128xf32> to vector<120x128xbf16>
    %55 = tpu.concatenate %53, %54 in 1 : vector<120x128xbf16>, vector<120x128xbf16> -> vector<120x256xbf16>
    %c0_13 = arith.constant 0 : index
    %c0_14 = arith.constant 0 : index
    %56 = vector.load %arg17[%c0_13, %c0_14] : memref<120x256xbf16, #tpu.memory_space<vmem>>, vector<120x256xbf16>
    tpu.vector_store %arg17[%c0_13, %c0_14], %55 {strides = array<i32>} : memref<120x256xbf16, #tpu.memory_space<vmem>>, vector<120x256xbf16>,
    %c4_i32 = arith.constant 4 : i32
    %57 = arith.subi %1, %c4_i32 : i32
    %58 = tpu.iota {dimensions = array<i32: 0>} : vector<112x1xi32>
    %59 = vector.broadcast %57 : i32 to vector<112x1xi32>
    %60 = arith.addi %59, %58 : vector<112x1xi32>
    %c0_i32_15 = arith.constant 0 : i32
    %61 = vector.broadcast %c0_i32_15 : i32 to vector<112x1xi32>
    %62 = arith.cmpi sge, %60, %61 : vector<112x1xi32>
    %c200_i32_16 = arith.constant 200 : i32
    %63 = vector.broadcast %c200_i32_16 : i32 to vector<112x1xi32>
    %64 = arith.cmpi slt, %60, %63 : vector<112x1xi32>
    %65 = arith.andi %62, %64 : vector<112x1xi1>
    %c2 = arith.constant 2 : index
    %c0_17 = arith.constant 0 : index
    %66 = vector.load %arg17[%c2, %c0_17] : memref<120x256xbf16, #tpu.memory_space<vmem>>, vector<112x256xbf16>
    %c0_18 = arith.constant 0 : index
    %c0_19 = arith.constant 0 : index
    %67 = vector.load %arg4[%c0_18, %c0_19] : memref<1280x128xbf16, #tpu.memory_space<vmem>>, vector<256x128xbf16>
    %cst_20 = arith.constant dense<0.000000e+00> : vector<112x128xf32>
    %68 = tpu.matmul %66, %67, %cst_20 {dimension_numbers = #tpu.dot_dimension_numbers<[1], [0], [0], [1], [0, 0, 1, 1], [], []>} : vector<112x256xbf16>, vector<256x128xbf16>, vector<112x128xf32> -> vector<112x128xf32>
    %c3 = arith.constant 3 : index
    %c0_21 = arith.constant 0 : index
    %69 = vector.load %arg17[%c3, %c0_21] : memref<120x256xbf16, #tpu.memory_space<vmem>>, vector<112x256xbf16>
    %c256 = arith.constant 256 : index
    %c0_22 = arith.constant 0 : index
    %70 = vector.load %arg4[%c256, %c0_22] : memref<1280x128xbf16, #tpu.memory_space<vmem>>, vector<256x128xbf16>
    %cst_23 = arith.constant dense<0.000000e+00> : vector<112x128xf32>
    %71 = tpu.matmul %69, %70, %cst_23 {dimension_numbers = #tpu.dot_dimension_numbers<[1], [0], [0], [1], [0, 0, 1, 1], [], []>} : vector<112x256xbf16>, vector<256x128xbf16>, vector<112x128xf32> -> vector<112x128xf32>
    %72 = arith.addf %68, %71 : vector<112x128xf32>
    %c4 = arith.constant 4 : index
    %c0_24 = arith.constant 0 : index
    %73 = vector.load %arg17[%c4, %c0_24] : memref<120x256xbf16, #tpu.memory_space<vmem>>, vector<112x256xbf16>
    %c512 = arith.constant 512 : index
    %c0_25 = arith.constant 0 : index
    %74 = vector.load %arg4[%c512, %c0_25] : memref<1280x128xbf16, #tpu.memory_space<vmem>>, vector<256x128xbf16>
    %cst_26 = arith.constant dense<0.000000e+00> : vector<112x128xf32>
    %75 = tpu.matmul %73, %74, %cst_26 {dimension_numbers = #tpu.dot_dimension_numbers<[1], [0], [0], [1], [0, 0, 1, 1], [], []>} : vector<112x256xbf16>, vector<256x128xbf16>, vector<112x128xf32> -> vector<112x128xf32>
    %76 = arith.addf %72, %75 : vector<112x128xf32>
    %c5 = arith.constant 5 : index
    %c0_27 = arith.constant 0 : index
    %77 = vector.load %arg17[%c5, %c0_27] : memref<120x256xbf16, #tpu.memory_space<vmem>>, vector<112x256xbf16>
    %c768 = arith.constant 768 : index
    %c0_28 = arith.constant 0 : index
    %78 = vector.load %arg4[%c768, %c0_28] : memref<1280x128xbf16, #tpu.memory_space<vmem>>, vector<256x128xbf16>
    %cst_29 = arith.constant dense<0.000000e+00> : vector<112x128xf32>
    %79 = tpu.matmul %77, %78, %cst_29 {dimension_numbers = #tpu.dot_dimension_numbers<[1], [0], [0], [1], [0, 0, 1, 1], [], []>} : vector<112x256xbf16>, vector<256x128xbf16>, vector<112x128xf32> -> vector<112x128xf32>
    %80 = arith.addf %76, %79 : vector<112x128xf32>
    %c6 = arith.constant 6 : index
    %c0_30 = arith.constant 0 : index
    %81 = vector.load %arg17[%c6, %c0_30] : memref<120x256xbf16, #tpu.memory_space<vmem>>, vector<112x256xbf16>
    %c1024 = arith.constant 1024 : index
    %c0_31 = arith.constant 0 : index
    %82 = vector.load %arg4[%c1024, %c0_31] : memref<1280x128xbf16, #tpu.memory_space<vmem>>, vector<256x128xbf16>
    %cst_32 = arith.constant dense<0.000000e+00> : vector<112x128xf32>
    %83 = tpu.matmul %81, %82, %cst_32 {dimension_numbers = #tpu.dot_dimension_numbers<[1], [0], [0], [1], [0, 0, 1, 1], [], []>} : vector<112x256xbf16>, vector<256x128xbf16>, vector<112x128xf32> -> vector<112x128xf32>
    %84 = arith.addf %80, %83 : vector<112x128xf32>
    %c0_33 = arith.constant 0 : index
    %c0_34 = arith.constant 0 : index
    %85 = vector.load %arg5[%c0_33, %c0_34] : memref<1x128xf32, #tpu.memory_space<vmem>>, vector<1x128xf32>
    %86 = vector.broadcast %85 : vector<1x128xf32> to vector<112x128xf32>
    %87 = arith.mulf %84, %86 : vector<112x128xf32>
    %c0_35 = arith.constant 0 : index
    %c0_36 = arith.constant 0 : index
    %88 = vector.load %arg6[%c0_35, %c0_36] : memref<1x128xf32, #tpu.memory_space<vmem>>, vector<1x128xf32>
    %89 = vector.broadcast %88 : vector<1x128xf32> to vector<112x128xf32>
    %90 = arith.addf %87, %89 : vector<112x128xf32>
    %cst_37 = arith.constant 0.000000e+00 : f32
    %91 = vector.broadcast %cst_37 : f32 to vector<112x128xf32>
    %92 = arith.maximumf %90, %91 : vector<112x128xf32>
    %cst_38 = arith.constant 0.000000e+00 : f32
    %93 = vector.shape_cast %65 : vector<112x1xi1> to vector<112x1xi1>
    %94 = vector.broadcast %93 : vector<112x1xi1> to vector<112x128xi1>
    %95 = vector.broadcast %cst_38 : f32 to vector<112x128xf32>
    %96 = arith.select %94, %92, %95 : vector<112x128xi1>, vector<112x128xf32>
    %97 = arith.truncf %96 : vector<112x128xf32> to vector<112x128xbf16>
    %c0_39 = arith.constant 0 : index
    %c0_40 = arith.constant 0 : index
    %98 = vector.load %arg18[%c0_39, %c0_40] : memref<112x128xbf16, #tpu.memory_space<vmem>>, vector<112x128xbf16>
    tpu.vector_store %arg18[%c0_39, %c0_40], %97 {strides = array<i32>} : memref<112x128xbf16, #tpu.memory_space<vmem>>, vector<112x128xbf16>,
    %c2_i32 = arith.constant 2 : i32
    %99 = arith.subi %1, %c2_i32 : i32
    %100 = tpu.iota {dimensions = array<i32: 0>} : vector<108x1xi32>
    %101 = vector.broadcast %99 : i32 to vector<108x1xi32>
    %102 = arith.addi %101, %100 : vector<108x1xi32>
    %c0_i32_41 = arith.constant 0 : i32
    %103 = vector.broadcast %c0_i32_41 : i32 to vector<108x1xi32>
    %104 = arith.cmpi sge, %102, %103 : vector<108x1xi32>
    %c200_i32_42 = arith.constant 200 : i32
    %105 = vector.broadcast %c200_i32_42 : i32 to vector<108x1xi32>
    %106 = arith.cmpi slt, %102, %105 : vector<108x1xi32>
    %107 = arith.andi %104, %106 : vector<108x1xi1>
    %c0_43 = arith.constant 0 : index
    %c0_44 = arith.constant 0 : index
    %108 = vector.load %arg18[%c0_43, %c0_44] : memref<112x128xbf16, #tpu.memory_space<vmem>>, vector<108x128xbf16>
    %c1 = arith.constant 1 : index
    %c0_45 = arith.constant 0 : index
    %109 = vector.load %arg18[%c1, %c0_45] : memref<112x128xbf16, #tpu.memory_space<vmem>>, vector<108x128xbf16>
    %110 = tpu.concatenate %108, %109 in 1 : vector<108x128xbf16>, vector<108x128xbf16> -> vector<108x256xbf16>
    %c0_46 = arith.constant 0 : index
    %c0_47 = arith.constant 0 : index
    %111 = vector.load %arg7[%c0_46, %c0_47] : memref<640x128xbf16, #tpu.memory_space<vmem>>, vector<256x128xbf16>
    %cst_48 = arith.constant dense<0.000000e+00> : vector<108x128xf32>
    %112 = tpu.matmul %110, %111, %cst_48 {dimension_numbers = #tpu.dot_dimension_numbers<[1], [0], [0], [1], [0, 0, 1, 1], [], []>} : vector<108x256xbf16>, vector<256x128xbf16>, vector<108x128xf32> -> vector<108x128xf32>
    %c2_49 = arith.constant 2 : index
    %c0_50 = arith.constant 0 : index
    %113 = vector.load %arg18[%c2_49, %c0_50] : memref<112x128xbf16, #tpu.memory_space<vmem>>, vector<108x128xbf16>
    %c3_51 = arith.constant 3 : index
    %c0_52 = arith.constant 0 : index
    %114 = vector.load %arg18[%c3_51, %c0_52] : memref<112x128xbf16, #tpu.memory_space<vmem>>, vector<108x128xbf16>
    %115 = tpu.concatenate %113, %114 in 1 : vector<108x128xbf16>, vector<108x128xbf16> -> vector<108x256xbf16>
    %c256_53 = arith.constant 256 : index
    %c0_54 = arith.constant 0 : index
    %116 = vector.load %arg7[%c256_53, %c0_54] : memref<640x128xbf16, #tpu.memory_space<vmem>>, vector<256x128xbf16>
    %cst_55 = arith.constant dense<0.000000e+00> : vector<108x128xf32>
    %117 = tpu.matmul %115, %116, %cst_55 {dimension_numbers = #tpu.dot_dimension_numbers<[1], [0], [0], [1], [0, 0, 1, 1], [], []>} : vector<108x256xbf16>, vector<256x128xbf16>, vector<108x128xf32> -> vector<108x128xf32>
    %118 = arith.addf %112, %117 : vector<108x128xf32>
    %c4_56 = arith.constant 4 : index
    %c0_57 = arith.constant 0 : index
    %119 = vector.load %arg18[%c4_56, %c0_57] : memref<112x128xbf16, #tpu.memory_space<vmem>>, vector<108x128xbf16>
    %c512_58 = arith.constant 512 : index
    %c0_59 = arith.constant 0 : index
    %120 = vector.load %arg7[%c512_58, %c0_59] : memref<640x128xbf16, #tpu.memory_space<vmem>>, vector<128x128xbf16>
    %cst_60 = arith.constant dense<0.000000e+00> : vector<108x128xf32>
    %121 = tpu.matmul %119, %120, %cst_60 {dimension_numbers = #tpu.dot_dimension_numbers<[1], [0], [0], [1], [0, 0, 1, 1], [], []>} : vector<108x128xbf16>, vector<128x128xbf16>, vector<108x128xf32> -> vector<108x128xf32>
    %122 = arith.addf %118, %121 : vector<108x128xf32>
    %c0_61 = arith.constant 0 : index
    %c0_62 = arith.constant 0 : index
    %123 = vector.load %arg8[%c0_61, %c0_62] : memref<1x128xf32, #tpu.memory_space<vmem>>, vector<1x128xf32>
    %124 = vector.broadcast %123 : vector<1x128xf32> to vector<108x128xf32>
    %125 = arith.mulf %122, %124 : vector<108x128xf32>
    %c0_63 = arith.constant 0 : index
    %c0_64 = arith.constant 0 : index
    %126 = vector.load %arg9[%c0_63, %c0_64] : memref<1x128xf32, #tpu.memory_space<vmem>>, vector<1x128xf32>
    %127 = vector.broadcast %126 : vector<1x128xf32> to vector<108x128xf32>
    %128 = arith.addf %125, %127 : vector<108x128xf32>
    %cst_65 = arith.constant 0.000000e+00 : f32
    %129 = vector.broadcast %cst_65 : f32 to vector<108x128xf32>
    %130 = arith.maximumf %128, %129 : vector<108x128xf32>
    %cst_66 = arith.constant 0.000000e+00 : f32
    %131 = vector.shape_cast %107 : vector<108x1xi1> to vector<108x1xi1>
    %132 = vector.broadcast %131 : vector<108x1xi1> to vector<108x128xi1>
    %133 = vector.broadcast %cst_66 : f32 to vector<108x128xf32>
    %134 = arith.select %132, %130, %133 : vector<108x128xi1>, vector<108x128xf32>
    %135 = arith.truncf %134 : vector<108x128xf32> to vector<108x128xbf16>
    %c0_67 = arith.constant 0 : index
    %c0_68 = arith.constant 0 : index
    %136 = vector.load %arg19[%c0_67, %c0_68] : memref<112x128xbf16, #tpu.memory_space<vmem>>, vector<108x128xbf16>
    tpu.vector_store %arg19[%c0_67, %c0_68], %135 {strides = array<i32>} : memref<112x128xbf16, #tpu.memory_space<vmem>>, vector<108x128xbf16>,
    %c0_69 = arith.constant 0 : index
    %c0_70 = arith.constant 0 : index
    %137 = vector.load %arg19[%c0_69, %c0_70] : memref<112x128xbf16, #tpu.memory_space<vmem>>, vector<104x128xbf16>
    %c1_71 = arith.constant 1 : index
    %c0_72 = arith.constant 0 : index
    %138 = vector.load %arg19[%c1_71, %c0_72] : memref<112x128xbf16, #tpu.memory_space<vmem>>, vector<104x128xbf16>
    %139 = tpu.concatenate %137, %138 in 1 : vector<104x128xbf16>, vector<104x128xbf16> -> vector<104x256xbf16>
    %c0_73 = arith.constant 0 : index
    %c0_74 = arith.constant 0 : index
    %140 = vector.load %arg10[%c0_73, %c0_74] : memref<640x128xbf16, #tpu.memory_space<vmem>>, vector<256x128xbf16>
    %cst_75 = arith.constant dense<0.000000e+00> : vector<104x128xf32>
    %141 = tpu.matmul %139, %140, %cst_75 {dimension_numbers = #tpu.dot_dimension_numbers<[1], [0], [0], [1], [0, 0, 1, 1], [], []>} : vector<104x256xbf16>, vector<256x128xbf16>, vector<104x128xf32> -> vector<104x128xf32>
    %c2_76 = arith.constant 2 : index
    %c0_77 = arith.constant 0 : index
    %142 = vector.load %arg19[%c2_76, %c0_77] : memref<112x128xbf16, #tpu.memory_space<vmem>>, vector<104x128xbf16>
    %c3_78 = arith.constant 3 : index
    %c0_79 = arith.constant 0 : index
    %143 = vector.load %arg19[%c3_78, %c0_79] : memref<112x128xbf16, #tpu.memory_space<vmem>>, vector<104x128xbf16>
    %144 = tpu.concatenate %142, %143 in 1 : vector<104x128xbf16>, vector<104x128xbf16> -> vector<104x256xbf16>
    %c256_80 = arith.constant 256 : index
    %c0_81 = arith.constant 0 : index
    %145 = vector.load %arg10[%c256_80, %c0_81] : memref<640x128xbf16, #tpu.memory_space<vmem>>, vector<256x128xbf16>
    %cst_82 = arith.constant dense<0.000000e+00> : vector<104x128xf32>
    %146 = tpu.matmul %144, %145, %cst_82 {dimension_numbers = #tpu.dot_dimension_numbers<[1], [0], [0], [1], [0, 0, 1, 1], [], []>} : vector<104x256xbf16>, vector<256x128xbf16>, vector<104x128xf32> -> vector<104x128xf32>
    %147 = arith.addf %141, %146 : vector<104x128xf32>
    %c4_83 = arith.constant 4 : index
    %c0_84 = arith.constant 0 : index
    %148 = vector.load %arg19[%c4_83, %c0_84] : memref<112x128xbf16, #tpu.memory_space<vmem>>, vector<104x128xbf16>
    %c512_85 = arith.constant 512 : index
    %c0_86 = arith.constant 0 : index
    %149 = vector.load %arg10[%c512_85, %c0_86] : memref<640x128xbf16, #tpu.memory_space<vmem>>, vector<128x128xbf16>
    %cst_87 = arith.constant dense<0.000000e+00> : vector<104x128xf32>
    %150 = tpu.matmul %148, %149, %cst_87 {dimension_numbers = #tpu.dot_dimension_numbers<[1], [0], [0], [1], [0, 0, 1, 1], [], []>} : vector<104x128xbf16>, vector<128x128xbf16>, vector<104x128xf32> -> vector<104x128xf32>
    %151 = arith.addf %147, %150 : vector<104x128xf32>
    %c0_88 = arith.constant 0 : index
    %c0_89 = arith.constant 0 : index
    %152 = vector.load %arg11[%c0_88, %c0_89] : memref<1x128xf32, #tpu.memory_space<vmem>>, vector<1x128xf32>
    %153 = vector.broadcast %152 : vector<1x128xf32> to vector<104x128xf32>
    %154 = arith.mulf %151, %153 : vector<104x128xf32>
    %c0_90 = arith.constant 0 : index
    %c0_91 = arith.constant 0 : index
    %155 = vector.load %arg12[%c0_90, %c0_91] : memref<1x128xf32, #tpu.memory_space<vmem>>, vector<1x128xf32>
    %156 = vector.broadcast %155 : vector<1x128xf32> to vector<104x128xf32>
    %157 = arith.addf %154, %156 : vector<104x128xf32>
    %158 = arith.truncf %157 : vector<104x128xf32> to vector<104x128xbf16>
    %c0_92 = arith.constant 0 : index
    %c0_93 = arith.constant 0 : index
    %159 = vector.load %arg13[%c0_92, %c0_93] : memref<128x128xbf16, #tpu.memory_space<vmem>>, vector<128x128xbf16>
    %cst_94 = arith.constant dense<0.000000e+00> : vector<104x128xf32>
    %160 = tpu.matmul %158, %159, %cst_94 {dimension_numbers = #tpu.dot_dimension_numbers<[1], [0], [0], [1], [0, 0, 1, 1], [], []>} : vector<104x128xbf16>, vector<128x128xbf16>, vector<104x128xf32> -> vector<104x128xf32>
    %c0_95 = arith.constant 0 : index
    %c0_96 = arith.constant 0 : index
    %161 = vector.load %arg14[%c0_95, %c0_96] : memref<1x128xf32, #tpu.memory_space<vmem>>, vector<1x128xf32>
    %162 = vector.broadcast %161 : vector<1x128xf32> to vector<104x128xf32>
    %163 = arith.addf %160, %162 : vector<104x128xf32>
    %c0_97 = arith.constant 0 : index
    %c0_98 = arith.constant 0 : index
    %164 = vector.load %arg15[%c0_97, %c0_98] : memref<104x128xf32, #tpu.memory_space<vmem>>, vector<104x128xf32>
    tpu.vector_store %arg15[%c0_97, %c0_98], %163 {strides = array<i32>} : memref<104x128xf32, #tpu.memory_space<vmem>>, vector<104x128xf32>,
    %cst_99 = arith.constant dense<0xFF800000> : vector<104xf32>
    %165 = vector.multi_reduction <maximumf>, %163, %cst_99 [1] : vector<104x128xf32> to vector<104xf32>
    %166 = vector.shape_cast %165 : vector<104xf32> to vector<104x1xf32>
    %167 = vector.broadcast %166 : vector<104x1xf32> to vector<104x128xf32>
    %168 = arith.subf %163, %167 : vector<104x128xf32>
    %169 = math.exp %168 : vector<104x128xf32>
    %cst_100 = arith.constant dense<0.000000e+00> : vector<104xf32>
    %170 = vector.multi_reduction <add>, %169, %cst_100 [1] : vector<104x128xf32> to vector<104xf32>
    %171 = vector.shape_cast %170 : vector<104xf32> to vector<104x1xf32>
    %172 = math.log %171 : vector<104x1xf32>
    %173 = arith.addf %166, %172 : vector<104x1xf32>
    %174 = vector.broadcast %173 : vector<104x1xf32> to vector<104x128xf32>
    %175 = arith.subf %163, %174 : vector<104x128xf32>
    %c0_101 = arith.constant 0 : index
    %c0_102 = arith.constant 0 : index
    %176 = vector.load %arg16[%c0_101, %c0_102] : memref<104x128xf32, #tpu.memory_space<vmem>>, vector<104x128xf32>
    tpu.vector_store %arg16[%c0_101, %c0_102], %175 {strides = array<i32>} : memref<104x128xf32, #tpu.memory_space<vmem>>, vector<104x128xf32>,
    return
  }
  func.func @transform_0(%arg0: i32) -> (i32, i32) {
    %c0_i32 = arith.constant 0 : i32
    %c0_i32_0 = arith.constant 0 : i32
    %c0_i32_1 = arith.constant 0 : i32
    return %c0_i32, %c0_i32_0 : i32, i32
  }
  func.func @transform_1(%arg0: i32) -> (i32, i32) {
    %c0_i32 = arith.constant 0 : i32
    %c0_i32_0 = arith.constant 0 : i32
    %c0_i32_1 = arith.constant 0 : i32
    return %c0_i32, %c0_i32_0 : i32, i32
  }
  func.func @transform_2(%arg0: i32) -> (i32, i32) {
    %c0_i32 = arith.constant 0 : i32
    %c0_i32_0 = arith.constant 0 : i32
    %c0_i32_1 = arith.constant 0 : i32
    return %c0_i32, %c0_i32_0 : i32, i32
  }
  func.func @transform_3(%arg0: i32) -> (i32, i32) {
    %c0_i32 = arith.constant 0 : i32
    %c0_i32_0 = arith.constant 0 : i32
    %c0_i32_1 = arith.constant 0 : i32
    return %c0_i32, %c0_i32_0 : i32, i32
  }
  func.func @transform_4(%arg0: i32) -> (i32, i32) {
    %c0_i32 = arith.constant 0 : i32
    %c0_i32_0 = arith.constant 0 : i32
    %c0_i32_1 = arith.constant 0 : i32
    return %c0_i32, %c0_i32_0 : i32, i32
  }
  func.func @transform_5(%arg0: i32) -> (i32, i32) {
    %c0_i32 = arith.constant 0 : i32
    %c0_i32_0 = arith.constant 0 : i32
    %c0_i32_1 = arith.constant 0 : i32
    return %c0_i32, %c0_i32_0 : i32, i32
  }
  func.func @transform_6(%arg0: i32) -> (i32, i32) {
    %c0_i32 = arith.constant 0 : i32
    %c0_i32_0 = arith.constant 0 : i32
    %c0_i32_1 = arith.constant 0 : i32
    return %c0_i32, %c0_i32_0 : i32, i32
  }
  func.func @transform_7(%arg0: i32) -> (i32, i32) {
    %c0_i32 = arith.constant 0 : i32
    %c0_i32_0 = arith.constant 0 : i32
    %c0_i32_1 = arith.constant 0 : i32
    return %c0_i32, %c0_i32_0 : i32, i32
  }
  func.func @transform_8(%arg0: i32) -> (i32, i32) {
    %c0_i32 = arith.constant 0 : i32
    %c0_i32_0 = arith.constant 0 : i32
    %c0_i32_1 = arith.constant 0 : i32
    return %c0_i32, %c0_i32_0 : i32, i32
  }
  func.func @transform_9(%arg0: i32) -> (i32, i32) {
    %c0_i32 = arith.constant 0 : i32
    %c0_i32_0 = arith.constant 0 : i32
    %c0_i32_1 = arith.constant 0 : i32
    return %c0_i32, %c0_i32_0 : i32, i32
  }
  func.func @transform_10(%arg0: i32) -> (i32, i32) {
    %c0_i32 = arith.constant 0 : i32
    %c0_i32_0 = arith.constant 0 : i32
    %c0_i32_1 = arith.constant 0 : i32
    return %c0_i32, %c0_i32_0 : i32, i32
  }
  func.func @transform_11(%arg0: i32) -> (i32, i32) {
    %c0_i32 = arith.constant 0 : i32
    %c0_i32_0 = arith.constant 0 : i32
    %c0_i32_1 = arith.constant 0 : i32
    return %c0_i32, %c0_i32_0 : i32, i32
  }
  func.func @transform_12(%arg0: i32) -> (i32, i32) {
    %c0_i32 = arith.constant 0 : i32
    %c0_i32_0 = arith.constant 0 : i32
    %c0_i32_1 = arith.constant 0 : i32
    return %c0_i32, %c0_i32_0 : i32, i32
  }
  func.func @transform_13(%arg0: i32) -> (i32, i32) {
    %c0_i32 = arith.constant 0 : i32
    %c0_i32_0 = arith.constant 0 : i32
    %c0_i32_1 = arith.constant 0 : i32
    return %c0_i32, %c0_i32_0 : i32, i32
  }
  func.func @transform_14(%arg0: i32) -> (i32, i32) {
    %c0_i32 = arith.constant 0 : i32
    %c0_i32_0 = arith.constant 0 : i32
    return %arg0, %c0_i32 : i32, i32
  }
  func.func @transform_15(%arg0: i32) -> (i32, i32) {
    %c0_i32 = arith.constant 0 : i32
    %c0_i32_0 = arith.constant 0 : i32
    return %arg0, %c0_i32 : i32, i32
  }
}

</mosaic_0001>

<llo_original>
// kernel: tpu_custom_call.1
$region0: #{tpu_custom_call.1}
  #allocation0 [shape = 'u32[]', space=smem, size = 0x4, offset = 0x4, fixed_abs, tag = 'smem constant byte address 0x4 - core index']
  #allocation1 [shape = 'u32[144,128]{1,0:T(1,128)}', space=vmem, size = 0x12000, scoped, tag = 'internal scratch']
  #allocation2 [shape = 'bf16[120,256]{1,0:T(8,128)(2,1)}', space=vmem, size = 0xf000, scoped, tag = 'scratch operand']
  #allocation3 [shape = 'bf16[112,128]{1,0:T(16,128)(2,1)}', space=vmem, size = 0x7000, scoped, tag = 'scratch operand']
  #allocation4 [shape = 'bf16[112,128]{1,0:T(16,128)(2,1)}', space=vmem, size = 0x7000, scoped, tag = 'scratch operand']
  %s0 = inlined_call_operand.hbm [shape: f32[224,128], index: 0, kind: input, shape index: {}]
  %s1 = inlined_call_operand.vmem [shape: f32[224,33], index: 1, kind: input, shape index: {}]
  %s2 = inlined_call_operand.hbm [shape: bf16[64,128], index: 2, kind: input, shape index: {}]
  %s3 = inlined_call_operand.hbm [shape: bf16[1280,128], index: 3, kind: input, shape index: {}]
  %s4 = inlined_call_operand.vmem [shape: f32[1,128], index: 4, kind: input, shape index: {}]
  %s5 = inlined_call_operand.vmem [shape: f32[1,128], index: 5, kind: input, shape index: {}]
  %s6 = inlined_call_operand.vmem [shape: bf16[640,128], index: 6, kind: input, shape index: {}]
  %s7 = inlined_call_operand.vmem [shape: f32[1,128], index: 7, kind: input, shape index: {}]
  %s8 = inlined_call_operand.vmem [shape: f32[1,128], index: 8, kind: input, shape index: {}]
  %s9 = inlined_call_operand.hbm [shape: bf16[640,128], index: 9, kind: input, shape index: {}]
  %s10 = inlined_call_operand.vmem [shape: f32[1,128], index: 10, kind: input, shape index: {}]
  %s11 = inlined_call_operand.vmem [shape: f32[1,128], index: 11, kind: input, shape index: {}]
  %s12 = inlined_call_operand.hbm [shape: bf16[128,128], index: 12, kind: input, shape index: {}]
  %s13 = inlined_call_operand.vmem [shape: f32[1,128], index: 13, kind: input, shape index: {}]
  %s14 = inlined_call_operand.hbm [shape: f32[208,128], index: 14, kind: output, shape index: {0}]
  %s15 = inlined_call_operand.hbm [shape: f32[208,128], index: 15, kind: output, shape index: {1}]
  %16 = xla_tuple %s14, %s15
  %s17 = sld [smem:[#allocation0]]
  $region117: #{tpu_custom_call.1} parent=0
    _
  %s19 = ssub.s32 1, %s17
  %s20 = scalar_select 0, %s19, %s17
  $region1: #{tpu_custom_call.1} parent=0
    #allocation5 [shape = 'u8[114688]{0}', space=vmem, size = 0x1c000, scoped, tag = 'input window, operand 0, single buffered']
    #allocation6 [shape = 's32[2]{0}', space=sflag, size = 0x8, scoped, tag = 'scoped memory for tpu_custom_call.1']
    #allocation7 [shape = 's32[2]{0}', space=sflag, size = 0x8, scoped, tag = 'scoped memory for tpu_custom_call.1']
    #allocation8 [shape = 'u8[16384]{0}', space=vmem, size = 0x4000, scoped, tag = 'input window, operand 2, single buffered']
    #allocation9 [shape = 's32[1]{0}', space=sflag, size = 0x4, scoped, tag = 'scoped memory for tpu_custom_call.1']
    #allocation10 [shape = 'u8[327680]{0}', space=vmem, size = 0x50000, scoped, tag = 'input window, operand 3, single buffered']
    #allocation11 [shape = 'u8[163840]{0}', space=vmem, size = 0x28000, scoped, tag = 'input window, operand 9, single buffered']
    #allocation12 [shape = 's32[1]{0}', space=sflag, size = 0x4, scoped, tag = 'scoped memory for tpu_custom_call.1']
    #allocation13 [shape = 'u8[32768]{0}', space=vmem, size = 0x8000, scoped, tag = 'input window, operand 12, single buffered']
    #allocation14 [shape = 'u8[106496]{0}', space=vmem, size = 0x1a000, scoped, tag = 'output window, operand 0']
    #allocation15 [shape = 'u8[106496]{0}', space=vmem, size = 0x1a000, scoped, tag = 'output window, operand 1']
    #allocation16 [shape = 's32[2]{0}', space=sflag, size = 0x8, scoped, tag = 'scoped memory for tpu_custom_call.1']
    %21 = vsyncpa [#allocation6], 0
    %22 = vsyncpa [#allocation9], 0
    %23 = vsyncpa [#allocation12], 0
    %24 = vsyncpa [#allocation7], 0
    %s25 = scalar_lea.sflag [#allocation7], 1
    %26 = vsyncpa %s25, 0
    %27 = vsyncpa [#allocation16], 0
    %s28 = scalar_lea.sflag [#allocation16], 1
    %29 = vsyncpa %s28, 0
    loop: start=0, step=1, limit=4
    $region2: #{tpu_custom_call.1} parent=1 // loop_pre_header
      _
    $region3: #{tpu_custom_call.1} parent=1 // loop_header
      %s31 = sphi 0, %s35
      %p32 = scmp.ge.s32.totalorder %s31, 4
      %s39 = sphi 0, %s39
      %s41 = sphi 0, %s39
      %s42 = sphi 0, %s41
      %s56 = sphi 0, %s42
      %s60 = sphi 0, %s60
      %s62 = sphi 0, %s60
      %s63 = sphi 0, %s62
      %s77 = sphi 0, %s63
      %s81 = sphi 0, %s81
      %s83 = sphi 0, %s81
      %s84 = sphi 0, %s83
      %s98 = sphi 0, %s84
      %s102 = sphi 0, %s102
      %s104 = sphi 0, %s102
      %s105 = sphi 0, %s104
      %s119 = sphi 0, %s105
      %s123 = sphi 0, %s123
      %s125 = sphi 0, %s123
      %s126 = sphi 0, %s125
      %s140 = sphi 0, %s126
      %s144 = sphi 0, %s144
      %s146 = sphi 0, %s144
      %s147 = sphi 0, %s146
      %s161 = sphi 0, %s147
      %s165 = sphi 0, %s165
      %s167 = sphi 0, %s165
      %s168 = sphi 0, %s167
      %s182 = sphi 0, %s168
      %s186 = sphi 0, %s186
      %s188 = sphi 0, %s186
      %s189 = sphi 0, %s188
      %s203 = sphi 0, %s189
      %s207 = sphi 0, %s207
      %s209 = sphi 0, %s207
      %s210 = sphi 0, %s209
      %s224 = sphi 0, %s210
      %s228 = sphi 0, %s228
      %s230 = sphi 0, %s228
      %s231 = sphi 0, %s230
      %s245 = sphi 0, %s231
      %s249 = sphi 0, %s249
      %s251 = sphi 0, %s249
      %s252 = sphi 0, %s251
      %s266 = sphi 0, %s252
      %s270 = sphi 0, %s270
      %s272 = sphi 0, %s270
      %s273 = sphi 0, %s272
      %s287 = sphi 0, %s273
      %s291 = sphi 0, %s291
      %s293 = sphi 0, %s291
      %s294 = sphi 0, %s293
      %s308 = sphi 0, %s294
      %s312 = sphi 0, %s312
      %s314 = sphi 0, %s312
      %s315 = sphi 0, %s314
      %s329 = sphi 0, %s315
      %s335 = sphi 0, %s337
      %s338 = sphi 0, %s335
      %s339 = sphi 0, %s338
      %s355 = sphi 0, %s339
      %s361 = sphi 0, %s363
      %s364 = sphi 0, %s361
      %s365 = sphi 0, %s364
      %s381 = sphi 0, %s365
    $region4: #{tpu_custom_call.1} parent=1 // loop_header_branch
      %34 = sbr.rel (%p32) target = $region8
    $region5: #{tpu_custom_call.1} parent=1 // loop_body
      %s36 = ssub.s32 %s31, 1
      %s37 = ssub.s32 %s31, 2
      %s38 = sadd.s32 %s31, 1
      %s40 = sadd.s32 %s39, 1
      %p43 = scmp.eq.s32.totalorder %s31, 1
      %p44 = scmp.ne.s32.totalorder %s39, %s41
      %p45 = scmp.eq.s32.totalorder %s31, 0
      %p46 = por %p44, %p45
      %p47 = scmp.ne.s32.totalorder %s39, %s41
      %p48 = scmp.eq.s32.totalorder %s36, 1
      %p49 = por %p47, %p48
      %p50 = scmp.ne.s32.totalorder %s41, %s42
      %p51 = scmp.eq.s32.totalorder %s36, 0
      %p52 = por %p50, %p51
      %p53 = scmp.ne.s32.totalorder %s41, %s42
      %p54 = scmp.eq.s32.totalorder %s37, 1
      %p55 = por %p53, %p54
      %p57 = scmp.ne.s32.totalorder %s42, %s56
      %p58 = scmp.eq.s32.totalorder %s37, 0
      %p59 = por %p57, %p58
      %s61 = sadd.s32 %s60, 1
      %p64 = scmp.eq.s32.totalorder %s31, 1
      %p65 = scmp.ne.s32.totalorder %s60, %s62
      %p66 = scmp.eq.s32.totalorder %s31, 0
      %p67 = por %p65, %p66
      %p68 = scmp.ne.s32.totalorder %s60, %s62
      %p69 = scmp.eq.s32.totalorder %s36, 1
      %p70 = por %p68, %p69
      %p71 = scmp.ne.s32.totalorder %s62, %s63
      %p72 = scmp.eq.s32.totalorder %s36, 0
      %p73 = por %p71, %p72
      %p74 = scmp.ne.s32.totalorder %s62, %s63
      %p75 = scmp.eq.s32.totalorder %s37, 1
      %p76 = por %p74, %p75
      %p78 = scmp.ne.s32.totalorder %s63, %s77
      %p79 = scmp.eq.s32.totalorder %s37, 0
      %p80 = por %p78, %p79
      %s82 = sadd.s32 %s81, 1
      %p85 = scmp.eq.s32.totalorder %s31, 1
      %p86 = scmp.ne.s32.totalorder %s81, %s83
      %p87 = scmp.eq.s32.totalorder %s31, 0
      %p88 = por %p86, %p87
      %p89 = scmp.ne.s32.totalorder %s81, %s83
      %p90 = scmp.eq.s32.totalorder %s36, 1
      %p91 = por %p89, %p90
      %p92 = scmp.ne.s32.totalorder %s83, %s84
      %p93 = scmp.eq.s32.totalorder %s36, 0
      %p94 = por %p92, %p93
      %p95 = scmp.ne.s32.totalorder %s83, %s84
      %p96 = scmp.eq.s32.totalorder %s37, 1
      %p97 = por %p95, %p96
      %p99 = scmp.ne.s32.totalorder %s84, %s98
      %p100 = scmp.eq.s32.totalorder %s37, 0
      %p101 = por %p99, %p100
      %s103 = sadd.s32 %s102, 1
      %p106 = scmp.eq.s32.totalorder %s31, 1
      %p107 = scmp.ne.s32.totalorder %s102, %s104
      %p108 = scmp.eq.s32.totalorder %s31, 0
      %p109 = por %p107, %p108
      %p110 = scmp.ne.s32.totalorder %s102, %s104
      %p111 = scmp.eq.s32.totalorder %s36, 1
      %p112 = por %p110, %p111
      %p113 = scmp.ne.s32.totalorder %s104, %s105
      %p114 = scmp.eq.s32.totalorder %s36, 0
      %p115 = por %p113, %p114
      %p116 = scmp.ne.s32.totalorder %s104, %s105
      %p117 = scmp.eq.s32.totalorder %s37, 1
      %p118 = por %p116, %p117
      %p120 = scmp.ne.s32.totalorder %s105, %s119
      %p121 = scmp.eq.s32.totalorder %s37, 0
      %p122 = por %p120, %p121
      %s124 = sadd.s32 %s123, 1
      %p127 = scmp.eq.s32.totalorder %s31, 1
      %p128 = scmp.ne.s32.totalorder %s123, %s125
      %p129 = scmp.eq.s32.totalorder %s31, 0
      %p130 = por %p128, %p129
      %p131 = scmp.ne.s32.totalorder %s123, %s125
      %p132 = scmp.eq.s32.totalorder %s36, 1
      %p133 = por %p131, %p132
      %p134 = scmp.ne.s32.totalorder %s125, %s126
      %p135 = scmp.eq.s32.totalorder %s36, 0
      %p136 = por %p134, %p135
      %p137 = scmp.ne.s32.totalorder %s125, %s126
      %p138 = scmp.eq.s32.totalorder %s37, 1
      %p139 = por %p137, %p138
      %p141 = scmp.ne.s32.totalorder %s126, %s140
      %p142 = scmp.eq.s32.totalorder %s37, 0
      %p143 = por %p141, %p142
      %s145 = sadd.s32 %s144, 1
      %p148 = scmp.eq.s32.totalorder %s31, 1
      %p149 = scmp.ne.s32.totalorder %s144, %s146
      %p150 = scmp.eq.s32.totalorder %s31, 0
      %p151 = por %p149, %p150
      %p152 = scmp.ne.s32.totalorder %s144, %s146
      %p153 = scmp.eq.s32.totalorder %s36, 1
      %p154 = por %p152, %p153
      %p155 = scmp.ne.s32.totalorder %s146, %s147
      %p156 = scmp.eq.s32.totalorder %s36, 0
      %p157 = por %p155, %p156
      %p158 = scmp.ne.s32.totalorder %s146, %s147
      %p159 = scmp.eq.s32.totalorder %s37, 1
      %p160 = por %p158, %p159
      %p162 = scmp.ne.s32.totalorder %s147, %s161
      %p163 = scmp.eq.s32.totalorder %s37, 0
      %p164 = por %p162, %p163
      %s166 = sadd.s32 %s165, 1
      %p169 = scmp.eq.s32.totalorder %s31, 1
      %p170 = scmp.ne.s32.totalorder %s165, %s167
      %p171 = scmp.eq.s32.totalorder %s31, 0
      %p172 = por %p170, %p171
      %p173 = scmp.ne.s32.totalorder %s165, %s167
      %p174 = scmp.eq.s32.totalorder %s36, 1
      %p175 = por %p173, %p174
      %p176 = scmp.ne.s32.totalorder %s167, %s168
      %p177 = scmp.eq.s32.totalorder %s36, 0
      %p178 = por %p176, %p177
      %p179 = scmp.ne.s32.totalorder %s167, %s168
      %p180 = scmp.eq.s32.totalorder %s37, 1
      %p181 = por %p179, %p180
      %p183 = scmp.ne.s32.totalorder %s168, %s182
      %p184 = scmp.eq.s32.totalorder %s37, 0
      %p185 = por %p183, %p184
      %s187 = sadd.s32 %s186, 1
      %p190 = scmp.eq.s32.totalorder %s31, 1
      %p191 = scmp.ne.s32.totalorder %s186, %s188
      %p192 = scmp.eq.s32.totalorder %s31, 0
      %p193 = por %p191, %p192
      %p194 = scmp.ne.s32.totalorder %s186, %s188
      %p195 = scmp.eq.s32.totalorder %s36, 1
      %p196 = por %p194, %p195
      %p197 = scmp.ne.s32.totalorder %s188, %s189
      %p198 = scmp.eq.s32.totalorder %s36, 0
      %p199 = por %p197, %p198
      %p200 = scmp.ne.s32.totalorder %s188, %s189
      %p201 = scmp.eq.s32.totalorder %s37, 1
      %p202 = por %p200, %p201
      %p204 = scmp.ne.s32.totalorder %s189, %s203
      %p205 = scmp.eq.s32.totalorder %s37, 0
      %p206 = por %p204, %p205
      %s208 = sadd.s32 %s207, 1
      %p211 = scmp.eq.s32.totalorder %s31, 1
      %p212 = scmp.ne.s32.totalorder %s207, %s209
      %p213 = scmp.eq.s32.totalorder %s31, 0
      %p214 = por %p212, %p213
      %p215 = scmp.ne.s32.totalorder %s207, %s209
      %p216 = scmp.eq.s32.totalorder %s36, 1
      %p217 = por %p215, %p216
      %p218 = scmp.ne.s32.totalorder %s209, %s210
      %p219 = scmp.eq.s32.totalorder %s36, 0
      %p220 = por %p218, %p219
      %p221 = scmp.ne.s32.totalorder %s209, %s210
      %p222 = scmp.eq.s32.totalorder %s37, 1
      %p223 = por %p221, %p222
      %p225 = scmp.ne.s32.totalorder %s210, %s224
      %p226 = scmp.eq.s32.totalorder %s37, 0
      %p227 = por %p225, %p226
      %s229 = sadd.s32 %s228, 1
      %p232 = scmp.eq.s32.totalorder %s31, 1
      %p233 = scmp.ne.s32.totalorder %s228, %s230
      %p234 = scmp.eq.s32.totalorder %s31, 0
      %p235 = por %p233, %p234
      %p236 = scmp.ne.s32.totalorder %s228, %s230
      %p237 = scmp.eq.s32.totalorder %s36, 1
      %p238 = por %p236, %p237
      %p239 = scmp.ne.s32.totalorder %s230, %s231
      %p240 = scmp.eq.s32.totalorder %s36, 0
      %p241 = por %p239, %p240
      %p242 = scmp.ne.s32.totalorder %s230, %s231
      %p243 = scmp.eq.s32.totalorder %s37, 1
      %p244 = por %p242, %p243
      %p246 = scmp.ne.s32.totalorder %s231, %s245
      %p247 = scmp.eq.s32.totalorder %s37, 0
      %p248 = por %p246, %p247
      %s250 = sadd.s32 %s249, 1
      %p253 = scmp.eq.s32.totalorder %s31, 1
      %p254 = scmp.ne.s32.totalorder %s249, %s251
      %p255 = scmp.eq.s32.totalorder %s31, 0
      %p256 = por %p254, %p255
      %p257 = scmp.ne.s32.totalorder %s249, %s251
      %p258 = scmp.eq.s32.totalorder %s36, 1
      %p259 = por %p257, %p258
      %p260 = scmp.ne.s32.totalorder %s251, %s252
      %p261 = scmp.eq.s32.totalorder %s36, 0
      %p262 = por %p260, %p261
      %p263 = scmp.ne.s32.totalorder %s251, %s252
      %p264 = scmp.eq.s32.totalorder %s37, 1
      %p265 = por %p263, %p264
      %p267 = scmp.ne.s32.totalorder %s252, %s266
      %p268 = scmp.eq.s32.totalorder %s37, 0
      %p269 = por %p267, %p268
      %s271 = sadd.s32 %s270, 1
      %p274 = scmp.eq.s32.totalorder %s31, 1
      %p275 = scmp.ne.s32.totalorder %s270, %s272
      %p276 = scmp.eq.s32.totalorder %s31, 0
      %p277 = por %p275, %p276
      %p278 = scmp.ne.s32.totalorder %s270, %s272
      %p279 = scmp.eq.s32.totalorder %s36, 1
      %p280 = por %p278, %p279
      %p281 = scmp.ne.s32.totalorder %s272, %s273
      %p282 = scmp.eq.s32.totalorder %s36, 0
      %p283 = por %p281, %p282
      %p284 = scmp.ne.s32.totalorder %s272, %s273
      %p285 = scmp.eq.s32.totalorder %s37, 1
      %p286 = por %p284, %p285
      %p288 = scmp.ne.s32.totalorder %s273, %s287
      %p289 = scmp.eq.s32.totalorder %s37, 0
      %p290 = por %p288, %p289
      %s292 = sadd.s32 %s291, 1
      %p295 = scmp.eq.s32.totalorder %s31, 1
      %p296 = scmp.ne.s32.totalorder %s291, %s293
      %p297 = scmp.eq.s32.totalorder %s31, 0
      %p298 = por %p296, %p297
      %p299 = scmp.ne.s32.totalorder %s291, %s293
      %p300 = scmp.eq.s32.totalorder %s36, 1
      %p301 = por %p299, %p300
      %p302 = scmp.ne.s32.totalorder %s293, %s294
      %p303 = scmp.eq.s32.totalorder %s36, 0
      %p304 = por %p302, %p303
      %p305 = scmp.ne.s32.totalorder %s293, %s294
      %p306 = scmp.eq.s32.totalorder %s37, 1
      %p307 = por %p305, %p306
      %p309 = scmp.ne.s32.totalorder %s294, %s308
      %p310 = scmp.eq.s32.totalorder %s37, 0
      %p311 = por %p309, %p310
      %s313 = sadd.s32 %s312, 1
      %p316 = scmp.eq.s32.totalorder %s31, 1
      %p317 = scmp.ne.s32.totalorder %s312, %s314
      %p318 = scmp.eq.s32.totalorder %s31, 0
      %p319 = por %p317, %p318
      %p320 = scmp.ne.s32.totalorder %s312, %s314
      %p321 = scmp.eq.s32.totalorder %s36, 1
      %p322 = por %p320, %p321
      %p323 = scmp.ne.s32.totalorder %s314, %s315
      %p324 = scmp.eq.s32.totalorder %s36, 0
      %p325 = por %p323, %p324
      %p326 = scmp.ne.s32.totalorder %s314, %s315
      %p327 = scmp.eq.s32.totalorder %s37, 1
      %p328 = por %p326, %p327
      %p330 = scmp.ne.s32.totalorder %s315, %s329
      %p331 = scmp.eq.s32.totalorder %s37, 0
      %p332 = por %p330, %p331
      %s333 = ssub.s32 %s31, %s38
      %p334 = scmp.eq.s32.totalorder %s333, 0
      %s336 = sadd.s32 %s335, 1
      %s337 = scalar_select %p334, %s335, %s336
      %p340 = pneg %p334
      %p341 = scmp.eq.s32.totalorder %s31, 1
      %p342 = por %p340, %p341
      %p343 = scmp.ne.s32.totalorder %s335, %s338
      %p344 = scmp.eq.s32.totalorder %s31, 0
      %p345 = por %p343, %p344
      %p346 = scmp.ne.s32.totalorder %s335, %s338
      %p347 = scmp.eq.s32.totalorder %s36, 1
      %p348 = por %p346, %p347
      %p349 = scmp.ne.s32.totalorder %s338, %s339
      %p350 = scmp.eq.s32.totalorder %s36, 0
      %p351 = por %p349, %p350
      %p352 = scmp.ne.s32.totalorder %s338, %s339
      %p353 = scmp.eq.s32.totalorder %s37, 1
      %p354 = por %p352, %p353
      %p356 = scmp.ne.s32.totalorder %s339, %s355
      %p357 = scmp.eq.s32.totalorder %s37, 0
      %p358 = por %p356, %p357
      %s359 = ssub.s32 %s31, %s38
      %p360 = scmp.eq.s32.totalorder %s359, 0
      %s362 = sadd.s32 %s361, 1
      %s363 = scalar_select %p360, %s361, %s362
      %p366 = pneg %p360
      %p367 = scmp.eq.s32.totalorder %s31, 1
      %p368 = por %p366, %p367
      %p369 = scmp.ne.s32.totalorder %s361, %s364
      %p370 = scmp.eq.s32.totalorder %s31, 0
      %p371 = por %p369, %p370
      %p372 = scmp.ne.s32.totalorder %s361, %s364
      %p373 = scmp.eq.s32.totalorder %s36, 1
      %p374 = por %p372, %p373
      %p375 = scmp.ne.s32.totalorder %s364, %s365
      %p376 = scmp.eq.s32.totalorder %s36, 0
      %p377 = por %p375, %p376
      %p378 = scmp.ne.s32.totalorder %s364, %s365
      %p379 = scmp.eq.s32.totalorder %s37, 1
      %p380 = por %p378, %p379
      %p382 = scmp.ne.s32.totalorder %s365, %s381
      %p383 = scmp.eq.s32.totalorder %s37, 0
      %p384 = por %p382, %p383
      %p385 = scmp.le.s32.totalorder 1, %s31
      %p386 = scmp.lt.s32.totalorder %s31, 3
      %p387 = pnand %p385, %p386
      %p388 = pneg %p387
      // Predicated region
      $region9: #{tpu_custom_call.1} parent=5 // pred_check
        _
      $region10: #{tpu_custom_call.1} parent=5 // pred_check_branch
        %390 = sbr.rel (%p387) target = $region12
      $region11: #{tpu_custom_call.1} parent=5 // pred_region
        %s391 = ssub.s32 %s31, 1
        // Predicated region
        $region13: #{tpu_custom_call.1} parent=11 // pred_check
          %p392 = pneg %p52
        $region14: #{tpu_custom_call.1} parent=11 // pred_check_branch
          %394 = sbr.rel (%p392) target = $region16
        $region15: #{tpu_custom_call.1} parent=11 // pred_region
          %s396 = ssub.s32 3584, 3584
          %397 = vsyncadd [#allocation6], %s396
          %s398 = sshll.u32 [#allocation5], 4
          %s399 = int_to_ptr.vmem [resolvable:$true] %s398
          %404 = dma.hbm_to_vmem [thread:$0]  %s0, 3584, %s399, [#allocation6], 128, 128, 8
        $region16: #{tpu_custom_call.1} parent=11 // pred_fallthru
          _
        // Predicated region
        $region17: #{tpu_custom_call.1} parent=11 // pred_check
          %p405 = pneg %p73
        $region18: #{tpu_custom_call.1} parent=11 // pred_check_branch
          %407 = sbr.rel (%p405) target = $region20
        $region19: #{tpu_custom_call.1} parent=11 // pred_region
          _
        $region20: #{tpu_custom_call.1} parent=11 // pred_fallthru
          _
        // Predicated region
        $region21: #{tpu_custom_call.1} parent=11 // pred_check
          %p408 = pneg %p94
        $region22: #{tpu_custom_call.1} parent=11 // pred_check_branch
          %410 = sbr.rel (%p408) target = $region24
        $region23: #{tpu_custom_call.1} parent=11 // pred_region
          %s412 = ssub.s32 512, 512
          %413 = vsyncadd [#allocation9], %s412
          %s414 = sshll.u32 [#allocation8], 4
          %s415 = int_to_ptr.vmem [resolvable:$true] %s414
          %420 = dma.hbm_to_vmem [thread:$0]  %s2, 512, %s415, [#allocation9], 64, 64, 4
        $region24: #{tpu_custom_call.1} parent=11 // pred_fallthru
          _
        // Predicated region
        $region25: #{tpu_custom_call.1} parent=11 // pred_check
          %p421 = pneg %p115
        $region26: #{tpu_custom_call.1} parent=11 // pred_check_branch
          %423 = sbr.rel (%p421) target = $region28
        $region27: #{tpu_custom_call.1} parent=11 // pred_region
          %s425 = ssub.s32 10240, 10240
          %426 = vsyncadd [#allocation9], %s425
          %s427 = sshll.u32 [#allocation10], 4
          %s428 = int_to_ptr.vmem [resolvable:$true] %s427
          %433 = dma.hbm_to_vmem [thread:$0]  %s3, 10240, %s428, [#allocation9], 64, 64, 4
        $region28: #{tpu_custom_call.1} parent=11 // pred_fallthru
          _
        // Predicated region
        $region29: #{tpu_custom_call.1} parent=11 // pred_check
          %p434 = pneg %p136
        $region30: #{tpu_custom_call.1} parent=11 // pred_check_branch
          %436 = sbr.rel (%p434) target = $region32
        $region31: #{tpu_custom_call.1} parent=11 // pred_region
          _
        $region32: #{tpu_custom_call.1} parent=11 // pred_fallthru
          _
        // Predicated region
        $region33: #{tpu_custom_call.1} parent=11 // pred_check
          %p437 = pneg %p157
        $region34: #{tpu_custom_call.1} parent=11 // pred_check_branch
          %439 = sbr.rel (%p437) target = $region36
        $region35: #{tpu_custom_call.1} parent=11 // pred_region
          _
        $region36: #{tpu_custom_call.1} parent=11 // pred_fallthru
          _
        // Predicated region
        $region37: #{tpu_custom_call.1} parent=11 // pred_check
          %p440 = pneg %p178
        $region38: #{tpu_custom_call.1} parent=11 // pred_check_branch
          %442 = sbr.rel (%p440) target = $region40
        $region39: #{tpu_custom_call.1} parent=11 // pred_region
          _
        $region40: #{tpu_custom_call.1} parent=11 // pred_fallthru
          _
        // Predicated region
        $region41: #{tpu_custom_call.1} parent=11 // pred_check
          %p443 = pneg %p199
        $region42: #{tpu_custom_call.1} parent=11 // pred_check_branch
          %445 = sbr.rel (%p443) target = $region44
        $region43: #{tpu_custom_call.1} parent=11 // pred_region
          _
        $region44: #{tpu_custom_call.1} parent=11 // pred_fallthru
          _
        // Predicated region
        $region45: #{tpu_custom_call.1} parent=11 // pred_check
          %p446 = pneg %p220
        $region46: #{tpu_custom_call.1} parent=11 // pred_check_branch
          %448 = sbr.rel (%p446) target = $region48
        $region47: #{tpu_custom_call.1} parent=11 // pred_region
          _
        $region48: #{tpu_custom_call.1} parent=11 // pred_fallthru
          _
        // Predicated region
        $region49: #{tpu_custom_call.1} parent=11 // pred_check
          %p449 = pneg %p241
        $region50: #{tpu_custom_call.1} parent=11 // pred_check_branch
          %451 = sbr.rel (%p449) target = $region52
        $region51: #{tpu_custom_call.1} parent=11 // pred_region
          %s453 = ssub.s32 5120, 5120
          %454 = vsyncadd [#allocation12], %s453
          %s455 = sshll.u32 [#allocation11], 4
          %s456 = int_to_ptr.vmem [resolvable:$true] %s455
          %461 = dma.hbm_to_vmem [thread:$0]  %s9, 5120, %s456, [#allocation12], 64, 64, 4
        $region52: #{tpu_custom_call.1} parent=11 // pred_fallthru
          _
        // Predicated region
        $region53: #{tpu_custom_call.1} parent=11 // pred_check
          %p462 = pneg %p262
        $region54: #{tpu_custom_call.1} parent=11 // pred_check_branch
          %464 = sbr.rel (%p462) target = $region56
        $region55: #{tpu_custom_call.1} parent=11 // pred_region
          _
        $region56: #{tpu_custom_call.1} parent=11 // pred_fallthru
          _
        // Predicated region
        $region57: #{tpu_custom_call.1} parent=11 // pred_check
          %p465 = pneg %p283
        $region58: #{tpu_custom_call.1} parent=11 // pred_check_branch
          %467 = sbr.rel (%p465) target = $region60
        $region59: #{tpu_custom_call.1} parent=11 // pred_region
          _
        $region60: #{tpu_custom_call.1} parent=11 // pred_fallthru
          _
        // Predicated region
        $region61: #{tpu_custom_call.1} parent=11 // pred_check
          %p468 = pneg %p304
        $region62: #{tpu_custom_call.1} parent=11 // pred_check_branch
          %470 = sbr.rel (%p468) target = $region64
        $region63: #{tpu_custom_call.1} parent=11 // pred_region
          %s472 = ssub.s32 1024, 1024
          %473 = vsyncadd [#allocation12], %s472
          %s474 = sshll.u32 [#allocation13], 4
          %s475 = int_to_ptr.vmem [resolvable:$true] %s474
          %480 = dma.hbm_to_vmem [thread:$0]  %s12, 1024, %s475, [#allocation12], 64, 64, 4
        $region64: #{tpu_custom_call.1} parent=11 // pred_fallthru
          _
        // Predicated region
        $region65: #{tpu_custom_call.1} parent=11 // pred_check
          %p481 = pneg %p325
        $region66: #{tpu_custom_call.1} parent=11 // pred_check_branch
          %483 = sbr.rel (%p481) target = $region68
        $region67: #{tpu_custom_call.1} parent=11 // pred_region
          _
        $region68: #{tpu_custom_call.1} parent=11 // pred_fallthru
          _
      $region12: #{tpu_custom_call.1} parent=5 // pred_fallthru
        _
      %p484 = scmp.lt.s32.totalorder %s31, 2
      // Predicated region
      $region69: #{tpu_custom_call.1} parent=5 // pred_check
        %p485 = pneg %p484
      $region70: #{tpu_custom_call.1} parent=5 // pred_check_branch
        %487 = sbr.rel (%p485) target = $region72
      $region71: #{tpu_custom_call.1} parent=5 // pred_region
        _
      $region72: #{tpu_custom_call.1} parent=5 // pred_fallthru
        _
      %p488 = scmp.le.s32.totalorder 1, %s31
      %p489 = scmp.lt.s32.totalorder %s31, 3
      %p490 = pnand %p488, %p489
      %p491 = pneg %p490
      // Predicated region
      $region73: #{tpu_custom_call.1} parent=5 // pred_check
        _
      $region74: #{tpu_custom_call.1} parent=5 // pred_check_branch
        %493 = sbr.rel (%p490) target = $region76
      $region75: #{tpu_custom_call.1} parent=5 // pred_region
        %s494 = ssub.s32 %s31, 1
        // Predicated region
        $region77: #{tpu_custom_call.1} parent=75 // pred_check
          %p495 = pneg %p52
        $region78: #{tpu_custom_call.1} parent=75 // pred_check_branch
          %497 = sbr.rel (%p495) target = $region80
        $region79: #{tpu_custom_call.1} parent=75 // pred_region
          %498 = dma.done [#allocation6], 3584
        $region80: #{tpu_custom_call.1} parent=75 // pred_fallthru
          _
        // Predicated region
        $region81: #{tpu_custom_call.1} parent=75 // pred_check
          %p499 = pneg %p94
        $region82: #{tpu_custom_call.1} parent=75 // pred_check_branch
          %501 = sbr.rel (%p499) target = $region84
        $region83: #{tpu_custom_call.1} parent=75 // pred_region
          %502 = dma.done [#allocation9], 512
        $region84: #{tpu_custom_call.1} parent=75 // pred_fallthru
          _
        // Predicated region
        $region85: #{tpu_custom_call.1} parent=75 // pred_check
          %p503 = pneg %p115
        $region86: #{tpu_custom_call.1} parent=75 // pred_check_branch
          %505 = sbr.rel (%p503) target = $region88
        $region87: #{tpu_custom_call.1} parent=75 // pred_region
          %506 = dma.done [#allocation9], 10240
        $region88: #{tpu_custom_call.1} parent=75 // pred_fallthru
          _
        // Predicated region
        $region89: #{tpu_custom_call.1} parent=75 // pred_check
          %p507 = pneg %p241
        $region90: #{tpu_custom_call.1} parent=75 // pred_check_branch
          %509 = sbr.rel (%p507) target = $region92
        $region91: #{tpu_custom_call.1} parent=75 // pred_region
          %510 = dma.done [#allocation12], 5120
        $region92: #{tpu_custom_call.1} parent=75 // pred_fallthru
          _
        // Predicated region
        $region93: #{tpu_custom_call.1} parent=75 // pred_check
          %p511 = pneg %p304
        $region94: #{tpu_custom_call.1} parent=75 // pred_check_branch
          %513 = sbr.rel (%p511) target = $region96
        $region95: #{tpu_custom_call.1} parent=75 // pred_region
          %514 = dma.done [#allocation12], 1024
        $region96: #{tpu_custom_call.1} parent=75 // pred_fallthru
          _
        %p515 = pneg %p52
        %p516 = pneg %p49
        %p517 = pneg %p73
        %p518 = pneg %p70
        %p519 = pneg %p94
        %p520 = pneg %p91
        %p521 = pneg %p115
        %p522 = pneg %p112
        %p523 = pneg %p136
        %p524 = pneg %p133
        %p525 = pneg %p157
        %p526 = pneg %p154
        %p527 = pneg %p178
        %p528 = pneg %p175
        %p529 = pneg %p199
        %p530 = pneg %p196
        %p531 = pneg %p220
        %p532 = pneg %p217
        %p533 = pneg %p241
        %p534 = pneg %p238
        %p535 = pneg %p262
        %p536 = pneg %p259
        %p537 = pneg %p283
        %p538 = pneg %p280
        %p539 = pneg %p304
        %p540 = pneg %p301
        %p541 = pneg %p325
        %p542 = pneg %p322
        %p543 = pneg %p351
        %p544 = pneg %p348
        %s545 = sand.u32 %s338, 1
        %s546 = scalar_lea.sflag [#allocation7], %s545
        %s547 = sand.u32 %s338, 1
        %s548 = smul.addr %s547, 104
        %s549 = scalar_lea.vmem [#allocation14], %s548
        %p550 = pneg %p377
        %p551 = pneg %p374
        %s552 = sand.u32 %s364, 1
        %s553 = scalar_lea.sflag [#allocation16], %s552
        %s554 = sand.u32 %s364, 1
        %s555 = smul.addr %s554, 104
        %s556 = scalar_lea.vmem [#allocation15], %s555
        %s557 = smul.u32 13, %s36
        %s558 = smul.u32 13, %s36
        %s560 = smul.u32 %s36, 104
        %s561 = scalar_lea.vmem [#allocation5], %s560
        %v562 = vld [vmem:[%s561] sm:$0xff]
        %v563 = vld [vmem:[%s561 + $0x8] sm:$0xff]
        %v564 = vld [vmem:[%s561 + $0x10] sm:$0xff]
        %v565 = vld [vmem:[%s561 + $0x18] sm:$0xff]
        %v566 = vld [vmem:[%s561 + $0x20] sm:$0xff]
        %v567 = vld [vmem:[%s561 + $0x28] sm:$0xff]
        %v568 = vld [vmem:[%s561 + $0x30] sm:$0xff]
        %v569 = vld [vmem:[%s561 + $0x38] sm:$0xff]
        %v570 = vld [vmem:[%s561 + $0x40] sm:$0xff]
        %v571 = vld [vmem:[%s561 + $0x48] sm:$0xff]
        %v572 = vld [vmem:[%s561 + $0x50] sm:$0xff]
        %v573 = vld [vmem:[%s561 + $0x58] sm:$0xff]
        %v574 = vld [vmem:[%s561 + $0x60] sm:$0xff]
        %v575 = vld [vmem:[%s561 + $0x68] sm:$0xff]
        %v576 = vld [vmem:[%s561 + $0x70] sm:$0xff]
        %s577 = scalar_lea.vmem %s1, %s560
        %v578 = vld [vmem:[%s577] sm:$0xff]
        %v579 = vld [vmem:[%s577 + $0x8] sm:$0xff]
        %v580 = vld [vmem:[%s577 + $0x10] sm:$0xff]
        %v581 = vld [vmem:[%s577 + $0x18] sm:$0xff]
        %v582 = vld [vmem:[%s577 + $0x20] sm:$0xff]
        %v583 = vld [vmem:[%s577 + $0x28] sm:$0xff]
        %v584 = vld [vmem:[%s577 + $0x30] sm:$0xff]
        %v585 = vld [vmem:[%s577 + $0x38] sm:$0xff]
        %v586 = vld [vmem:[%s577 + $0x40] sm:$0xff]
        %v587 = vld [vmem:[%s577 + $0x48] sm:$0xff]
        %v588 = vld [vmem:[%s577 + $0x50] sm:$0xff]
        %v589 = vld [vmem:[%s577 + $0x58] sm:$0xff]
        %v590 = vld [vmem:[%s577 + $0x60] sm:$0xff]
        %v591 = vld [vmem:[%s577 + $0x68] sm:$0xff]
        %v592 = vld [vmem:[%s577 + $0x70] sm:$0xff]
        %vm593 = vcmask 269312
        %v594 = vsel %vm593, %v578, -inf
        %595 = vmax.xlane.f32.xlu0 %v594
        %v596 = vpop.xlane.xlu0 %595
        %v597 = vsel %vm593, %v579, -inf
        %598 = vmax.xlane.f32.xlu0 %v597
        %v599 = vpop.xlane.xlu0 %598
        %v600 = vsel %vm593, %v580, -inf
        %601 = vmax.xlane.f32.xlu0 %v600
        %v602 = vpop.xlane.xlu0 %601
        %v603 = vsel %vm593, %v581, -inf
        %604 = vmax.xlane.f32.xlu0 %v603
        %v605 = vpop.xlane.xlu0 %604
        %v606 = vsel %vm593, %v582, -inf
        %607 = vmax.xlane.f32.xlu0 %v606
        %v608 = vpop.xlane.xlu0 %607
        %v609 = vsel %vm593, %v583, -inf
        %610 = vmax.xlane.f32.xlu0 %v609
        %v611 = vpop.xlane.xlu0 %610
        %v612 = vsel %vm593, %v584, -inf
        %613 = vmax.xlane.f32.xlu0 %v612
        %v614 = vpop.xlane.xlu0 %613
        %v615 = vsel %vm593, %v585, -inf
        %616 = vmax.xlane.f32.xlu0 %v615
        %v617 = vpop.xlane.xlu0 %616
        %v618 = vsel %vm593, %v586, -inf
        %619 = vmax.xlane.f32.xlu0 %v618
        %v620 = vpop.xlane.xlu0 %619
        %v621 = vsel %vm593, %v587, -inf
        %622 = vmax.xlane.f32.xlu0 %v621
        %v623 = vpop.xlane.xlu0 %622
        %v624 = vsel %vm593, %v588, -inf
        %625 = vmax.xlane.f32.xlu0 %v624
        %v626 = vpop.xlane.xlu0 %625
        %v627 = vsel %vm593, %v589, -inf
        %628 = vmax.xlane.f32.xlu0 %v627
        %v629 = vpop.xlane.xlu0 %628
        %v630 = vsel %vm593, %v590, -inf
        %631 = vmax.xlane.f32.xlu0 %v630
        %v632 = vpop.xlane.xlu0 %631
        %v633 = vsel %vm593, %v591, -inf
        %634 = vmax.xlane.f32.xlu0 %v633
        %v635 = vpop.xlane.xlu0 %634
        %v636 = vsel %vm593, %v592, -inf
        %637 = vmax.xlane.f32.xlu0 %v636
        %v638 = vpop.xlane.xlu0 %637
        %vm639 = vcmp.eq.f32.partialorder %v578, %v596
        %vm640 = vcmp.eq.f32.partialorder %v579, %v599
        %vm641 = vcmp.eq.f32.partialorder %v580, %v602
        %vm642 = vcmp.eq.f32.partialorder %v581, %v605
        %vm643 = vcmp.eq.f32.partialorder %v582, %v608
        %vm644 = vcmp.eq.f32.partialorder %v583, %v611
        %vm645 = vcmp.eq.f32.partialorder %v584, %v614
        %vm646 = vcmp.eq.f32.partialorder %v585, %v617
        %vm647 = vcmp.eq.f32.partialorder %v586, %v620
        %vm648 = vcmp.eq.f32.partialorder %v587, %v623
        %vm649 = vcmp.eq.f32.partialorder %v588, %v626
        %vm650 = vcmp.eq.f32.partialorder %v589, %v629
        %vm651 = vcmp.eq.f32.partialorder %v590, %v632
        %vm652 = vcmp.eq.f32.partialorder %v591, %v635
        %vm653 = vcmp.eq.f32.partialorder %v592, %v638
        %v654 = vsel %vm639, 1, 0
        %v655 = vsel %vm640, 1, 0
        %v656 = vsel %vm641, 1, 0
        %v657 = vsel %vm642, 1, 0
        %v658 = vsel %vm643, 1, 0
        %v659 = vsel %vm644, 1, 0
        %v660 = vsel %vm645, 1, 0
        %v661 = vsel %vm646, 1, 0
        %v662 = vsel %vm647, 1, 0
        %v663 = vsel %vm648, 1, 0
        %v664 = vsel %vm649, 1, 0
        %v665 = vsel %vm650, 1, 0
        %v666 = vsel %vm651, 1, 0
        %v667 = vsel %vm652, 1, 0
        %v668 = vsel %vm653, 1, 0
        %v669 = vcvt.s32.f32 %v654
        %v670 = vcvt.s32.f32 %v655
        %v671 = vcvt.s32.f32 %v656
        %v672 = vcvt.s32.f32 %v657
        %v673 = vcvt.s32.f32 %v658
        %v674 = vcvt.s32.f32 %v659
        %v675 = vcvt.s32.f32 %v660
        %v676 = vcvt.s32.f32 %v661
        %v677 = vcvt.s32.f32 %v662
        %v678 = vcvt.s32.f32 %v663
        %v679 = vcvt.s32.f32 %v664
        %v680 = vcvt.s32.f32 %v665
        %v681 = vcvt.s32.f32 %v666
        %v682 = vcvt.s32.f32 %v667
        %v683 = vcvt.s32.f32 %v668
        %v684 = vsel %vm593, %v669, 0.0
        %685 = vadd.xlane.f32.xlu0 %v684
        %v686 = vpop.xlane.xlu0 %685
        %v687 = vsel %vm593, %v670, 0.0
        %688 = vadd.xlane.f32.xlu0 %v687
        %v689 = vpop.xlane.xlu0 %688
        %v690 = vsel %vm593, %v671, 0.0
        %691 = vadd.xlane.f32.xlu0 %v690
        %v692 = vpop.xlane.xlu0 %691
        %v693 = vsel %vm593, %v672, 0.0
        %694 = vadd.xlane.f32.xlu0 %v693
        %v695 = vpop.xlane.xlu0 %694
        %v696 = vsel %vm593, %v673, 0.0
        %697 = vadd.xlane.f32.xlu0 %v696
        %v698 = vpop.xlane.xlu0 %697
        %v699 = vsel %vm593, %v674, 0.0
        %700 = vadd.xlane.f32.xlu0 %v699
        %v701 = vpop.xlane.xlu0 %700
        %v702 = vsel %vm593, %v675, 0.0
        %703 = vadd.xlane.f32.xlu0 %v702
        %v704 = vpop.xlane.xlu0 %703
        %v705 = vsel %vm593, %v676, 0.0
        %706 = vadd.xlane.f32.xlu0 %v705
        %v707 = vpop.xlane.xlu0 %706
        %v708 = vsel %vm593, %v677, 0.0
        %709 = vadd.xlane.f32.xlu0 %v708
        %v710 = vpop.xlane.xlu0 %709
        %v711 = vsel %vm593, %v678, 0.0
        %712 = vadd.xlane.f32.xlu0 %v711
        %v713 = vpop.xlane.xlu0 %712
        %v714 = vsel %vm593, %v679, 0.0
        %715 = vadd.xlane.f32.xlu0 %v714
        %v716 = vpop.xlane.xlu0 %715
        %v717 = vsel %vm593, %v680, 0.0
        %718 = vadd.xlane.f32.xlu0 %v717
        %v719 = vpop.xlane.xlu0 %718
        %v720 = vsel %vm593, %v681, 0.0
        %721 = vadd.xlane.f32.xlu0 %v720
        %v722 = vpop.xlane.xlu0 %721
        %v723 = vsel %vm593, %v682, 0.0
        %724 = vadd.xlane.f32.xlu0 %v723
        %v725 = vpop.xlane.xlu0 %724
        %v726 = vsel %vm593, %v683, 0.0
        %727 = vadd.xlane.f32.xlu0 %v726
        %v728 = vpop.xlane.xlu0 %727
        %v729 = vsel %vm639, -inf, %v578
        %v730 = vsel %vm640, -inf, %v579
        %v731 = vsel %vm641, -inf, %v580
        %v732 = vsel %vm642, -inf, %v581
        %v733 = vsel %vm643, -inf, %v582
        %v734 = vsel %vm644, -inf, %v583
        %v735 = vsel %vm645, -inf, %v584
        %v736 = vsel %vm646, -inf, %v585
        %v737 = vsel %vm647, -inf, %v586
        %v738 = vsel %vm648, -inf, %v587
        %v739 = vsel %vm649, -inf, %v588
        %v740 = vsel %vm650, -inf, %v589
        %v741 = vsel %vm651, -inf, %v590
        %v742 = vsel %vm652, -inf, %v591
        %v743 = vsel %vm653, -inf, %v592
        %v744 = vsel %vm593, %v729, -inf
        %745 = vmax.xlane.f32.xlu0 %v744
        %v746 = vpop.xlane.xlu0 %745
        %v747 = vsel %vm593, %v730, -inf
        %748 = vmax.xlane.f32.xlu0 %v747
        %v749 = vpop.xlane.xlu0 %748
        %v750 = vsel %vm593, %v731, -inf
        %751 = vmax.xlane.f32.xlu0 %v750
        %v752 = vpop.xlane.xlu0 %751
        %v753 = vsel %vm593, %v732, -inf
        %754 = vmax.xlane.f32.xlu0 %v753
        %v755 = vpop.xlane.xlu0 %754
        %v756 = vsel %vm593, %v733, -inf
        %757 = vmax.xlane.f32.xlu0 %v756
        %v758 = vpop.xlane.xlu0 %757
        %v759 = vsel %vm593, %v734, -inf
        %760 = vmax.xlane.f32.xlu0 %v759
        %v761 = vpop.xlane.xlu0 %760
        %v762 = vsel %vm593, %v735, -inf
        %763 = vmax.xlane.f32.xlu0 %v762
        %v764 = vpop.xlane.xlu0 %763
        %v765 = vsel %vm593, %v736, -inf
        %766 = vmax.xlane.f32.xlu0 %v765
        %v767 = vpop.xlane.xlu0 %766
        %v768 = vsel %vm593, %v737, -inf
        %769 = vmax.xlane.f32.xlu0 %v768
        %v770 = vpop.xlane.xlu0 %769
        %v771 = vsel %vm593, %v738, -inf
        %772 = vmax.xlane.f32.xlu0 %v771
        %v773 = vpop.xlane.xlu0 %772
        %v774 = vsel %vm593, %v739, -inf
        %775 = vmax.xlane.f32.xlu0 %v774
        %v776 = vpop.xlane.xlu0 %775
        %v777 = vsel %vm593, %v740, -inf
        %778 = vmax.xlane.f32.xlu0 %v777
        %v779 = vpop.xlane.xlu0 %778
        %v780 = vsel %vm593, %v741, -inf
        %781 = vmax.xlane.f32.xlu0 %v780
        %v782 = vpop.xlane.xlu0 %781
        %v783 = vsel %vm593, %v742, -inf
        %784 = vmax.xlane.f32.xlu0 %v783
        %v785 = vpop.xlane.xlu0 %784
        %v786 = vsel %vm593, %v743, -inf
        %787 = vmax.xlane.f32.xlu0 %v786
        %v788 = vpop.xlane.xlu0 %787
        %vm789 = vcmp.gt.f32.partialorder %v686, 1.5
        %vm790 = vcmp.gt.f32.partialorder %v689, 1.5
        %vm791 = vcmp.gt.f32.partialorder %v692, 1.5
        %vm792 = vcmp.gt.f32.partialorder %v695, 1.5
        %vm793 = vcmp.gt.f32.partialorder %v698, 1.5
        %vm794 = vcmp.gt.f32.partialorder %v701, 1.5
        %vm795 = vcmp.gt.f32.partialorder %v704, 1.5
        %vm796 = vcmp.gt.f32.partialorder %v707, 1.5
        %vm797 = vcmp.gt.f32.partialorder %v710, 1.5
        %vm798 = vcmp.gt.f32.partialorder %v713, 1.5
        %vm799 = vcmp.gt.f32.partialorder %v716, 1.5
        %vm800 = vcmp.gt.f32.partialorder %v719, 1.5
        %vm801 = vcmp.gt.f32.partialorder %v722, 1.5
        %vm802 = vcmp.gt.f32.partialorder %v725, 1.5
        %vm803 = vcmp.gt.f32.partialorder %v728, 1.5
        %v804 = vsel %vm789, %v596, %v746
        %v805 = vsel %vm790, %v599, %v749
        %v806 = vsel %vm791, %v602, %v752
        %v807 = vsel %vm792, %v605, %v755
        %v808 = vsel %vm793, %v608, %v758
        %v809 = vsel %vm794, %v611, %v761
        %v810 = vsel %vm795, %v614, %v764
        %v811 = vsel %vm796, %v617, %v767
        %v812 = vsel %vm797, %v620, %v770
        %v813 = vsel %vm798, %v623, %v773
        %v814 = vsel %vm799, %v626, %v776
        %v815 = vsel %vm800, %v629, %v779
        %v816 = vsel %vm801, %v632, %v782
        %v817 = vsel %vm802, %v635, %v785
        %v818 = vsel %vm803, %v638, %v788
        %v819 = vadd.f32 %v804, 1e-05
        %v820 = vadd.f32 %v805, 1e-05
        %v821 = vadd.f32 %v806, 1e-05
        %v822 = vadd.f32 %v807, 1e-05
        %v823 = vadd.f32 %v808, 1e-05
        %v824 = vadd.f32 %v809, 1e-05
        %v825 = vadd.f32 %v810, 1e-05
        %v826 = vadd.f32 %v811, 1e-05
        %v827 = vadd.f32 %v812, 1e-05
        %v828 = vadd.f32 %v813, 1e-05
        %v829 = vadd.f32 %v814, 1e-05
        %v830 = vadd.f32 %v815, 1e-05
        %v831 = vadd.f32 %v816, 1e-05
        %v832 = vadd.f32 %v817, 1e-05
        %v833 = vadd.f32 %v818, 1e-05
        %v834 = vrcp.pop %v819
        %v835 = vmul.f32 %v596, %v834
        %v836 = vrcp.pop %v820
        %v837 = vmul.f32 %v599, %v836
        %v838 = vrcp.pop %v821
        %v839 = vmul.f32 %v602, %v838
        %v840 = vrcp.pop %v822
        %v841 = vmul.f32 %v605, %v840
        %v842 = vrcp.pop %v823
        %v843 = vmul.f32 %v608, %v842
        %v844 = vrcp.pop %v824
        %v845 = vmul.f32 %v611, %v844
        %v846 = vrcp.pop %v825
        %v847 = vmul.f32 %v614, %v846
        %v848 = vrcp.pop %v826
        %v849 = vmul.f32 %v617, %v848
        %v850 = vrcp.pop %v827
        %v851 = vmul.f32 %v620, %v850
        %v852 = vrcp.pop %v828
        %v853 = vmul.f32 %v623, %v852
        %v854 = vrcp.pop %v829
        %v855 = vmul.f32 %v626, %v854
        %v856 = vrcp.pop %v830
        %v857 = vmul.f32 %v629, %v856
        %v858 = vrcp.pop %v831
        %v859 = vmul.f32 %v632, %v858
        %v860 = vrcp.pop %v832
        %v861 = vmul.f32 %v635, %v860
        %v862 = vrcp.pop %v833
        %v863 = vmul.f32 %v638, %v862
        %vm864 = vcmp.ne.f32.partialorder %v835, %v835
        %vm865 = vcmp.ne.f32.partialorder %v837, %v837
        %vm866 = vcmp.ne.f32.partialorder %v839, %v839
        %vm867 = vcmp.ne.f32.partialorder %v841, %v841
        %vm868 = vcmp.ne.f32.partialorder %v843, %v843
        %vm869 = vcmp.ne.f32.partialorder %v845, %v845
        %vm870 = vcmp.ne.f32.partialorder %v847, %v847
        %vm871 = vcmp.ne.f32.partialorder %v849, %v849
        %vm872 = vcmp.ne.f32.partialorder %v851, %v851
        %vm873 = vcmp.ne.f32.partialorder %v853, %v853
        %vm874 = vcmp.ne.f32.partialorder %v855, %v855
        %vm875 = vcmp.ne.f32.partialorder %v857, %v857
        %vm876 = vcmp.ne.f32.partialorder %v859, %v859
        %vm877 = vcmp.ne.f32.partialorder %v861, %v861
        %vm878 = vcmp.ne.f32.partialorder %v863, %v863
        %v879 = vsel %vm864, 0.0, %v835
        %v880 = vsel %vm865, 0.0, %v837
        %v881 = vsel %vm866, 0.0, %v839
        %v882 = vsel %vm867, 0.0, %v841
        %v883 = vsel %vm868, 0.0, %v843
        %v884 = vsel %vm869, 0.0, %v845
        %v885 = vsel %vm870, 0.0, %v847
        %v886 = vsel %vm871, 0.0, %v849
        %v887 = vsel %vm872, 0.0, %v851
        %v888 = vsel %vm873, 0.0, %v853
        %v889 = vsel %vm874, 0.0, %v855
        %v890 = vsel %vm875, 0.0, %v857
        %v891 = vsel %vm876, 0.0, %v859
        %v892 = vsel %vm877, 0.0, %v861
        %v893 = vsel %vm878, 0.0, %v863
        %v894 = vmax.f32 %v879, 0.0
        %v895 = vmax.f32 %v880, 0.0
        %v896 = vmax.f32 %v881, 0.0
        %v897 = vmax.f32 %v882, 0.0
        %v898 = vmax.f32 %v883, 0.0
        %v899 = vmax.f32 %v884, 0.0
        %v900 = vmax.f32 %v885, 0.0
        %v901 = vmax.f32 %v886, 0.0
        %v902 = vmax.f32 %v887, 0.0
        %v903 = vmax.f32 %v888, 0.0
        %v904 = vmax.f32 %v889, 0.0
        %v905 = vmax.f32 %v890, 0.0
        %v906 = vmax.f32 %v891, 0.0
        %v907 = vmax.f32 %v892, 0.0
        %v908 = vmax.f32 %v893, 0.0
        %v909 = vmin.f32 %v894, 49.0
        %v910 = vmin.f32 %v895, 49.0
        %v911 = vmin.f32 %v896, 49.0
        %v912 = vmin.f32 %v897, 49.0
        %v913 = vmin.f32 %v898, 49.0
        %v914 = vmin.f32 %v899, 49.0
        %v915 = vmin.f32 %v900, 49.0
        %v916 = vmin.f32 %v901, 49.0
        %v917 = vmin.f32 %v902, 49.0
        %v918 = vmin.f32 %v903, 49.0
        %v919 = vmin.f32 %v904, 49.0
        %v920 = vmin.f32 %v905, 49.0
        %v921 = vmin.f32 %v906, 49.0
        %v922 = vmin.f32 %v907, 49.0
        %v923 = vmin.f32 %v908, 49.0
        %v924 = vcvt.f32.s32.to.zero.pseudo %v909
        %v925 = vcvt.f32.s32.to.zero.pseudo %v910
        %v926 = vcvt.f32.s32.to.zero.pseudo %v911
        %v927 = vcvt.f32.s32.to.zero.pseudo %v912
        %v928 = vcvt.f32.s32.to.zero.pseudo %v913
        %v929 = vcvt.f32.s32.to.zero.pseudo %v914
        %v930 = vcvt.f32.s32.to.zero.pseudo %v915
        %v931 = vcvt.f32.s32.to.zero.pseudo %v916
        %v932 = vcvt.f32.s32.to.zero.pseudo %v917
        %v933 = vcvt.f32.s32.to.zero.pseudo %v918
        %v934 = vcvt.f32.s32.to.zero.pseudo %v919
        %v935 = vcvt.f32.s32.to.zero.pseudo %v920
        %v936 = vcvt.f32.s32.to.zero.pseudo %v921
        %v937 = vcvt.f32.s32.to.zero.pseudo %v922
        %v938 = vcvt.f32.s32.to.zero.pseudo %v923
        %v939 = vlaneseq
        %v940 = vand.u32 %v939, 127
        %vm941 = vcmp.eq.s32.totalorder %v940, %v924
        %vm942 = vcmp.eq.s32.totalorder %v940, %v925
        %vm943 = vcmp.eq.s32.totalorder %v940, %v926
        %vm944 = vcmp.eq.s32.totalorder %v940, %v927
        %vm945 = vcmp.eq.s32.totalorder %v940, %v928
        %vm946 = vcmp.eq.s32.totalorder %v940, %v929
        %vm947 = vcmp.eq.s32.totalorder %v940, %v930
        %vm948 = vcmp.eq.s32.totalorder %v940, %v931
        %vm949 = vcmp.eq.s32.totalorder %v940, %v932
        %vm950 = vcmp.eq.s32.totalorder %v940, %v933
        %vm951 = vcmp.eq.s32.totalorder %v940, %v934
        %vm952 = vcmp.eq.s32.totalorder %v940, %v935
        %vm953 = vcmp.eq.s32.totalorder %v940, %v936
        %vm954 = vcmp.eq.s32.totalorder %v940, %v937
        %vm955 = vcmp.eq.s32.totalorder %v940, %v938
        %v956 = vsel %vm941, 1, 0
        %v957 = vsel %vm942, 1, 0
        %v958 = vsel %vm943, 1, 0
        %v959 = vsel %vm944, 1, 0
        %v960 = vsel %vm945, 1, 0
        %v961 = vsel %vm946, 1, 0
        %v962 = vsel %vm947, 1, 0
        %v963 = vsel %vm948, 1, 0
        %v964 = vsel %vm949, 1, 0
        %v965 = vsel %vm950, 1, 0
        %v966 = vsel %vm951, 1, 0
        %v967 = vsel %vm952, 1, 0
        %v968 = vsel %vm953, 1, 0
        %v969 = vsel %vm954, 1, 0
        %v970 = vsel %vm955, 1, 0
        %v971 = vcvt.s32.f32 %v956
        %v972 = vcvt.s32.f32 %v957
        %v973 = vcvt.s32.f32 %v958
        %v974 = vcvt.s32.f32 %v959
        %v975 = vcvt.s32.f32 %v960
        %v976 = vcvt.s32.f32 %v961
        %v977 = vcvt.s32.f32 %v962
        %v978 = vcvt.s32.f32 %v963
        %v979 = vcvt.s32.f32 %v964
        %v980 = vcvt.s32.f32 %v965
        %v981 = vcvt.s32.f32 %v966
        %v982 = vcvt.s32.f32 %v967
        %v983 = vcvt.s32.f32 %v968
        %v984 = vcvt.s32.f32 %v969
        %v985 = vcvt.s32.f32 %v970
        %v986 = vpack.c.bf16 %v972, %v971
        %v987 = vpack.c.bf16 %v974, %v973
        %v988 = vpack.c.bf16 %v976, %v975
        %v989 = vpack.c.bf16 %v978, %v977
        %v990 = vpack.c.bf16 %v980, %v979
        %v991 = vpack.c.bf16 %v982, %v981
        %v992 = vpack.c.bf16 %v984, %v983
        %v993 = vpack.c.bf16 %v985, %v985
        %v994 = vld [vmem:[#allocation8] sm:$0xf]
        %v995 = vld [vmem:[#allocation8 + $0x4] sm:$0xf]
        %v996 = vld [vmem:[#allocation8 + $0x8] sm:$0xf]
        %v997 = vld [vmem:[#allocation8 + $0xc] sm:$0xf]
        %v998 = vld [vmem:[#allocation8 + $0x10] sm:$0xf]
        %v999 = vld [vmem:[#allocation8 + $0x14] sm:$0xf]
        %v1000 = vld [vmem:[#allocation8 + $0x18] sm:$0xf]
        %v1001 = vld [vmem:[#allocation8 + $0x1c] sm:$0xf]
        %v1010 = vunpack.c.l.b16 %v994
        %v1011 = vunpack.c.l.b16 %v995
        %v1012 = vunpack.c.l.b16 %v996
        %v1013 = vunpack.c.l.b16 %v997
        %v1014 = vunpack.c.l.b16 %v998
        %v1015 = vunpack.c.l.b16 %v999
        %v1016 = vunpack.c.l.b16 %v1000
        %v1017 = vunpack.c.l.b16 %v1001
        %v1018 = vpack.c.b16 %v1011, %v1010
        %v1019 = vpack.c.b16 %v1013, %v1012
        %v1020 = vpack.c.b16 %v1015, %v1014
        %v1021 = vpack.c.b16 %v1017, %v1016
        %vm1026 = vcmask 523264
        %v1028 = vsel %vm1026, %v986, 0
        %v1031 = vsel %vm1026, %v987, 0
        %v1034 = vsel %vm1026, %v988, 0
        %v1037 = vsel %vm1026, %v989, 0
        %v1040 = vsel %vm1026, %v990, 0
        %v1043 = vsel %vm1026, %v991, 0
        %v1046 = vsel %vm1026, %v992, 0
        %v1049 = vsel %vm1026, %v993, 0
        %1051 = vmatprep.subr.bf16.mxu0 0
        %1052 = vmatpush1.bf16.msra.mxu0 %v1018
        %1053 = vmatprep.subr.bf16.mxu0 0
        %1054 = vmatpush1.bf16.msra.mxu0 %v1019
        %1055 = vmatprep.subr.bf16.mxu0 0
        %1056 = vmatpush1.bf16.msra.mxu0 %v1020
        %1057 = vmatprep.subr.bf16.mxu0 0
        %1058 = vmatpush1.bf16.msra.mxu0 %v1021
        %1059 = vmatprep.subr.bf16.mxu0 0
        %1060 = vmatpush1.bf16.msra.mxu0 0
        %1061 = vmatprep.subr.bf16.mxu0 0
        %1062 = vmatpush1.bf16.msra.mxu0 0
        %1063 = vmatprep.subr.bf16.mxu0 0
        %1064 = vmatpush1.bf16.msra.mxu0 0
        %1065 = vmatprep.subr.bf16.mxu0 0
        %1066 = vmatpush1.bf16.msra.mxu0 0
        %1067 = vmatprep.subr.bf16.mxu0 0
        %1068 = vmatpush1.bf16.msra.mxu0 0
        %1069 = vmatprep.subr.bf16.mxu0 0
        %1070 = vmatpush1.bf16.msra.mxu0 0
        %1071 = vmatprep.subr.bf16.mxu0 0
        %1072 = vmatpush1.bf16.msra.mxu0 0
        %1073 = vmatprep.subr.bf16.mxu0 0
        %1074 = vmatpush1.bf16.msra.mxu0 0
        %1075 = vmatprep.subr.bf16.mxu0 0
        %1076 = vmatpush1.bf16.msra.mxu0 0
        %1077 = vmatprep.subr.bf16.mxu0 0
        %1078 = vmatpush1.bf16.msra.mxu0 0
        %1079 = vmatprep.subr.bf16.mxu0 0
        %1080 = vmatpush1.bf16.msra.mxu0 0
        %1081 = vmatprep.subr.bf16.mxu0 0
        %1082 = vmatpush1.bf16.msra.mxu0 0
        %1083 = vmatprep.mubr.bf16.mxu0 0
        %1084 = vmatmul.mubr.bf16.gmra.mrb[0].mxu0 %v1028
        %v1085 = vpop.f32.mrb[0].mxu0
        %v1086 = vadd.f32 0.0, %v1085
        %v1087 = vpop.f32.mrb[0].mxu0
        %v1088 = vpop.f32.mrb[0].mxu0
        %v1089 = vadd.f32 0.0, %v1088
        %v1090 = vpop.f32.mrb[0].mxu0
        %1091 = vmatprep.mubr.bf16.mxu0 0
        %1092 = vmatmul.mubr.bf16.gmra.mrb[0].mxu0 %v1031
        %v1093 = vpop.f32.mrb[0].mxu0
        %v1094 = vadd.f32 0.0, %v1093
        %v1095 = vpop.f32.mrb[0].mxu0
        %v1096 = vpop.f32.mrb[0].mxu0
        %v1097 = vadd.f32 0.0, %v1096
        %v1098 = vpop.f32.mrb[0].mxu0
        %1099 = vmatprep.mubr.bf16.mxu0 0
        %1100 = vmatmul.mubr.bf16.gmra.mrb[0].mxu0 %v1034
        %v1101 = vpop.f32.mrb[0].mxu0
        %v1102 = vadd.f32 0.0, %v1101
        %v1103 = vpop.f32.mrb[0].mxu0
        %v1104 = vpop.f32.mrb[0].mxu0
        %v1105 = vadd.f32 0.0, %v1104
        %v1106 = vpop.f32.mrb[0].mxu0
        %1107 = vmatprep.mubr.bf16.mxu0 0
        %1108 = vmatmul.mubr.bf16.gmra.mrb[0].mxu0 %v1037
        %v1109 = vpop.f32.mrb[0].mxu0
        %v1110 = vadd.f32 0.0, %v1109
        %v1111 = vpop.f32.mrb[0].mxu0
        %v1112 = vpop.f32.mrb[0].mxu0
        %v1113 = vadd.f32 0.0, %v1112
        %v1114 = vpop.f32.mrb[0].mxu0
        %1115 = vmatprep.mubr.bf16.mxu0 0
        %1116 = vmatmul.mubr.bf16.gmra.mrb[0].mxu0 %v1040
        %v1117 = vpop.f32.mrb[0].mxu0
        %v1118 = vadd.f32 0.0, %v1117
        %v1119 = vpop.f32.mrb[0].mxu0
        %v1120 = vpop.f32.mrb[0].mxu0
        %v1121 = vadd.f32 0.0, %v1120
        %v1122 = vpop.f32.mrb[0].mxu0
        %1123 = vmatprep.mubr.bf16.mxu0 0
        %1124 = vmatmul.mubr.bf16.gmra.mrb[0].mxu0 %v1043
        %v1125 = vpop.f32.mrb[0].mxu0
        %v1126 = vadd.f32 0.0, %v1125
        %v1127 = vpop.f32.mrb[0].mxu0
        %v1128 = vpop.f32.mrb[0].mxu0
        %v1129 = vadd.f32 0.0, %v1128
        %v1130 = vpop.f32.mrb[0].mxu0
        %1131 = vmatprep.mubr.bf16.mxu0 0
        %1132 = vmatmul.mubr.bf16.gmra.mrb[0].mxu0 %v1046
        %v1133 = vpop.f32.mrb[0].mxu0
        %v1134 = vadd.f32 0.0, %v1133
        %v1135 = vpop.f32.mrb[0].mxu0
        %v1136 = vpop.f32.mrb[0].mxu0
        %v1137 = vadd.f32 0.0, %v1136
        %v1138 = vpop.f32.mrb[0].mxu0
        %1139 = vmatprep.mubr.bf16.mxu0 0
        %1140 = vmatmul.mubr.bf16.gmra.mrb[0].mxu0 %v1049
        %v1141 = vpop.f32.mrb[0].mxu0
        %v1142 = vadd.f32 0.0, %v1141
        %v1143 = vpop.f32.mrb[0].mxu0
        %v1144 = vpop.f32.mrb[0].mxu0
        %v1145 = vpop.f32.mrb[0].mxu0
        %1146 = vdwg.mxu0
        %s1147 = ssub.s32 %s560, 8
        %v1148 = vlaneseq
        %v1149 = vshrl.u32 %v1148, 7
        %v1150 = vadd.s32 %v1149, 8
        %v1151 = vadd.s32 %v1149, 16
        %v1152 = vadd.s32 %v1149, 24
        %v1153 = vadd.s32 %v1149, 32
        %v1154 = vadd.s32 %v1149, 40
        %v1155 = vadd.s32 %v1149, 48
        %v1156 = vadd.s32 %v1149, 56
        %v1157 = vadd.s32 %v1149, 64
        %v1158 = vadd.s32 %v1149, 72
        %v1159 = vadd.s32 %v1149, 80
        %v1160 = vadd.s32 %v1149, 88
        %v1161 = vadd.s32 %v1149, 96
        %v1162 = vadd.s32 %v1149, 104
        %v1163 = vadd.s32 %v1149, 112
        %v1164 = vstv %s1147
        %v1165 = vadd.s32 %v1164, %v1149
        %v1166 = vadd.s32 %v1164, %v1150
        %v1167 = vadd.s32 %v1164, %v1151
        %v1168 = vadd.s32 %v1164, %v1152
        %v1169 = vadd.s32 %v1164, %v1153
        %v1170 = vadd.s32 %v1164, %v1154
        %v1171 = vadd.s32 %v1164, %v1155
        %v1172 = vadd.s32 %v1164, %v1156
        %v1173 = vadd.s32 %v1164, %v1157
        %v1174 = vadd.s32 %v1164, %v1158
        %v1175 = vadd.s32 %v1164, %v1159
        %v1176 = vadd.s32 %v1164, %v1160
        %v1177 = vadd.s32 %v1164, %v1161
        %v1178 = vadd.s32 %v1164, %v1162
        %v1179 = vadd.s32 %v1164, %v1163
        %vm1180 = vcmp.ge.s32.totalorder %v1165, 0
        %vm1181 = vcmp.ge.s32.totalorder %v1166, 0
        %vm1182 = vcmp.ge.s32.totalorder %v1167, 0
        %vm1183 = vcmp.ge.s32.totalorder %v1168, 0
        %vm1184 = vcmp.ge.s32.totalorder %v1169, 0
        %vm1185 = vcmp.ge.s32.totalorder %v1170, 0
        %vm1186 = vcmp.ge.s32.totalorder %v1171, 0
        %vm1187 = vcmp.ge.s32.totalorder %v1172, 0
        %vm1188 = vcmp.ge.s32.totalorder %v1173, 0
        %vm1189 = vcmp.ge.s32.totalorder %v1174, 0
        %vm1190 = vcmp.ge.s32.totalorder %v1175, 0
        %vm1191 = vcmp.ge.s32.totalorder %v1176, 0
        %vm1192 = vcmp.ge.s32.totalorder %v1177, 0
        %vm1193 = vcmp.ge.s32.totalorder %v1178, 0
        %vm1194 = vcmp.ge.s32.totalorder %v1179, 0
        %vm1195 = vcmp.lt.s32.totalorder %v1165, 200
        %vm1196 = vcmp.lt.s32.totalorder %v1166, 200
        %vm1197 = vcmp.lt.s32.totalorder %v1167, 200
        %vm1198 = vcmp.lt.s32.totalorder %v1168, 200
        %vm1199 = vcmp.lt.s32.totalorder %v1169, 200
        %vm1200 = vcmp.lt.s32.totalorder %v1170, 200
        %vm1201 = vcmp.lt.s32.totalorder %v1171, 200
        %vm1202 = vcmp.lt.s32.totalorder %v1172, 200
        %vm1203 = vcmp.lt.s32.totalorder %v1173, 200
        %vm1204 = vcmp.lt.s32.totalorder %v1174, 200
        %vm1205 = vcmp.lt.s32.totalorder %v1175, 200
        %vm1206 = vcmp.lt.s32.totalorder %v1176, 200
        %vm1207 = vcmp.lt.s32.totalorder %v1177, 200
        %vm1208 = vcmp.lt.s32.totalorder %v1178, 200
        %vm1209 = vcmp.lt.s32.totalorder %v1179, 200
        %vm1210 = vmand %vm1180, %vm1195
        %vm1211 = vmand %vm1181, %vm1196
        %vm1212 = vmand %vm1182, %vm1197
        %vm1213 = vmand %vm1183, %vm1198
        %vm1214 = vmand %vm1184, %vm1199
        %vm1215 = vmand %vm1185, %vm1200
        %vm1216 = vmand %vm1186, %vm1201
        %vm1217 = vmand %vm1187, %vm1202
        %vm1218 = vmand %vm1188, %vm1203
        %vm1219 = vmand %vm1189, %vm1204
        %vm1220 = vmand %vm1190, %vm1205
        %vm1221 = vmand %vm1191, %vm1206
        %vm1222 = vmand %vm1192, %vm1207
        %vm1223 = vmand %vm1193, %vm1208
        %vm1224 = vmand %vm1194, %vm1209
        %v1225 = vsel %vm1210, 1, 0
        %v1226 = vsel %vm1211, 1, 0
        %v1227 = vsel %vm1212, 1, 0
        %v1228 = vsel %vm1213, 1, 0
        %v1229 = vsel %vm1214, 1, 0
        %v1230 = vsel %vm1215, 1, 0
        %v1231 = vsel %vm1216, 1, 0
        %v1232 = vsel %vm1217, 1, 0
        %v1233 = vsel %vm1218, 1, 0
        %v1234 = vsel %vm1219, 1, 0
        %v1235 = vsel %vm1220, 1, 0
        %v1236 = vsel %vm1221, 1, 0
        %v1237 = vsel %vm1222, 1, 0
        %v1238 = vsel %vm1223, 1, 0
        %v1239 = vsel %vm1224, 1, 0
        %vm1240 = vcmp.eq.s32.totalorder %v1225, 1
        %vm1241 = vcmp.eq.s32.totalorder %v1226, 1
        %vm1242 = vcmp.eq.s32.totalorder %v1227, 1
        %vm1243 = vcmp.eq.s32.totalorder %v1228, 1
        %vm1244 = vcmp.eq.s32.totalorder %v1229, 1
        %vm1245 = vcmp.eq.s32.totalorder %v1230, 1
        %vm1246 = vcmp.eq.s32.totalorder %v1231, 1
        %vm1247 = vcmp.eq.s32.totalorder %v1232, 1
        %vm1248 = vcmp.eq.s32.totalorder %v1233, 1
        %vm1249 = vcmp.eq.s32.totalorder %v1234, 1
        %vm1250 = vcmp.eq.s32.totalorder %v1235, 1
        %vm1251 = vcmp.eq.s32.totalorder %v1236, 1
        %vm1252 = vcmp.eq.s32.totalorder %v1237, 1
        %vm1253 = vcmp.eq.s32.totalorder %v1238, 1
        %vm1254 = vcmp.eq.s32.totalorder %v1239, 1
        %v1255 = vsel %vm1240, %v1086, 0.0
        %v1256 = vsel %vm1241, %v1089, 0.0
        %v1257 = vsel %vm1242, %v1094, 0.0
        %v1258 = vsel %vm1243, %v1097, 0.0
        %v1259 = vsel %vm1244, %v1102, 0.0
        %v1260 = vsel %vm1245, %v1105, 0.0
        %v1261 = vsel %vm1246, %v1110, 0.0
        %v1262 = vsel %vm1247, %v1113, 0.0
        %v1263 = vsel %vm1248, %v1118, 0.0
        %v1264 = vsel %vm1249, %v1121, 0.0
        %v1265 = vsel %vm1250, %v1126, 0.0
        %v1266 = vsel %vm1251, %v1129, 0.0
        %v1267 = vsel %vm1252, %v1134, 0.0
        %v1268 = vsel %vm1253, %v1137, 0.0
        %v1269 = vsel %vm1254, %v1142, 0.0
        %v1270 = vpack.c.bf16 %v563, %v562
        %v1271 = vpack.c.bf16 %v565, %v564
        %v1272 = vpack.c.bf16 %v567, %v566
        %v1273 = vpack.c.bf16 %v569, %v568
        %v1274 = vpack.c.bf16 %v571, %v570
        %v1275 = vpack.c.bf16 %v573, %v572
        %v1276 = vpack.c.bf16 %v575, %v574
        %v1277 = vpack.c.bf16 %v576, %v576
        %v1278 = vpack.c.bf16 %v1256, %v1255
        %v1279 = vpack.c.bf16 %v1258, %v1257
        %v1280 = vpack.c.bf16 %v1260, %v1259
        %v1281 = vpack.c.bf16 %v1262, %v1261
        %v1282 = vpack.c.bf16 %v1264, %v1263
        %v1283 = vpack.c.bf16 %v1266, %v1265
        %v1284 = vpack.c.bf16 %v1268, %v1267
        %v1285 = vpack.c.bf16 %v1269, %v1269
        %v1302 = vunpack.c.l.b16 %v1270
        %v1303 = vunpack.c.l.b16 %v1278
        %v1304 = vunpack.c.h.b16 %v1270
        %v1305 = vunpack.c.h.b16 %v1278
        %v1306 = vunpack.c.l.b16 %v1271
        %v1307 = vunpack.c.l.b16 %v1279
        %v1308 = vunpack.c.h.b16 %v1271
        %v1309 = vunpack.c.h.b16 %v1279
        %v1310 = vunpack.c.l.b16 %v1272
        %v1311 = vunpack.c.l.b16 %v1280
        %v1312 = vunpack.c.h.b16 %v1272
        %v1313 = vunpack.c.h.b16 %v1280
        %v1314 = vunpack.c.l.b16 %v1273
        %v1315 = vunpack.c.l.b16 %v1281
        %v1316 = vunpack.c.h.b16 %v1273
        %v1317 = vunpack.c.h.b16 %v1281
        %v1318 = vunpack.c.l.b16 %v1274
        %v1319 = vunpack.c.l.b16 %v1282
        %v1320 = vunpack.c.h.b16 %v1274
        %v1321 = vunpack.c.h.b16 %v1282
        %v1322 = vunpack.c.l.b16 %v1275
        %v1323 = vunpack.c.l.b16 %v1283
        %v1324 = vunpack.c.h.b16 %v1275
        %v1325 = vunpack.c.h.b16 %v1283
        %v1326 = vunpack.c.l.b16 %v1276
        %v1327 = vunpack.c.l.b16 %v1284
        %v1328 = vunpack.c.h.b16 %v1276
        %v1329 = vunpack.c.h.b16 %v1284
        %v1330 = vunpack.c.l.b16 %v1277
        %v1331 = vunpack.c.l.b16 %v1285
        %v1332 = vpack.c.b16 %v1303, %v1302
        %v1333 = vpack.c.b16 %v1305, %v1304
        %v1334 = vpack.c.b16 %v1307, %v1306
        %v1335 = vpack.c.b16 %v1309, %v1308
        %v1336 = vpack.c.b16 %v1311, %v1310
        %v1337 = vpack.c.b16 %v1313, %v1312
        %v1338 = vpack.c.b16 %v1315, %v1314
        %v1339 = vpack.c.b16 %v1317, %v1316
        %v1340 = vpack.c.b16 %v1319, %v1318
        %v1341 = vpack.c.b16 %v1321, %v1320
        %v1342 = vpack.c.b16 %v1323, %v1322
        %v1343 = vpack.c.b16 %v1325, %v1324
        %v1344 = vpack.c.b16 %v1327, %v1326
        %v1345 = vpack.c.b16 %v1329, %v1328
        %v1346 = vpack.c.b16 %v1331, %v1330
        %1362 = vst [vmem:[#allocation2] sm:$0xff] %v1332
        %1363 = vst [vmem:[#allocation2 + $0x8] sm:$0xff] %v1333
        %1364 = vst [vmem:[#allocation2 + $0x10] sm:$0xff] %v1334
        %1365 = vst [vmem:[#allocation2 + $0x18] sm:$0xff] %v1335
        %1366 = vst [vmem:[#allocation2 + $0x20] sm:$0xff] %v1336
        %1367 = vst [vmem:[#allocation2 + $0x28] sm:$0xff] %v1337
        %1368 = vst [vmem:[#allocation2 + $0x30] sm:$0xff] %v1338
        %1369 = vst [vmem:[#allocation2 + $0x38] sm:$0xff] %v1339
        %1370 = vst [vmem:[#allocation2 + $0x40] sm:$0xff] %v1340
        %1371 = vst [vmem:[#allocation2 + $0x48] sm:$0xff] %v1341
        %1372 = vst [vmem:[#allocation2 + $0x50] sm:$0xff] %v1342
        %1373 = vst [vmem:[#allocation2 + $0x58] sm:$0xff] %v1343
        %1374 = vst [vmem:[#allocation2 + $0x60] sm:$0xff] %v1344
        %1375 = vst [vmem:[#allocation2 + $0x68] sm:$0xff] %v1345
        %1376 = vst [vmem:[#allocation2 + $0x70] sm:$0xff] %v1346
        %s1377 = ssub.s32 %s560, 4
        %v1378 = vstv %s1377
        %v1379 = vadd.s32 %v1378, %v1149
        %v1380 = vadd.s32 %v1378, %v1150
        %v1381 = vadd.s32 %v1378, %v1151
        %v1382 = vadd.s32 %v1378, %v1152
        %v1383 = vadd.s32 %v1378, %v1153
        %v1384 = vadd.s32 %v1378, %v1154
        %v1385 = vadd.s32 %v1378, %v1155
        %v1386 = vadd.s32 %v1378, %v1156
        %v1387 = vadd.s32 %v1378, %v1157
        %v1388 = vadd.s32 %v1378, %v1158
        %v1389 = vadd.s32 %v1378, %v1159
        %v1390 = vadd.s32 %v1378, %v1160
        %v1391 = vadd.s32 %v1378, %v1161
        %v1392 = vadd.s32 %v1378, %v1162
        %vm1393 = vcmp.ge.s32.totalorder %v1379, 0
        %vm1394 = vcmp.ge.s32.totalorder %v1380, 0
        %vm1395 = vcmp.ge.s32.totalorder %v1381, 0
        %vm1396 = vcmp.ge.s32.totalorder %v1382, 0
        %vm1397 = vcmp.ge.s32.totalorder %v1383, 0
        %vm1398 = vcmp.ge.s32.totalorder %v1384, 0
        %vm1399 = vcmp.ge.s32.totalorder %v1385, 0
        %vm1400 = vcmp.ge.s32.totalorder %v1386, 0
        %vm1401 = vcmp.ge.s32.totalorder %v1387, 0
        %vm1402 = vcmp.ge.s32.totalorder %v1388, 0
        %vm1403 = vcmp.ge.s32.totalorder %v1389, 0
        %vm1404 = vcmp.ge.s32.totalorder %v1390, 0
        %vm1405 = vcmp.ge.s32.totalorder %v1391, 0
        %vm1406 = vcmp.ge.s32.totalorder %v1392, 0
        %vm1407 = vcmp.lt.s32.totalorder %v1379, 200
        %vm1408 = vcmp.lt.s32.totalorder %v1380, 200
        %vm1409 = vcmp.lt.s32.totalorder %v1381, 200
        %vm1410 = vcmp.lt.s32.totalorder %v1382, 200
        %vm1411 = vcmp.lt.s32.totalorder %v1383, 200
        %vm1412 = vcmp.lt.s32.totalorder %v1384, 200
        %vm1413 = vcmp.lt.s32.totalorder %v1385, 200
        %vm1414 = vcmp.lt.s32.totalorder %v1386, 200
        %vm1415 = vcmp.lt.s32.totalorder %v1387, 200
        %vm1416 = vcmp.lt.s32.totalorder %v1388, 200
        %vm1417 = vcmp.lt.s32.totalorder %v1389, 200
        %vm1418 = vcmp.lt.s32.totalorder %v1390, 200
        %vm1419 = vcmp.lt.s32.totalorder %v1391, 200
        %vm1420 = vcmp.lt.s32.totalorder %v1392, 200
        %vm1421 = vmand %vm1393, %vm1407
        %vm1422 = vmand %vm1394, %vm1408
        %vm1423 = vmand %vm1395, %vm1409
        %vm1424 = vmand %vm1396, %vm1410
        %vm1425 = vmand %vm1397, %vm1411
        %vm1426 = vmand %vm1398, %vm1412
        %vm1427 = vmand %vm1399, %vm1413
        %vm1428 = vmand %vm1400, %vm1414
        %vm1429 = vmand %vm1401, %vm1415
        %vm1430 = vmand %vm1402, %vm1416
        %vm1431 = vmand %vm1403, %vm1417
        %vm1432 = vmand %vm1404, %vm1418
        %vm1433 = vmand %vm1405, %vm1419
        %vm1434 = vmand %vm1406, %vm1420
        %v1435 = vld [vmem:[#allocation2] sm:$0xee]
        %v1436 = vld [vmem:[#allocation2 + $0x8] sm:$0xff]
        %v1437 = vld [vmem:[#allocation2 + $0x10] sm:$0xff]
        %v1438 = vld [vmem:[#allocation2 + $0x18] sm:$0xff]
        %v1439 = vld [vmem:[#allocation2 + $0x20] sm:$0xff]
        %v1440 = vld [vmem:[#allocation2 + $0x28] sm:$0xff]
        %v1441 = vld [vmem:[#allocation2 + $0x30] sm:$0xff]
        %v1442 = vld [vmem:[#allocation2 + $0x38] sm:$0xff]
        %v1443 = vld [vmem:[#allocation2 + $0x40] sm:$0xff]
        %v1444 = vld [vmem:[#allocation2 + $0x48] sm:$0xff]
        %v1445 = vld [vmem:[#allocation2 + $0x50] sm:$0xff]
        %v1446 = vld [vmem:[#allocation2 + $0x58] sm:$0xff]
        %v1447 = vld [vmem:[#allocation2 + $0x60] sm:$0xff]
        %v1448 = vld [vmem:[#allocation2 + $0x68] sm:$0xff]
        %v1449 = vld [vmem:[#allocation2 + $0x70] sm:$0x11]
        %v1450 = vld [vmem:[#allocation10] sm:$0xf]
        %v1451 = vld [vmem:[#allocation10 + $0x4] sm:$0xf]
        %v1452 = vld [vmem:[#allocation10 + $0x8] sm:$0xf]
        %v1453 = vld [vmem:[#allocation10 + $0xc] sm:$0xf]
        %v1454 = vld [vmem:[#allocation10 + $0x10] sm:$0xf]
        %v1455 = vld [vmem:[#allocation10 + $0x14] sm:$0xf]
        %v1456 = vld [vmem:[#allocation10 + $0x18] sm:$0xf]
        %v1457 = vld [vmem:[#allocation10 + $0x1c] sm:$0xf]
        %v1458 = vld [vmem:[#allocation10 + $0x20] sm:$0xf]
        %v1459 = vld [vmem:[#allocation10 + $0x24] sm:$0xf]
        %v1460 = vld [vmem:[#allocation10 + $0x28] sm:$0xf]
        %v1461 = vld [vmem:[#allocation10 + $0x2c] sm:$0xf]
        %v1462 = vld [vmem:[#allocation10 + $0x30] sm:$0xf]
        %v1463 = vld [vmem:[#allocation10 + $0x34] sm:$0xf]
        %v1464 = vld [vmem:[#allocation10 + $0x38] sm:$0xf]
        %v1465 = vld [vmem:[#allocation10 + $0x3c] sm:$0xf]
        %v1466 = vld [vmem:[#allocation10 + $0x40] sm:$0xf]
        %v1467 = vld [vmem:[#allocation10 + $0x44] sm:$0xf]
        %v1468 = vld [vmem:[#allocation10 + $0x48] sm:$0xf]
        %v1469 = vld [vmem:[#allocation10 + $0x4c] sm:$0xf]
        %v1470 = vld [vmem:[#allocation10 + $0x50] sm:$0xf]
        %v1471 = vld [vmem:[#allocation10 + $0x54] sm:$0xf]
        %v1472 = vld [vmem:[#allocation10 + $0x58] sm:$0xf]
        %v1473 = vld [vmem:[#allocation10 + $0x5c] sm:$0xf]
        %v1474 = vld [vmem:[#allocation10 + $0x60] sm:$0xf]
        %v1475 = vld [vmem:[#allocation10 + $0x64] sm:$0xf]
        %v1476 = vld [vmem:[#allocation10 + $0x68] sm:$0xf]
        %v1477 = vld [vmem:[#allocation10 + $0x6c] sm:$0xf]
        %v1478 = vld [vmem:[#allocation10 + $0x70] sm:$0xf]
        %v1479 = vld [vmem:[#allocation10 + $0x74] sm:$0xf]
        %v1480 = vld [vmem:[#allocation10 + $0x78] sm:$0xf]
        %v1481 = vld [vmem:[#allocation10 + $0x7c] sm:$0xf]
        %v1482 = vld [vmem:[#allocation2 + $0x70] sm:$0x33]
        %v1483 = vld [vmem:[#allocation10 + $0x80] sm:$0xf]
        %v1484 = vld [vmem:[#allocation10 + $0x84] sm:$0xf]
        %v1485 = vld [vmem:[#allocation10 + $0x88] sm:$0xf]
        %v1486 = vld [vmem:[#allocation10 + $0x8c] sm:$0xf]
        %v1487 = vld [vmem:[#allocation10 + $0x90] sm:$0xf]
        %v1488 = vld [vmem:[#allocation10 + $0x94] sm:$0xf]
        %v1489 = vld [vmem:[#allocation10 + $0x98] sm:$0xf]
        %v1490 = vld [vmem:[#allocation10 + $0x9c] sm:$0xf]
        %v1491 = vld [vmem:[#allocation10 + $0xa0] sm:$0xf]
        %v1492 = vld [vmem:[#allocation10 + $0xa4] sm:$0xf]
        %v1493 = vld [vmem:[#allocation10 + $0xa8] sm:$0xf]
        %v1494 = vld [vmem:[#allocation10 + $0xac] sm:$0xf]
        %v1495 = vld [vmem:[#allocation10 + $0xb0] sm:$0xf]
        %v1496 = vld [vmem:[#allocation10 + $0xb4] sm:$0xf]
        %v1497 = vld [vmem:[#allocation10 + $0xb8] sm:$0xf]
        %v1498 = vld [vmem:[#allocation10 + $0xbc] sm:$0xf]
        %v1499 = vld [vmem:[#allocation10 + $0xc0] sm:$0xf]
        %v1500 = vld [vmem:[#allocation10 + $0xc4] sm:$0xf]
        %v1501 = vld [vmem:[#allocation10 + $0xc8] sm:$0xf]
        %v1502 = vld [vmem:[#allocation10 + $0xcc] sm:$0xf]
        %v1503 = vld [vmem:[#allocation10 + $0xd0] sm:$0xf]
        %v1504 = vld [vmem:[#allocation10 + $0xd4] sm:$0xf]
        %v1505 = vld [vmem:[#allocation10 + $0xd8] sm:$0xf]
        %v1506 = vld [vmem:[#allocation10 + $0xdc] sm:$0xf]
        %v1507 = vld [vmem:[#allocation10 + $0xe0] sm:$0xf]
        %v1508 = vld [vmem:[#allocation10 + $0xe4] sm:$0xf]
        %v1509 = vld [vmem:[#allocation10 + $0xe8] sm:$0xf]
        %v1510 = vld [vmem:[#allocation10 + $0xec] sm:$0xf]
        %v1511 = vld [vmem:[#allocation10 + $0xf0] sm:$0xf]
        %v1512 = vld [vmem:[#allocation10 + $0xf4] sm:$0xf]
        %v1513 = vld [vmem:[#allocation10 + $0xf8] sm:$0xf]
        %v1514 = vld [vmem:[#allocation10 + $0xfc] sm:$0xf]
        %v1530 = vunpack.c.l.b16 %v1435
        %v1531 = vunpack.c.h.b16 %v1435
        %v1532 = vunpack.c.l.b16 %v1436
        %v1533 = vunpack.c.h.b16 %v1436
        %v1534 = vunpack.c.l.b16 %v1437
        %v1535 = vunpack.c.h.b16 %v1437
        %v1536 = vunpack.c.l.b16 %v1438
        %v1537 = vunpack.c.h.b16 %v1438
        %v1538 = vunpack.c.l.b16 %v1439
        %v1539 = vunpack.c.h.b16 %v1439
        %v1540 = vunpack.c.l.b16 %v1440
        %v1541 = vunpack.c.h.b16 %v1440
        %v1542 = vunpack.c.l.b16 %v1441
        %v1543 = vunpack.c.h.b16 %v1441
        %v1544 = vunpack.c.l.b16 %v1442
        %v1545 = vunpack.c.h.b16 %v1442
        %v1546 = vunpack.c.l.b16 %v1443
        %v1547 = vunpack.c.h.b16 %v1443
        %v1548 = vunpack.c.l.b16 %v1444
        %v1549 = vunpack.c.h.b16 %v1444
        %v1550 = vunpack.c.l.b16 %v1445
        %v1551 = vunpack.c.h.b16 %v1445
        %v1552 = vunpack.c.l.b16 %v1446
        %v1553 = vunpack.c.h.b16 %v1446
        %v1554 = vunpack.c.l.b16 %v1447
        %v1555 = vunpack.c.h.b16 %v1447
        %v1556 = vunpack.c.l.b16 %v1448
        %v1557 = vunpack.c.h.b16 %v1448
        %v1558 = vunpack.c.l.b16 %v1482
        %v1559 = vunpack.c.h.b16 %v1482
        %v1560 = vpack.c.b16 %v1532, %v1530
        %v1561 = vpack.c.b16 %v1533, %v1531
        %v1562 = vpack.c.b16 %v1536, %v1534
        %v1563 = vpack.c.b16 %v1537, %v1535
        %v1564 = vpack.c.b16 %v1540, %v1538
        %v1565 = vpack.c.b16 %v1541, %v1539
        %v1566 = vpack.c.b16 %v1544, %v1542
        %v1567 = vpack.c.b16 %v1545, %v1543
        %v1568 = vpack.c.b16 %v1548, %v1546
        %v1569 = vpack.c.b16 %v1549, %v1547
        %v1570 = vpack.c.b16 %v1552, %v1550
        %v1571 = vpack.c.b16 %v1553, %v1551
        %v1572 = vpack.c.b16 %v1556, %v1554
        %v1573 = vpack.c.b16 %v1557, %v1555
        %v1574 = vpack.c.b16 %v1558, %v1558
        %v1575 = vpack.c.b16 %v1559, %v1559
        %vm1576 = vsmask.f32 6400
        %v1578 = vshrl.u32 %v1560, 16
        %v1580 = vrot.slane %v1578, 1
        %v1581 = vshll.u32 %v1560, 16
        %v1583 = vrot.slane %v1581, 2
        %v1584 = vor.u32 %v1580, %v1583
        %v1586 = vshrl.u32 %v1562, 16
        %v1588 = vrot.slane %v1586, 1
        %v1589 = vshll.u32 %v1562, 16
        %v1591 = vrot.slane %v1589, 2
        %v1592 = vor.u32 %v1588, %v1591
        %v1593 = vsel %vm1576, %v1584, %v1592
        %v1595 = vshrl.u32 %v1561, 16
        %v1597 = vrot.slane %v1595, 1
        %v1598 = vshll.u32 %v1561, 16
        %v1600 = vrot.slane %v1598, 2
        %v1601 = vor.u32 %v1597, %v1600
        %v1603 = vshrl.u32 %v1563, 16
        %v1605 = vrot.slane %v1603, 1
        %v1606 = vshll.u32 %v1563, 16
        %v1608 = vrot.slane %v1606, 2
        %v1609 = vor.u32 %v1605, %v1608
        %v1610 = vsel %vm1576, %v1601, %v1609
        %v1612 = vshrl.u32 %v1564, 16
        %v1614 = vrot.slane %v1612, 1
        %v1615 = vshll.u32 %v1564, 16
        %v1617 = vrot.slane %v1615, 2
        %v1618 = vor.u32 %v1614, %v1617
        %v1619 = vsel %vm1576, %v1592, %v1618
        %v1621 = vshrl.u32 %v1565, 16
        %v1623 = vrot.slane %v1621, 1
        %v1624 = vshll.u32 %v1565, 16
        %v1626 = vrot.slane %v1624, 2
        %v1627 = vor.u32 %v1623, %v1626
        %v1628 = vsel %vm1576, %v1609, %v1627
        %v1630 = vshrl.u32 %v1566, 16
        %v1632 = vrot.slane %v1630, 1
        %v1633 = vshll.u32 %v1566, 16
        %v1635 = vrot.slane %v1633, 2
        %v1636 = vor.u32 %v1632, %v1635
        %v1637 = vsel %vm1576, %v1618, %v1636
        %v1639 = vshrl.u32 %v1567, 16
        %v1641 = vrot.slane %v1639, 1
        %v1642 = vshll.u32 %v1567, 16
        %v1644 = vrot.slane %v1642, 2
        %v1645 = vor.u32 %v1641, %v1644
        %v1646 = vsel %vm1576, %v1627, %v1645
        %v1648 = vshrl.u32 %v1568, 16
        %v1650 = vrot.slane %v1648, 1
        %v1651 = vshll.u32 %v1568, 16
        %v1653 = vrot.slane %v1651, 2
        %v1654 = vor.u32 %v1650, %v1653
        %v1655 = vsel %vm1576, %v1636, %v1654
        %v1657 = vshrl.u32 %v1569, 16
        %v1659 = vrot.slane %v1657, 1
        %v1660 = vshll.u32 %v1569, 16
        %v1662 = vrot.slane %v1660, 2
        %v1663 = vor.u32 %v1659, %v1662
        %v1664 = vsel %vm1576, %v1645, %v1663
        %v1666 = vshrl.u32 %v1570, 16
        %v1668 = vrot.slane %v1666, 1
        %v1669 = vshll.u32 %v1570, 16
        %v1671 = vrot.slane %v1669, 2
        %v1672 = vor.u32 %v1668, %v1671
        %v1673 = vsel %vm1576, %v1654, %v1672
        %v1675 = vshrl.u32 %v1571, 16
        %v1677 = vrot.slane %v1675, 1
        %v1678 = vshll.u32 %v1571, 16
        %v1680 = vrot.slane %v1678, 2
        %v1681 = vor.u32 %v1677, %v1680
        %v1682 = vsel %vm1576, %v1663, %v1681
        %v1684 = vshrl.u32 %v1572, 16
        %v1686 = vrot.slane %v1684, 1
        %v1687 = vshll.u32 %v1572, 16
        %v1689 = vrot.slane %v1687, 2
        %v1690 = vor.u32 %v1686, %v1689
        %v1691 = vsel %vm1576, %v1672, %v1690
        %v1693 = vshrl.u32 %v1573, 16
        %v1695 = vrot.slane %v1693, 1
        %v1696 = vshll.u32 %v1573, 16
        %v1698 = vrot.slane %v1696, 2
        %v1699 = vor.u32 %v1695, %v1698
        %v1700 = vsel %vm1576, %v1681, %v1699
        %v1702 = vshrl.u32 %v1574, 16
        %v1704 = vrot.slane %v1702, 1
        %v1705 = vshll.u32 %v1574, 16
        %v1707 = vrot.slane %v1705, 2
        %v1708 = vor.u32 %v1704, %v1707
        %v1709 = vsel %vm1576, %v1690, %v1708
        %v1711 = vshrl.u32 %v1575, 16
        %v1713 = vrot.slane %v1711, 1
        %v1714 = vshll.u32 %v1575, 16
        %v1716 = vrot.slane %v1714, 2
        %v1717 = vor.u32 %v1713, %v1716
        %v1718 = vsel %vm1576, %v1699, %v1717
        %v1765 = vunpack.c.l.b16 %v1483
        %v1766 = vunpack.c.l.b16 %v1484
        %v1767 = vunpack.c.l.b16 %v1485
        %v1768 = vunpack.c.l.b16 %v1486
        %v1769 = vunpack.c.l.b16 %v1487
        %v1770 = vunpack.c.l.b16 %v1488
        %v1771 = vunpack.c.l.b16 %v1489
        %v1772 = vunpack.c.l.b16 %v1490
        %v1773 = vunpack.c.l.b16 %v1491
        %v1774 = vunpack.c.l.b16 %v1492
        %v1775 = vunpack.c.l.b16 %v1493
        %v1776 = vunpack.c.l.b16 %v1494
        %v1777 = vunpack.c.l.b16 %v1495
        %v1778 = vunpack.c.l.b16 %v1496
        %v1779 = vunpack.c.l.b16 %v1497
        %v1780 = vunpack.c.l.b16 %v1498
        %v1781 = vunpack.c.l.b16 %v1499
        %v1782 = vunpack.c.l.b16 %v1500
        %v1783 = vunpack.c.l.b16 %v1501
        %v1784 = vunpack.c.l.b16 %v1502
        %v1785 = vunpack.c.l.b16 %v1503
        %v1786 = vunpack.c.l.b16 %v1504
        %v1787 = vunpack.c.l.b16 %v1505
        %v1788 = vunpack.c.l.b16 %v1506
        %v1789 = vunpack.c.l.b16 %v1507
        %v1790 = vunpack.c.l.b16 %v1508
        %v1791 = vunpack.c.l.b16 %v1509
        %v1792 = vunpack.c.l.b16 %v1510
        %v1793 = vunpack.c.l.b16 %v1511
        %v1794 = vunpack.c.l.b16 %v1512
        %v1795 = vunpack.c.l.b16 %v1513
        %v1796 = vunpack.c.l.b16 %v1514
        %v1797 = vpack.c.b16 %v1766, %v1765
        %v1798 = vpack.c.b16 %v1768, %v1767
        %v1799 = vpack.c.b16 %v1770, %v1769
        %v1800 = vpack.c.b16 %v1772, %v1771
        %v1801 = vpack.c.b16 %v1774, %v1773
        %v1802 = vpack.c.b16 %v1776, %v1775
        %v1803 = vpack.c.b16 %v1778, %v1777
        %v1804 = vpack.c.b16 %v1780, %v1779
        %v1805 = vpack.c.b16 %v1782, %v1781
        %v1806 = vpack.c.b16 %v1784, %v1783
        %v1807 = vpack.c.b16 %v1786, %v1785
        %v1808 = vpack.c.b16 %v1788, %v1787
        %v1809 = vpack.c.b16 %v1790, %v1789
        %v1810 = vpack.c.b16 %v1792, %v1791
        %v1811 = vpack.c.b16 %v1794, %v1793
        %v1812 = vpack.c.b16 %v1796, %v1795
        %1829 = vmatprep.subr.bf16.mxu0 0
        %1830 = vmatpush1.bf16.msra.mxu0 %v1797
        %1831 = vmatprep.subr.bf16.mxu0 0
        %1832 = vmatpush1.bf16.msra.mxu0 %v1798
        %1833 = vmatprep.subr.bf16.mxu0 0
        %1834 = vmatpush1.bf16.msra.mxu0 %v1799
        %1835 = vmatprep.subr.bf16.mxu0 0
        %1836 = vmatpush1.bf16.msra.mxu0 %v1800
        %1837 = vmatprep.subr.bf16.mxu0 0
        %1838 = vmatpush1.bf16.msra.mxu0 %v1801
        %1839 = vmatprep.subr.bf16.mxu0 0
        %1840 = vmatpush1.bf16.msra.mxu0 %v1802
        %1841 = vmatprep.subr.bf16.mxu0 0
        %1842 = vmatpush1.bf16.msra.mxu0 %v1803
        %1843 = vmatprep.subr.bf16.mxu0 0
        %1844 = vmatpush1.bf16.msra.mxu0 %v1804
        %1845 = vmatprep.subr.bf16.mxu0 0
        %1846 = vmatpush1.bf16.msra.mxu0 %v1805
        %1847 = vmatprep.subr.bf16.mxu0 0
        %1848 = vmatpush1.bf16.msra.mxu0 %v1806
        %1849 = vmatprep.subr.bf16.mxu0 0
        %1850 = vmatpush1.bf16.msra.mxu0 %v1807
        %1851 = vmatprep.subr.bf16.mxu0 0
        %1852 = vmatpush1.bf16.msra.mxu0 %v1808
        %1853 = vmatprep.subr.bf16.mxu0 0
        %1854 = vmatpush1.bf16.msra.mxu0 %v1809
        %1855 = vmatprep.subr.bf16.mxu0 0
        %1856 = vmatpush1.bf16.msra.mxu0 %v1810
        %1857 = vmatprep.subr.bf16.mxu0 0
        %1858 = vmatpush1.bf16.msra.mxu0 %v1811
        %1859 = vmatprep.subr.bf16.mxu0 0
        %1860 = vmatpush1.bf16.msra.mxu0 %v1812
        %1861 = vmatprep.mubr.bf16.mxu0 %v1610
        %1862 = vmatmul.mubr.bf16.gmra.mrb[0].mxu0 %v1593
        %v1863 = vpop.f32.mrb[0].mxu0
        %v1864 = vadd.f32 0.0, %v1863
        %v1865 = vpop.f32.mrb[0].mxu0
        %v1866 = vpop.f32.mrb[0].mxu0
        %v1867 = vadd.f32 0.0, %v1866
        %v1868 = vpop.f32.mrb[0].mxu0
        %1869 = vmatprep.mubr.bf16.mxu0 %v1628
        %1870 = vmatmul.mubr.bf16.gmra.mrb[0].mxu0 %v1619
        %v1871 = vpop.f32.mrb[0].mxu0
        %v1872 = vadd.f32 0.0, %v1871
        %v1873 = vpop.f32.mrb[0].mxu0
        %v1874 = vpop.f32.mrb[0].mxu0
        %v1875 = vadd.f32 0.0, %v1874
        %v1876 = vpop.f32.mrb[0].mxu0
        %1877 = vmatprep.mubr.bf16.mxu0 %v1646
        %1878 = vmatmul.mubr.bf16.gmra.mrb[0].mxu0 %v1637
        %v1879 = vpop.f32.mrb[0].mxu0
        %v1880 = vadd.f32 0.0, %v1879
        %v1881 = vpop.f32.mrb[0].mxu0
        %v1882 = vpop.f32.mrb[0].mxu0
        %v1883 = vadd.f32 0.0, %v1882
        %v1884 = vpop.f32.mrb[0].mxu0
        %1885 = vmatprep.mubr.bf16.mxu0 %v1664
        %1886 = vmatmul.mubr.bf16.gmra.mrb[0].mxu0 %v1655
        %v1887 = vpop.f32.mrb[0].mxu0
        %v1888 = vadd.f32 0.0, %v1887
        %v1889 = vpop.f32.mrb[0].mxu0
        %v1890 = vpop.f32.mrb[0].mxu0
        %v1891 = vadd.f32 0.0, %v1890
        %v1892 = vpop.f32.mrb[0].mxu0
        %1893 = vmatprep.mubr.bf16.mxu0 %v1682
        %1894 = vmatmul.mubr.bf16.gmra.mrb[0].mxu0 %v1673
        %v1895 = vpop.f32.mrb[0].mxu0
        %v1896 = vadd.f32 0.0, %v1895
        %v1897 = vpop.f32.mrb[0].mxu0
        %v1898 = vpop.f32.mrb[0].mxu0
        %v1899 = vadd.f32 0.0, %v1898
        %v1900 = vpop.f32.mrb[0].mxu0
        %1901 = vmatprep.mubr.bf16.mxu0 %v1700
        %1902 = vmatmul.mubr.bf16.gmra.mrb[0].mxu0 %v1691
        %v1903 = vpop.f32.mrb[0].mxu0
        %v1904 = vadd.f32 0.0, %v1903
        %v1905 = vpop.f32.mrb[0].mxu0
        %v1906 = vpop.f32.mrb[0].mxu0
        %v1907 = vadd.f32 0.0, %v1906
        %v1908 = vpop.f32.mrb[0].mxu0
        %1909 = vmatprep.mubr.bf16.mxu0 %v1718
        %1910 = vmatmul.mubr.bf16.gmra.mrb[0].mxu0 %v1709
        %v1911 = vpop.f32.mrb[0].mxu0
        %v1912 = vadd.f32 0.0, %v1911
        %v1913 = vpop.f32.mrb[0].mxu0
        %v1914 = vpop.f32.mrb[0].mxu0
        %v1915 = vadd.f32 0.0, %v1914
        %v1916 = vpop.f32.mrb[0].mxu0
        %1917 = vdwg.mxu0
        %v1919 = vunpack.c.l.b16 %v1449
        %v1920 = vunpack.c.h.b16 %v1449
        %v1921 = vpack.c.b16 %v1919, %v1919
        %v1922 = vpack.c.b16 %v1920, %v1920
        %vm1923 = vcmask 1046528
        %v1924 = vrot.slane %v1560, 1
        %v1925 = vrot.slane %v1562, 1
        %v1926 = vsel %vm1923, %v1924, %v1925
        %v1927 = vrot.slane %v1561, 1
        %v1928 = vrot.slane %v1563, 1
        %v1929 = vsel %vm1923, %v1927, %v1928
        %v1930 = vrot.slane %v1564, 1
        %v1931 = vsel %vm1923, %v1925, %v1930
        %v1932 = vrot.slane %v1565, 1
        %v1933 = vsel %vm1923, %v1928, %v1932
        %v1934 = vrot.slane %v1566, 1
        %v1935 = vsel %vm1923, %v1930, %v1934
        %v1936 = vrot.slane %v1567, 1
        %v1937 = vsel %vm1923, %v1932, %v1936
        %v1938 = vrot.slane %v1568, 1
        %v1939 = vsel %vm1923, %v1934, %v1938
        %v1940 = vrot.slane %v1569, 1
        %v1941 = vsel %vm1923, %v1936, %v1940
        %v1942 = vrot.slane %v1570, 1
        %v1943 = vsel %vm1923, %v1938, %v1942
        %v1944 = vrot.slane %v1571, 1
        %v1945 = vsel %vm1923, %v1940, %v1944
        %v1946 = vrot.slane %v1572, 1
        %v1947 = vsel %vm1923, %v1942, %v1946
        %v1948 = vrot.slane %v1573, 1
        %v1949 = vsel %vm1923, %v1944, %v1948
        %v1950 = vrot.slane %v1921, 1
        %v1951 = vsel %vm1923, %v1946, %v1950
        %v1952 = vrot.slane %v1922, 1
        %v1953 = vsel %vm1923, %v1948, %v1952
        %v2000 = vunpack.c.l.b16 %v1450
        %v2001 = vunpack.c.l.b16 %v1451
        %v2002 = vunpack.c.l.b16 %v1452
        %v2003 = vunpack.c.l.b16 %v1453
        %v2004 = vunpack.c.l.b16 %v1454
        %v2005 = vunpack.c.l.b16 %v1455
        %v2006 = vunpack.c.l.b16 %v1456
        %v2007 = vunpack.c.l.b16 %v1457
        %v2008 = vunpack.c.l.b16 %v1458
        %v2009 = vunpack.c.l.b16 %v1459
        %v2010 = vunpack.c.l.b16 %v1460
        %v2011 = vunpack.c.l.b16 %v1461
        %v2012 = vunpack.c.l.b16 %v1462
        %v2013 = vunpack.c.l.b16 %v1463
        %v2014 = vunpack.c.l.b16 %v1464
        %v2015 = vunpack.c.l.b16 %v1465
        %v2016 = vunpack.c.l.b16 %v1466
        %v2017 = vunpack.c.l.b16 %v1467
        %v2018 = vunpack.c.l.b16 %v1468
        %v2019 = vunpack.c.l.b16 %v1469
        %v2020 = vunpack.c.l.b16 %v1470
        %v2021 = vunpack.c.l.b16 %v1471
        %v2022 = vunpack.c.l.b16 %v1472
        %v2023 = vunpack.c.l.b16 %v1473
        %v2024 = vunpack.c.l.b16 %v1474
        %v2025 = vunpack.c.l.b16 %v1475
        %v2026 = vunpack.c.l.b16 %v1476
        %v2027 = vunpack.c.l.b16 %v1477
        %v2028 = vunpack.c.l.b16 %v1478
        %v2029 = vunpack.c.l.b16 %v1479
        %v2030 = vunpack.c.l.b16 %v1480
        %v2031 = vunpack.c.l.b16 %v1481
        %v2032 = vpack.c.b16 %v2001, %v2000
        %v2033 = vpack.c.b16 %v2003, %v2002
        %v2034 = vpack.c.b16 %v2005, %v2004
        %v2035 = vpack.c.b16 %v2007, %v2006
        %v2036 = vpack.c.b16 %v2009, %v2008
        %v2037 = vpack.c.b16 %v2011, %v2010
        %v2038 = vpack.c.b16 %v2013, %v2012
        %v2039 = vpack.c.b16 %v2015, %v2014
        %v2040 = vpack.c.b16 %v2017, %v2016
        %v2041 = vpack.c.b16 %v2019, %v2018
        %v2042 = vpack.c.b16 %v2021, %v2020
        %v2043 = vpack.c.b16 %v2023, %v2022
        %v2044 = vpack.c.b16 %v2025, %v2024
        %v2045 = vpack.c.b16 %v2027, %v2026
        %v2046 = vpack.c.b16 %v2029, %v2028
        %v2047 = vpack.c.b16 %v2031, %v2030
        %2064 = vmatprep.subr.bf16.mxu0 0
        %2065 = vmatpush1.bf16.msra.mxu0 %v2032
        %2066 = vmatprep.subr.bf16.mxu0 0
        %2067 = vmatpush1.bf16.msra.mxu0 %v2033
        %2068 = vmatprep.subr.bf16.mxu0 0
        %2069 = vmatpush1.bf16.msra.mxu0 %v2034
        %2070 = vmatprep.subr.bf16.mxu0 0
        %2071 = vmatpush1.bf16.msra.mxu0 %v2035
        %2072 = vmatprep.subr.bf16.mxu0 0
        %2073 = vmatpush1.bf16.msra.mxu0 %v2036
        %2074 = vmatprep.subr.bf16.mxu0 0
        %2075 = vmatpush1.bf16.msra.mxu0 %v2037
        %2076 = vmatprep.subr.bf16.mxu0 0
        %2077 = vmatpush1.bf16.msra.mxu0 %v2038
        %2078 = vmatprep.subr.bf16.mxu0 0
        %2079 = vmatpush1.bf16.msra.mxu0 %v2039
        %2080 = vmatprep.subr.bf16.mxu0 0
        %2081 = vmatpush1.bf16.msra.mxu0 %v2040
        %2082 = vmatprep.subr.bf16.mxu0 0
        %2083 = vmatpush1.bf16.msra.mxu0 %v2041
        %2084 = vmatprep.subr.bf16.mxu0 0
        %2085 = vmatpush1.bf16.msra.mxu0 %v2042
        %2086 = vmatprep.subr.bf16.mxu0 0
        %2087 = vmatpush1.bf16.msra.mxu0 %v2043
        %2088 = vmatprep.subr.bf16.mxu0 0
        %2089 = vmatpush1.bf16.msra.mxu0 %v2044
        %2090 = vmatprep.subr.bf16.mxu0 0
        %2091 = vmatpush1.bf16.msra.mxu0 %v2045
        %2092 = vmatprep.subr.bf16.mxu0 0
        %2093 = vmatpush1.bf16.msra.mxu0 %v2046
        %2094 = vmatprep.subr.bf16.mxu0 0
        %2095 = vmatpush1.bf16.msra.mxu0 %v2047
        %2096 = vmatprep.mubr.bf16.mxu0 %v1929
        %2097 = vmatmul.mubr.bf16.gmra.mrb[0].mxu0 %v1926
        %v2098 = vpop.f32.mrb[0].mxu0
        %v2099 = vadd.f32 %v1864, %v2098
        %v2100 = vpop.f32.mrb[0].mxu0
        %v2101 = vpop.f32.mrb[0].mxu0
        %v2102 = vadd.f32 %v1867, %v2101
        %v2103 = vpop.f32.mrb[0].mxu0
        %2104 = vmatprep.mubr.bf16.mxu0 %v1933
        %2105 = vmatmul.mubr.bf16.gmra.mrb[0].mxu0 %v1931
        %v2106 = vpop.f32.mrb[0].mxu0
        %v2107 = vadd.f32 %v1872, %v2106
        %v2108 = vpop.f32.mrb[0].mxu0
        %v2109 = vpop.f32.mrb[0].mxu0
        %v2110 = vadd.f32 %v1875, %v2109
        %v2111 = vpop.f32.mrb[0].mxu0
        %2112 = vmatprep.mubr.bf16.mxu0 %v1937
        %2113 = vmatmul.mubr.bf16.gmra.mrb[0].mxu0 %v1935
        %v2114 = vpop.f32.mrb[0].mxu0
        %v2115 = vadd.f32 %v1880, %v2114
        %v2116 = vpop.f32.mrb[0].mxu0
        %v2117 = vpop.f32.mrb[0].mxu0
        %v2118 = vadd.f32 %v1883, %v2117
        %v2119 = vpop.f32.mrb[0].mxu0
        %2120 = vmatprep.mubr.bf16.mxu0 %v1941
        %2121 = vmatmul.mubr.bf16.gmra.mrb[0].mxu0 %v1939
        %v2122 = vpop.f32.mrb[0].mxu0
        %v2123 = vadd.f32 %v1888, %v2122
        %v2124 = vpop.f32.mrb[0].mxu0
        %v2125 = vpop.f32.mrb[0].mxu0
        %v2126 = vadd.f32 %v1891, %v2125
        %v2127 = vpop.f32.mrb[0].mxu0
        %2128 = vmatprep.mubr.bf16.mxu0 %v1945
        %2129 = vmatmul.mubr.bf16.gmra.mrb[0].mxu0 %v1943
        %v2130 = vpop.f32.mrb[0].mxu0
        %v2131 = vadd.f32 %v1896, %v2130
        %v2132 = vpop.f32.mrb[0].mxu0
        %v2133 = vpop.f32.mrb[0].mxu0
        %v2134 = vadd.f32 %v1899, %v2133
        %v2135 = vpop.f32.mrb[0].mxu0
        %2136 = vmatprep.mubr.bf16.mxu0 %v1949
        %2137 = vmatmul.mubr.bf16.gmra.mrb[0].mxu0 %v1947
        %v2138 = vpop.f32.mrb[0].mxu0
        %v2139 = vadd.f32 %v1904, %v2138
        %v2140 = vpop.f32.mrb[0].mxu0
        %v2141 = vpop.f32.mrb[0].mxu0
        %v2142 = vadd.f32 %v1907, %v2141
        %v2143 = vpop.f32.mrb[0].mxu0
        %2144 = vmatprep.mubr.bf16.mxu0 %v1953
        %2145 = vmatmul.mubr.bf16.gmra.mrb[0].mxu0 %v1951
        %v2146 = vpop.f32.mrb[0].mxu0
        %v2147 = vadd.f32 %v1912, %v2146
        %v2148 = vpop.f32.mrb[0].mxu0
        %v2149 = vpop.f32.mrb[0].mxu0
        %v2150 = vadd.f32 %v1915, %v2149
        %v2151 = vpop.f32.mrb[0].mxu0
        %2152 = vdwg.mxu0
        %v2153 = vld [vmem:[#allocation2] sm:$0xcc]
        %v2154 = vld [vmem:[#allocation10 + $0x100] sm:$0xf]
        %v2155 = vld [vmem:[#allocation10 + $0x104] sm:$0xf]
        %v2156 = vld [vmem:[#allocation10 + $0x108] sm:$0xf]
        %v2157 = vld [vmem:[#allocation10 + $0x10c] sm:$0xf]
        %v2158 = vld [vmem:[#allocation10 + $0x110] sm:$0xf]
        %v2159 = vld [vmem:[#allocation10 + $0x114] sm:$0xf]
        %v2160 = vld [vmem:[#allocation10 + $0x118] sm:$0xf]
        %v2161 = vld [vmem:[#allocation10 + $0x11c] sm:$0xf]
        %v2162 = vld [vmem:[#allocation10 + $0x120] sm:$0xf]
        %v2163 = vld [vmem:[#allocation10 + $0x124] sm:$0xf]
        %v2164 = vld [vmem:[#allocation10 + $0x128] sm:$0xf]
        %v2165 = vld [vmem:[#allocation10 + $0x12c] sm:$0xf]
        %v2166 = vld [vmem:[#allocation10 + $0x130] sm:$0xf]
        %v2167 = vld [vmem:[#allocation10 + $0x134] sm:$0xf]
        %v2168 = vld [vmem:[#allocation10 + $0x138] sm:$0xf]
        %v2169 = vld [vmem:[#allocation10 + $0x13c] sm:$0xf]
        %v2170 = vld [vmem:[#allocation10 + $0x140] sm:$0xf]
        %v2171 = vld [vmem:[#allocation10 + $0x144] sm:$0xf]
        %v2172 = vld [vmem:[#allocation10 + $0x148] sm:$0xf]
        %v2173 = vld [vmem:[#allocation10 + $0x14c] sm:$0xf]
        %v2174 = vld [vmem:[#allocation10 + $0x150] sm:$0xf]
        %v2175 = vld [vmem:[#allocation10 + $0x154] sm:$0xf]
        %v2176 = vld [vmem:[#allocation10 + $0x158] sm:$0xf]
        %v2177 = vld [vmem:[#allocation10 + $0x15c] sm:$0xf]
        %v2178 = vld [vmem:[#allocation10 + $0x160] sm:$0xf]
        %v2179 = vld [vmem:[#allocation10 + $0x164] sm:$0xf]
        %v2180 = vld [vmem:[#allocation10 + $0x168] sm:$0xf]
        %v2181 = vld [vmem:[#allocation10 + $0x16c] sm:$0xf]
        %v2182 = vld [vmem:[#allocation10 + $0x170] sm:$0xf]
        %v2183 = vld [vmem:[#allocation10 + $0x174] sm:$0xf]
        %v2184 = vld [vmem:[#allocation10 + $0x178] sm:$0xf]
        %v2185 = vld [vmem:[#allocation10 + $0x17c] sm:$0xf]
        %v2187 = vunpack.c.l.b16 %v2153
        %v2188 = vunpack.c.h.b16 %v2153
        %v2189 = vpack.c.b16 %v1532, %v2187
        %v2190 = vpack.c.b16 %v1533, %v2188
        %vm2191 = vcmask 1045504
        %v2192 = vrot.slane %v2189, 2
        %v2193 = vrot.slane %v1562, 2
        %v2194 = vsel %vm2191, %v2192, %v2193
        %v2195 = vrot.slane %v2190, 2
        %v2196 = vrot.slane %v1563, 2
        %v2197 = vsel %vm2191, %v2195, %v2196
        %v2198 = vrot.slane %v1564, 2
        %v2199 = vsel %vm2191, %v2193, %v2198
        %v2200 = vrot.slane %v1565, 2
        %v2201 = vsel %vm2191, %v2196, %v2200
        %v2202 = vrot.slane %v1566, 2
        %v2203 = vsel %vm2191, %v2198, %v2202
        %v2204 = vrot.slane %v1567, 2
        %v2205 = vsel %vm2191, %v2200, %v2204
        %v2206 = vrot.slane %v1568, 2
        %v2207 = vsel %vm2191, %v2202, %v2206
        %v2208 = vrot.slane %v1569, 2
        %v2209 = vsel %vm2191, %v2204, %v2208
        %v2210 = vrot.slane %v1570, 2
        %v2211 = vsel %vm2191, %v2206, %v2210
        %v2212 = vrot.slane %v1571, 2
        %v2213 = vsel %vm2191, %v2208, %v2212
        %v2214 = vrot.slane %v1572, 2
        %v2215 = vsel %vm2191, %v2210, %v2214
        %v2216 = vrot.slane %v1573, 2
        %v2217 = vsel %vm2191, %v2212, %v2216
        %v2218 = vrot.slane %v1574, 2
        %v2219 = vsel %vm2191, %v2214, %v2218
        %v2220 = vrot.slane %v1575, 2
        %v2221 = vsel %vm2191, %v2216, %v2220
        %v2268 = vunpack.c.l.b16 %v2154
        %v2269 = vunpack.c.l.b16 %v2155
        %v2270 = vunpack.c.l.b16 %v2156
        %v2271 = vunpack.c.l.b16 %v2157
        %v2272 = vunpack.c.l.b16 %v2158
        %v2273 = vunpack.c.l.b16 %v2159
        %v2274 = vunpack.c.l.b16 %v2160
        %v2275 = vunpack.c.l.b16 %v2161
        %v2276 = vunpack.c.l.b16 %v2162
        %v2277 = vunpack.c.l.b16 %v2163
        %v2278 = vunpack.c.l.b16 %v2164
        %v2279 = vunpack.c.l.b16 %v2165
        %v2280 = vunpack.c.l.b16 %v2166
        %v2281 = vunpack.c.l.b16 %v2167
        %v2282 = vunpack.c.l.b16 %v2168
        %v2283 = vunpack.c.l.b16 %v2169
        %v2284 = vunpack.c.l.b16 %v2170
        %v2285 = vunpack.c.l.b16 %v2171
        %v2286 = vunpack.c.l.b16 %v2172
        %v2287 = vunpack.c.l.b16 %v2173
        %v2288 = vunpack.c.l.b16 %v2174
        %v2289 = vunpack.c.l.b16 %v2175
        %v2290 = vunpack.c.l.b16 %v2176
        %v2291 = vunpack.c.l.b16 %v2177
        %v2292 = vunpack.c.l.b16 %v2178
        %v2293 = vunpack.c.l.b16 %v2179
        %v2294 = vunpack.c.l.b16 %v2180
        %v2295 = vunpack.c.l.b16 %v2181
        %v2296 = vunpack.c.l.b16 %v2182
        %v2297 = vunpack.c.l.b16 %v2183
        %v2298 = vunpack.c.l.b16 %v2184
        %v2299 = vunpack.c.l.b16 %v2185
        %v2300 = vpack.c.b16 %v2269, %v2268
        %v2301 = vpack.c.b16 %v2271, %v2270
        %v2302 = vpack.c.b16 %v2273, %v2272
        %v2303 = vpack.c.b16 %v2275, %v2274
        %v2304 = vpack.c.b16 %v2277, %v2276
        %v2305 = vpack.c.b16 %v2279, %v2278
        %v2306 = vpack.c.b16 %v2281, %v2280
        %v2307 = vpack.c.b16 %v2283, %v2282
        %v2308 = vpack.c.b16 %v2285, %v2284
        %v2309 = vpack.c.b16 %v2287, %v2286
        %v2310 = vpack.c.b16 %v2289, %v2288
        %v2311 = vpack.c.b16 %v2291, %v2290
        %v2312 = vpack.c.b16 %v2293, %v2292
        %v2313 = vpack.c.b16 %v2295, %v2294
        %v2314 = vpack.c.b16 %v2297, %v2296
        %v2315 = vpack.c.b16 %v2299, %v2298
        %2332 = vmatprep.subr.bf16.mxu0 0
        %2333 = vmatpush1.bf16.msra.mxu0 %v2300
        %2334 = vmatprep.subr.bf16.mxu0 0
        %2335 = vmatpush1.bf16.msra.mxu0 %v2301
        %2336 = vmatprep.subr.bf16.mxu0 0
        %2337 = vmatpush1.bf16.msra.mxu0 %v2302
        %2338 = vmatprep.subr.bf16.mxu0 0
        %2339 = vmatpush1.bf16.msra.mxu0 %v2303
        %2340 = vmatprep.subr.bf16.mxu0 0
        %2341 = vmatpush1.bf16.msra.mxu0 %v2304
        %2342 = vmatprep.subr.bf16.mxu0 0
        %2343 = vmatpush1.bf16.msra.mxu0 %v2305
        %2344 = vmatprep.subr.bf16.mxu0 0
        %2345 = vmatpush1.bf16.msra.mxu0 %v2306
        %2346 = vmatprep.subr.bf16.mxu0 0
        %2347 = vmatpush1.bf16.msra.mxu0 %v2307
        %2348 = vmatprep.subr.bf16.mxu0 0
        %2349 = vmatpush1.bf16.msra.mxu0 %v2308
        %2350 = vmatprep.subr.bf16.mxu0 0
        %2351 = vmatpush1.bf16.msra.mxu0 %v2309
        %2352 = vmatprep.subr.bf16.mxu0 0
        %2353 = vmatpush1.bf16.msra.mxu0 %v2310
        %2354 = vmatprep.subr.bf16.mxu0 0
        %2355 = vmatpush1.bf16.msra.mxu0 %v2311
        %2356 = vmatprep.subr.bf16.mxu0 0
        %2357 = vmatpush1.bf16.msra.mxu0 %v2312
        %2358 = vmatprep.subr.bf16.mxu0 0
        %2359 = vmatpush1.bf16.msra.mxu0 %v2313
        %2360 = vmatprep.subr.bf16.mxu0 0
        %2361 = vmatpush1.bf16.msra.mxu0 %v2314
        %2362 = vmatprep.subr.bf16.mxu0 0
        %2363 = vmatpush1.bf16.msra.mxu0 %v2315
        %2364 = vmatprep.mubr.bf16.mxu0 %v2197
        %2365 = vmatmul.mubr.bf16.gmra.mrb[0].mxu0 %v2194
        %v2366 = vpop.f32.mrb[0].mxu0
        %v2367 = vadd.f32 0.0, %v2366
        %v2368 = vpop.f32.mrb[0].mxu0
        %v2369 = vpop.f32.mrb[0].mxu0
        %v2370 = vadd.f32 0.0, %v2369
        %v2371 = vpop.f32.mrb[0].mxu0
        %2372 = vmatprep.mubr.bf16.mxu0 %v2201
        %2373 = vmatmul.mubr.bf16.gmra.mrb[0].mxu0 %v2199
        %v2374 = vpop.f32.mrb[0].mxu0
        %v2375 = vadd.f32 0.0, %v2374
        %v2376 = vpop.f32.mrb[0].mxu0
        %v2377 = vpop.f32.mrb[0].mxu0
        %v2378 = vadd.f32 0.0, %v2377
        %v2379 = vpop.f32.mrb[0].mxu0
        %2380 = vmatprep.mubr.bf16.mxu0 %v2205
        %2381 = vmatmul.mubr.bf16.gmra.mrb[0].mxu0 %v2203
        %v2382 = vpop.f32.mrb[0].mxu0
        %v2383 = vadd.f32 0.0, %v2382
        %v2384 = vpop.f32.mrb[0].mxu0
        %v2385 = vpop.f32.mrb[0].mxu0
        %v2386 = vadd.f32 0.0, %v2385
        %v2387 = vpop.f32.mrb[0].mxu0
        %2388 = vmatprep.mubr.bf16.mxu0 %v2209
        %2389 = vmatmul.mubr.bf16.gmra.mrb[0].mxu0 %v2207
        %v2390 = vpop.f32.mrb[0].mxu0
        %v2391 = vadd.f32 0.0, %v2390
        %v2392 = vpop.f32.mrb[0].mxu0
        %v2393 = vpop.f32.mrb[0].mxu0
        %v2394 = vadd.f32 0.0, %v2393
        %v2395 = vpop.f32.mrb[0].mxu0
        %2396 = vmatprep.mubr.bf16.mxu0 %v2213
        %2397 = vmatmul.mubr.bf16.gmra.mrb[0].mxu0 %v2211
        %v2398 = vpop.f32.mrb[0].mxu0
        %v2399 = vadd.f32 0.0, %v2398
        %v2400 = vpop.f32.mrb[0].mxu0
        %v2401 = vpop.f32.mrb[0].mxu0
        %v2402 = vadd.f32 0.0, %v2401
        %v2403 = vpop.f32.mrb[0].mxu0
        %2404 = vmatprep.mubr.bf16.mxu0 %v2217
        %2405 = vmatmul.mubr.bf16.gmra.mrb[0].mxu0 %v2215
        %v2406 = vpop.f32.mrb[0].mxu0
        %v2407 = vadd.f32 0.0, %v2406
        %v2408 = vpop.f32.mrb[0].mxu0
        %v2409 = vpop.f32.mrb[0].mxu0
        %v2410 = vadd.f32 0.0, %v2409
        %v2411 = vpop.f32.mrb[0].mxu0
        %2412 = vmatprep.mubr.bf16.mxu0 %v2221
        %2413 = vmatmul.mubr.bf16.gmra.mrb[0].mxu0 %v2219
        %v2414 = vpop.f32.mrb[0].mxu0
        %v2415 = vadd.f32 0.0, %v2414
        %v2416 = vpop.f32.mrb[0].mxu0
        %v2417 = vpop.f32.mrb[0].mxu0
        %v2418 = vadd.f32 0.0, %v2417
        %v2419 = vpop.f32.mrb[0].mxu0
        %2420 = vdwg.mxu0
        %v2421 = vadd.f32 %v2099, %v2367
        %v2422 = vadd.f32 %v2102, %v2370
        %v2423 = vadd.f32 %v2107, %v2375
        %v2424 = vadd.f32 %v2110, %v2378
        %v2425 = vadd.f32 %v2115, %v2383
        %v2426 = vadd.f32 %v2118, %v2386
        %v2427 = vadd.f32 %v2123, %v2391
        %v2428 = vadd.f32 %v2126, %v2394
        %v2429 = vadd.f32 %v2131, %v2399
        %v2430 = vadd.f32 %v2134, %v2402
        %v2431 = vadd.f32 %v2139, %v2407
        %v2432 = vadd.f32 %v2142, %v2410
        %v2433 = vadd.f32 %v2147, %v2415
        %v2434 = vadd.f32 %v2150, %v2418
        %v2435 = vld [vmem:[#allocation2 + $0x70] sm:$0x77]
        %v2436 = vld [vmem:[#allocation10 + $0x180] sm:$0xf]
        %v2437 = vld [vmem:[#allocation10 + $0x184] sm:$0xf]
        %v2438 = vld [vmem:[#allocation10 + $0x188] sm:$0xf]
        %v2439 = vld [vmem:[#allocation10 + $0x18c] sm:$0xf]
        %v2440 = vld [vmem:[#allocation10 + $0x190] sm:$0xf]
        %v2441 = vld [vmem:[#allocation10 + $0x194] sm:$0xf]
        %v2442 = vld [vmem:[#allocation10 + $0x198] sm:$0xf]
        %v2443 = vld [vmem:[#allocation10 + $0x19c] sm:$0xf]
        %v2444 = vld [vmem:[#allocation10 + $0x1a0] sm:$0xf]
        %v2445 = vld [vmem:[#allocation10 + $0x1a4] sm:$0xf]
        %v2446 = vld [vmem:[#allocation10 + $0x1a8] sm:$0xf]
        %v2447 = vld [vmem:[#allocation10 + $0x1ac] sm:$0xf]
        %v2448 = vld [vmem:[#allocation10 + $0x1b0] sm:$0xf]
        %v2449 = vld [vmem:[#allocation10 + $0x1b4] sm:$0xf]
        %v2450 = vld [vmem:[#allocation10 + $0x1b8] sm:$0xf]
        %v2451 = vld [vmem:[#allocation10 + $0x1bc] sm:$0xf]
        %v2452 = vld [vmem:[#allocation10 + $0x1c0] sm:$0xf]
        %v2453 = vld [vmem:[#allocation10 + $0x1c4] sm:$0xf]
        %v2454 = vld [vmem:[#allocation10 + $0x1c8] sm:$0xf]
        %v2455 = vld [vmem:[#allocation10 + $0x1cc] sm:$0xf]
        %v2456 = vld [vmem:[#allocation10 + $0x1d0] sm:$0xf]
        %v2457 = vld [vmem:[#allocation10 + $0x1d4] sm:$0xf]
        %v2458 = vld [vmem:[#allocation10 + $0x1d8] sm:$0xf]
        %v2459 = vld [vmem:[#allocation10 + $0x1dc] sm:$0xf]
        %v2460 = vld [vmem:[#allocation10 + $0x1e0] sm:$0xf]
        %v2461 = vld [vmem:[#allocation10 + $0x1e4] sm:$0xf]
        %v2462 = vld [vmem:[#allocation10 + $0x1e8] sm:$0xf]
        %v2463 = vld [vmem:[#allocation10 + $0x1ec] sm:$0xf]
        %v2464 = vld [vmem:[#allocation10 + $0x1f0] sm:$0xf]
        %v2465 = vld [vmem:[#allocation10 + $0x1f4] sm:$0xf]
        %v2466 = vld [vmem:[#allocation10 + $0x1f8] sm:$0xf]
        %v2467 = vld [vmem:[#allocation10 + $0x1fc] sm:$0xf]
        %v2469 = vunpack.c.l.b16 %v2435
        %v2470 = vunpack.c.h.b16 %v2435
        %v2471 = vpack.c.b16 %v2469, %v2469
        %v2472 = vpack.c.b16 %v2470, %v2470
        %vm2473 = vsmask.f32 5376
        %v2475 = vshrl.u32 %v2189, 16
        %v2477 = vrot.slane %v2475, 2
        %v2478 = vshll.u32 %v2189, 16
        %v2480 = vrot.slane %v2478, 3
        %v2481 = vor.u32 %v2477, %v2480
        %v2482 = vrot.slane %v1586, 2
        %v2483 = vrot.slane %v1589, 3
        %v2484 = vor.u32 %v2482, %v2483
        %v2485 = vsel %vm2473, %v2481, %v2484
        %v2487 = vshrl.u32 %v2190, 16
        %v2489 = vrot.slane %v2487, 2
        %v2490 = vshll.u32 %v2190, 16
        %v2492 = vrot.slane %v2490, 3
        %v2493 = vor.u32 %v2489, %v2492
        %v2494 = vrot.slane %v1603, 2
        %v2495 = vrot.slane %v1606, 3
        %v2496 = vor.u32 %v2494, %v2495
        %v2497 = vsel %vm2473, %v2493, %v2496
        %v2498 = vrot.slane %v1612, 2
        %v2499 = vrot.slane %v1615, 3
        %v2500 = vor.u32 %v2498, %v2499
        %v2501 = vsel %vm2473, %v2484, %v2500
        %v2502 = vrot.slane %v1621, 2
        %v2503 = vrot.slane %v1624, 3
        %v2504 = vor.u32 %v2502, %v2503
        %v2505 = vsel %vm2473, %v2496, %v2504
        %v2506 = vrot.slane %v1630, 2
        %v2507 = vrot.slane %v1633, 3
        %v2508 = vor.u32 %v2506, %v2507
        %v2509 = vsel %vm2473, %v2500, %v2508
        %v2510 = vrot.slane %v1639, 2
        %v2511 = vrot.slane %v1642, 3
        %v2512 = vor.u32 %v2510, %v2511
        %v2513 = vsel %vm2473, %v2504, %v2512
        %v2514 = vrot.slane %v1648, 2
        %v2515 = vrot.slane %v1651, 3
        %v2516 = vor.u32 %v2514, %v2515
        %v2517 = vsel %vm2473, %v2508, %v2516
        %v2518 = vrot.slane %v1657, 2
        %v2519 = vrot.slane %v1660, 3
        %v2520 = vor.u32 %v2518, %v2519
        %v2521 = vsel %vm2473, %v2512, %v2520
        %v2522 = vrot.slane %v1666, 2
        %v2523 = vrot.slane %v1669, 3
        %v2524 = vor.u32 %v2522, %v2523
        %v2525 = vsel %vm2473, %v2516, %v2524
        %v2526 = vrot.slane %v1675, 2
        %v2527 = vrot.slane %v1678, 3
        %v2528 = vor.u32 %v2526, %v2527
        %v2529 = vsel %vm2473, %v2520, %v2528
        %v2530 = vrot.slane %v1684, 2
        %v2531 = vrot.slane %v1687, 3
        %v2532 = vor.u32 %v2530, %v2531
        %v2533 = vsel %vm2473, %v2524, %v2532
        %v2534 = vrot.slane %v1693, 2
        %v2535 = vrot.slane %v1696, 3
        %v2536 = vor.u32 %v2534, %v2535
        %v2537 = vsel %vm2473, %v2528, %v2536
        %v2539 = vshrl.u32 %v2471, 16
        %v2541 = vrot.slane %v2539, 2
        %v2542 = vshll.u32 %v2471, 16
        %v2544 = vrot.slane %v2542, 3
        %v2545 = vor.u32 %v2541, %v2544
        %v2546 = vsel %vm2473, %v2532, %v2545
        %v2548 = vshrl.u32 %v2472, 16
        %v2550 = vrot.slane %v2548, 2
        %v2551 = vshll.u32 %v2472, 16
        %v2553 = vrot.slane %v2551, 3
        %v2554 = vor.u32 %v2550, %v2553
        %v2555 = vsel %vm2473, %v2536, %v2554
        %v2602 = vunpack.c.l.b16 %v2436
        %v2603 = vunpack.c.l.b16 %v2437
        %v2604 = vunpack.c.l.b16 %v2438
        %v2605 = vunpack.c.l.b16 %v2439
        %v2606 = vunpack.c.l.b16 %v2440
        %v2607 = vunpack.c.l.b16 %v2441
        %v2608 = vunpack.c.l.b16 %v2442
        %v2609 = vunpack.c.l.b16 %v2443
        %v2610 = vunpack.c.l.b16 %v2444
        %v2611 = vunpack.c.l.b16 %v2445
        %v2612 = vunpack.c.l.b16 %v2446
        %v2613 = vunpack.c.l.b16 %v2447
        %v2614 = vunpack.c.l.b16 %v2448
        %v2615 = vunpack.c.l.b16 %v2449
        %v2616 = vunpack.c.l.b16 %v2450
        %v2617 = vunpack.c.l.b16 %v2451
        %v2618 = vunpack.c.l.b16 %v2452
        %v2619 = vunpack.c.l.b16 %v2453
        %v2620 = vunpack.c.l.b16 %v2454
        %v2621 = vunpack.c.l.b16 %v2455
        %v2622 = vunpack.c.l.b16 %v2456
        %v2623 = vunpack.c.l.b16 %v2457
        %v2624 = vunpack.c.l.b16 %v2458
        %v2625 = vunpack.c.l.b16 %v2459
        %v2626 = vunpack.c.l.b16 %v2460
        %v2627 = vunpack.c.l.b16 %v2461
        %v2628 = vunpack.c.l.b16 %v2462
        %v2629 = vunpack.c.l.b16 %v2463
        %v2630 = vunpack.c.l.b16 %v2464
        %v2631 = vunpack.c.l.b16 %v2465
        %v2632 = vunpack.c.l.b16 %v2466
        %v2633 = vunpack.c.l.b16 %v2467
        %v2634 = vpack.c.b16 %v2603, %v2602
        %v2635 = vpack.c.b16 %v2605, %v2604
        %v2636 = vpack.c.b16 %v2607, %v2606
        %v2637 = vpack.c.b16 %v2609, %v2608
        %v2638 = vpack.c.b16 %v2611, %v2610
        %v2639 = vpack.c.b16 %v2613, %v2612
        %v2640 = vpack.c.b16 %v2615, %v2614
        %v2641 = vpack.c.b16 %v2617, %v2616
        %v2642 = vpack.c.b16 %v2619, %v2618
        %v2643 = vpack.c.b16 %v2621, %v2620
        %v2644 = vpack.c.b16 %v2623, %v2622
        %v2645 = vpack.c.b16 %v2625, %v2624
        %v2646 = vpack.c.b16 %v2627, %v2626
        %v2647 = vpack.c.b16 %v2629, %v2628
        %v2648 = vpack.c.b16 %v2631, %v2630
        %v2649 = vpack.c.b16 %v2633, %v2632
        %2666 = vmatprep.subr.bf16.mxu0 0
        %2667 = vmatpush1.bf16.msra.mxu0 %v2634
        %2668 = vmatprep.subr.bf16.mxu0 0
        %2669 = vmatpush1.bf16.msra.mxu0 %v2635
        %2670 = vmatprep.subr.bf16.mxu0 0
        %2671 = vmatpush1.bf16.msra.mxu0 %v2636
        %2672 = vmatprep.subr.bf16.mxu0 0
        %2673 = vmatpush1.bf16.msra.mxu0 %v2637
        %2674 = vmatprep.subr.bf16.mxu0 0
        %2675 = vmatpush1.bf16.msra.mxu0 %v2638
        %2676 = vmatprep.subr.bf16.mxu0 0
        %2677 = vmatpush1.bf16.msra.mxu0 %v2639
        %2678 = vmatprep.subr.bf16.mxu0 0
        %2679 = vmatpush1.bf16.msra.mxu0 %v2640
        %2680 = vmatprep.subr.bf16.mxu0 0
        %2681 = vmatpush1.bf16.msra.mxu0 %v2641
        %2682 = vmatprep.subr.bf16.mxu0 0
        %2683 = vmatpush1.bf16.msra.mxu0 %v2642
        %2684 = vmatprep.subr.bf16.mxu0 0
        %2685 = vmatpush1.bf16.msra.mxu0 %v2643
        %2686 = vmatprep.subr.bf16.mxu0 0
        %2687 = vmatpush1.bf16.msra.mxu0 %v2644
        %2688 = vmatprep.subr.bf16.mxu0 0
        %2689 = vmatpush1.bf16.msra.mxu0 %v2645
        %2690 = vmatprep.subr.bf16.mxu0 0
        %2691 = vmatpush1.bf16.msra.mxu0 %v2646
        %2692 = vmatprep.subr.bf16.mxu0 0
        %2693 = vmatpush1.bf16.msra.mxu0 %v2647
        %2694 = vmatprep.subr.bf16.mxu0 0
        %2695 = vmatpush1.bf16.msra.mxu0 %v2648
        %2696 = vmatprep.subr.bf16.mxu0 0
        %2697 = vmatpush1.bf16.msra.mxu0 %v2649
        %2698 = vmatprep.mubr.bf16.mxu0 %v2497
        %2699 = vmatmul.mubr.bf16.gmra.mrb[0].mxu0 %v2485
        %v2700 = vpop.f32.mrb[0].mxu0
        %v2701 = vadd.f32 0.0, %v2700
        %v2702 = vpop.f32.mrb[0].mxu0
        %v2703 = vpop.f32.mrb[0].mxu0
        %v2704 = vadd.f32 0.0, %v2703
        %v2705 = vpop.f32.mrb[0].mxu0
        %2706 = vmatprep.mubr.bf16.mxu0 %v2505
        %2707 = vmatmul.mubr.bf16.gmra.mrb[0].mxu0 %v2501
        %v2708 = vpop.f32.mrb[0].mxu0
        %v2709 = vadd.f32 0.0, %v2708
        %v2710 = vpop.f32.mrb[0].mxu0
        %v2711 = vpop.f32.mrb[0].mxu0
        %v2712 = vadd.f32 0.0, %v2711
        %v2713 = vpop.f32.mrb[0].mxu0
        %2714 = vmatprep.mubr.bf16.mxu0 %v2513
        %2715 = vmatmul.mubr.bf16.gmra.mrb[0].mxu0 %v2509
        %v2716 = vpop.f32.mrb[0].mxu0
        %v2717 = vadd.f32 0.0, %v2716
        %v2718 = vpop.f32.mrb[0].mxu0
        %v2719 = vpop.f32.mrb[0].mxu0
        %v2720 = vadd.f32 0.0, %v2719
        %v2721 = vpop.f32.mrb[0].mxu0
        %2722 = vmatprep.mubr.bf16.mxu0 %v2521
        %2723 = vmatmul.mubr.bf16.gmra.mrb[0].mxu0 %v2517
        %v2724 = vpop.f32.mrb[0].mxu0
        %v2725 = vadd.f32 0.0, %v2724
        %v2726 = vpop.f32.mrb[0].mxu0
        %v2727 = vpop.f32.mrb[0].mxu0
        %v2728 = vadd.f32 0.0, %v2727
        %v2729 = vpop.f32.mrb[0].mxu0
        %2730 = vmatprep.mubr.bf16.mxu0 %v2529
        %2731 = vmatmul.mubr.bf16.gmra.mrb[0].mxu0 %v2525
        %v2732 = vpop.f32.mrb[0].mxu0
        %v2733 = vadd.f32 0.0, %v2732
        %v2734 = vpop.f32.mrb[0].mxu0
        %v2735 = vpop.f32.mrb[0].mxu0
        %v2736 = vadd.f32 0.0, %v2735
        %v2737 = vpop.f32.mrb[0].mxu0
        %2738 = vmatprep.mubr.bf16.mxu0 %v2537
        %2739 = vmatmul.mubr.bf16.gmra.mrb[0].mxu0 %v2533
        %v2740 = vpop.f32.mrb[0].mxu0
        %v2741 = vadd.f32 0.0, %v2740
        %v2742 = vpop.f32.mrb[0].mxu0
        %v2743 = vpop.f32.mrb[0].mxu0
        %v2744 = vadd.f32 0.0, %v2743
        %v2745 = vpop.f32.mrb[0].mxu0
        %2746 = vmatprep.mubr.bf16.mxu0 %v2555
        %2747 = vmatmul.mubr.bf16.gmra.mrb[0].mxu0 %v2546
        %v2748 = vpop.f32.mrb[0].mxu0
        %v2749 = vadd.f32 0.0, %v2748
        %v2750 = vpop.f32.mrb[0].mxu0
        %v2751 = vpop.f32.mrb[0].mxu0
        %v2752 = vadd.f32 0.0, %v2751
        %v2753 = vpop.f32.mrb[0].mxu0
        %2754 = vdwg.mxu0
        %v2755 = vadd.f32 %v2421, %v2701
        %v2756 = vadd.f32 %v2422, %v2704
        %v2757 = vadd.f32 %v2423, %v2709
        %v2758 = vadd.f32 %v2424, %v2712
        %v2759 = vadd.f32 %v2425, %v2717
        %v2760 = vadd.f32 %v2426, %v2720
        %v2761 = vadd.f32 %v2427, %v2725
        %v2762 = vadd.f32 %v2428, %v2728
        %v2763 = vadd.f32 %v2429, %v2733
        %v2764 = vadd.f32 %v2430, %v2736
        %v2765 = vadd.f32 %v2431, %v2741
        %v2766 = vadd.f32 %v2432, %v2744
        %v2767 = vadd.f32 %v2433, %v2749
        %v2768 = vadd.f32 %v2434, %v2752
        %v2769 = vld [vmem:[#allocation2] sm:$0x88]
        %v2770 = vld [vmem:[#allocation10 + $0x200] sm:$0xf]
        %v2771 = vld [vmem:[#allocation10 + $0x204] sm:$0xf]
        %v2772 = vld [vmem:[#allocation10 + $0x208] sm:$0xf]
        %v2773 = vld [vmem:[#allocation10 + $0x20c] sm:$0xf]
        %v2774 = vld [vmem:[#allocation10 + $0x210] sm:$0xf]
        %v2775 = vld [vmem:[#allocation10 + $0x214] sm:$0xf]
        %v2776 = vld [vmem:[#allocation10 + $0x218] sm:$0xf]
        %v2777 = vld [vmem:[#allocation10 + $0x21c] sm:$0xf]
        %v2778 = vld [vmem:[#allocation10 + $0x220] sm:$0xf]
        %v2779 = vld [vmem:[#allocation10 + $0x224] sm:$0xf]
        %v2780 = vld [vmem:[#allocation10 + $0x228] sm:$0xf]
        %v2781 = vld [vmem:[#allocation10 + $0x22c] sm:$0xf]
        %v2782 = vld [vmem:[#allocation10 + $0x230] sm:$0xf]
        %v2783 = vld [vmem:[#allocation10 + $0x234] sm:$0xf]
        %v2784 = vld [vmem:[#allocation10 + $0x238] sm:$0xf]
        %v2785 = vld [vmem:[#allocation10 + $0x23c] sm:$0xf]
        %v2786 = vld [vmem:[#allocation10 + $0x240] sm:$0xf]
        %v2787 = vld [vmem:[#allocation10 + $0x244] sm:$0xf]
        %v2788 = vld [vmem:[#allocation10 + $0x248] sm:$0xf]
        %v2789 = vld [vmem:[#allocation10 + $0x24c] sm:$0xf]
        %v2790 = vld [vmem:[#allocation10 + $0x250] sm:$0xf]
        %v2791 = vld [vmem:[#allocation10 + $0x254] sm:$0xf]
        %v2792 = vld [vmem:[#allocation10 + $0x258] sm:$0xf]
        %v2793 = vld [vmem:[#allocation10 + $0x25c] sm:$0xf]
        %v2794 = vld [vmem:[#allocation10 + $0x260] sm:$0xf]
        %v2795 = vld [vmem:[#allocation10 + $0x264] sm:$0xf]
        %v2796 = vld [vmem:[#allocation10 + $0x268] sm:$0xf]
        %v2797 = vld [vmem:[#allocation10 + $0x26c] sm:$0xf]
        %v2798 = vld [vmem:[#allocation10 + $0x270] sm:$0xf]
        %v2799 = vld [vmem:[#allocation10 + $0x274] sm:$0xf]
        %v2800 = vld [vmem:[#allocation10 + $0x278] sm:$0xf]
        %v2801 = vld [vmem:[#allocation10 + $0x27c] sm:$0xf]
        %v2803 = vunpack.c.l.b16 %v2769
        %v2804 = vunpack.c.h.b16 %v2769
        %v2805 = vpack.c.b16 %v1532, %v2803
        %v2806 = vpack.c.b16 %v1533, %v2804
        %vm2807 = vcmask 1044480
        %v2808 = vrot.slane %v2805, 3
        %v2809 = vrot.slane %v1562, 3
        %v2810 = vsel %vm2807, %v2808, %v2809
        %v2811 = vrot.slane %v2806, 3
        %v2812 = vrot.slane %v1563, 3
        %v2813 = vsel %vm2807, %v2811, %v2812
        %v2814 = vrot.slane %v1564, 3
        %v2815 = vsel %vm2807, %v2809, %v2814
        %v2816 = vrot.slane %v1565, 3
        %v2817 = vsel %vm2807, %v2812, %v2816
        %v2818 = vrot.slane %v1566, 3
        %v2819 = vsel %vm2807, %v2814, %v2818
        %v2820 = vrot.slane %v1567, 3
        %v2821 = vsel %vm2807, %v2816, %v2820
        %v2822 = vrot.slane %v1568, 3
        %v2823 = vsel %vm2807, %v2818, %v2822
        %v2824 = vrot.slane %v1569, 3
        %v2825 = vsel %vm2807, %v2820, %v2824
        %v2826 = vrot.slane %v1570, 3
        %v2827 = vsel %vm2807, %v2822, %v2826
        %v2828 = vrot.slane %v1571, 3
        %v2829 = vsel %vm2807, %v2824, %v2828
        %v2830 = vrot.slane %v1572, 3
        %v2831 = vsel %vm2807, %v2826, %v2830
        %v2832 = vrot.slane %v1573, 3
        %v2833 = vsel %vm2807, %v2828, %v2832
        %v2834 = vrot.slane %v2471, 3
        %v2835 = vsel %vm2807, %v2830, %v2834
        %v2836 = vrot.slane %v2472, 3
        %v2837 = vsel %vm2807, %v2832, %v2836
        %v2884 = vunpack.c.l.b16 %v2770
        %v2885 = vunpack.c.l.b16 %v2771
        %v2886 = vunpack.c.l.b16 %v2772
        %v2887 = vunpack.c.l.b16 %v2773
        %v2888 = vunpack.c.l.b16 %v2774
        %v2889 = vunpack.c.l.b16 %v2775
        %v2890 = vunpack.c.l.b16 %v2776
        %v2891 = vunpack.c.l.b16 %v2777
        %v2892 = vunpack.c.l.b16 %v2778
        %v2893 = vunpack.c.l.b16 %v2779
        %v2894 = vunpack.c.l.b16 %v2780
        %v2895 = vunpack.c.l.b16 %v2781
        %v2896 = vunpack.c.l.b16 %v2782
        %v2897 = vunpack.c.l.b16 %v2783
        %v2898 = vunpack.c.l.b16 %v2784
        %v2899 = vunpack.c.l.b16 %v2785
        %v2900 = vunpack.c.l.b16 %v2786
        %v2901 = vunpack.c.l.b16 %v2787
        %v2902 = vunpack.c.l.b16 %v2788
        %v2903 = vunpack.c.l.b16 %v2789
        %v2904 = vunpack.c.l.b16 %v2790
        %v2905 = vunpack.c.l.b16 %v2791
        %v2906 = vunpack.c.l.b16 %v2792
        %v2907 = vunpack.c.l.b16 %v2793
        %v2908 = vunpack.c.l.b16 %v2794
        %v2909 = vunpack.c.l.b16 %v2795
        %v2910 = vunpack.c.l.b16 %v2796
        %v2911 = vunpack.c.l.b16 %v2797
        %v2912 = vunpack.c.l.b16 %v2798
        %v2913 = vunpack.c.l.b16 %v2799
        %v2914 = vunpack.c.l.b16 %v2800
        %v2915 = vunpack.c.l.b16 %v2801
        %v2916 = vpack.c.b16 %v2885, %v2884
        %v2917 = vpack.c.b16 %v2887, %v2886
        %v2918 = vpack.c.b16 %v2889, %v2888
        %v2919 = vpack.c.b16 %v2891, %v2890
        %v2920 = vpack.c.b16 %v2893, %v2892
        %v2921 = vpack.c.b16 %v2895, %v2894
        %v2922 = vpack.c.b16 %v2897, %v2896
        %v2923 = vpack.c.b16 %v2899, %v2898
        %v2924 = vpack.c.b16 %v2901, %v2900
        %v2925 = vpack.c.b16 %v2903, %v2902
        %v2926 = vpack.c.b16 %v2905, %v2904
        %v2927 = vpack.c.b16 %v2907, %v2906
        %v2928 = vpack.c.b16 %v2909, %v2908
        %v2929 = vpack.c.b16 %v2911, %v2910
        %v2930 = vpack.c.b16 %v2913, %v2912
        %v2931 = vpack.c.b16 %v2915, %v2914
        %2948 = vmatprep.subr.bf16.mxu0 0
        %2949 = vmatpush1.bf16.msra.mxu0 %v2916
        %2950 = vmatprep.subr.bf16.mxu0 0
        %2951 = vmatpush1.bf16.msra.mxu0 %v2917
        %2952 = vmatprep.subr.bf16.mxu0 0
        %2953 = vmatpush1.bf16.msra.mxu0 %v2918
        %2954 = vmatprep.subr.bf16.mxu0 0
        %2955 = vmatpush1.bf16.msra.mxu0 %v2919
        %2956 = vmatprep.subr.bf16.mxu0 0
        %2957 = vmatpush1.bf16.msra.mxu0 %v2920
        %2958 = vmatprep.subr.bf16.mxu0 0
        %2959 = vmatpush1.bf16.msra.mxu0 %v2921
        %2960 = vmatprep.subr.bf16.mxu0 0
        %2961 = vmatpush1.bf16.msra.mxu0 %v2922
        %2962 = vmatprep.subr.bf16.mxu0 0
        %2963 = vmatpush1.bf16.msra.mxu0 %v2923
        %2964 = vmatprep.subr.bf16.mxu0 0
        %2965 = vmatpush1.bf16.msra.mxu0 %v2924
        %2966 = vmatprep.subr.bf16.mxu0 0
        %2967 = vmatpush1.bf16.msra.mxu0 %v2925
        %2968 = vmatprep.subr.bf16.mxu0 0
        %2969 = vmatpush1.bf16.msra.mxu0 %v2926
        %2970 = vmatprep.subr.bf16.mxu0 0
        %2971 = vmatpush1.bf16.msra.mxu0 %v2927
        %2972 = vmatprep.subr.bf16.mxu0 0
        %2973 = vmatpush1.bf16.msra.mxu0 %v2928
        %2974 = vmatprep.subr.bf16.mxu0 0
        %2975 = vmatpush1.bf16.msra.mxu0 %v2929
        %2976 = vmatprep.subr.bf16.mxu0 0
        %2977 = vmatpush1.bf16.msra.mxu0 %v2930
        %2978 = vmatprep.subr.bf16.mxu0 0
        %2979 = vmatpush1.bf16.msra.mxu0 %v2931
        %2980 = vmatprep.mubr.bf16.mxu0 %v2813
        %2981 = vmatmul.mubr.bf16.gmra.mrb[0].mxu0 %v2810
        %v2982 = vpop.f32.mrb[0].mxu0
        %v2983 = vadd.f32 0.0, %v2982
        %v2984 = vpop.f32.mrb[0].mxu0
        %v2985 = vpop.f32.mrb[0].mxu0
        %v2986 = vadd.f32 0.0, %v2985
        %v2987 = vpop.f32.mrb[0].mxu0
        %2988 = vmatprep.mubr.bf16.mxu0 %v2817
        %2989 = vmatmul.mubr.bf16.gmra.mrb[0].mxu0 %v2815
        %v2990 = vpop.f32.mrb[0].mxu0
        %v2991 = vadd.f32 0.0, %v2990
        %v2992 = vpop.f32.mrb[0].mxu0
        %v2993 = vpop.f32.mrb[0].mxu0
        %v2994 = vadd.f32 0.0, %v2993
        %v2995 = vpop.f32.mrb[0].mxu0
        %2996 = vmatprep.mubr.bf16.mxu0 %v2821
        %2997 = vmatmul.mubr.bf16.gmra.mrb[0].mxu0 %v2819
        %v2998 = vpop.f32.mrb[0].mxu0
        %v2999 = vadd.f32 0.0, %v2998
        %v3000 = vpop.f32.mrb[0].mxu0
        %v3001 = vpop.f32.mrb[0].mxu0
        %v3002 = vadd.f32 0.0, %v3001
        %v3003 = vpop.f32.mrb[0].mxu0
        %3004 = vmatprep.mubr.bf16.mxu0 %v2825
        %3005 = vmatmul.mubr.bf16.gmra.mrb[0].mxu0 %v2823
        %v3006 = vpop.f32.mrb[0].mxu0
        %v3007 = vadd.f32 0.0, %v3006
        %v3008 = vpop.f32.mrb[0].mxu0
        %v3009 = vpop.f32.mrb[0].mxu0
        %v3010 = vadd.f32 0.0, %v3009
        %v3011 = vpop.f32.mrb[0].mxu0
        %3012 = vmatprep.mubr.bf16.mxu0 %v2829
        %3013 = vmatmul.mubr.bf16.gmra.mrb[0].mxu0 %v2827
        %v3014 = vpop.f32.mrb[0].mxu0
        %v3015 = vadd.f32 0.0, %v3014
        %v3016 = vpop.f32.mrb[0].mxu0
        %v3017 = vpop.f32.mrb[0].mxu0
        %v3018 = vadd.f32 0.0, %v3017
        %v3019 = vpop.f32.mrb[0].mxu0
        %3020 = vmatprep.mubr.bf16.mxu0 %v2833
        %3021 = vmatmul.mubr.bf16.gmra.mrb[0].mxu0 %v2831
        %v3022 = vpop.f32.mrb[0].mxu0
        %v3023 = vadd.f32 0.0, %v3022
        %v3024 = vpop.f32.mrb[0].mxu0
        %v3025 = vpop.f32.mrb[0].mxu0
        %v3026 = vadd.f32 0.0, %v3025
        %v3027 = vpop.f32.mrb[0].mxu0
        %3028 = vmatprep.mubr.bf16.mxu0 %v2837
        %3029 = vmatmul.mubr.bf16.gmra.mrb[0].mxu0 %v2835
        %v3030 = vpop.f32.mrb[0].mxu0
        %v3031 = vadd.f32 0.0, %v3030
        %v3032 = vpop.f32.mrb[0].mxu0
        %v3033 = vpop.f32.mrb[0].mxu0
        %v3034 = vadd.f32 0.0, %v3033
        %v3035 = vpop.f32.mrb[0].mxu0
        %3036 = vdwg.mxu0
        %v3037 = vadd.f32 %v2755, %v2983
        %v3038 = vadd.f32 %v2756, %v2986
        %v3039 = vadd.f32 %v2757, %v2991
        %v3040 = vadd.f32 %v2758, %v2994
        %v3041 = vadd.f32 %v2759, %v2999
        %v3042 = vadd.f32 %v2760, %v3002
        %v3043 = vadd.f32 %v2761, %v3007
        %v3044 = vadd.f32 %v2762, %v3010
        %v3045 = vadd.f32 %v2763, %v3015
        %v3046 = vadd.f32 %v2764, %v3018
        %v3047 = vadd.f32 %v2765, %v3023
        %v3048 = vadd.f32 %v2766, %v3026
        %v3049 = vadd.f32 %v2767, %v3031
        %v3050 = vadd.f32 %v2768, %v3034
        %v3051 = vld [vmem:[%s4] sm:$0x1]
        %v3053 = vlaneseq
        %v3054 = vshrl.u32 %v3053, 7
        %v3055 = vsub.s32 0, %v3054
        %v3056 = vrot.slane %v3051, %v3055
        %v3058 = vmul.f32 %v3037, %v3056
        %v3059 = vmul.f32 %v3038, %v3056
        %v3060 = vmul.f32 %v3039, %v3056
        %v3061 = vmul.f32 %v3040, %v3056
        %v3062 = vmul.f32 %v3041, %v3056
        %v3063 = vmul.f32 %v3042, %v3056
        %v3064 = vmul.f32 %v3043, %v3056
        %v3065 = vmul.f32 %v3044, %v3056
        %v3066 = vmul.f32 %v3045, %v3056
        %v3067 = vmul.f32 %v3046, %v3056
        %v3068 = vmul.f32 %v3047, %v3056
        %v3069 = vmul.f32 %v3048, %v3056
        %v3070 = vmul.f32 %v3049, %v3056
        %v3071 = vmul.f32 %v3050, %v3056
        %v3072 = vld [vmem:[%s5] sm:$0x1]
        %v3074 = vlaneseq
        %v3075 = vshrl.u32 %v3074, 7
        %v3076 = vsub.s32 0, %v3075
        %v3077 = vrot.slane %v3072, %v3076
        %v3079 = vadd.f32 %v3058, %v3077
        %v3080 = vadd.f32 %v3059, %v3077
        %v3081 = vadd.f32 %v3060, %v3077
        %v3082 = vadd.f32 %v3061, %v3077
        %v3083 = vadd.f32 %v3062, %v3077
        %v3084 = vadd.f32 %v3063, %v3077
        %v3085 = vadd.f32 %v3064, %v3077
        %v3086 = vadd.f32 %v3065, %v3077
        %v3087 = vadd.f32 %v3066, %v3077
        %v3088 = vadd.f32 %v3067, %v3077
        %v3089 = vadd.f32 %v3068, %v3077
        %v3090 = vadd.f32 %v3069, %v3077
        %v3091 = vadd.f32 %v3070, %v3077
        %v3092 = vadd.f32 %v3071, %v3077
        %v3093 = vmax.f32 %v3079, 0.0
        %v3094 = vmax.f32 %v3080, 0.0
        %v3095 = vmax.f32 %v3081, 0.0
        %v3096 = vmax.f32 %v3082, 0.0
        %v3097 = vmax.f32 %v3083, 0.0
        %v3098 = vmax.f32 %v3084, 0.0
        %v3099 = vmax.f32 %v3085, 0.0
        %v3100 = vmax.f32 %v3086, 0.0
        %v3101 = vmax.f32 %v3087, 0.0
        %v3102 = vmax.f32 %v3088, 0.0
        %v3103 = vmax.f32 %v3089, 0.0
        %v3104 = vmax.f32 %v3090, 0.0
        %v3105 = vmax.f32 %v3091, 0.0
        %v3106 = vmax.f32 %v3092, 0.0
        %v3107 = vsel %vm1421, 1, 0
        %v3108 = vsel %vm1422, 1, 0
        %v3109 = vsel %vm1423, 1, 0
        %v3110 = vsel %vm1424, 1, 0
        %v3111 = vsel %vm1425, 1, 0
        %v3112 = vsel %vm1426, 1, 0
        %v3113 = vsel %vm1427, 1, 0
        %v3114 = vsel %vm1428, 1, 0
        %v3115 = vsel %vm1429, 1, 0
        %v3116 = vsel %vm1430, 1, 0
        %v3117 = vsel %vm1431, 1, 0
        %v3118 = vsel %vm1432, 1, 0
        %v3119 = vsel %vm1433, 1, 0
        %v3120 = vsel %vm1434, 1, 0
        %vm3121 = vcmp.eq.s32.totalorder %v3107, 1
        %vm3122 = vcmp.eq.s32.totalorder %v3108, 1
        %vm3123 = vcmp.eq.s32.totalorder %v3109, 1
        %vm3124 = vcmp.eq.s32.totalorder %v3110, 1
        %vm3125 = vcmp.eq.s32.totalorder %v3111, 1
        %vm3126 = vcmp.eq.s32.totalorder %v3112, 1
        %vm3127 = vcmp.eq.s32.totalorder %v3113, 1
        %vm3128 = vcmp.eq.s32.totalorder %v3114, 1
        %vm3129 = vcmp.eq.s32.totalorder %v3115, 1
        %vm3130 = vcmp.eq.s32.totalorder %v3116, 1
        %vm3131 = vcmp.eq.s32.totalorder %v3117, 1
        %vm3132 = vcmp.eq.s32.totalorder %v3118, 1
        %vm3133 = vcmp.eq.s32.totalorder %v3119, 1
        %vm3134 = vcmp.eq.s32.totalorder %v3120, 1
        %v3135 = vsel %vm3121, %v3093, 0.0
        %v3136 = vsel %vm3122, %v3094, 0.0
        %v3137 = vsel %vm3123, %v3095, 0.0
        %v3138 = vsel %vm3124, %v3096, 0.0
        %v3139 = vsel %vm3125, %v3097, 0.0
        %v3140 = vsel %vm3126, %v3098, 0.0
        %v3141 = vsel %vm3127, %v3099, 0.0
        %v3142 = vsel %vm3128, %v3100, 0.0
        %v3143 = vsel %vm3129, %v3101, 0.0
        %v3144 = vsel %vm3130, %v3102, 0.0
        %v3145 = vsel %vm3131, %v3103, 0.0
        %v3146 = vsel %vm3132, %v3104, 0.0
        %v3147 = vsel %vm3133, %v3105, 0.0
        %v3148 = vsel %vm3134, %v3106, 0.0
        %v3149 = vpack.c.bf16 %v3136, %v3135
        %v3150 = vpack.c.bf16 %v3138, %v3137
        %v3151 = vpack.c.bf16 %v3140, %v3139
        %v3152 = vpack.c.bf16 %v3142, %v3141
        %v3153 = vpack.c.bf16 %v3144, %v3143
        %v3154 = vpack.c.bf16 %v3146, %v3145
        %v3155 = vpack.c.bf16 %v3148, %v3147
        %3156 = vst [vmem:[#allocation3] sm:$0xff] %v3149
        %3157 = vst [vmem:[#allocation3 + $0x8] sm:$0xff] %v3150
        %3158 = vst [vmem:[#allocation3 + $0x10] sm:$0xff] %v3151
        %3159 = vst [vmem:[#allocation3 + $0x18] sm:$0xff] %v3152
        %3160 = vst [vmem:[#allocation3 + $0x20] sm:$0xff] %v3153
        %3161 = vst [vmem:[#allocation3 + $0x28] sm:$0xff] %v3154
        %3162 = vst [vmem:[#allocation3 + $0x30] sm:$0xff] %v3155
        %s3163 = ssub.s32 %s560, 2
        %v3164 = vstv %s3163
        %v3165 = vadd.s32 %v3164, %v1149
        %v3166 = vadd.s32 %v3164, %v1150
        %v3167 = vadd.s32 %v3164, %v1151
        %v3168 = vadd.s32 %v3164, %v1152
        %v3169 = vadd.s32 %v3164, %v1153
        %v3170 = vadd.s32 %v3164, %v1154
        %v3171 = vadd.s32 %v3164, %v1155
        %v3172 = vadd.s32 %v3164, %v1156
        %v3173 = vadd.s32 %v3164, %v1157
        %v3174 = vadd.s32 %v3164, %v1158
        %v3175 = vadd.s32 %v3164, %v1159
        %v3176 = vadd.s32 %v3164, %v1160
        %v3177 = vadd.s32 %v3164, %v1161
        %v3178 = vadd.s32 %v3164, %v1162
        %vm3179 = vcmp.ge.s32.totalorder %v3165, 0
        %vm3180 = vcmp.ge.s32.totalorder %v3166, 0
        %vm3181 = vcmp.ge.s32.totalorder %v3167, 0
        %vm3182 = vcmp.ge.s32.totalorder %v3168, 0
        %vm3183 = vcmp.ge.s32.totalorder %v3169, 0
        %vm3184 = vcmp.ge.s32.totalorder %v3170, 0
        %vm3185 = vcmp.ge.s32.totalorder %v3171, 0
        %vm3186 = vcmp.ge.s32.totalorder %v3172, 0
        %vm3187 = vcmp.ge.s32.totalorder %v3173, 0
        %vm3188 = vcmp.ge.s32.totalorder %v3174, 0
        %vm3189 = vcmp.ge.s32.totalorder %v3175, 0
        %vm3190 = vcmp.ge.s32.totalorder %v3176, 0
        %vm3191 = vcmp.ge.s32.totalorder %v3177, 0
        %vm3192 = vcmp.ge.s32.totalorder %v3178, 0
        %vm3193 = vcmp.lt.s32.totalorder %v3165, 200
        %vm3194 = vcmp.lt.s32.totalorder %v3166, 200
        %vm3195 = vcmp.lt.s32.totalorder %v3167, 200
        %vm3196 = vcmp.lt.s32.totalorder %v3168, 200
        %vm3197 = vcmp.lt.s32.totalorder %v3169, 200
        %vm3198 = vcmp.lt.s32.totalorder %v3170, 200
        %vm3199 = vcmp.lt.s32.totalorder %v3171, 200
        %vm3200 = vcmp.lt.s32.totalorder %v3172, 200
        %vm3201 = vcmp.lt.s32.totalorder %v3173, 200
        %vm3202 = vcmp.lt.s32.totalorder %v3174, 200
        %vm3203 = vcmp.lt.s32.totalorder %v3175, 200
        %vm3204 = vcmp.lt.s32.totalorder %v3176, 200
        %vm3205 = vcmp.lt.s32.totalorder %v3177, 200
        %vm3206 = vcmp.lt.s32.totalorder %v3178, 200
        %vm3207 = vmand %vm3179, %vm3193
        %vm3208 = vmand %vm3180, %vm3194
        %vm3209 = vmand %vm3181, %vm3195
        %vm3210 = vmand %vm3182, %vm3196
        %vm3211 = vmand %vm3183, %vm3197
        %vm3212 = vmand %vm3184, %vm3198
        %vm3213 = vmand %vm3185, %vm3199
        %vm3214 = vmand %vm3186, %vm3200
        %vm3215 = vmand %vm3187, %vm3201
        %vm3216 = vmand %vm3188, %vm3202
        %vm3217 = vmand %vm3189, %vm3203
        %vm3218 = vmand %vm3190, %vm3204
        %vm3219 = vmand %vm3191, %vm3205
        %vm3220 = vmand %vm3192, %vm3206
        %v3221 = vld [vmem:[#allocation3] sm:$0xff]
        %v3222 = vld [vmem:[#allocation3 + $0x8] sm:$0xff]
        %v3223 = vld [vmem:[#allocation3 + $0x10] sm:$0xff]
        %v3224 = vld [vmem:[#allocation3 + $0x18] sm:$0xff]
        %v3225 = vld [vmem:[#allocation3 + $0x20] sm:$0xff]
        %v3226 = vld [vmem:[#allocation3 + $0x28] sm:$0xff]
        %v3227 = vld [vmem:[#allocation3 + $0x30] sm:$0x3f]
        %v3228 = vld [vmem:[#allocation3 + $0x30] sm:$0x7f]
        %vm3229 = vsmask.f32 7424
        %v3231 = vshrl.u32 %v3221, 16
        %v3233 = vshll.u32 %v3221, 16
        %v3235 = vrot.slane %v3233, 1
        %v3236 = vor.u32 %v3231, %v3235
        %v3238 = vshll.u32 %v3222, 16
        %v3240 = vrot.slane %v3238, 1
        %v3241 = vsel %vm3229, %v3236, %v3240
        %v3242 = vshrl.u32 %v3222, 16
        %v3244 = vor.u32 %v3242, %v3240
        %v3246 = vshll.u32 %v3223, 16
        %v3248 = vrot.slane %v3246, 1
        %v3249 = vsel %vm3229, %v3244, %v3248
        %v3250 = vshrl.u32 %v3223, 16
        %v3252 = vor.u32 %v3250, %v3248
        %v3254 = vshll.u32 %v3224, 16
        %v3256 = vrot.slane %v3254, 1
        %v3257 = vsel %vm3229, %v3252, %v3256
        %v3258 = vshrl.u32 %v3224, 16
        %v3260 = vor.u32 %v3258, %v3256
        %v3262 = vshll.u32 %v3225, 16
        %v3264 = vrot.slane %v3262, 1
        %v3265 = vsel %vm3229, %v3260, %v3264
        %v3266 = vshrl.u32 %v3225, 16
        %v3268 = vor.u32 %v3266, %v3264
        %v3270 = vshll.u32 %v3226, 16
        %v3272 = vrot.slane %v3270, 1
        %v3273 = vsel %vm3229, %v3268, %v3272
        %v3274 = vshrl.u32 %v3226, 16
        %v3276 = vor.u32 %v3274, %v3272
        %v3278 = vshll.u32 %v3228, 16
        %v3280 = vrot.slane %v3278, 1
        %v3281 = vsel %vm3229, %v3276, %v3280
        %v3282 = vshrl.u32 %v3228, 16
        %v3284 = vor.u32 %v3282, %v3280
        %v3292 = vld [vmem:[%s6] sm:$0xf]
        %v3293 = vld [vmem:[%s6 + $0x4] sm:$0xf]
        %v3294 = vld [vmem:[%s6 + $0x8] sm:$0xf]
        %v3295 = vld [vmem:[%s6 + $0xc] sm:$0xf]
        %v3296 = vld [vmem:[%s6 + $0x10] sm:$0xf]
        %v3297 = vld [vmem:[%s6 + $0x14] sm:$0xf]
        %v3298 = vld [vmem:[%s6 + $0x18] sm:$0xf]
        %v3299 = vld [vmem:[%s6 + $0x1c] sm:$0xf]
        %v3300 = vld [vmem:[%s6 + $0x20] sm:$0xf]
        %v3301 = vld [vmem:[%s6 + $0x24] sm:$0xf]
        %v3302 = vld [vmem:[%s6 + $0x28] sm:$0xf]
        %v3303 = vld [vmem:[%s6 + $0x2c] sm:$0xf]
        %v3304 = vld [vmem:[%s6 + $0x30] sm:$0xf]
        %v3305 = vld [vmem:[%s6 + $0x34] sm:$0xf]
        %v3306 = vld [vmem:[%s6 + $0x38] sm:$0xf]
        %v3307 = vld [vmem:[%s6 + $0x3c] sm:$0xf]
        %v3308 = vld [vmem:[%s6 + $0x40] sm:$0xf]
        %v3309 = vld [vmem:[%s6 + $0x44] sm:$0xf]
        %v3310 = vld [vmem:[%s6 + $0x48] sm:$0xf]
        %v3311 = vld [vmem:[%s6 + $0x4c] sm:$0xf]
        %v3312 = vld [vmem:[%s6 + $0x50] sm:$0xf]
        %v3313 = vld [vmem:[%s6 + $0x54] sm:$0xf]
        %v3314 = vld [vmem:[%s6 + $0x58] sm:$0xf]
        %v3315 = vld [vmem:[%s6 + $0x5c] sm:$0xf]
        %v3316 = vld [vmem:[%s6 + $0x60] sm:$0xf]
        %v3317 = vld [vmem:[%s6 + $0x64] sm:$0xf]
        %v3318 = vld [vmem:[%s6 + $0x68] sm:$0xf]
        %v3319 = vld [vmem:[%s6 + $0x6c] sm:$0xf]
        %v3320 = vld [vmem:[%s6 + $0x70] sm:$0xf]
        %v3321 = vld [vmem:[%s6 + $0x74] sm:$0xf]
        %v3322 = vld [vmem:[%s6 + $0x78] sm:$0xf]
        %v3323 = vld [vmem:[%s6 + $0x7c] sm:$0xf]
        %v3324 = vld [vmem:[#allocation3] sm:$0xfe]
        %v3325 = vld [vmem:[#allocation3 + $0x30] sm:$0xff]
        %v3327 = vshrl.u32 %v3324, 16
        %v3329 = vshll.u32 %v3324, 16
        %v3331 = vrot.slane %v3329, 1
        %v3332 = vor.u32 %v3327, %v3331
        %v3333 = vsel %vm3229, %v3332, %v3240
        %v3335 = vshll.u32 %v3325, 16
        %v3337 = vrot.slane %v3335, 1
        %v3338 = vsel %vm3229, %v3276, %v3337
        %v3339 = vshrl.u32 %v3325, 16
        %v3341 = vor.u32 %v3339, %v3337
        %v3342 = vld [vmem:[%s6 + $0x80] sm:$0xf]
        %v3343 = vld [vmem:[%s6 + $0x84] sm:$0xf]
        %v3344 = vld [vmem:[%s6 + $0x88] sm:$0xf]
        %v3345 = vld [vmem:[%s6 + $0x8c] sm:$0xf]
        %v3346 = vld [vmem:[%s6 + $0x90] sm:$0xf]
        %v3347 = vld [vmem:[%s6 + $0x94] sm:$0xf]
        %v3348 = vld [vmem:[%s6 + $0x98] sm:$0xf]
        %v3349 = vld [vmem:[%s6 + $0x9c] sm:$0xf]
        %v3350 = vld [vmem:[%s6 + $0xa0] sm:$0xf]
        %v3351 = vld [vmem:[%s6 + $0xa4] sm:$0xf]
        %v3352 = vld [vmem:[%s6 + $0xa8] sm:$0xf]
        %v3353 = vld [vmem:[%s6 + $0xac] sm:$0xf]
        %v3354 = vld [vmem:[%s6 + $0xb0] sm:$0xf]
        %v3355 = vld [vmem:[%s6 + $0xb4] sm:$0xf]
        %v3356 = vld [vmem:[%s6 + $0xb8] sm:$0xf]
        %v3357 = vld [vmem:[%s6 + $0xbc] sm:$0xf]
        %v3358 = vld [vmem:[%s6 + $0xc0] sm:$0xf]
        %v3359 = vld [vmem:[%s6 + $0xc4] sm:$0xf]
        %v3360 = vld [vmem:[%s6 + $0xc8] sm:$0xf]
        %v3361 = vld [vmem:[%s6 + $0xcc] sm:$0xf]
        %v3362 = vld [vmem:[%s6 + $0xd0] sm:$0xf]
        %v3363 = vld [vmem:[%s6 + $0xd4] sm:$0xf]
        %v3364 = vld [vmem:[%s6 + $0xd8] sm:$0xf]
        %v3365 = vld [vmem:[%s6 + $0xdc] sm:$0xf]
        %v3366 = vld [vmem:[%s6 + $0xe0] sm:$0xf]
        %v3367 = vld [vmem:[%s6 + $0xe4] sm:$0xf]
        %v3368 = vld [vmem:[%s6 + $0xe8] sm:$0xf]
        %v3369 = vld [vmem:[%s6 + $0xec] sm:$0xf]
        %v3370 = vld [vmem:[%s6 + $0xf0] sm:$0xf]
        %v3371 = vld [vmem:[%s6 + $0xf4] sm:$0xf]
        %v3372 = vld [vmem:[%s6 + $0xf8] sm:$0xf]
        %v3373 = vld [vmem:[%s6 + $0xfc] sm:$0xf]
        %v3381 = vrot.slane %v3324, 1
        %v3382 = vrot.slane %v3222, 1
        %v3383 = vsel %vm1923, %v3381, %v3382
        %v3384 = vrot.slane %v3333, 1
        %v3385 = vrot.slane %v3249, 1
        %v3386 = vsel %vm1923, %v3384, %v3385
        %v3387 = vrot.slane %v3223, 1
        %v3388 = vsel %vm1923, %v3382, %v3387
        %v3389 = vrot.slane %v3257, 1
        %v3390 = vsel %vm1923, %v3385, %v3389
        %v3391 = vrot.slane %v3224, 1
        %v3392 = vsel %vm1923, %v3387, %v3391
        %v3393 = vrot.slane %v3265, 1
        %v3394 = vsel %vm1923, %v3389, %v3393
        %v3395 = vrot.slane %v3225, 1
        %v3396 = vsel %vm1923, %v3391, %v3395
        %v3397 = vrot.slane %v3273, 1
        %v3398 = vsel %vm1923, %v3393, %v3397
        %v3399 = vrot.slane %v3226, 1
        %v3400 = vsel %vm1923, %v3395, %v3399
        %v3401 = vrot.slane %v3338, 1
        %v3402 = vsel %vm1923, %v3397, %v3401
        %v3403 = vrot.slane %v3228, 1
        %v3404 = vsel %vm1923, %v3399, %v3403
        %v3405 = vrot.slane %v3341, 1
        %v3406 = vsel %vm1923, %v3401, %v3405
        %v3453 = vunpack.c.l.b16 %v3342
        %v3454 = vunpack.c.l.b16 %v3343
        %v3455 = vunpack.c.l.b16 %v3344
        %v3456 = vunpack.c.l.b16 %v3345
        %v3457 = vunpack.c.l.b16 %v3346
        %v3458 = vunpack.c.l.b16 %v3347
        %v3459 = vunpack.c.l.b16 %v3348
        %v3460 = vunpack.c.l.b16 %v3349
        %v3461 = vunpack.c.l.b16 %v3350
        %v3462 = vunpack.c.l.b16 %v3351
        %v3463 = vunpack.c.l.b16 %v3352
        %v3464 = vunpack.c.l.b16 %v3353
        %v3465 = vunpack.c.l.b16 %v3354
        %v3466 = vunpack.c.l.b16 %v3355
        %v3467 = vunpack.c.l.b16 %v3356
        %v3468 = vunpack.c.l.b16 %v3357
        %v3469 = vunpack.c.l.b16 %v3358
        %v3470 = vunpack.c.l.b16 %v3359
        %v3471 = vunpack.c.l.b16 %v3360
        %v3472 = vunpack.c.l.b16 %v3361
        %v3473 = vunpack.c.l.b16 %v3362
        %v3474 = vunpack.c.l.b16 %v3363
        %v3475 = vunpack.c.l.b16 %v3364
        %v3476 = vunpack.c.l.b16 %v3365
        %v3477 = vunpack.c.l.b16 %v3366
        %v3478 = vunpack.c.l.b16 %v3367
        %v3479 = vunpack.c.l.b16 %v3368
        %v3480 = vunpack.c.l.b16 %v3369
        %v3481 = vunpack.c.l.b16 %v3370
        %v3482 = vunpack.c.l.b16 %v3371
        %v3483 = vunpack.c.l.b16 %v3372
        %v3484 = vunpack.c.l.b16 %v3373
        %v3485 = vpack.c.b16 %v3454, %v3453
        %v3486 = vpack.c.b16 %v3456, %v3455
        %v3487 = vpack.c.b16 %v3458, %v3457
        %v3488 = vpack.c.b16 %v3460, %v3459
        %v3489 = vpack.c.b16 %v3462, %v3461
        %v3490 = vpack.c.b16 %v3464, %v3463
        %v3491 = vpack.c.b16 %v3466, %v3465
        %v3492 = vpack.c.b16 %v3468, %v3467
        %v3493 = vpack.c.b16 %v3470, %v3469
        %v3494 = vpack.c.b16 %v3472, %v3471
        %v3495 = vpack.c.b16 %v3474, %v3473
        %v3496 = vpack.c.b16 %v3476, %v3475
        %v3497 = vpack.c.b16 %v3478, %v3477
        %v3498 = vpack.c.b16 %v3480, %v3479
        %v3499 = vpack.c.b16 %v3482, %v3481
        %v3500 = vpack.c.b16 %v3484, %v3483
        %3517 = vmatprep.subr.bf16.mxu0 0
        %3518 = vmatpush1.bf16.msra.mxu0 %v3485
        %3519 = vmatprep.subr.bf16.mxu0 0
        %3520 = vmatpush1.bf16.msra.mxu0 %v3486
        %3521 = vmatprep.subr.bf16.mxu0 0
        %3522 = vmatpush1.bf16.msra.mxu0 %v3487
        %3523 = vmatprep.subr.bf16.mxu0 0
        %3524 = vmatpush1.bf16.msra.mxu0 %v3488
        %3525 = vmatprep.subr.bf16.mxu0 0
        %3526 = vmatpush1.bf16.msra.mxu0 %v3489
        %3527 = vmatprep.subr.bf16.mxu0 0
        %3528 = vmatpush1.bf16.msra.mxu0 %v3490
        %3529 = vmatprep.subr.bf16.mxu0 0
        %3530 = vmatpush1.bf16.msra.mxu0 %v3491
        %3531 = vmatprep.subr.bf16.mxu0 0
        %3532 = vmatpush1.bf16.msra.mxu0 %v3492
        %3533 = vmatprep.subr.bf16.mxu0 0
        %3534 = vmatpush1.bf16.msra.mxu0 %v3493
        %3535 = vmatprep.subr.bf16.mxu0 0
        %3536 = vmatpush1.bf16.msra.mxu0 %v3494
        %3537 = vmatprep.subr.bf16.mxu0 0
        %3538 = vmatpush1.bf16.msra.mxu0 %v3495
        %3539 = vmatprep.subr.bf16.mxu0 0
        %3540 = vmatpush1.bf16.msra.mxu0 %v3496
        %3541 = vmatprep.subr.bf16.mxu0 0
        %3542 = vmatpush1.bf16.msra.mxu0 %v3497
        %3543 = vmatprep.subr.bf16.mxu0 0
        %3544 = vmatpush1.bf16.msra.mxu0 %v3498
        %3545 = vmatprep.subr.bf16.mxu0 0
        %3546 = vmatpush1.bf16.msra.mxu0 %v3499
        %3547 = vmatprep.subr.bf16.mxu0 0
        %3548 = vmatpush1.bf16.msra.mxu0 %v3500
        %3549 = vmatprep.mubr.bf16.mxu0 %v3386
        %3550 = vmatmul.mubr.bf16.gmra.mrb[0].mxu0 %v3383
        %v3551 = vpop.f32.mrb[0].mxu0
        %v3552 = vadd.f32 0.0, %v3551
        %v3553 = vpop.f32.mrb[0].mxu0
        %v3554 = vpop.f32.mrb[0].mxu0
        %v3555 = vadd.f32 0.0, %v3554
        %v3556 = vpop.f32.mrb[0].mxu0
        %3557 = vmatprep.mubr.bf16.mxu0 %v3390
        %3558 = vmatmul.mubr.bf16.gmra.mrb[0].mxu0 %v3388
        %v3559 = vpop.f32.mrb[0].mxu0
        %v3560 = vadd.f32 0.0, %v3559
        %v3561 = vpop.f32.mrb[0].mxu0
        %v3562 = vpop.f32.mrb[0].mxu0
        %v3563 = vadd.f32 0.0, %v3562
        %v3564 = vpop.f32.mrb[0].mxu0
        %3565 = vmatprep.mubr.bf16.mxu0 %v3394
        %3566 = vmatmul.mubr.bf16.gmra.mrb[0].mxu0 %v3392
        %v3567 = vpop.f32.mrb[0].mxu0
        %v3568 = vadd.f32 0.0, %v3567
        %v3569 = vpop.f32.mrb[0].mxu0
        %v3570 = vpop.f32.mrb[0].mxu0
        %v3571 = vadd.f32 0.0, %v3570
        %v3572 = vpop.f32.mrb[0].mxu0
        %3573 = vmatprep.mubr.bf16.mxu0 %v3398
        %3574 = vmatmul.mubr.bf16.gmra.mrb[0].mxu0 %v3396
        %v3575 = vpop.f32.mrb[0].mxu0
        %v3576 = vadd.f32 0.0, %v3575
        %v3577 = vpop.f32.mrb[0].mxu0
        %v3578 = vpop.f32.mrb[0].mxu0
        %v3579 = vadd.f32 0.0, %v3578
        %v3580 = vpop.f32.mrb[0].mxu0
        %3581 = vmatprep.mubr.bf16.mxu0 %v3402
        %3582 = vmatmul.mubr.bf16.gmra.mrb[0].mxu0 %v3400
        %v3583 = vpop.f32.mrb[0].mxu0
        %v3584 = vadd.f32 0.0, %v3583
        %v3585 = vpop.f32.mrb[0].mxu0
        %v3586 = vpop.f32.mrb[0].mxu0
        %v3587 = vadd.f32 0.0, %v3586
        %v3588 = vpop.f32.mrb[0].mxu0
        %3589 = vmatprep.mubr.bf16.mxu0 %v3406
        %3590 = vmatmul.mubr.bf16.gmra.mrb[0].mxu0 %v3404
        %v3591 = vpop.f32.mrb[0].mxu0
        %v3592 = vadd.f32 0.0, %v3591
        %v3593 = vpop.f32.mrb[0].mxu0
        %v3594 = vpop.f32.mrb[0].mxu0
        %v3595 = vadd.f32 0.0, %v3594
        %v3596 = vpop.f32.mrb[0].mxu0
        %3597 = vmatprep.mubr.bf16.mxu0 %v3405
        %3598 = vmatmul.mubr.bf16.gmra.mrb[0].mxu0 %v3403
        %v3599 = vpop.f32.mrb[0].mxu0
        %v3600 = vadd.f32 0.0, %v3599
        %v3601 = vpop.f32.mrb[0].mxu0
        %v3602 = vpop.f32.mrb[0].mxu0
        %v3603 = vadd.f32 0.0, %v3602
        %v3604 = vpop.f32.mrb[0].mxu0
        %3605 = vdwg.mxu0
        %v3638 = vunpack.c.l.b16 %v3292
        %v3639 = vunpack.c.l.b16 %v3293
        %v3640 = vunpack.c.l.b16 %v3294
        %v3641 = vunpack.c.l.b16 %v3295
        %v3642 = vunpack.c.l.b16 %v3296
        %v3643 = vunpack.c.l.b16 %v3297
        %v3644 = vunpack.c.l.b16 %v3298
        %v3645 = vunpack.c.l.b16 %v3299
        %v3646 = vunpack.c.l.b16 %v3300
        %v3647 = vunpack.c.l.b16 %v3301
        %v3648 = vunpack.c.l.b16 %v3302
        %v3649 = vunpack.c.l.b16 %v3303
        %v3650 = vunpack.c.l.b16 %v3304
        %v3651 = vunpack.c.l.b16 %v3305
        %v3652 = vunpack.c.l.b16 %v3306
        %v3653 = vunpack.c.l.b16 %v3307
        %v3654 = vunpack.c.l.b16 %v3308
        %v3655 = vunpack.c.l.b16 %v3309
        %v3656 = vunpack.c.l.b16 %v3310
        %v3657 = vunpack.c.l.b16 %v3311
        %v3658 = vunpack.c.l.b16 %v3312
        %v3659 = vunpack.c.l.b16 %v3313
        %v3660 = vunpack.c.l.b16 %v3314
        %v3661 = vunpack.c.l.b16 %v3315
        %v3662 = vunpack.c.l.b16 %v3316
        %v3663 = vunpack.c.l.b16 %v3317
        %v3664 = vunpack.c.l.b16 %v3318
        %v3665 = vunpack.c.l.b16 %v3319
        %v3666 = vunpack.c.l.b16 %v3320
        %v3667 = vunpack.c.l.b16 %v3321
        %v3668 = vunpack.c.l.b16 %v3322
        %v3669 = vunpack.c.l.b16 %v3323
        %v3670 = vpack.c.b16 %v3639, %v3638
        %v3671 = vpack.c.b16 %v3641, %v3640
        %v3672 = vpack.c.b16 %v3643, %v3642
        %v3673 = vpack.c.b16 %v3645, %v3644
        %v3674 = vpack.c.b16 %v3647, %v3646
        %v3675 = vpack.c.b16 %v3649, %v3648
        %v3676 = vpack.c.b16 %v3651, %v3650
        %v3677 = vpack.c.b16 %v3653, %v3652
        %v3678 = vpack.c.b16 %v3655, %v3654
        %v3679 = vpack.c.b16 %v3657, %v3656
        %v3680 = vpack.c.b16 %v3659, %v3658
        %v3681 = vpack.c.b16 %v3661, %v3660
        %v3682 = vpack.c.b16 %v3663, %v3662
        %v3683 = vpack.c.b16 %v3665, %v3664
        %v3684 = vpack.c.b16 %v3667, %v3666
        %v3685 = vpack.c.b16 %v3669, %v3668
        %3702 = vmatprep.subr.bf16.mxu0 0
        %3703 = vmatpush1.bf16.msra.mxu0 %v3670
        %3704 = vmatprep.subr.bf16.mxu0 0
        %3705 = vmatpush1.bf16.msra.mxu0 %v3671
        %3706 = vmatprep.subr.bf16.mxu0 0
        %3707 = vmatpush1.bf16.msra.mxu0 %v3672
        %3708 = vmatprep.subr.bf16.mxu0 0
        %3709 = vmatpush1.bf16.msra.mxu0 %v3673
        %3710 = vmatprep.subr.bf16.mxu0 0
        %3711 = vmatpush1.bf16.msra.mxu0 %v3674
        %3712 = vmatprep.subr.bf16.mxu0 0
        %3713 = vmatpush1.bf16.msra.mxu0 %v3675
        %3714 = vmatprep.subr.bf16.mxu0 0
        %3715 = vmatpush1.bf16.msra.mxu0 %v3676
        %3716 = vmatprep.subr.bf16.mxu0 0
        %3717 = vmatpush1.bf16.msra.mxu0 %v3677
        %3718 = vmatprep.subr.bf16.mxu0 0
        %3719 = vmatpush1.bf16.msra.mxu0 %v3678
        %3720 = vmatprep.subr.bf16.mxu0 0
        %3721 = vmatpush1.bf16.msra.mxu0 %v3679
        %3722 = vmatprep.subr.bf16.mxu0 0
        %3723 = vmatpush1.bf16.msra.mxu0 %v3680
        %3724 = vmatprep.subr.bf16.mxu0 0
        %3725 = vmatpush1.bf16.msra.mxu0 %v3681
        %3726 = vmatprep.subr.bf16.mxu0 0
        %3727 = vmatpush1.bf16.msra.mxu0 %v3682
        %3728 = vmatprep.subr.bf16.mxu0 0
        %3729 = vmatpush1.bf16.msra.mxu0 %v3683
        %3730 = vmatprep.subr.bf16.mxu0 0
        %3731 = vmatpush1.bf16.msra.mxu0 %v3684
        %3732 = vmatprep.subr.bf16.mxu0 0
        %3733 = vmatpush1.bf16.msra.mxu0 %v3685
        %3734 = vmatprep.mubr.bf16.mxu0 %v3241
        %3735 = vmatmul.mubr.bf16.gmra.mrb[0].mxu0 %v3221
        %v3736 = vpop.f32.mrb[0].mxu0
        %v3737 = vadd.f32 %v3552, %v3736
        %v3738 = vpop.f32.mrb[0].mxu0
        %v3739 = vpop.f32.mrb[0].mxu0
        %v3740 = vadd.f32 %v3555, %v3739
        %v3741 = vpop.f32.mrb[0].mxu0
        %3742 = vmatprep.mubr.bf16.mxu0 %v3249
        %3743 = vmatmul.mubr.bf16.gmra.mrb[0].mxu0 %v3222
        %v3744 = vpop.f32.mrb[0].mxu0
        %v3745 = vadd.f32 %v3560, %v3744
        %v3746 = vpop.f32.mrb[0].mxu0
        %v3747 = vpop.f32.mrb[0].mxu0
        %v3748 = vadd.f32 %v3563, %v3747
        %v3749 = vpop.f32.mrb[0].mxu0
        %3750 = vmatprep.mubr.bf16.mxu0 %v3257
        %3751 = vmatmul.mubr.bf16.gmra.mrb[0].mxu0 %v3223
        %v3752 = vpop.f32.mrb[0].mxu0
        %v3753 = vadd.f32 %v3568, %v3752
        %v3754 = vpop.f32.mrb[0].mxu0
        %v3755 = vpop.f32.mrb[0].mxu0
        %v3756 = vadd.f32 %v3571, %v3755
        %v3757 = vpop.f32.mrb[0].mxu0
        %3758 = vmatprep.mubr.bf16.mxu0 %v3265
        %3759 = vmatmul.mubr.bf16.gmra.mrb[0].mxu0 %v3224
        %v3760 = vpop.f32.mrb[0].mxu0
        %v3761 = vadd.f32 %v3576, %v3760
        %v3762 = vpop.f32.mrb[0].mxu0
        %v3763 = vpop.f32.mrb[0].mxu0
        %v3764 = vadd.f32 %v3579, %v3763
        %v3765 = vpop.f32.mrb[0].mxu0
        %3766 = vmatprep.mubr.bf16.mxu0 %v3273
        %3767 = vmatmul.mubr.bf16.gmra.mrb[0].mxu0 %v3225
        %v3768 = vpop.f32.mrb[0].mxu0
        %v3769 = vadd.f32 %v3584, %v3768
        %v3770 = vpop.f32.mrb[0].mxu0
        %v3771 = vpop.f32.mrb[0].mxu0
        %v3772 = vadd.f32 %v3587, %v3771
        %v3773 = vpop.f32.mrb[0].mxu0
        %3774 = vmatprep.mubr.bf16.mxu0 %v3281
        %3775 = vmatmul.mubr.bf16.gmra.mrb[0].mxu0 %v3226
        %v3776 = vpop.f32.mrb[0].mxu0
        %v3777 = vadd.f32 %v3592, %v3776
        %v3778 = vpop.f32.mrb[0].mxu0
        %v3779 = vpop.f32.mrb[0].mxu0
        %v3780 = vadd.f32 %v3595, %v3779
        %v3781 = vpop.f32.mrb[0].mxu0
        %3782 = vmatprep.mubr.bf16.mxu0 %v3284
        %3783 = vmatmul.mubr.bf16.gmra.mrb[0].mxu0 %v3227
        %v3784 = vpop.f32.mrb[0].mxu0
        %v3785 = vadd.f32 %v3600, %v3784
        %v3786 = vpop.f32.mrb[0].mxu0
        %v3787 = vpop.f32.mrb[0].mxu0
        %v3788 = vadd.f32 %v3603, %v3787
        %v3789 = vpop.f32.mrb[0].mxu0
        %3790 = vdwg.mxu0
        %v3791 = vld [vmem:[#allocation3] sm:$0xfc]
        %v3792 = vld [vmem:[%s6 + $0x100] sm:$0xf]
        %v3793 = vld [vmem:[%s6 + $0x104] sm:$0xf]
        %v3794 = vld [vmem:[%s6 + $0x108] sm:$0xf]
        %v3795 = vld [vmem:[%s6 + $0x10c] sm:$0xf]
        %v3796 = vld [vmem:[%s6 + $0x110] sm:$0xf]
        %v3797 = vld [vmem:[%s6 + $0x114] sm:$0xf]
        %v3798 = vld [vmem:[%s6 + $0x118] sm:$0xf]
        %v3799 = vld [vmem:[%s6 + $0x11c] sm:$0xf]
        %v3800 = vld [vmem:[%s6 + $0x120] sm:$0xf]
        %v3801 = vld [vmem:[%s6 + $0x124] sm:$0xf]
        %v3802 = vld [vmem:[%s6 + $0x128] sm:$0xf]
        %v3803 = vld [vmem:[%s6 + $0x12c] sm:$0xf]
        %v3804 = vld [vmem:[%s6 + $0x130] sm:$0xf]
        %v3805 = vld [vmem:[%s6 + $0x134] sm:$0xf]
        %v3806 = vld [vmem:[%s6 + $0x138] sm:$0xf]
        %v3807 = vld [vmem:[%s6 + $0x13c] sm:$0xf]
        %v3810 = vrot.slane %v3791, 2
        %v3811 = vrot.slane %v3222, 2
        %v3812 = vsel %vm2191, %v3810, %v3811
        %v3813 = vrot.slane %v3223, 2
        %v3814 = vsel %vm2191, %v3811, %v3813
        %v3815 = vrot.slane %v3224, 2
        %v3816 = vsel %vm2191, %v3813, %v3815
        %v3817 = vrot.slane %v3225, 2
        %v3818 = vsel %vm2191, %v3815, %v3817
        %v3819 = vrot.slane %v3226, 2
        %v3820 = vsel %vm2191, %v3817, %v3819
        %v3821 = vrot.slane %v3325, 2
        %v3822 = vsel %vm2191, %v3819, %v3821
        %v3846 = vunpack.c.l.b16 %v3792
        %v3847 = vunpack.c.l.b16 %v3793
        %v3848 = vunpack.c.l.b16 %v3794
        %v3849 = vunpack.c.l.b16 %v3795
        %v3850 = vunpack.c.l.b16 %v3796
        %v3851 = vunpack.c.l.b16 %v3797
        %v3852 = vunpack.c.l.b16 %v3798
        %v3853 = vunpack.c.l.b16 %v3799
        %v3854 = vunpack.c.l.b16 %v3800
        %v3855 = vunpack.c.l.b16 %v3801
        %v3856 = vunpack.c.l.b16 %v3802
        %v3857 = vunpack.c.l.b16 %v3803
        %v3858 = vunpack.c.l.b16 %v3804
        %v3859 = vunpack.c.l.b16 %v3805
        %v3860 = vunpack.c.l.b16 %v3806
        %v3861 = vunpack.c.l.b16 %v3807
        %v3862 = vpack.c.b16 %v3847, %v3846
        %v3863 = vpack.c.b16 %v3849, %v3848
        %v3864 = vpack.c.b16 %v3851, %v3850
        %v3865 = vpack.c.b16 %v3853, %v3852
        %v3866 = vpack.c.b16 %v3855, %v3854
        %v3867 = vpack.c.b16 %v3857, %v3856
        %v3868 = vpack.c.b16 %v3859, %v3858
        %v3869 = vpack.c.b16 %v3861, %v3860
        %3878 = vmatprep.subr.bf16.mxu0 0
        %3879 = vmatpush1.bf16.msra.mxu0 %v3862
        %3880 = vmatprep.subr.bf16.mxu0 0
        %3881 = vmatpush1.bf16.msra.mxu0 %v3863
        %3882 = vmatprep.subr.bf16.mxu0 0
        %3883 = vmatpush1.bf16.msra.mxu0 %v3864
        %3884 = vmatprep.subr.bf16.mxu0 0
        %3885 = vmatpush1.bf16.msra.mxu0 %v3865
        %3886 = vmatprep.subr.bf16.mxu0 0
        %3887 = vmatpush1.bf16.msra.mxu0 %v3866
        %3888 = vmatprep.subr.bf16.mxu0 0
        %3889 = vmatpush1.bf16.msra.mxu0 %v3867
        %3890 = vmatprep.subr.bf16.mxu0 0
        %3891 = vmatpush1.bf16.msra.mxu0 %v3868
        %3892 = vmatprep.subr.bf16.mxu0 0
        %3893 = vmatpush1.bf16.msra.mxu0 %v3869
        %3894 = vmatprep.subr.bf16.mxu0 0
        %3895 = vmatpush1.bf16.msra.mxu0 0
        %3896 = vmatprep.subr.bf16.mxu0 0
        %3897 = vmatpush1.bf16.msra.mxu0 0
        %3898 = vmatprep.subr.bf16.mxu0 0
        %3899 = vmatpush1.bf16.msra.mxu0 0
        %3900 = vmatprep.subr.bf16.mxu0 0
        %3901 = vmatpush1.bf16.msra.mxu0 0
        %3902 = vmatprep.subr.bf16.mxu0 0
        %3903 = vmatpush1.bf16.msra.mxu0 0
        %3904 = vmatprep.subr.bf16.mxu0 0
        %3905 = vmatpush1.bf16.msra.mxu0 0
        %3906 = vmatprep.subr.bf16.mxu0 0
        %3907 = vmatpush1.bf16.msra.mxu0 0
        %3908 = vmatprep.subr.bf16.mxu0 0
        %3909 = vmatpush1.bf16.msra.mxu0 0
        %3910 = vmatprep.mubr.bf16.mxu0 0
        %3911 = vmatmul.mubr.bf16.gmra.mrb[0].mxu0 %v3812
        %v3912 = vpop.f32.mrb[0].mxu0
        %v3913 = vadd.f32 0.0, %v3912
        %v3914 = vpop.f32.mrb[0].mxu0
        %v3915 = vpop.f32.mrb[0].mxu0
        %v3916 = vadd.f32 0.0, %v3915
        %v3917 = vpop.f32.mrb[0].mxu0
        %3918 = vmatprep.mubr.bf16.mxu0 0
        %3919 = vmatmul.mubr.bf16.gmra.mrb[0].mxu0 %v3814
        %v3920 = vpop.f32.mrb[0].mxu0
        %v3921 = vadd.f32 0.0, %v3920
        %v3922 = vpop.f32.mrb[0].mxu0
        %v3923 = vpop.f32.mrb[0].mxu0
        %v3924 = vadd.f32 0.0, %v3923
        %v3925 = vpop.f32.mrb[0].mxu0
        %3926 = vmatprep.mubr.bf16.mxu0 0
        %3927 = vmatmul.mubr.bf16.gmra.mrb[0].mxu0 %v3816
        %v3928 = vpop.f32.mrb[0].mxu0
        %v3929 = vadd.f32 0.0, %v3928
        %v3930 = vpop.f32.mrb[0].mxu0
        %v3931 = vpop.f32.mrb[0].mxu0
        %v3932 = vadd.f32 0.0, %v3931
        %v3933 = vpop.f32.mrb[0].mxu0
        %3934 = vmatprep.mubr.bf16.mxu0 0
        %3935 = vmatmul.mubr.bf16.gmra.mrb[0].mxu0 %v3818
        %v3936 = vpop.f32.mrb[0].mxu0
        %v3937 = vadd.f32 0.0, %v3936
        %v3938 = vpop.f32.mrb[0].mxu0
        %v3939 = vpop.f32.mrb[0].mxu0
        %v3940 = vadd.f32 0.0, %v3939
        %v3941 = vpop.f32.mrb[0].mxu0
        %3942 = vmatprep.mubr.bf16.mxu0 0
        %3943 = vmatmul.mubr.bf16.gmra.mrb[0].mxu0 %v3820
        %v3944 = vpop.f32.mrb[0].mxu0
        %v3945 = vadd.f32 0.0, %v3944
        %v3946 = vpop.f32.mrb[0].mxu0
        %v3947 = vpop.f32.mrb[0].mxu0
        %v3948 = vadd.f32 0.0, %v3947
        %v3949 = vpop.f32.mrb[0].mxu0
        %3950 = vmatprep.mubr.bf16.mxu0 0
        %3951 = vmatmul.mubr.bf16.gmra.mrb[0].mxu0 %v3822
        %v3952 = vpop.f32.mrb[0].mxu0
        %v3953 = vadd.f32 0.0, %v3952
        %v3954 = vpop.f32.mrb[0].mxu0
        %v3955 = vpop.f32.mrb[0].mxu0
        %v3956 = vadd.f32 0.0, %v3955
        %v3957 = vpop.f32.mrb[0].mxu0
        %3958 = vmatprep.mubr.bf16.mxu0 0
        %3959 = vmatmul.mubr.bf16.gmra.mrb[0].mxu0 %v3821
        %v3960 = vpop.f32.mrb[0].mxu0
        %v3961 = vadd.f32 0.0, %v3960
        %v3962 = vpop.f32.mrb[0].mxu0
        %v3963 = vpop.f32.mrb[0].mxu0
        %v3964 = vadd.f32 0.0, %v3963
        %v3965 = vpop.f32.mrb[0].mxu0
        %3966 = vdwg.mxu0
        %v3967 = vadd.f32 %v3737, %v3913
        %v3968 = vadd.f32 %v3740, %v3916
        %v3969 = vadd.f32 %v3745, %v3921
        %v3970 = vadd.f32 %v3748, %v3924
        %v3971 = vadd.f32 %v3753, %v3929
        %v3972 = vadd.f32 %v3756, %v3932
        %v3973 = vadd.f32 %v3761, %v3937
        %v3974 = vadd.f32 %v3764, %v3940
        %v3975 = vadd.f32 %v3769, %v3945
        %v3976 = vadd.f32 %v3772, %v3948
        %v3977 = vadd.f32 %v3777, %v3953
        %v3978 = vadd.f32 %v3780, %v3956
        %v3979 = vadd.f32 %v3785, %v3961
        %v3980 = vadd.f32 %v3788, %v3964
        %v3981 = vld [vmem:[%s7] sm:$0x1]
        %v3983 = vlaneseq
        %v3984 = vshrl.u32 %v3983, 7
        %v3985 = vsub.s32 0, %v3984
        %v3986 = vrot.slane %v3981, %v3985
        %v3988 = vmul.f32 %v3967, %v3986
        %v3989 = vmul.f32 %v3968, %v3986
        %v3990 = vmul.f32 %v3969, %v3986
        %v3991 = vmul.f32 %v3970, %v3986
        %v3992 = vmul.f32 %v3971, %v3986
        %v3993 = vmul.f32 %v3972, %v3986
        %v3994 = vmul.f32 %v3973, %v3986
        %v3995 = vmul.f32 %v3974, %v3986
        %v3996 = vmul.f32 %v3975, %v3986
        %v3997 = vmul.f32 %v3976, %v3986
        %v3998 = vmul.f32 %v3977, %v3986
        %v3999 = vmul.f32 %v3978, %v3986
        %v4000 = vmul.f32 %v3979, %v3986
        %v4001 = vmul.f32 %v3980, %v3986
        %v4002 = vld [vmem:[%s8] sm:$0x1]
        %v4004 = vlaneseq
        %v4005 = vshrl.u32 %v4004, 7
        %v4006 = vsub.s32 0, %v4005
        %v4007 = vrot.slane %v4002, %v4006
        %v4009 = vadd.f32 %v3988, %v4007
        %v4010 = vadd.f32 %v3989, %v4007
        %v4011 = vadd.f32 %v3990, %v4007
        %v4012 = vadd.f32 %v3991, %v4007
        %v4013 = vadd.f32 %v3992, %v4007
        %v4014 = vadd.f32 %v3993, %v4007
        %v4015 = vadd.f32 %v3994, %v4007
        %v4016 = vadd.f32 %v3995, %v4007
        %v4017 = vadd.f32 %v3996, %v4007
        %v4018 = vadd.f32 %v3997, %v4007
        %v4019 = vadd.f32 %v3998, %v4007
        %v4020 = vadd.f32 %v3999, %v4007
        %v4021 = vadd.f32 %v4000, %v4007
        %v4022 = vadd.f32 %v4001, %v4007
        %v4023 = vmax.f32 %v4009, 0.0
        %v4024 = vmax.f32 %v4010, 0.0
        %v4025 = vmax.f32 %v4011, 0.0
        %v4026 = vmax.f32 %v4012, 0.0
        %v4027 = vmax.f32 %v4013, 0.0
        %v4028 = vmax.f32 %v4014, 0.0
        %v4029 = vmax.f32 %v4015, 0.0
        %v4030 = vmax.f32 %v4016, 0.0
        %v4031 = vmax.f32 %v4017, 0.0
        %v4032 = vmax.f32 %v4018, 0.0
        %v4033 = vmax.f32 %v4019, 0.0
        %v4034 = vmax.f32 %v4020, 0.0
        %v4035 = vmax.f32 %v4021, 0.0
        %v4036 = vmax.f32 %v4022, 0.0
        %v4037 = vsel %vm3207, 1, 0
        %v4038 = vsel %vm3208, 1, 0
        %v4039 = vsel %vm3209, 1, 0
        %v4040 = vsel %vm3210, 1, 0
        %v4041 = vsel %vm3211, 1, 0
        %v4042 = vsel %vm3212, 1, 0
        %v4043 = vsel %vm3213, 1, 0
        %v4044 = vsel %vm3214, 1, 0
        %v4045 = vsel %vm3215, 1, 0
        %v4046 = vsel %vm3216, 1, 0
        %v4047 = vsel %vm3217, 1, 0
        %v4048 = vsel %vm3218, 1, 0
        %v4049 = vsel %vm3219, 1, 0
        %v4050 = vsel %vm3220, 1, 0
        %vm4051 = vcmp.eq.s32.totalorder %v4037, 1
        %vm4052 = vcmp.eq.s32.totalorder %v4038, 1
        %vm4053 = vcmp.eq.s32.totalorder %v4039, 1
        %vm4054 = vcmp.eq.s32.totalorder %v4040, 1
        %vm4055 = vcmp.eq.s32.totalorder %v4041, 1
        %vm4056 = vcmp.eq.s32.totalorder %v4042, 1
        %vm4057 = vcmp.eq.s32.totalorder %v4043, 1
        %vm4058 = vcmp.eq.s32.totalorder %v4044, 1
        %vm4059 = vcmp.eq.s32.totalorder %v4045, 1
        %vm4060 = vcmp.eq.s32.totalorder %v4046, 1
        %vm4061 = vcmp.eq.s32.totalorder %v4047, 1
        %vm4062 = vcmp.eq.s32.totalorder %v4048, 1
        %vm4063 = vcmp.eq.s32.totalorder %v4049, 1
        %vm4064 = vcmp.eq.s32.totalorder %v4050, 1
        %v4065 = vsel %vm4051, %v4023, 0.0
        %v4066 = vsel %vm4052, %v4024, 0.0
        %v4067 = vsel %vm4053, %v4025, 0.0
        %v4068 = vsel %vm4054, %v4026, 0.0
        %v4069 = vsel %vm4055, %v4027, 0.0
        %v4070 = vsel %vm4056, %v4028, 0.0
        %v4071 = vsel %vm4057, %v4029, 0.0
        %v4072 = vsel %vm4058, %v4030, 0.0
        %v4073 = vsel %vm4059, %v4031, 0.0
        %v4074 = vsel %vm4060, %v4032, 0.0
        %v4075 = vsel %vm4061, %v4033, 0.0
        %v4076 = vsel %vm4062, %v4034, 0.0
        %v4077 = vsel %vm4063, %v4035, 0.0
        %v4078 = vsel %vm4064, %v4036, 0.0
        %v4079 = vpack.c.bf16 %v4066, %v4065
        %v4080 = vpack.c.bf16 %v4068, %v4067
        %v4081 = vpack.c.bf16 %v4070, %v4069
        %v4082 = vpack.c.bf16 %v4072, %v4071
        %v4083 = vpack.c.bf16 %v4074, %v4073
        %v4084 = vpack.c.bf16 %v4076, %v4075
        %v4085 = vpack.c.bf16 %v4078, %v4077
        %4086 = vst [vmem:[#allocation4] sm:$0xff] %v4079
        %4087 = vst [vmem:[#allocation4 + $0x8] sm:$0xff] %v4080
        %4088 = vst [vmem:[#allocation4 + $0x10] sm:$0xff] %v4081
        %4089 = vst [vmem:[#allocation4 + $0x18] sm:$0xff] %v4082
        %4090 = vst [vmem:[#allocation4 + $0x20] sm:$0xff] %v4083
        %4091 = vst [vmem:[#allocation4 + $0x28] sm:$0xff] %v4084
        %4092 = vst [vmem:[#allocation4 + $0x30] sm:$0x3f] %v4085
        %v4093 = vld [vmem:[#allocation4] sm:$0xff]
        %v4094 = vld [vmem:[#allocation4 + $0x8] sm:$0xff]
        %v4095 = vld [vmem:[#allocation4 + $0x10] sm:$0xff]
        %v4096 = vld [vmem:[#allocation4 + $0x18] sm:$0xff]
        %v4097 = vld [vmem:[#allocation4 + $0x20] sm:$0xff]
        %v4098 = vld [vmem:[#allocation4 + $0x28] sm:$0xff]
        %v4099 = vld [vmem:[#allocation4 + $0x30] sm:$0xf]
        %v4100 = vld [vmem:[#allocation4 + $0x30] sm:$0x1f]
        %v4102 = vshrl.u32 %v4093, 16
        %v4104 = vshll.u32 %v4093, 16
        %v4106 = vrot.slane %v4104, 1
        %v4107 = vor.u32 %v4102, %v4106
        %v4109 = vshll.u32 %v4094, 16
        %v4111 = vrot.slane %v4109, 1
        %v4112 = vsel %vm3229, %v4107, %v4111
        %v4113 = vshrl.u32 %v4094, 16
        %v4115 = vor.u32 %v4113, %v4111
        %v4117 = vshll.u32 %v4095, 16
        %v4119 = vrot.slane %v4117, 1
        %v4120 = vsel %vm3229, %v4115, %v4119
        %v4121 = vshrl.u32 %v4095, 16
        %v4123 = vor.u32 %v4121, %v4119
        %v4125 = vshll.u32 %v4096, 16
        %v4127 = vrot.slane %v4125, 1
        %v4128 = vsel %vm3229, %v4123, %v4127
        %v4129 = vshrl.u32 %v4096, 16
        %v4131 = vor.u32 %v4129, %v4127
        %v4133 = vshll.u32 %v4097, 16
        %v4135 = vrot.slane %v4133, 1
        %v4136 = vsel %vm3229, %v4131, %v4135
        %v4137 = vshrl.u32 %v4097, 16
        %v4139 = vor.u32 %v4137, %v4135
        %v4141 = vshll.u32 %v4098, 16
        %v4143 = vrot.slane %v4141, 1
        %v4144 = vsel %vm3229, %v4139, %v4143
        %v4145 = vshrl.u32 %v4098, 16
        %v4147 = vor.u32 %v4145, %v4143
        %v4149 = vshll.u32 %v4100, 16
        %v4151 = vrot.slane %v4149, 1
        %v4152 = vsel %vm3229, %v4147, %v4151
        %v4153 = vshrl.u32 %v4100, 16
        %v4155 = vor.u32 %v4153, %v4151
        %v4163 = vld [vmem:[#allocation11] sm:$0xf]
        %v4164 = vld [vmem:[#allocation11 + $0x4] sm:$0xf]
        %v4165 = vld [vmem:[#allocation11 + $0x8] sm:$0xf]
        %v4166 = vld [vmem:[#allocation11 + $0xc] sm:$0xf]
        %v4167 = vld [vmem:[#allocation11 + $0x10] sm:$0xf]
        %v4168 = vld [vmem:[#allocation11 + $0x14] sm:$0xf]
        %v4169 = vld [vmem:[#allocation11 + $0x18] sm:$0xf]
        %v4170 = vld [vmem:[#allocation11 + $0x1c] sm:$0xf]
        %v4171 = vld [vmem:[#allocation11 + $0x20] sm:$0xf]
        %v4172 = vld [vmem:[#allocation11 + $0x24] sm:$0xf]
        %v4173 = vld [vmem:[#allocation11 + $0x28] sm:$0xf]
        %v4174 = vld [vmem:[#allocation11 + $0x2c] sm:$0xf]
        %v4175 = vld [vmem:[#allocation11 + $0x30] sm:$0xf]
        %v4176 = vld [vmem:[#allocation11 + $0x34] sm:$0xf]
        %v4177 = vld [vmem:[#allocation11 + $0x38] sm:$0xf]
        %v4178 = vld [vmem:[#allocation11 + $0x3c] sm:$0xf]
        %v4179 = vld [vmem:[#allocation11 + $0x40] sm:$0xf]
        %v4180 = vld [vmem:[#allocation11 + $0x44] sm:$0xf]
        %v4181 = vld [vmem:[#allocation11 + $0x48] sm:$0xf]
        %v4182 = vld [vmem:[#allocation11 + $0x4c] sm:$0xf]
        %v4183 = vld [vmem:[#allocation11 + $0x50] sm:$0xf]
        %v4184 = vld [vmem:[#allocation11 + $0x54] sm:$0xf]
        %v4185 = vld [vmem:[#allocation11 + $0x58] sm:$0xf]
        %v4186 = vld [vmem:[#allocation11 + $0x5c] sm:$0xf]
        %v4187 = vld [vmem:[#allocation11 + $0x60] sm:$0xf]
        %v4188 = vld [vmem:[#allocation11 + $0x64] sm:$0xf]
        %v4189 = vld [vmem:[#allocation11 + $0x68] sm:$0xf]
        %v4190 = vld [vmem:[#allocation11 + $0x6c] sm:$0xf]
        %v4191 = vld [vmem:[#allocation11 + $0x70] sm:$0xf]
        %v4192 = vld [vmem:[#allocation11 + $0x74] sm:$0xf]
        %v4193 = vld [vmem:[#allocation11 + $0x78] sm:$0xf]
        %v4194 = vld [vmem:[#allocation11 + $0x7c] sm:$0xf]
        %v4195 = vld [vmem:[#allocation4] sm:$0xfe]
        %v4196 = vld [vmem:[#allocation4 + $0x30] sm:$0x3f]
        %v4198 = vshrl.u32 %v4195, 16
        %v4200 = vshll.u32 %v4195, 16
        %v4202 = vrot.slane %v4200, 1
        %v4203 = vor.u32 %v4198, %v4202
        %v4204 = vsel %vm3229, %v4203, %v4111
        %v4206 = vshll.u32 %v4196, 16
        %v4208 = vrot.slane %v4206, 1
        %v4209 = vsel %vm3229, %v4147, %v4208
        %v4210 = vshrl.u32 %v4196, 16
        %v4212 = vor.u32 %v4210, %v4208
        %v4213 = vld [vmem:[#allocation11 + $0x80] sm:$0xf]
        %v4214 = vld [vmem:[#allocation11 + $0x84] sm:$0xf]
        %v4215 = vld [vmem:[#allocation11 + $0x88] sm:$0xf]
        %v4216 = vld [vmem:[#allocation11 + $0x8c] sm:$0xf]
        %v4217 = vld [vmem:[#allocation11 + $0x90] sm:$0xf]
        %v4218 = vld [vmem:[#allocation11 + $0x94] sm:$0xf]
        %v4219 = vld [vmem:[#allocation11 + $0x98] sm:$0xf]
        %v4220 = vld [vmem:[#allocation11 + $0x9c] sm:$0xf]
        %v4221 = vld [vmem:[#allocation11 + $0xa0] sm:$0xf]
        %v4222 = vld [vmem:[#allocation11 + $0xa4] sm:$0xf]
        %v4223 = vld [vmem:[#allocation11 + $0xa8] sm:$0xf]
        %v4224 = vld [vmem:[#allocation11 + $0xac] sm:$0xf]
        %v4225 = vld [vmem:[#allocation11 + $0xb0] sm:$0xf]
        %v4226 = vld [vmem:[#allocation11 + $0xb4] sm:$0xf]
        %v4227 = vld [vmem:[#allocation11 + $0xb8] sm:$0xf]
        %v4228 = vld [vmem:[#allocation11 + $0xbc] sm:$0xf]
        %v4229 = vld [vmem:[#allocation11 + $0xc0] sm:$0xf]
        %v4230 = vld [vmem:[#allocation11 + $0xc4] sm:$0xf]
        %v4231 = vld [vmem:[#allocation11 + $0xc8] sm:$0xf]
        %v4232 = vld [vmem:[#allocation11 + $0xcc] sm:$0xf]
        %v4233 = vld [vmem:[#allocation11 + $0xd0] sm:$0xf]
        %v4234 = vld [vmem:[#allocation11 + $0xd4] sm:$0xf]
        %v4235 = vld [vmem:[#allocation11 + $0xd8] sm:$0xf]
        %v4236 = vld [vmem:[#allocation11 + $0xdc] sm:$0xf]
        %v4237 = vld [vmem:[#allocation11 + $0xe0] sm:$0xf]
        %v4238 = vld [vmem:[#allocation11 + $0xe4] sm:$0xf]
        %v4239 = vld [vmem:[#allocation11 + $0xe8] sm:$0xf]
        %v4240 = vld [vmem:[#allocation11 + $0xec] sm:$0xf]
        %v4241 = vld [vmem:[#allocation11 + $0xf0] sm:$0xf]
        %v4242 = vld [vmem:[#allocation11 + $0xf4] sm:$0xf]
        %v4243 = vld [vmem:[#allocation11 + $0xf8] sm:$0xf]
        %v4244 = vld [vmem:[#allocation11 + $0xfc] sm:$0xf]
        %v4252 = vrot.slane %v4195, 1
        %v4253 = vrot.slane %v4094, 1
        %v4254 = vsel %vm1923, %v4252, %v4253
        %v4255 = vrot.slane %v4204, 1
        %v4256 = vrot.slane %v4120, 1
        %v4257 = vsel %vm1923, %v4255, %v4256
        %v4258 = vrot.slane %v4095, 1
        %v4259 = vsel %vm1923, %v4253, %v4258
        %v4260 = vrot.slane %v4128, 1
        %v4261 = vsel %vm1923, %v4256, %v4260
        %v4262 = vrot.slane %v4096, 1
        %v4263 = vsel %vm1923, %v4258, %v4262
        %v4264 = vrot.slane %v4136, 1
        %v4265 = vsel %vm1923, %v4260, %v4264
        %v4266 = vrot.slane %v4097, 1
        %v4267 = vsel %vm1923, %v4262, %v4266
        %v4268 = vrot.slane %v4144, 1
        %v4269 = vsel %vm1923, %v4264, %v4268
        %v4270 = vrot.slane %v4098, 1
        %v4271 = vsel %vm1923, %v4266, %v4270
        %v4272 = vrot.slane %v4209, 1
        %v4273 = vsel %vm1923, %v4268, %v4272
        %v4274 = vrot.slane %v4100, 1
        %v4275 = vsel %vm1923, %v4270, %v4274
        %v4276 = vrot.slane %v4212, 1
        %v4277 = vsel %vm1923, %v4272, %v4276
        %v4324 = vunpack.c.l.b16 %v4213
        %v4325 = vunpack.c.l.b16 %v4214
        %v4326 = vunpack.c.l.b16 %v4215
        %v4327 = vunpack.c.l.b16 %v4216
        %v4328 = vunpack.c.l.b16 %v4217
        %v4329 = vunpack.c.l.b16 %v4218
        %v4330 = vunpack.c.l.b16 %v4219
        %v4331 = vunpack.c.l.b16 %v4220
        %v4332 = vunpack.c.l.b16 %v4221
        %v4333 = vunpack.c.l.b16 %v4222
        %v4334 = vunpack.c.l.b16 %v4223
        %v4335 = vunpack.c.l.b16 %v4224
        %v4336 = vunpack.c.l.b16 %v4225
        %v4337 = vunpack.c.l.b16 %v4226
        %v4338 = vunpack.c.l.b16 %v4227
        %v4339 = vunpack.c.l.b16 %v4228
        %v4340 = vunpack.c.l.b16 %v4229
        %v4341 = vunpack.c.l.b16 %v4230
        %v4342 = vunpack.c.l.b16 %v4231
        %v4343 = vunpack.c.l.b16 %v4232
        %v4344 = vunpack.c.l.b16 %v4233
        %v4345 = vunpack.c.l.b16 %v4234
        %v4346 = vunpack.c.l.b16 %v4235
        %v4347 = vunpack.c.l.b16 %v4236
        %v4348 = vunpack.c.l.b16 %v4237
        %v4349 = vunpack.c.l.b16 %v4238
        %v4350 = vunpack.c.l.b16 %v4239
        %v4351 = vunpack.c.l.b16 %v4240
        %v4352 = vunpack.c.l.b16 %v4241
        %v4353 = vunpack.c.l.b16 %v4242
        %v4354 = vunpack.c.l.b16 %v4243
        %v4355 = vunpack.c.l.b16 %v4244
        %v4356 = vpack.c.b16 %v4325, %v4324
        %v4357 = vpack.c.b16 %v4327, %v4326
        %v4358 = vpack.c.b16 %v4329, %v4328
        %v4359 = vpack.c.b16 %v4331, %v4330
        %v4360 = vpack.c.b16 %v4333, %v4332
        %v4361 = vpack.c.b16 %v4335, %v4334
        %v4362 = vpack.c.b16 %v4337, %v4336
        %v4363 = vpack.c.b16 %v4339, %v4338
        %v4364 = vpack.c.b16 %v4341, %v4340
        %v4365 = vpack.c.b16 %v4343, %v4342
        %v4366 = vpack.c.b16 %v4345, %v4344
        %v4367 = vpack.c.b16 %v4347, %v4346
        %v4368 = vpack.c.b16 %v4349, %v4348
        %v4369 = vpack.c.b16 %v4351, %v4350
        %v4370 = vpack.c.b16 %v4353, %v4352
        %v4371 = vpack.c.b16 %v4355, %v4354
        %4388 = vmatprep.subr.bf16.mxu0 0
        %4389 = vmatpush1.bf16.msra.mxu0 %v4356
        %4390 = vmatprep.subr.bf16.mxu0 0
        %4391 = vmatpush1.bf16.msra.mxu0 %v4357
        %4392 = vmatprep.subr.bf16.mxu0 0
        %4393 = vmatpush1.bf16.msra.mxu0 %v4358
        %4394 = vmatprep.subr.bf16.mxu0 0
        %4395 = vmatpush1.bf16.msra.mxu0 %v4359
        %4396 = vmatprep.subr.bf16.mxu0 0
        %4397 = vmatpush1.bf16.msra.mxu0 %v4360
        %4398 = vmatprep.subr.bf16.mxu0 0
        %4399 = vmatpush1.bf16.msra.mxu0 %v4361
        %4400 = vmatprep.subr.bf16.mxu0 0
        %4401 = vmatpush1.bf16.msra.mxu0 %v4362
        %4402 = vmatprep.subr.bf16.mxu0 0
        %4403 = vmatpush1.bf16.msra.mxu0 %v4363
        %4404 = vmatprep.subr.bf16.mxu0 0
        %4405 = vmatpush1.bf16.msra.mxu0 %v4364
        %4406 = vmatprep.subr.bf16.mxu0 0
        %4407 = vmatpush1.bf16.msra.mxu0 %v4365
        %4408 = vmatprep.subr.bf16.mxu0 0
        %4409 = vmatpush1.bf16.msra.mxu0 %v4366
        %4410 = vmatprep.subr.bf16.mxu0 0
        %4411 = vmatpush1.bf16.msra.mxu0 %v4367
        %4412 = vmatprep.subr.bf16.mxu0 0
        %4413 = vmatpush1.bf16.msra.mxu0 %v4368
        %4414 = vmatprep.subr.bf16.mxu0 0
        %4415 = vmatpush1.bf16.msra.mxu0 %v4369
        %4416 = vmatprep.subr.bf16.mxu0 0
        %4417 = vmatpush1.bf16.msra.mxu0 %v4370
        %4418 = vmatprep.subr.bf16.mxu0 0
        %4419 = vmatpush1.bf16.msra.mxu0 %v4371
        %4420 = vmatprep.mubr.bf16.mxu0 %v4257
        %4421 = vmatmul.mubr.bf16.gmra.mrb[0].mxu0 %v4254
        %v4422 = vpop.f32.mrb[0].mxu0
        %v4423 = vadd.f32 0.0, %v4422
        %v4424 = vpop.f32.mrb[0].mxu0
        %v4425 = vpop.f32.mrb[0].mxu0
        %v4426 = vadd.f32 0.0, %v4425
        %v4427 = vpop.f32.mrb[0].mxu0
        %4428 = vmatprep.mubr.bf16.mxu0 %v4261
        %4429 = vmatmul.mubr.bf16.gmra.mrb[0].mxu0 %v4259
        %v4430 = vpop.f32.mrb[0].mxu0
        %v4431 = vadd.f32 0.0, %v4430
        %v4432 = vpop.f32.mrb[0].mxu0
        %v4433 = vpop.f32.mrb[0].mxu0
        %v4434 = vadd.f32 0.0, %v4433
        %v4435 = vpop.f32.mrb[0].mxu0
        %4436 = vmatprep.mubr.bf16.mxu0 %v4265
        %4437 = vmatmul.mubr.bf16.gmra.mrb[0].mxu0 %v4263
        %v4438 = vpop.f32.mrb[0].mxu0
        %v4439 = vadd.f32 0.0, %v4438
        %v4440 = vpop.f32.mrb[0].mxu0
        %v4441 = vpop.f32.mrb[0].mxu0
        %v4442 = vadd.f32 0.0, %v4441
        %v4443 = vpop.f32.mrb[0].mxu0
        %4444 = vmatprep.mubr.bf16.mxu0 %v4269
        %4445 = vmatmul.mubr.bf16.gmra.mrb[0].mxu0 %v4267
        %v4446 = vpop.f32.mrb[0].mxu0
        %v4447 = vadd.f32 0.0, %v4446
        %v4448 = vpop.f32.mrb[0].mxu0
        %v4449 = vpop.f32.mrb[0].mxu0
        %v4450 = vadd.f32 0.0, %v4449
        %v4451 = vpop.f32.mrb[0].mxu0
        %4452 = vmatprep.mubr.bf16.mxu0 %v4273
        %4453 = vmatmul.mubr.bf16.gmra.mrb[0].mxu0 %v4271
        %v4454 = vpop.f32.mrb[0].mxu0
        %v4455 = vadd.f32 0.0, %v4454
        %v4456 = vpop.f32.mrb[0].mxu0
        %v4457 = vpop.f32.mrb[0].mxu0
        %v4458 = vadd.f32 0.0, %v4457
        %v4459 = vpop.f32.mrb[0].mxu0
        %4460 = vmatprep.mubr.bf16.mxu0 %v4277
        %4461 = vmatmul.mubr.bf16.gmra.mrb[0].mxu0 %v4275
        %v4462 = vpop.f32.mrb[0].mxu0
        %v4463 = vadd.f32 0.0, %v4462
        %v4464 = vpop.f32.mrb[0].mxu0
        %v4465 = vpop.f32.mrb[0].mxu0
        %v4466 = vadd.f32 0.0, %v4465
        %v4467 = vpop.f32.mrb[0].mxu0
        %4468 = vmatprep.mubr.bf16.mxu0 %v4276
        %4469 = vmatmul.mubr.bf16.gmra.mrb[0].mxu0 %v4274
        %v4470 = vpop.f32.mrb[0].mxu0
        %v4471 = vadd.f32 0.0, %v4470
        %v4472 = vpop.f32.mrb[0].mxu0
        %v4473 = vpop.f32.mrb[0].mxu0
        %v4474 = vpop.f32.mrb[0].mxu0
        %4475 = vdwg.mxu0
        %v4508 = vunpack.c.l.b16 %v4163
        %v4509 = vunpack.c.l.b16 %v4164
        %v4510 = vunpack.c.l.b16 %v4165
        %v4511 = vunpack.c.l.b16 %v4166
        %v4512 = vunpack.c.l.b16 %v4167
        %v4513 = vunpack.c.l.b16 %v4168
        %v4514 = vunpack.c.l.b16 %v4169
        %v4515 = vunpack.c.l.b16 %v4170
        %v4516 = vunpack.c.l.b16 %v4171
        %v4517 = vunpack.c.l.b16 %v4172
        %v4518 = vunpack.c.l.b16 %v4173
        %v4519 = vunpack.c.l.b16 %v4174
        %v4520 = vunpack.c.l.b16 %v4175
        %v4521 = vunpack.c.l.b16 %v4176
        %v4522 = vunpack.c.l.b16 %v4177
        %v4523 = vunpack.c.l.b16 %v4178
        %v4524 = vunpack.c.l.b16 %v4179
        %v4525 = vunpack.c.l.b16 %v4180
        %v4526 = vunpack.c.l.b16 %v4181
        %v4527 = vunpack.c.l.b16 %v4182
        %v4528 = vunpack.c.l.b16 %v4183
        %v4529 = vunpack.c.l.b16 %v4184
        %v4530 = vunpack.c.l.b16 %v4185
        %v4531 = vunpack.c.l.b16 %v4186
        %v4532 = vunpack.c.l.b16 %v4187
        %v4533 = vunpack.c.l.b16 %v4188
        %v4534 = vunpack.c.l.b16 %v4189
        %v4535 = vunpack.c.l.b16 %v4190
        %v4536 = vunpack.c.l.b16 %v4191
        %v4537 = vunpack.c.l.b16 %v4192
        %v4538 = vunpack.c.l.b16 %v4193
        %v4539 = vunpack.c.l.b16 %v4194
        %v4540 = vpack.c.b16 %v4509, %v4508
        %v4541 = vpack.c.b16 %v4511, %v4510
        %v4542 = vpack.c.b16 %v4513, %v4512
        %v4543 = vpack.c.b16 %v4515, %v4514
        %v4544 = vpack.c.b16 %v4517, %v4516
        %v4545 = vpack.c.b16 %v4519, %v4518
        %v4546 = vpack.c.b16 %v4521, %v4520
        %v4547 = vpack.c.b16 %v4523, %v4522
        %v4548 = vpack.c.b16 %v4525, %v4524
        %v4549 = vpack.c.b16 %v4527, %v4526
        %v4550 = vpack.c.b16 %v4529, %v4528
        %v4551 = vpack.c.b16 %v4531, %v4530
        %v4552 = vpack.c.b16 %v4533, %v4532
        %v4553 = vpack.c.b16 %v4535, %v4534
        %v4554 = vpack.c.b16 %v4537, %v4536
        %v4555 = vpack.c.b16 %v4539, %v4538
        %4572 = vmatprep.subr.bf16.mxu0 0
        %4573 = vmatpush1.bf16.msra.mxu0 %v4540
        %4574 = vmatprep.subr.bf16.mxu0 0
        %4575 = vmatpush1.bf16.msra.mxu0 %v4541
        %4576 = vmatprep.subr.bf16.mxu0 0
        %4577 = vmatpush1.bf16.msra.mxu0 %v4542
        %4578 = vmatprep.subr.bf16.mxu0 0
        %4579 = vmatpush1.bf16.msra.mxu0 %v4543
        %4580 = vmatprep.subr.bf16.mxu0 0
        %4581 = vmatpush1.bf16.msra.mxu0 %v4544
        %4582 = vmatprep.subr.bf16.mxu0 0
        %4583 = vmatpush1.bf16.msra.mxu0 %v4545
        %4584 = vmatprep.subr.bf16.mxu0 0
        %4585 = vmatpush1.bf16.msra.mxu0 %v4546
        %4586 = vmatprep.subr.bf16.mxu0 0
        %4587 = vmatpush1.bf16.msra.mxu0 %v4547
        %4588 = vmatprep.subr.bf16.mxu0 0
        %4589 = vmatpush1.bf16.msra.mxu0 %v4548
        %4590 = vmatprep.subr.bf16.mxu0 0
        %4591 = vmatpush1.bf16.msra.mxu0 %v4549
        %4592 = vmatprep.subr.bf16.mxu0 0
        %4593 = vmatpush1.bf16.msra.mxu0 %v4550
        %4594 = vmatprep.subr.bf16.mxu0 0
        %4595 = vmatpush1.bf16.msra.mxu0 %v4551
        %4596 = vmatprep.subr.bf16.mxu0 0
        %4597 = vmatpush1.bf16.msra.mxu0 %v4552
        %4598 = vmatprep.subr.bf16.mxu0 0
        %4599 = vmatpush1.bf16.msra.mxu0 %v4553
        %4600 = vmatprep.subr.bf16.mxu0 0
        %4601 = vmatpush1.bf16.msra.mxu0 %v4554
        %4602 = vmatprep.subr.bf16.mxu0 0
        %4603 = vmatpush1.bf16.msra.mxu0 %v4555
        %4604 = vmatprep.mubr.bf16.mxu0 %v4112
        %4605 = vmatmul.mubr.bf16.gmra.mrb[0].mxu0 %v4093
        %v4606 = vpop.f32.mrb[0].mxu0
        %v4607 = vadd.f32 %v4423, %v4606
        %v4608 = vpop.f32.mrb[0].mxu0
        %v4609 = vpop.f32.mrb[0].mxu0
        %v4610 = vadd.f32 %v4426, %v4609
        %v4611 = vpop.f32.mrb[0].mxu0
        %4612 = vmatprep.mubr.bf16.mxu0 %v4120
        %4613 = vmatmul.mubr.bf16.gmra.mrb[0].mxu0 %v4094
        %v4614 = vpop.f32.mrb[0].mxu0
        %v4615 = vadd.f32 %v4431, %v4614
        %v4616 = vpop.f32.mrb[0].mxu0
        %v4617 = vpop.f32.mrb[0].mxu0
        %v4618 = vadd.f32 %v4434, %v4617
        %v4619 = vpop.f32.mrb[0].mxu0
        %4620 = vmatprep.mubr.bf16.mxu0 %v4128
        %4621 = vmatmul.mubr.bf16.gmra.mrb[0].mxu0 %v4095
        %v4622 = vpop.f32.mrb[0].mxu0
        %v4623 = vadd.f32 %v4439, %v4622
        %v4624 = vpop.f32.mrb[0].mxu0
        %v4625 = vpop.f32.mrb[0].mxu0
        %v4626 = vadd.f32 %v4442, %v4625
        %v4627 = vpop.f32.mrb[0].mxu0
        %4628 = vmatprep.mubr.bf16.mxu0 %v4136
        %4629 = vmatmul.mubr.bf16.gmra.mrb[0].mxu0 %v4096
        %v4630 = vpop.f32.mrb[0].mxu0
        %v4631 = vadd.f32 %v4447, %v4630
        %v4632 = vpop.f32.mrb[0].mxu0
        %v4633 = vpop.f32.mrb[0].mxu0
        %v4634 = vadd.f32 %v4450, %v4633
        %v4635 = vpop.f32.mrb[0].mxu0
        %4636 = vmatprep.mubr.bf16.mxu0 %v4144
        %4637 = vmatmul.mubr.bf16.gmra.mrb[0].mxu0 %v4097
        %v4638 = vpop.f32.mrb[0].mxu0
        %v4639 = vadd.f32 %v4455, %v4638
        %v4640 = vpop.f32.mrb[0].mxu0
        %v4641 = vpop.f32.mrb[0].mxu0
        %v4642 = vadd.f32 %v4458, %v4641
        %v4643 = vpop.f32.mrb[0].mxu0
        %4644 = vmatprep.mubr.bf16.mxu0 %v4152
        %4645 = vmatmul.mubr.bf16.gmra.mrb[0].mxu0 %v4098
        %v4646 = vpop.f32.mrb[0].mxu0
        %v4647 = vadd.f32 %v4463, %v4646
        %v4648 = vpop.f32.mrb[0].mxu0
        %v4649 = vpop.f32.mrb[0].mxu0
        %v4650 = vadd.f32 %v4466, %v4649
        %v4651 = vpop.f32.mrb[0].mxu0
        %4652 = vmatprep.mubr.bf16.mxu0 %v4155
        %4653 = vmatmul.mubr.bf16.gmra.mrb[0].mxu0 %v4099
        %v4654 = vpop.f32.mrb[0].mxu0
        %v4655 = vadd.f32 %v4471, %v4654
        %v4656 = vpop.f32.mrb[0].mxu0
        %v4657 = vpop.f32.mrb[0].mxu0
        %v4658 = vpop.f32.mrb[0].mxu0
        %4659 = vdwg.mxu0
        %v4660 = vld [vmem:[#allocation4] sm:$0xfc]
        %v4661 = vld [vmem:[#allocation11 + $0x100] sm:$0xf]
        %v4662 = vld [vmem:[#allocation11 + $0x104] sm:$0xf]
        %v4663 = vld [vmem:[#allocation11 + $0x108] sm:$0xf]
        %v4664 = vld [vmem:[#allocation11 + $0x10c] sm:$0xf]
        %v4665 = vld [vmem:[#allocation11 + $0x110] sm:$0xf]
        %v4666 = vld [vmem:[#allocation11 + $0x114] sm:$0xf]
        %v4667 = vld [vmem:[#allocation11 + $0x118] sm:$0xf]
        %v4668 = vld [vmem:[#allocation11 + $0x11c] sm:$0xf]
        %v4669 = vld [vmem:[#allocation11 + $0x120] sm:$0xf]
        %v4670 = vld [vmem:[#allocation11 + $0x124] sm:$0xf]
        %v4671 = vld [vmem:[#allocation11 + $0x128] sm:$0xf]
        %v4672 = vld [vmem:[#allocation11 + $0x12c] sm:$0xf]
        %v4673 = vld [vmem:[#allocation11 + $0x130] sm:$0xf]
        %v4674 = vld [vmem:[#allocation11 + $0x134] sm:$0xf]
        %v4675 = vld [vmem:[#allocation11 + $0x138] sm:$0xf]
        %v4676 = vld [vmem:[#allocation11 + $0x13c] sm:$0xf]
        %v4679 = vrot.slane %v4660, 2
        %v4680 = vrot.slane %v4094, 2
        %v4681 = vsel %vm2191, %v4679, %v4680
        %v4682 = vrot.slane %v4095, 2
        %v4683 = vsel %vm2191, %v4680, %v4682
        %v4684 = vrot.slane %v4096, 2
        %v4685 = vsel %vm2191, %v4682, %v4684
        %v4686 = vrot.slane %v4097, 2
        %v4687 = vsel %vm2191, %v4684, %v4686
        %v4688 = vrot.slane %v4098, 2
        %v4689 = vsel %vm2191, %v4686, %v4688
        %v4690 = vrot.slane %v4196, 2
        %v4691 = vsel %vm2191, %v4688, %v4690
        %v4715 = vunpack.c.l.b16 %v4661
        %v4716 = vunpack.c.l.b16 %v4662
        %v4717 = vunpack.c.l.b16 %v4663
        %v4718 = vunpack.c.l.b16 %v4664
        %v4719 = vunpack.c.l.b16 %v4665
        %v4720 = vunpack.c.l.b16 %v4666
        %v4721 = vunpack.c.l.b16 %v4667
        %v4722 = vunpack.c.l.b16 %v4668
        %v4723 = vunpack.c.l.b16 %v4669
        %v4724 = vunpack.c.l.b16 %v4670
        %v4725 = vunpack.c.l.b16 %v4671
        %v4726 = vunpack.c.l.b16 %v4672
        %v4727 = vunpack.c.l.b16 %v4673
        %v4728 = vunpack.c.l.b16 %v4674
        %v4729 = vunpack.c.l.b16 %v4675
        %v4730 = vunpack.c.l.b16 %v4676
        %v4731 = vpack.c.b16 %v4716, %v4715
        %v4732 = vpack.c.b16 %v4718, %v4717
        %v4733 = vpack.c.b16 %v4720, %v4719
        %v4734 = vpack.c.b16 %v4722, %v4721
        %v4735 = vpack.c.b16 %v4724, %v4723
        %v4736 = vpack.c.b16 %v4726, %v4725
        %v4737 = vpack.c.b16 %v4728, %v4727
        %v4738 = vpack.c.b16 %v4730, %v4729
        %4747 = vmatprep.subr.bf16.mxu0 0
        %4748 = vmatpush1.bf16.msra.mxu0 %v4731
        %4749 = vmatprep.subr.bf16.mxu0 0
        %4750 = vmatpush1.bf16.msra.mxu0 %v4732
        %4751 = vmatprep.subr.bf16.mxu0 0
        %4752 = vmatpush1.bf16.msra.mxu0 %v4733
        %4753 = vmatprep.subr.bf16.mxu0 0
        %4754 = vmatpush1.bf16.msra.mxu0 %v4734
        %4755 = vmatprep.subr.bf16.mxu0 0
        %4756 = vmatpush1.bf16.msra.mxu0 %v4735
        %4757 = vmatprep.subr.bf16.mxu0 0
        %4758 = vmatpush1.bf16.msra.mxu0 %v4736
        %4759 = vmatprep.subr.bf16.mxu0 0
        %4760 = vmatpush1.bf16.msra.mxu0 %v4737
        %4761 = vmatprep.subr.bf16.mxu0 0
        %4762 = vmatpush1.bf16.msra.mxu0 %v4738
        %4763 = vmatprep.subr.bf16.mxu0 0
        %4764 = vmatpush1.bf16.msra.mxu0 0
        %4765 = vmatprep.subr.bf16.mxu0 0
        %4766 = vmatpush1.bf16.msra.mxu0 0
        %4767 = vmatprep.subr.bf16.mxu0 0
        %4768 = vmatpush1.bf16.msra.mxu0 0
        %4769 = vmatprep.subr.bf16.mxu0 0
        %4770 = vmatpush1.bf16.msra.mxu0 0
        %4771 = vmatprep.subr.bf16.mxu0 0
        %4772 = vmatpush1.bf16.msra.mxu0 0
        %4773 = vmatprep.subr.bf16.mxu0 0
        %4774 = vmatpush1.bf16.msra.mxu0 0
        %4775 = vmatprep.subr.bf16.mxu0 0
        %4776 = vmatpush1.bf16.msra.mxu0 0
        %4777 = vmatprep.subr.bf16.mxu0 0
        %4778 = vmatpush1.bf16.msra.mxu0 0
        %4779 = vmatprep.mubr.bf16.mxu0 0
        %4780 = vmatmul.mubr.bf16.gmra.mrb[0].mxu0 %v4681
        %v4781 = vpop.f32.mrb[0].mxu0
        %v4782 = vadd.f32 0.0, %v4781
        %v4783 = vpop.f32.mrb[0].mxu0
        %v4784 = vpop.f32.mrb[0].mxu0
        %v4785 = vadd.f32 0.0, %v4784
        %v4786 = vpop.f32.mrb[0].mxu0
        %4787 = vmatprep.mubr.bf16.mxu0 0
        %4788 = vmatmul.mubr.bf16.gmra.mrb[0].mxu0 %v4683
        %v4789 = vpop.f32.mrb[0].mxu0
        %v4790 = vadd.f32 0.0, %v4789
        %v4791 = vpop.f32.mrb[0].mxu0
        %v4792 = vpop.f32.mrb[0].mxu0
        %v4793 = vadd.f32 0.0, %v4792
        %v4794 = vpop.f32.mrb[0].mxu0
        %4795 = vmatprep.mubr.bf16.mxu0 0
        %4796 = vmatmul.mubr.bf16.gmra.mrb[0].mxu0 %v4685
        %v4797 = vpop.f32.mrb[0].mxu0
        %v4798 = vadd.f32 0.0, %v4797
        %v4799 = vpop.f32.mrb[0].mxu0
        %v4800 = vpop.f32.mrb[0].mxu0
        %v4801 = vadd.f32 0.0, %v4800
        %v4802 = vpop.f32.mrb[0].mxu0
        %4803 = vmatprep.mubr.bf16.mxu0 0
        %4804 = vmatmul.mubr.bf16.gmra.mrb[0].mxu0 %v4687
        %v4805 = vpop.f32.mrb[0].mxu0
        %v4806 = vadd.f32 0.0, %v4805
        %v4807 = vpop.f32.mrb[0].mxu0
        %v4808 = vpop.f32.mrb[0].mxu0
        %v4809 = vadd.f32 0.0, %v4808
        %v4810 = vpop.f32.mrb[0].mxu0
        %4811 = vmatprep.mubr.bf16.mxu0 0
        %4812 = vmatmul.mubr.bf16.gmra.mrb[0].mxu0 %v4689
        %v4813 = vpop.f32.mrb[0].mxu0
        %v4814 = vadd.f32 0.0, %v4813
        %v4815 = vpop.f32.mrb[0].mxu0
        %v4816 = vpop.f32.mrb[0].mxu0
        %v4817 = vadd.f32 0.0, %v4816
        %v4818 = vpop.f32.mrb[0].mxu0
        %4819 = vmatprep.mubr.bf16.mxu0 0
        %4820 = vmatmul.mubr.bf16.gmra.mrb[0].mxu0 %v4691
        %v4821 = vpop.f32.mrb[0].mxu0
        %v4822 = vadd.f32 0.0, %v4821
        %v4823 = vpop.f32.mrb[0].mxu0
        %v4824 = vpop.f32.mrb[0].mxu0
        %v4825 = vadd.f32 0.0, %v4824
        %v4826 = vpop.f32.mrb[0].mxu0
        %4827 = vmatprep.mubr.bf16.mxu0 0
        %4828 = vmatmul.mubr.bf16.gmra.mrb[0].mxu0 %v4690
        %v4829 = vpop.f32.mrb[0].mxu0
        %v4830 = vadd.f32 0.0, %v4829
        %v4831 = vpop.f32.mrb[0].mxu0
        %v4832 = vpop.f32.mrb[0].mxu0
        %v4833 = vpop.f32.mrb[0].mxu0
        %4834 = vdwg.mxu0
        %v4835 = vadd.f32 %v4607, %v4782
        %v4836 = vadd.f32 %v4610, %v4785
        %v4837 = vadd.f32 %v4615, %v4790
        %v4838 = vadd.f32 %v4618, %v4793
        %v4839 = vadd.f32 %v4623, %v4798
        %v4840 = vadd.f32 %v4626, %v4801
        %v4841 = vadd.f32 %v4631, %v4806
        %v4842 = vadd.f32 %v4634, %v4809
        %v4843 = vadd.f32 %v4639, %v4814
        %v4844 = vadd.f32 %v4642, %v4817
        %v4845 = vadd.f32 %v4647, %v4822
        %v4846 = vadd.f32 %v4650, %v4825
        %v4847 = vadd.f32 %v4655, %v4830
        %v4848 = vld [vmem:[%s10] sm:$0x1]
        %v4850 = vlaneseq
        %v4851 = vshrl.u32 %v4850, 7
        %v4852 = vsub.s32 0, %v4851
        %v4853 = vrot.slane %v4848, %v4852
        %v4855 = vmul.f32 %v4835, %v4853
        %v4856 = vmul.f32 %v4836, %v4853
        %v4857 = vmul.f32 %v4837, %v4853
        %v4858 = vmul.f32 %v4838, %v4853
        %v4859 = vmul.f32 %v4839, %v4853
        %v4860 = vmul.f32 %v4840, %v4853
        %v4861 = vmul.f32 %v4841, %v4853
        %v4862 = vmul.f32 %v4842, %v4853
        %v4863 = vmul.f32 %v4843, %v4853
        %v4864 = vmul.f32 %v4844, %v4853
        %v4865 = vmul.f32 %v4845, %v4853
        %v4866 = vmul.f32 %v4846, %v4853
        %v4867 = vmul.f32 %v4847, %v4853
        %v4868 = vld [vmem:[%s11] sm:$0x1]
        %v4870 = vlaneseq
        %v4871 = vshrl.u32 %v4870, 7
        %v4872 = vsub.s32 0, %v4871
        %v4873 = vrot.slane %v4868, %v4872
        %v4875 = vadd.f32 %v4855, %v4873
        %v4876 = vadd.f32 %v4856, %v4873
        %v4877 = vadd.f32 %v4857, %v4873
        %v4878 = vadd.f32 %v4858, %v4873
        %v4879 = vadd.f32 %v4859, %v4873
        %v4880 = vadd.f32 %v4860, %v4873
        %v4881 = vadd.f32 %v4861, %v4873
        %v4882 = vadd.f32 %v4862, %v4873
        %v4883 = vadd.f32 %v4863, %v4873
        %v4884 = vadd.f32 %v4864, %v4873
        %v4885 = vadd.f32 %v4865, %v4873
        %v4886 = vadd.f32 %v4866, %v4873
        %v4887 = vadd.f32 %v4867, %v4873
        %v4888 = vpack.c.bf16 %v4876, %v4875
        %v4889 = vpack.c.bf16 %v4878, %v4877
        %v4890 = vpack.c.bf16 %v4880, %v4879
        %v4891 = vpack.c.bf16 %v4882, %v4881
        %v4892 = vpack.c.bf16 %v4884, %v4883
        %v4893 = vpack.c.bf16 %v4886, %v4885
        %v4894 = vpack.c.bf16 %v4887, %v4887
        %v4895 = vld [vmem:[#allocation13] sm:$0xf]
        %v4896 = vld [vmem:[#allocation13 + $0x4] sm:$0xf]
        %v4897 = vld [vmem:[#allocation13 + $0x8] sm:$0xf]
        %v4898 = vld [vmem:[#allocation13 + $0xc] sm:$0xf]
        %v4899 = vld [vmem:[#allocation13 + $0x10] sm:$0xf]
        %v4900 = vld [vmem:[#allocation13 + $0x14] sm:$0xf]
        %v4901 = vld [vmem:[#allocation13 + $0x18] sm:$0xf]
        %v4902 = vld [vmem:[#allocation13 + $0x1c] sm:$0xf]
        %v4903 = vld [vmem:[#allocation13 + $0x20] sm:$0xf]
        %v4904 = vld [vmem:[#allocation13 + $0x24] sm:$0xf]
        %v4905 = vld [vmem:[#allocation13 + $0x28] sm:$0xf]
        %v4906 = vld [vmem:[#allocation13 + $0x2c] sm:$0xf]
        %v4907 = vld [vmem:[#allocation13 + $0x30] sm:$0xf]
        %v4908 = vld [vmem:[#allocation13 + $0x34] sm:$0xf]
        %v4909 = vld [vmem:[#allocation13 + $0x38] sm:$0xf]
        %v4910 = vld [vmem:[#allocation13 + $0x3c] sm:$0xf]
        %v4911 = vld [vmem:[%s13] sm:$0x1]
        %v4913 = vlaneseq
        %v4914 = vshrl.u32 %v4913, 7
        %v4915 = vsub.s32 0, %v4914
        %v4916 = vrot.slane %v4911, %v4915
        %v4934 = vunpack.c.l.b16 %v4895
        %v4935 = vunpack.c.l.b16 %v4896
        %v4936 = vunpack.c.l.b16 %v4897
        %v4937 = vunpack.c.l.b16 %v4898
        %v4938 = vunpack.c.l.b16 %v4899
        %v4939 = vunpack.c.l.b16 %v4900
        %v4940 = vunpack.c.l.b16 %v4901
        %v4941 = vunpack.c.l.b16 %v4902
        %v4942 = vunpack.c.l.b16 %v4903
        %v4943 = vunpack.c.l.b16 %v4904
        %v4944 = vunpack.c.l.b16 %v4905
        %v4945 = vunpack.c.l.b16 %v4906
        %v4946 = vunpack.c.l.b16 %v4907
        %v4947 = vunpack.c.l.b16 %v4908
        %v4948 = vunpack.c.l.b16 %v4909
        %v4949 = vunpack.c.l.b16 %v4910
        %v4950 = vpack.c.b16 %v4935, %v4934
        %v4951 = vpack.c.b16 %v4937, %v4936
        %v4952 = vpack.c.b16 %v4939, %v4938
        %v4953 = vpack.c.b16 %v4941, %v4940
        %v4954 = vpack.c.b16 %v4943, %v4942
        %v4955 = vpack.c.b16 %v4945, %v4944
        %v4956 = vpack.c.b16 %v4947, %v4946
        %v4957 = vpack.c.b16 %v4949, %v4948
        %4966 = vmatprep.subr.bf16.mxu0 0
        %4967 = vmatpush1.bf16.msra.mxu0 %v4950
        %4968 = vmatprep.subr.bf16.mxu0 0
        %4969 = vmatpush1.bf16.msra.mxu0 %v4951
        %4970 = vmatprep.subr.bf16.mxu0 0
        %4971 = vmatpush1.bf16.msra.mxu0 %v4952
        %4972 = vmatprep.subr.bf16.mxu0 0
        %4973 = vmatpush1.bf16.msra.mxu0 %v4953
        %4974 = vmatprep.subr.bf16.mxu0 0
        %4975 = vmatpush1.bf16.msra.mxu0 %v4954
        %4976 = vmatprep.subr.bf16.mxu0 0
        %4977 = vmatpush1.bf16.msra.mxu0 %v4955
        %4978 = vmatprep.subr.bf16.mxu0 0
        %4979 = vmatpush1.bf16.msra.mxu0 %v4956
        %4980 = vmatprep.subr.bf16.mxu0 0
        %4981 = vmatpush1.bf16.msra.mxu0 %v4957
        %4982 = vmatprep.subr.bf16.mxu0 0
        %4983 = vmatpush1.bf16.msra.mxu0 0
        %4984 = vmatprep.subr.bf16.mxu0 0
        %4985 = vmatpush1.bf16.msra.mxu0 0
        %4986 = vmatprep.subr.bf16.mxu0 0
        %4987 = vmatpush1.bf16.msra.mxu0 0
        %4988 = vmatprep.subr.bf16.mxu0 0
        %4989 = vmatpush1.bf16.msra.mxu0 0
        %4990 = vmatprep.subr.bf16.mxu0 0
        %4991 = vmatpush1.bf16.msra.mxu0 0
        %4992 = vmatprep.subr.bf16.mxu0 0
        %4993 = vmatpush1.bf16.msra.mxu0 0
        %4994 = vmatprep.subr.bf16.mxu0 0
        %4995 = vmatpush1.bf16.msra.mxu0 0
        %4996 = vmatprep.subr.bf16.mxu0 0
        %4997 = vmatpush1.bf16.msra.mxu0 0
        %4998 = vmatprep.mubr.bf16.mxu0 0
        %4999 = vmatmul.mubr.bf16.gmra.mrb[0].mxu0 %v4888
        %v5000 = vpop.f32.mrb[0].mxu0
        %v5001 = vadd.f32 %v4916, %v5000
        %v5002 = vpop.f32.mrb[0].mxu0
        %v5003 = vpop.f32.mrb[0].mxu0
        %v5004 = vadd.f32 %v4916, %v5003
        %v5005 = vpop.f32.mrb[0].mxu0
        %5006 = vmatprep.mubr.bf16.mxu0 0
        %5007 = vmatmul.mubr.bf16.gmra.mrb[0].mxu0 %v4889
        %v5008 = vpop.f32.mrb[0].mxu0
        %v5009 = vadd.f32 %v4916, %v5008
        %v5010 = vpop.f32.mrb[0].mxu0
        %v5011 = vpop.f32.mrb[0].mxu0
        %v5012 = vadd.f32 %v4916, %v5011
        %v5013 = vpop.f32.mrb[0].mxu0
        %5014 = vmatprep.mubr.bf16.mxu0 0
        %5015 = vmatmul.mubr.bf16.gmra.mrb[0].mxu0 %v4890
        %v5016 = vpop.f32.mrb[0].mxu0
        %v5017 = vadd.f32 %v4916, %v5016
        %v5018 = vpop.f32.mrb[0].mxu0
        %v5019 = vpop.f32.mrb[0].mxu0
        %v5020 = vadd.f32 %v4916, %v5019
        %v5021 = vpop.f32.mrb[0].mxu0
        %5022 = vmatprep.mubr.bf16.mxu0 0
        %5023 = vmatmul.mubr.bf16.gmra.mrb[0].mxu0 %v4891
        %v5024 = vpop.f32.mrb[0].mxu0
        %v5025 = vadd.f32 %v4916, %v5024
        %v5026 = vpop.f32.mrb[0].mxu0
        %v5027 = vpop.f32.mrb[0].mxu0
        %v5028 = vadd.f32 %v4916, %v5027
        %v5029 = vpop.f32.mrb[0].mxu0
        %5030 = vmatprep.mubr.bf16.mxu0 0
        %5031 = vmatmul.mubr.bf16.gmra.mrb[0].mxu0 %v4892
        %v5032 = vpop.f32.mrb[0].mxu0
        %v5033 = vadd.f32 %v4916, %v5032
        %v5034 = vpop.f32.mrb[0].mxu0
        %v5035 = vpop.f32.mrb[0].mxu0
        %v5036 = vadd.f32 %v4916, %v5035
        %v5037 = vpop.f32.mrb[0].mxu0
        %5038 = vmatprep.mubr.bf16.mxu0 0
        %5039 = vmatmul.mubr.bf16.gmra.mrb[0].mxu0 %v4893
        %v5040 = vpop.f32.mrb[0].mxu0
        %v5041 = vadd.f32 %v4916, %v5040
        %v5042 = vpop.f32.mrb[0].mxu0
        %v5043 = vpop.f32.mrb[0].mxu0
        %v5044 = vadd.f32 %v4916, %v5043
        %v5045 = vpop.f32.mrb[0].mxu0
        %5046 = vmatprep.mubr.bf16.mxu0 0
        %5047 = vmatmul.mubr.bf16.gmra.mrb[0].mxu0 %v4894
        %v5048 = vpop.f32.mrb[0].mxu0
        %v5049 = vadd.f32 %v4916, %v5048
        %v5050 = vpop.f32.mrb[0].mxu0
        %v5051 = vpop.f32.mrb[0].mxu0
        %v5052 = vpop.f32.mrb[0].mxu0
        %5053 = vdwg.mxu0
        %5054 = vst [vmem:[%s549] sm:$0xff] %v5001
        %5055 = vst [vmem:[%s549 + $0x8] sm:$0xff] %v5004
        %5056 = vst [vmem:[%s549 + $0x10] sm:$0xff] %v5009
        %5057 = vst [vmem:[%s549 + $0x18] sm:$0xff] %v5012
        %5058 = vst [vmem:[%s549 + $0x20] sm:$0xff] %v5017
        %5059 = vst [vmem:[%s549 + $0x28] sm:$0xff] %v5020
        %5060 = vst [vmem:[%s549 + $0x30] sm:$0xff] %v5025
        %5061 = vst [vmem:[%s549 + $0x38] sm:$0xff] %v5028
        %5062 = vst [vmem:[%s549 + $0x40] sm:$0xff] %v5033
        %5063 = vst [vmem:[%s549 + $0x48] sm:$0xff] %v5036
        %5064 = vst [vmem:[%s549 + $0x50] sm:$0xff] %v5041
        %5065 = vst [vmem:[%s549 + $0x58] sm:$0xff] %v5044
        %5066 = vst [vmem:[%s549 + $0x60] sm:$0xff] %v5049
        %5067 = vmax.xlane.f32.xlu0 %v5001
        %v5068 = vpop.xlane.xlu0 %5067
        %5069 = vmax.xlane.f32.xlu0 %v5004
        %v5070 = vpop.xlane.xlu0 %5069
        %5071 = vmax.xlane.f32.xlu0 %v5009
        %v5072 = vpop.xlane.xlu0 %5071
        %5073 = vmax.xlane.f32.xlu0 %v5012
        %v5074 = vpop.xlane.xlu0 %5073
        %5075 = vmax.xlane.f32.xlu0 %v5017
        %v5076 = vpop.xlane.xlu0 %5075
        %5077 = vmax.xlane.f32.xlu0 %v5020
        %v5078 = vpop.xlane.xlu0 %5077
        %5079 = vmax.xlane.f32.xlu0 %v5025
        %v5080 = vpop.xlane.xlu0 %5079
        %5081 = vmax.xlane.f32.xlu0 %v5028
        %v5082 = vpop.xlane.xlu0 %5081
        %5083 = vmax.xlane.f32.xlu0 %v5033
        %v5084 = vpop.xlane.xlu0 %5083
        %5085 = vmax.xlane.f32.xlu0 %v5036
        %v5086 = vpop.xlane.xlu0 %5085
        %5087 = vmax.xlane.f32.xlu0 %v5041
        %v5088 = vpop.xlane.xlu0 %5087
        %5089 = vmax.xlane.f32.xlu0 %v5044
        %v5090 = vpop.xlane.xlu0 %5089
        %5091 = vmax.xlane.f32.xlu0 %v5049
        %v5092 = vpop.xlane.xlu0 %5091
        %v5093 = vsub.f32 %v5001, %v5068
        %v5094 = vsub.f32 %v5004, %v5070
        %v5095 = vsub.f32 %v5009, %v5072
        %v5096 = vsub.f32 %v5012, %v5074
        %v5097 = vsub.f32 %v5017, %v5076
        %v5098 = vsub.f32 %v5020, %v5078
        %v5099 = vsub.f32 %v5025, %v5080
        %v5100 = vsub.f32 %v5028, %v5082
        %v5101 = vsub.f32 %v5033, %v5084
        %v5102 = vsub.f32 %v5036, %v5086
        %v5103 = vsub.f32 %v5041, %v5088
        %v5104 = vsub.f32 %v5044, %v5090
        %v5105 = vsub.f32 %v5049, %v5092
        %v5106 = vmul.f32 %v5093, 1.442695
        %v5107 = vpow.pop %v5106
        %v5108 = vmul.f32 %v5094, 1.442695
        %v5109 = vpow.pop %v5108
        %v5110 = vmul.f32 %v5095, 1.442695
        %v5111 = vpow.pop %v5110
        %v5112 = vmul.f32 %v5096, 1.442695
        %v5113 = vpow.pop %v5112
        %v5114 = vmul.f32 %v5097, 1.442695
        %v5115 = vpow.pop %v5114
        %v5116 = vmul.f32 %v5098, 1.442695
        %v5117 = vpow.pop %v5116
        %v5118 = vmul.f32 %v5099, 1.442695
        %v5119 = vpow.pop %v5118
        %v5120 = vmul.f32 %v5100, 1.442695
        %v5121 = vpow.pop %v5120
        %v5122 = vmul.f32 %v5101, 1.442695
        %v5123 = vpow.pop %v5122
        %v5124 = vmul.f32 %v5102, 1.442695
        %v5125 = vpow.pop %v5124
        %v5126 = vmul.f32 %v5103, 1.442695
        %v5127 = vpow.pop %v5126
        %v5128 = vmul.f32 %v5104, 1.442695
        %v5129 = vpow.pop %v5128
        %v5130 = vmul.f32 %v5105, 1.442695
        %v5131 = vpow.pop %v5130
        %5132 = vadd.xlane.f32.xlu0 %v5107
        %v5133 = vpop.xlane.xlu0 %5132
        %5134 = vadd.xlane.f32.xlu0 %v5109
        %v5135 = vpop.xlane.xlu0 %5134
        %5136 = vadd.xlane.f32.xlu0 %v5111
        %v5137 = vpop.xlane.xlu0 %5136
        %5138 = vadd.xlane.f32.xlu0 %v5113
        %v5139 = vpop.xlane.xlu0 %5138
        %5140 = vadd.xlane.f32.xlu0 %v5115
        %v5141 = vpop.xlane.xlu0 %5140
        %5142 = vadd.xlane.f32.xlu0 %v5117
        %v5143 = vpop.xlane.xlu0 %5142
        %5144 = vadd.xlane.f32.xlu0 %v5119
        %v5145 = vpop.xlane.xlu0 %5144
        %5146 = vadd.xlane.f32.xlu0 %v5121
        %v5147 = vpop.xlane.xlu0 %5146
        %5148 = vadd.xlane.f32.xlu0 %v5123
        %v5149 = vpop.xlane.xlu0 %5148
        %5150 = vadd.xlane.f32.xlu0 %v5125
        %v5151 = vpop.xlane.xlu0 %5150
        %5152 = vadd.xlane.f32.xlu0 %v5127
        %v5153 = vpop.xlane.xlu0 %5152
        %5154 = vadd.xlane.f32.xlu0 %v5129
        %v5155 = vpop.xlane.xlu0 %5154
        %5156 = vadd.xlane.f32.xlu0 %v5131
        %v5157 = vpop.xlane.xlu0 %5156
        %v5158 = vlog2.pop %v5133
        %v5159 = vmul.f32 %v5158, 0.6931472
        %v5160 = vlog2.pop %v5135
        %v5161 = vmul.f32 %v5160, 0.6931472
        %v5162 = vlog2.pop %v5137
        %v5163 = vmul.f32 %v5162, 0.6931472
        %v5164 = vlog2.pop %v5139
        %v5165 = vmul.f32 %v5164, 0.6931472
        %v5166 = vlog2.pop %v5141
        %v5167 = vmul.f32 %v5166, 0.6931472
        %v5168 = vlog2.pop %v5143
        %v5169 = vmul.f32 %v5168, 0.6931472
        %v5170 = vlog2.pop %v5145
        %v5171 = vmul.f32 %v5170, 0.6931472
        %v5172 = vlog2.pop %v5147
        %v5173 = vmul.f32 %v5172, 0.6931472
        %v5174 = vlog2.pop %v5149
        %v5175 = vmul.f32 %v5174, 0.6931472
        %v5176 = vlog2.pop %v5151
        %v5177 = vmul.f32 %v5176, 0.6931472
        %v5178 = vlog2.pop %v5153
        %v5179 = vmul.f32 %v5178, 0.6931472
        %v5180 = vlog2.pop %v5155
        %v5181 = vmul.f32 %v5180, 0.6931472
        %v5182 = vlog2.pop %v5157
        %v5183 = vmul.f32 %v5182, 0.6931472
        %v5184 = vadd.f32 %v5068, %v5159
        %v5185 = vadd.f32 %v5070, %v5161
        %v5186 = vadd.f32 %v5072, %v5163
        %v5187 = vadd.f32 %v5074, %v5165
        %v5188 = vadd.f32 %v5076, %v5167
        %v5189 = vadd.f32 %v5078, %v5169
        %v5190 = vadd.f32 %v5080, %v5171
        %v5191 = vadd.f32 %v5082, %v5173
        %v5192 = vadd.f32 %v5084, %v5175
        %v5193 = vadd.f32 %v5086, %v5177
        %v5194 = vadd.f32 %v5088, %v5179
        %v5195 = vadd.f32 %v5090, %v5181
        %v5196 = vadd.f32 %v5092, %v5183
        %v5197 = vsub.f32 %v5001, %v5184
        %v5198 = vsub.f32 %v5004, %v5185
        %v5199 = vsub.f32 %v5009, %v5186
        %v5200 = vsub.f32 %v5012, %v5187
        %v5201 = vsub.f32 %v5017, %v5188
        %v5202 = vsub.f32 %v5020, %v5189
        %v5203 = vsub.f32 %v5025, %v5190
        %v5204 = vsub.f32 %v5028, %v5191
        %v5205 = vsub.f32 %v5033, %v5192
        %v5206 = vsub.f32 %v5036, %v5193
        %v5207 = vsub.f32 %v5041, %v5194
        %v5208 = vsub.f32 %v5044, %v5195
        %v5209 = vsub.f32 %v5049, %v5196
        %5210 = vst [vmem:[%s556] sm:$0xff] %v5197
        %5211 = vst [vmem:[%s556 + $0x8] sm:$0xff] %v5198
        %5212 = vst [vmem:[%s556 + $0x10] sm:$0xff] %v5199
        %5213 = vst [vmem:[%s556 + $0x18] sm:$0xff] %v5200
        %5214 = vst [vmem:[%s556 + $0x20] sm:$0xff] %v5201
        %5215 = vst [vmem:[%s556 + $0x28] sm:$0xff] %v5202
        %5216 = vst [vmem:[%s556 + $0x30] sm:$0xff] %v5203
        %5217 = vst [vmem:[%s556 + $0x38] sm:$0xff] %v5204
        %5218 = vst [vmem:[%s556 + $0x40] sm:$0xff] %v5205
        %5219 = vst [vmem:[%s556 + $0x48] sm:$0xff] %v5206
        %5220 = vst [vmem:[%s556 + $0x50] sm:$0xff] %v5207
        %5221 = vst [vmem:[%s556 + $0x58] sm:$0xff] %v5208
        %5222 = vst [vmem:[%s556 + $0x60] sm:$0xff] %v5209
        %s5223 = sand.u32 %s338, 1
        %s5224 = scalar_lea.sflag [#allocation7], %s5223
        %s5225 = sand.u32 %s338, 1
        %s5226 = smul.addr %s5225, 104
        %s5227 = scalar_lea.vmem [#allocation14], %s5226
        %s5228 = sand.u32 %s364, 1
        %s5229 = scalar_lea.sflag [#allocation16], %s5228
        %s5230 = sand.u32 %s364, 1
        %s5231 = smul.addr %s5230, 104
        %s5232 = scalar_lea.vmem [#allocation15], %s5231
        // Predicated region
        $region97: #{tpu_custom_call.1} parent=75 // pred_check
          %p5233 = pneg %p348
        $region98: #{tpu_custom_call.1} parent=75 // pred_check_branch
          %5235 = sbr.rel (%p5233) target = $region100
        $region99: #{tpu_custom_call.1} parent=75 // pred_region
          %s5236 = smul.u32 13, %s36
          %s5238 = ssub.s32 1664, 1664
          %5239 = vsyncadd %s5224, %s5238
          %s5240 = smul.addr %s5236, 128
          %s5241 = scalar_lea.hbm %s14, %s5240
          %s5242 = sshll.u32 %s5227, 4
          %s5243 = int_to_ptr.vmem [resolvable:$true] %s5242
          %5248 = dma.vmem_to_hbm [thread:$0]  %s5243, 1664, %s5241, %s5224, 128, 128, 8
        $region100: #{tpu_custom_call.1} parent=75 // pred_fallthru
          _
        // Predicated region
        $region101: #{tpu_custom_call.1} parent=75 // pred_check
          %p5249 = pneg %p374
        $region102: #{tpu_custom_call.1} parent=75 // pred_check_branch
          %5251 = sbr.rel (%p5249) target = $region104
        $region103: #{tpu_custom_call.1} parent=75 // pred_region
          %s5252 = smul.u32 13, %s36
          %s5254 = ssub.s32 1664, 1664
          %5255 = vsyncadd %s5229, %s5254
          %s5256 = smul.addr %s5252, 128
          %s5257 = scalar_lea.hbm %s15, %s5256
          %s5258 = sshll.u32 %s5232, 4
          %s5259 = int_to_ptr.vmem [resolvable:$true] %s5258
          %5264 = dma.vmem_to_hbm [thread:$0]  %s5259, 1664, %s5257, %s5229, 128, 128, 8
        $region104: #{tpu_custom_call.1} parent=75 // pred_fallthru
          _
      $region76: #{tpu_custom_call.1} parent=5 // pred_fallthru
        _
      %p5265 = scmp.le.s32.totalorder 2, %s31
      // Predicated region
      $region105: #{tpu_custom_call.1} parent=5 // pred_check
        %p5266 = pneg %p5265
      $region106: #{tpu_custom_call.1} parent=5 // pred_check_branch
        %5268 = sbr.rel (%p5266) target = $region108
      $region107: #{tpu_custom_call.1} parent=5 // pred_region
        %s5269 = ssub.s32 %s31, 2
        // Predicated region
        $region109: #{tpu_custom_call.1} parent=107 // pred_check
          %p5270 = pneg %p354
        $region110: #{tpu_custom_call.1} parent=107 // pred_check_branch
          %5272 = sbr.rel (%p5270) target = $region112
        $region111: #{tpu_custom_call.1} parent=107 // pred_region
          %s5273 = sand.u32 %s339, 1
          %s5274 = scalar_lea.sflag [#allocation7], %s5273
          %s5275 = sand.u32 %s339, 1
          %s5276 = smul.addr %s5275, 104
          %s5277 = scalar_lea.vmem [#allocation14], %s5276
          %5278 = dma.done %s5274, 1664
        $region112: #{tpu_custom_call.1} parent=107 // pred_fallthru
          _
        // Predicated region
        $region113: #{tpu_custom_call.1} parent=107 // pred_check
          %p5279 = pneg %p380
        $region114: #{tpu_custom_call.1} parent=107 // pred_check_branch
          %5281 = sbr.rel (%p5279) target = $region116
        $region115: #{tpu_custom_call.1} parent=107 // pred_region
          %s5282 = sand.u32 %s365, 1
          %s5283 = scalar_lea.sflag [#allocation16], %s5282
          %s5284 = sand.u32 %s365, 1
          %s5285 = smul.addr %s5284, 104
          %s5286 = scalar_lea.vmem [#allocation15], %s5285
          %5287 = dma.done %s5283, 1664
        $region116: #{tpu_custom_call.1} parent=107 // pred_fallthru
          _
      $region108: #{tpu_custom_call.1} parent=5 // pred_fallthru
        _
    $region6: #{tpu_custom_call.1} parent=1 // loop_footer
      %s35 = sadd.s32 1, %s31
    $region7: #{tpu_custom_call.1} parent=1 // loop_footer_branch
      %30 = sbr.rel target = $region3
    $region8: #{tpu_custom_call.1} parent=1 // loop_exit
      _
    %5288 = vsyncpa [#allocation6], 1
    %s5289 = scalar_lea.sflag [#allocation6], 1
    %5290 = vsyncpa %s5289, 1
    %5291 = vsyncpa [#allocation9], 1
    %5292 = vsyncpa [#allocation12], 1
    %5293 = vsyncpa [#allocation7], 1
    %s5294 = scalar_lea.sflag [#allocation7], 1
    %5295 = vsyncpa %s5294, 1
    %5296 = vsyncpa [#allocation16], 1
    %s5297 = scalar_lea.sflag [#allocation16], 1
    %5298 = vsyncpa %s5297, 1

// kernel: tpu_custom_call.1
$region0: #{tpu_custom_call.1}
  #allocation0 [shape = 'u32[]', space=smem, size = 0x4, offset = 0x4, fixed_abs, tag = 'smem constant byte address 0x4 - core index']
  #allocation1 [shape = 'u32[144,128]{1,0:T(1,128)}', space=vmem, size = 0x12000, scoped, tag = 'internal scratch']
  #allocation2 [shape = 'bf16[120,256]{1,0:T(8,128)(2,1)}', space=vmem, size = 0xf000, scoped, tag = 'scratch operand']
  #allocation3 [shape = 'bf16[112,128]{1,0:T(16,128)(2,1)}', space=vmem, size = 0x7000, scoped, tag = 'scratch operand']
  #allocation4 [shape = 'bf16[112,128]{1,0:T(16,128)(2,1)}', space=vmem, size = 0x7000, scoped, tag = 'scratch operand']
  %s0 = inlined_call_operand.hbm [shape: f32[224,128], index: 0, kind: input, shape index: {}]
  %s1 = inlined_call_operand.vmem [shape: f32[224,33], index: 1, kind: input, shape index: {}]
  %s2 = inlined_call_operand.hbm [shape: bf16[64,128], index: 2, kind: input, shape index: {}]
  %s3 = inlined_call_operand.hbm [shape: bf16[1280,128], index: 3, kind: input, shape index: {}]
  %s4 = inlined_call_operand.vmem [shape: f32[1,128], index: 4, kind: input, shape index: {}]
  %s5 = inlined_call_operand.vmem [shape: f32[1,128], index: 5, kind: input, shape index: {}]
  %s6 = inlined_call_operand.vmem [shape: bf16[640,128], index: 6, kind: input, shape index: {}]
  %s7 = inlined_call_operand.vmem [shape: f32[1,128], index: 7, kind: input, shape index: {}]
  %s8 = inlined_call_operand.vmem [shape: f32[1,128], index: 8, kind: input, shape index: {}]
  %s9 = inlined_call_operand.hbm [shape: bf16[640,128], index: 9, kind: input, shape index: {}]
  %s10 = inlined_call_operand.vmem [shape: f32[1,128], index: 10, kind: input, shape index: {}]
  %s11 = inlined_call_operand.vmem [shape: f32[1,128], index: 11, kind: input, shape index: {}]
  %s12 = inlined_call_operand.hbm [shape: bf16[128,128], index: 12, kind: input, shape index: {}]
  %s13 = inlined_call_operand.vmem [shape: f32[1,128], index: 13, kind: input, shape index: {}]
  %s14 = inlined_call_operand.hbm [shape: f32[208,128], index: 14, kind: output, shape index: {0}]
  %s15 = inlined_call_operand.hbm [shape: f32[208,128], index: 15, kind: output, shape index: {1}]
  %16 = xla_tuple %s14, %s15
  %s17 = sld [smem:[#allocation0]]
  $region117: #{tpu_custom_call.1} parent=0
    _
  %s19 = ssub.s32 1, %s17
  %s20 = scalar_select 0, %s19, %s17
  $region1: #{tpu_custom_call.1} parent=0
    #allocation5 [shape = 'u8[114688]{0}', space=vmem, size = 0x1c000, scoped, tag = 'input window, operand 0, single buffered']
    #allocation6 [shape = 's32[2]{0}', space=sflag, size = 0x8, scoped, tag = 'scoped memory for tpu_custom_call.1']
    #allocation7 [shape = 's32[2]{0}', space=sflag, size = 0x8, scoped, tag = 'scoped memory for tpu_custom_call.1']
    #allocation8 [shape = 'u8[16384]{0}', space=vmem, size = 0x4000, scoped, tag = 'input window, operand 2, single buffered']
    #allocation9 [shape = 's32[1]{0}', space=sflag, size = 0x4, scoped, tag = 'scoped memory for tpu_custom_call.1']
    #allocation10 [shape = 'u8[327680]{0}', space=vmem, size = 0x50000, scoped, tag = 'input window, operand 3, single buffered']
    #allocation11 [shape = 'u8[163840]{0}', space=vmem, size = 0x28000, scoped, tag = 'input window, operand 9, single buffered']
    #allocation12 [shape = 's32[1]{0}', space=sflag, size = 0x4, scoped, tag = 'scoped memory for tpu_custom_call.1']
    #allocation13 [shape = 'u8[32768]{0}', space=vmem, size = 0x8000, scoped, tag = 'input window, operand 12, single buffered']
    #allocation14 [shape = 'u8[106496]{0}', space=vmem, size = 0x1a000, scoped, tag = 'output window, operand 0']
    #allocation15 [shape = 'u8[106496]{0}', space=vmem, size = 0x1a000, scoped, tag = 'output window, operand 1']
    #allocation16 [shape = 's32[2]{0}', space=sflag, size = 0x8, scoped, tag = 'scoped memory for tpu_custom_call.1']
    %21 = vsyncpa [#allocation6], 0
    %22 = vsyncpa [#allocation9], 0
    %23 = vsyncpa [#allocation12], 0
    %24 = vsyncpa [#allocation7], 0
    %s25 = scalar_lea.sflag [#allocation7], 1
    %26 = vsyncpa %s25, 0
    %27 = vsyncpa [#allocation16], 0
    %s28 = scalar_lea.sflag [#allocation16], 1
    %29 = vsyncpa %s28, 0
    loop: start=0, step=1, limit=4
    $region2: #{tpu_custom_call.1} parent=1 // loop_pre_header
      _
    $region3: #{tpu_custom_call.1} parent=1 // loop_header
      %s31 = sphi 0, %s35
      %p32 = scmp.ge.s32.totalorder %s31, 4
      %s39 = sphi 0, %s39
      %s41 = sphi 0, %s39
      %s42 = sphi 0, %s41
      %s56 = sphi 0, %s42
      %s60 = sphi 0, %s60
      %s62 = sphi 0, %s60
      %s63 = sphi 0, %s62
      %s77 = sphi 0, %s63
      %s81 = sphi 0, %s81
      %s83 = sphi 0, %s81
      %s84 = sphi 0, %s83
      %s98 = sphi 0, %s84
      %s102 = sphi 0, %s102
      %s104 = sphi 0, %s102
      %s105 = sphi 0, %s104
      %s119 = sphi 0, %s105
      %s123 = sphi 0, %s123
      %s125 = sphi 0, %s123
      %s126 = sphi 0, %s125
      %s140 = sphi 0, %s126
      %s144 = sphi 0, %s144
      %s146 = sphi 0, %s144
      %s147 = sphi 0, %s146
      %s161 = sphi 0, %s147
      %s165 = sphi 0, %s165
      %s167 = sphi 0, %s165
      %s168 = sphi 0, %s167
      %s182 = sphi 0, %s168
      %s186 = sphi 0, %s186
      %s188 = sphi 0, %s186
      %s189 = sphi 0, %s188
      %s203 = sphi 0, %s189
      %s207 = sphi 0, %s207
      %s209 = sphi 0, %s207
      %s210 = sphi 0, %s209
      %s224 = sphi 0, %s210
      %s228 = sphi 0, %s228
      %s230 = sphi 0, %s228
      %s231 = sphi 0, %s230
      %s245 = sphi 0, %s231
      %s249 = sphi 0, %s249
      %s251 = sphi 0, %s249
      %s252 = sphi 0, %s251
      %s266 = sphi 0, %s252
      %s270 = sphi 0, %s270
      %s272 = sphi 0, %s270
      %s273 = sphi 0, %s272
      %s287 = sphi 0, %s273
      %s291 = sphi 0, %s291
      %s293 = sphi 0, %s291
      %s294 = sphi 0, %s293
      %s308 = sphi 0, %s294
      %s312 = sphi 0, %s312
      %s314 = sphi 0, %s312
      %s315 = sphi 0, %s314
      %s329 = sphi 0, %s315
      %s335 = sphi 0, %s337
      %s338 = sphi 0, %s335
      %s339 = sphi 0, %s338
      %s355 = sphi 0, %s339
      %s361 = sphi 0, %s363
      %s364 = sphi 0, %s361
      %s365 = sphi 0, %s364
      %s381 = sphi 0, %s365
    $region4: #{tpu_custom_call.1} parent=1 // loop_header_branch
      %34 = sbr.rel (%p32) target = $region8
    $region5: #{tpu_custom_call.1} parent=1 // loop_body
      %s36 = ssub.s32 %s31, 1
      %s37 = ssub.s32 %s31, 2
      %s38 = sadd.s32 %s31, 1
      %s40 = sadd.s32 %s39, 1
      %p43 = scmp.eq.s32.totalorder %s31, 1
      %p44 = scmp.ne.s32.totalorder %s39, %s41
      %p45 = scmp.eq.s32.totalorder %s31, 0
      %p46 = por %p44, %p45
      %p47 = scmp.ne.s32.totalorder %s39, %s41
      %p48 = scmp.eq.s32.totalorder %s36, 1
      %p49 = por %p47, %p48
      %p50 = scmp.ne.s32.totalorder %s41, %s42
      %p51 = scmp.eq.s32.totalorder %s36, 0
      %p52 = por %p50, %p51
      %p53 = scmp.ne.s32.totalorder %s41, %s42
      %p54 = scmp.eq.s32.totalorder %s37, 1
      %p55 = por %p53, %p54
      %p57 = scmp.ne.s32.totalorder %s42, %s56
      %p58 = scmp.eq.s32.totalorder %s37, 0
      %p59 = por %p57, %p58
      %s61 = sadd.s32 %s60, 1
      %p64 = scmp.eq.s32.totalorder %s31, 1
      %p65 = scmp.ne.s32.totalorder %s60, %s62
      %p66 = scmp.eq.s32.totalorder %s31, 0
      %p67 = por %p65, %p66
      %p68 = scmp.ne.s32.totalorder %s60, %s62
      %p69 = scmp.eq.s32.totalorder %s36, 1
      %p70 = por %p68, %p69
      %p71 = scmp.ne.s32.totalorder %s62, %s63
      %p72 = scmp.eq.s32.totalorder %s36, 0
      %p73 = por %p71, %p72
      %p74 = scmp.ne.s32.totalorder %s62, %s63
      %p75 = scmp.eq.s32.totalorder %s37, 1
      %p76 = por %p74, %p75
      %p78 = scmp.ne.s32.totalorder %s63, %s77
      %p79 = scmp.eq.s32.totalorder %s37, 0
      %p80 = por %p78, %p79
      %s82 = sadd.s32 %s81, 1
      %p85 = scmp.eq.s32.totalorder %s31, 1
      %p86 = scmp.ne.s32.totalorder %s81, %s83
      %p87 = scmp.eq.s32.totalorder %s31, 0
      %p88 = por %p86, %p87
      %p89 = scmp.ne.s32.totalorder %s81, %s83
      %p90 = scmp.eq.s32.totalorder %s36, 1
      %p91 = por %p89, %p90
      %p92 = scmp.ne.s32.totalorder %s83, %s84
      %p93 = scmp.eq.s32.totalorder %s36, 0
      %p94 = por %p92, %p93
      %p95 = scmp.ne.s32.totalorder %s83, %s84
      %p96 = scmp.eq.s32.totalorder %s37, 1
      %p97 = por %p95, %p96
      %p99 = scmp.ne.s32.totalorder %s84, %s98
      %p100 = scmp.eq.s32.totalorder %s37, 0
      %p101 = por %p99, %p100
      %s103 = sadd.s32 %s102, 1
      %p106 = scmp.eq.s32.totalorder %s31, 1
      %p107 = scmp.ne.s32.totalorder %s102, %s104
      %p108 = scmp.eq.s32.totalorder %s31, 0
      %p109 = por %p107, %p108
      %p110 = scmp.ne.s32.totalorder %s102, %s104
      %p111 = scmp.eq.s32.totalorder %s36, 1
      %p112 = por %p110, %p111
      %p113 = scmp.ne.s32.totalorder %s104, %s105
      %p114 = scmp.eq.s32.totalorder %s36, 0
      %p115 = por %p113, %p114
      %p116 = scmp.ne.s32.totalorder %s104, %s105
      %p117 = scmp.eq.s32.totalorder %s37, 1
      %p118 = por %p116, %p117
      %p120 = scmp.ne.s32.totalorder %s105, %s119
      %p121 = scmp.eq.s32.totalorder %s37, 0
      %p122 = por %p120, %p121
      %s124 = sadd.s32 %s123, 1
      %p127 = scmp.eq.s32.totalorder %s31, 1
      %p128 = scmp.ne.s32.totalorder %s123, %s125
      %p129 = scmp.eq.s32.totalorder %s31, 0
      %p130 = por %p128, %p129
      %p131 = scmp.ne.s32.totalorder %s123, %s125
      %p132 = scmp.eq.s32.totalorder %s36, 1
      %p133 = por %p131, %p132
      %p134 = scmp.ne.s32.totalorder %s125, %s126
      %p135 = scmp.eq.s32.totalorder %s36, 0
      %p136 = por %p134, %p135
      %p137 = scmp.ne.s32.totalorder %s125, %s126
      %p138 = scmp.eq.s32.totalorder %s37, 1
      %p139 = por %p137, %p138
      %p141 = scmp.ne.s32.totalorder %s126, %s140
      %p142 = scmp.eq.s32.totalorder %s37, 0
      %p143 = por %p141, %p142
      %s145 = sadd.s32 %s144, 1
      %p148 = scmp.eq.s32.totalorder %s31, 1
      %p149 = scmp.ne.s32.totalorder %s144, %s146
      %p150 = scmp.eq.s32.totalorder %s31, 0
      %p151 = por %p149, %p150
      %p152 = scmp.ne.s32.totalorder %s144, %s146
      %p153 = scmp.eq.s32.totalorder %s36, 1
      %p154 = por %p152, %p153
      %p155 = scmp.ne.s32.totalorder %s146, %s147
      %p156 = scmp.eq.s32.totalorder %s36, 0
      %p157 = por %p155, %p156
      %p158 = scmp.ne.s32.totalorder %s146, %s147
      %p159 = scmp.eq.s32.totalorder %s37, 1
      %p160 = por %p158, %p159
      %p162 = scmp.ne.s32.totalorder %s147, %s161
      %p163 = scmp.eq.s32.totalorder %s37, 0
      %p164 = por %p162, %p163
      %s166 = sadd.s32 %s165, 1
      %p169 = scmp.eq.s32.totalorder %s31, 1
      %p170 = scmp.ne.s32.totalorder %s165, %s167
      %p171 = scmp.eq.s32.totalorder %s31, 0
      %p172 = por %p170, %p171
      %p173 = scmp.ne.s32.totalorder %s165, %s167
      %p174 = scmp.eq.s32.totalorder %s36, 1
      %p175 = por %p173, %p174
      %p176 = scmp.ne.s32.totalorder %s167, %s168
      %p177 = scmp.eq.s32.totalorder %s36, 0
      %p178 = por %p176, %p177
      %p179 = scmp.ne.s32.totalorder %s167, %s168
      %p180 = scmp.eq.s32.totalorder %s37, 1
      %p181 = por %p179, %p180
      %p183 = scmp.ne.s32.totalorder %s168, %s182
      %p184 = scmp.eq.s32.totalorder %s37, 0
      %p185 = por %p183, %p184
      %s187 = sadd.s32 %s186, 1
      %p190 = scmp.eq.s32.totalorder %s31, 1
      %p191 = scmp.ne.s32.totalorder %s186, %s188
      %p192 = scmp.eq.s32.totalorder %s31, 0
      %p193 = por %p191, %p192
      %p194 = scmp.ne.s32.totalorder %s186, %s188
      %p195 = scmp.eq.s32.totalorder %s36, 1
      %p196 = por %p194, %p195
      %p197 = scmp.ne.s32.totalorder %s188, %s189
      %p198 = scmp.eq.s32.totalorder %s36, 0
      %p199 = por %p197, %p198
      %p200 = scmp.ne.s32.totalorder %s188, %s189
      %p201 = scmp.eq.s32.totalorder %s37, 1
      %p202 = por %p200, %p201
      %p204 = scmp.ne.s32.totalorder %s189, %s203
      %p205 = scmp.eq.s32.totalorder %s37, 0
      %p206 = por %p204, %p205
      %s208 = sadd.s32 %s207, 1
      %p211 = scmp.eq.s32.totalorder %s31, 1
      %p212 = scmp.ne.s32.totalorder %s207, %s209
      %p213 = scmp.eq.s32.totalorder %s31, 0
      %p214 = por %p212, %p213
      %p215 = scmp.ne.s32.totalorder %s207, %s209
      %p216 = scmp.eq.s32.totalorder %s36, 1
      %p217 = por %p215, %p216
      %p218 = scmp.ne.s32.totalorder %s209, %s210
      %p219 = scmp.eq.s32.totalorder %s36, 0
      %p220 = por %p218, %p219
      %p221 = scmp.ne.s32.totalorder %s209, %s210
      %p222 = scmp.eq.s32.totalorder %s37, 1
      %p223 = por %p221, %p222
      %p225 = scmp.ne.s32.totalorder %s210, %s224
      %p226 = scmp.eq.s32.totalorder %s37, 0
      %p227 = por %p225, %p226
      %s229 = sadd.s32 %s228, 1
      %p232 = scmp.eq.s32.totalorder %s31, 1
      %p233 = scmp.ne.s32.totalorder %s228, %s230
      %p234 = scmp.eq.s32.totalorder %s31, 0
      %p235 = por %p233, %p234
      %p236 = scmp.ne.s32.totalorder %s228, %s230
      %p237 = scmp.eq.s32.totalorder %s36, 1
      %p238 = por %p236, %p237
      %p239 = scmp.ne.s32.totalorder %s230, %s231
      %p240 = scmp.eq.s32.totalorder %s36, 0
      %p241 = por %p239, %p240
      %p242 = scmp.ne.s32.totalorder %s230, %s231
      %p243 = scmp.eq.s32.totalorder %s37, 1
      %p244 = por %p242, %p243
      %p246 = scmp.ne.s32.totalorder %s231, %s245
      %p247 = scmp.eq.s32.totalorder %s37, 0
      %p248 = por %p246, %p247
      %s250 = sadd.s32 %s249, 1
      %p253 = scmp.eq.s32.totalorder %s31, 1
      %p254 = scmp.ne.s32.totalorder %s249, %s251
      %p255 = scmp.eq.s32.totalorder %s31, 0
      %p256 = por %p254, %p255
      %p257 = scmp.ne.s32.totalorder %s249, %s251
      %p258 = scmp.eq.s32.totalorder %s36, 1
      %p259 = por %p257, %p258
      %p260 = scmp.ne.s32.totalorder %s251, %s252
      %p261 = scmp.eq.s32.totalorder %s36, 0
      %p262 = por %p260, %p261
      %p263 = scmp.ne.s32.totalorder %s251, %s252
      %p264 = scmp.eq.s32.totalorder %s37, 1
      %p265 = por %p263, %p264
      %p267 = scmp.ne.s32.totalorder %s252, %s266
      %p268 = scmp.eq.s32.totalorder %s37, 0
      %p269 = por %p267, %p268
      %s271 = sadd.s32 %s270, 1
      %p274 = scmp.eq.s32.totalorder %s31, 1
      %p275 = scmp.ne.s32.totalorder %s270, %s272
      %p276 = scmp.eq.s32.totalorder %s31, 0
      %p277 = por %p275, %p276
      %p278 = scmp.ne.s32.totalorder %s270, %s272
      %p279 = scmp.eq.s32.totalorder %s36, 1
      %p280 = por %p278, %p279
      %p281 = scmp.ne.s32.totalorder %s272, %s273
      %p282 = scmp.eq.s32.totalorder %s36, 0
      %p283 = por %p281, %p282
      %p284 = scmp.ne.s32.totalorder %s272, %s273
      %p285 = scmp.eq.s32.totalorder %s37, 1
      %p286 = por %p284, %p285
      %p288 = scmp.ne.s32.totalorder %s273, %s287
      %p289 = scmp.eq.s32.totalorder %s37, 0
      %p290 = por %p288, %p289
      %s292 = sadd.s32 %s291, 1
      %p295 = scmp.eq.s32.totalorder %s31, 1
      %p296 = scmp.ne.s32.totalorder %s291, %s293
      %p297 = scmp.eq.s32.totalorder %s31, 0
      %p298 = por %p296, %p297
      %p299 = scmp.ne.s32.totalorder %s291, %s293
      %p300 = scmp.eq.s32.totalorder %s36, 1
      %p301 = por %p299, %p300
      %p302 = scmp.ne.s32.totalorder %s293, %s294
      %p303 = scmp.eq.s32.totalorder %s36, 0
      %p304 = por %p302, %p303
      %p305 = scmp.ne.s32.totalorder %s293, %s294
      %p306 = scmp.eq.s32.totalorder %s37, 1
      %p307 = por %p305, %p306
      %p309 = scmp.ne.s32.totalorder %s294, %s308
      %p310 = scmp.eq.s32.totalorder %s37, 0
      %p311 = por %p309, %p310
      %s313 = sadd.s32 %s312, 1
      %p316 = scmp.eq.s32.totalorder %s31, 1
      %p317 = scmp.ne.s32.totalorder %s312, %s314
      %p318 = scmp.eq.s32.totalorder %s31, 0
      %p319 = por %p317, %p318
      %p320 = scmp.ne.s32.totalorder %s312, %s314
      %p321 = scmp.eq.s32.totalorder %s36, 1
      %p322 = por %p320, %p321
      %p323 = scmp.ne.s32.totalorder %s314, %s315
      %p324 = scmp.eq.s32.totalorder %s36, 0
      %p325 = por %p323, %p324
      %p326 = scmp.ne.s32.totalorder %s314, %s315
      %p327 = scmp.eq.s32.totalorder %s37, 1
      %p328 = por %p326, %p327
      %p330 = scmp.ne.s32.totalorder %s315, %s329
      %p331 = scmp.eq.s32.totalorder %s37, 0
      %p332 = por %p330, %p331
      %s333 = ssub.s32 %s31, %s38
      %p334 = scmp.eq.s32.totalorder %s333, 0
      %s336 = sadd.s32 %s335, 1
      %s337 = scalar_select %p334, %s335, %s336
      %p340 = pneg %p334
      %p341 = scmp.eq.s32.totalorder %s31, 1
      %p342 = por %p340, %p341
      %p343 = scmp.ne.s32.totalorder %s335, %s338
      %p344 = scmp.eq.s32.totalorder %s31, 0
      %p345 = por %p343, %p344
      %p346 = scmp.ne.s32.totalorder %s335, %s338
      %p347 = scmp.eq.s32.totalorder %s36, 1
      %p348 = por %p346, %p347
      %p349 = scmp.ne.s32.totalorder %s338, %s339
      %p350 = scmp.eq.s32.totalorder %s36, 0
      %p351 = por %p349, %p350
      %p352 = scmp.ne.s32.totalorder %s338, %s339
      %p353 = scmp.eq.s32.totalorder %s37, 1
      %p354 = por %p352, %p353
      %p356 = scmp.ne.s32.totalorder %s339, %s355
      %p357 = scmp.eq.s32.totalorder %s37, 0
      %p358 = por %p356, %p357
      %s359 = ssub.s32 %s31, %s38
      %p360 = scmp.eq.s32.totalorder %s359, 0
      %s362 = sadd.s32 %s361, 1
      %s363 = scalar_select %p360, %s361, %s362
      %p366 = pneg %p360
      %p367 = scmp.eq.s32.totalorder %s31, 1
      %p368 = por %p366, %p367
      %p369 = scmp.ne.s32.totalorder %s361, %s364
      %p370 = scmp.eq.s32.totalorder %s31, 0
      %p371 = por %p369, %p370
      %p372 = scmp.ne.s32.totalorder %s361, %s364
      %p373 = scmp.eq.s32.totalorder %s36, 1
      %p374 = por %p372, %p373
      %p375 = scmp.ne.s32.totalorder %s364, %s365
      %p376 = scmp.eq.s32.totalorder %s36, 0
      %p377 = por %p375, %p376
      %p378 = scmp.ne.s32.totalorder %s364, %s365
      %p379 = scmp.eq.s32.totalorder %s37, 1
      %p380 = por %p378, %p379
      %p382 = scmp.ne.s32.totalorder %s365, %s381
      %p383 = scmp.eq.s32.totalorder %s37, 0
      %p384 = por %p382, %p383
      %p385 = scmp.le.s32.totalorder 1, %s31
      %p386 = scmp.lt.s32.totalorder %s31, 3
      %p387 = pnand %p385, %p386
      %p388 = pneg %p387
      // Predicated region
      $region9: #{tpu_custom_call.1} parent=5 // pred_check
        _
      $region10: #{tpu_custom_call.1} parent=5 // pred_check_branch
        %390 = sbr.rel (%p387) target = $region12
      $region11: #{tpu_custom_call.1} parent=5 // pred_region
        %s391 = ssub.s32 %s31, 1
        // Predicated region
        $region13: #{tpu_custom_call.1} parent=11 // pred_check
          %p392 = pneg %p52
        $region14: #{tpu_custom_call.1} parent=11 // pred_check_branch
          %394 = sbr.rel (%p392) target = $region16
        $region15: #{tpu_custom_call.1} parent=11 // pred_region
          %s396 = ssub.s32 3584, 3584
          %397 = vsyncadd [#allocation6], %s396
          %s398 = sshll.u32 [#allocation5], 4
          %s399 = int_to_ptr.vmem [resolvable:$true] %s398
          %404 = dma.hbm_to_vmem [thread:$0]  %s0, 3584, %s399, [#allocation6], 128, 128, 8
        $region16: #{tpu_custom_call.1} parent=11 // pred_fallthru
          _
        // Predicated region
        $region17: #{tpu_custom_call.1} parent=11 // pred_check
          %p405 = pneg %p73
        $region18: #{tpu_custom_call.1} parent=11 // pred_check_branch
          %407 = sbr.rel (%p405) target = $region20
        $region19: #{tpu_custom_call.1} parent=11 // pred_region
          _
        $region20: #{tpu_custom_call.1} parent=11 // pred_fallthru
          _
        // Predicated region
        $region21: #{tpu_custom_call.1} parent=11 // pred_check
          %p408 = pneg %p94
        $region22: #{tpu_custom_call.1} parent=11 // pred_check_branch
          %410 = sbr.rel (%p408) target = $region24
        $region23: #{tpu_custom_call.1} parent=11 // pred_region
          %s412 = ssub.s32 512, 512
          %413 = vsyncadd [#allocation9], %s412
          %s414 = sshll.u32 [#allocation8], 4
          %s415 = int_to_ptr.vmem [resolvable:$true] %s414
          %420 = dma.hbm_to_vmem [thread:$0]  %s2, 512, %s415, [#allocation9], 64, 64, 4
        $region24: #{tpu_custom_call.1} parent=11 // pred_fallthru
          _
        // Predicated region
        $region25: #{tpu_custom_call.1} parent=11 // pred_check
          %p421 = pneg %p115
        $region26: #{tpu_custom_call.1} parent=11 // pred_check_branch
          %423 = sbr.rel (%p421) target = $region28
        $region27: #{tpu_custom_call.1} parent=11 // pred_region
          %s425 = ssub.s32 10240, 10240
          %426 = vsyncadd [#allocation9], %s425
          %s427 = sshll.u32 [#allocation10], 4
          %s428 = int_to_ptr.vmem [resolvable:$true] %s427
          %433 = dma.hbm_to_vmem [thread:$0]  %s3, 10240, %s428, [#allocation9], 64, 64, 4
        $region28: #{tpu_custom_call.1} parent=11 // pred_fallthru
          _
        // Predicated region
        $region29: #{tpu_custom_call.1} parent=11 // pred_check
          %p434 = pneg %p136
        $region30: #{tpu_custom_call.1} parent=11 // pred_check_branch
          %436 = sbr.rel (%p434) target = $region32
        $region31: #{tpu_custom_call.1} parent=11 // pred_region
          _
        $region32: #{tpu_custom_call.1} parent=11 // pred_fallthru
          _
        // Predicated region
        $region33: #{tpu_custom_call.1} parent=11 // pred_check
          %p437 = pneg %p157
        $region34: #{tpu_custom_call.1} parent=11 // pred_check_branch
          %439 = sbr.rel (%p437) target = $region36
        $region35: #{tpu_custom_call.1} parent=11 // pred_region
          _
        $region36: #{tpu_custom_call.1} parent=11 // pred_fallthru
          _
        // Predicated region
        $region37: #{tpu_custom_call.1} parent=11 // pred_check
          %p440 = pneg %p178
        $region38: #{tpu_custom_call.1} parent=11 // pred_check_branch
          %442 = sbr.rel (%p440) target = $region40
        $region39: #{tpu_custom_call.1} parent=11 // pred_region
          _
        $region40: #{tpu_custom_call.1} parent=11 // pred_fallthru
          _
        // Predicated region
        $region41: #{tpu_custom_call.1} parent=11 // pred_check
          %p443 = pneg %p199
        $region42: #{tpu_custom_call.1} parent=11 // pred_check_branch
          %445 = sbr.rel (%p443) target = $region44
        $region43: #{tpu_custom_call.1} parent=11 // pred_region
          _
        $region44: #{tpu_custom_call.1} parent=11 // pred_fallthru
          _
        // Predicated region
        $region45: #{tpu_custom_call.1} parent=11 // pred_check
          %p446 = pneg %p220
        $region46: #{tpu_custom_call.1} parent=11 // pred_check_branch
          %448 = sbr.rel (%p446) target = $region48
        $region47: #{tpu_custom_call.1} parent=11 // pred_region
          _
        $region48: #{tpu_custom_call.1} parent=11 // pred_fallthru
          _
        // Predicated region
        $region49: #{tpu_custom_call.1} parent=11 // pred_check
          %p449 = pneg %p241
        $region50: #{tpu_custom_call.1} parent=11 // pred_check_branch
          %451 = sbr.rel (%p449) target = $region52
        $region51: #{tpu_custom_call.1} parent=11 // pred_region
          %s453 = ssub.s32 5120, 5120
          %454 = vsyncadd [#allocation12], %s453
          %s455 = sshll.u32 [#allocation11], 4
          %s456 = int_to_ptr.vmem [resolvable:$true] %s455
          %461 = dma.hbm_to_vmem [thread:$0]  %s9, 5120, %s456, [#allocation12], 64, 64, 4
        $region52: #{tpu_custom_call.1} parent=11 // pred_fallthru
          _
        // Predicated region
        $region53: #{tpu_custom_call.1} parent=11 // pred_check
          %p462 = pneg %p262
        $region54: #{tpu_custom_call.1} parent=11 // pred_check_branch
          %464 = sbr.rel (%p462) target = $region56
        $region55: #{tpu_custom_call.1} parent=11 // pred_region
          _
        $region56: #{tpu_custom_call.1} parent=11 // pred_fallthru
          _
        // Predicated region
        $region57: #{tpu_custom_call.1} parent=11 // pred_check
          %p465 = pneg %p283
        $region58: #{tpu_custom_call.1} parent=11 // pred_check_branch
          %467 = sbr.rel (%p465) target = $region60
        $region59: #{tpu_custom_call.1} parent=11 // pred_region
          _
        $region60: #{tpu_custom_call.1} parent=11 // pred_fallthru
          _
        // Predicated region
        $region61: #{tpu_custom_call.1} parent=11 // pred_check
          %p468 = pneg %p304
        $region62: #{tpu_custom_call.1} parent=11 // pred_check_branch
          %470 = sbr.rel (%p468) target = $region64
        $region63: #{tpu_custom_call.1} parent=11 // pred_region
          %s472 = ssub.s32 1024, 1024
          %473 = vsyncadd [#allocation12], %s472
          %s474 = sshll.u32 [#allocation13], 4
          %s475 = int_to_ptr.vmem [resolvable:$true] %s474
          %480 = dma.hbm_to_vmem [thread:$0]  %s12, 1024, %s475, [#allocation12], 64, 64, 4
        $region64: #{tpu_custom_call.1} parent=11 // pred_fallthru
          _
        // Predicated region
        $region65: #{tpu_custom_call.1} parent=11 // pred_check
          %p481 = pneg %p325
        $region66: #{tpu_custom_call.1} parent=11 // pred_check_branch
          %483 = sbr.rel (%p481) target = $region68
        $region67: #{tpu_custom_call.1} parent=11 // pred_region
          _
        $region68: #{tpu_custom_call.1} parent=11 // pred_fallthru
          _
      $region12: #{tpu_custom_call.1} parent=5 // pred_fallthru
        _
      %p484 = scmp.lt.s32.totalorder %s31, 2
      // Predicated region
      $region69: #{tpu_custom_call.1} parent=5 // pred_check
        %p485 = pneg %p484
      $region70: #{tpu_custom_call.1} parent=5 // pred_check_branch
        %487 = sbr.rel (%p485) target = $region72
      $region71: #{tpu_custom_call.1} parent=5 // pred_region
        _
      $region72: #{tpu_custom_call.1} parent=5 // pred_fallthru
        _
      %p488 = scmp.le.s32.totalorder 1, %s31
      %p489 = scmp.lt.s32.totalorder %s31, 3
      %p490 = pnand %p488, %p489
      %p491 = pneg %p490
      // Predicated region
      $region73: #{tpu_custom_call.1} parent=5 // pred_check
        _
      $region74: #{tpu_custom_call.1} parent=5 // pred_check_branch
        %493 = sbr.rel (%p490) target = $region76
      $region75: #{tpu_custom_call.1} parent=5 // pred_region
        %s494 = ssub.s32 %s31, 1
        // Predicated region
        $region77: #{tpu_custom_call.1} parent=75 // pred_check
          %p495 = pneg %p52
        $region78: #{tpu_custom_call.1} parent=75 // pred_check_branch
          %497 = sbr.rel (%p495) target = $region80
        $region79: #{tpu_custom_call.1} parent=75 // pred_region
          %498 = dma.done [#allocation6], 3584
        $region80: #{tpu_custom_call.1} parent=75 // pred_fallthru
          _
        // Predicated region
        $region81: #{tpu_custom_call.1} parent=75 // pred_check
          %p499 = pneg %p94
        $region82: #{tpu_custom_call.1} parent=75 // pred_check_branch
          %501 = sbr.rel (%p499) target = $region84
        $region83: #{tpu_custom_call.1} parent=75 // pred_region
          %502 = dma.done [#allocation9], 512
        $region84: #{tpu_custom_call.1} parent=75 // pred_fallthru
          _
        // Predicated region
        $region85: #{tpu_custom_call.1} parent=75 // pred_check
          %p503 = pneg %p115
        $region86: #{tpu_custom_call.1} parent=75 // pred_check_branch
          %505 = sbr.rel (%p503) target = $region88
        $region87: #{tpu_custom_call.1} parent=75 // pred_region
          %506 = dma.done [#allocation9], 10240
        $region88: #{tpu_custom_call.1} parent=75 // pred_fallthru
          _
        // Predicated region
        $region89: #{tpu_custom_call.1} parent=75 // pred_check
          %p507 = pneg %p241
        $region90: #{tpu_custom_call.1} parent=75 // pred_check_branch
          %509 = sbr.rel (%p507) target = $region92
        $region91: #{tpu_custom_call.1} parent=75 // pred_region
          %510 = dma.done [#allocation12], 5120
        $region92: #{tpu_custom_call.1} parent=75 // pred_fallthru
          _
        // Predicated region
        $region93: #{tpu_custom_call.1} parent=75 // pred_check
          %p511 = pneg %p304
        $region94: #{tpu_custom_call.1} parent=75 // pred_check_branch
          %513 = sbr.rel (%p511) target = $region96
        $region95: #{tpu_custom_call.1} parent=75 // pred_region
          %514 = dma.done [#allocation12], 1024
        $region96: #{tpu_custom_call.1} parent=75 // pred_fallthru
          _
        %p515 = pneg %p52
        %p516 = pneg %p49
        %p517 = pneg %p73
        %p518 = pneg %p70
        %p519 = pneg %p94
        %p520 = pneg %p91
        %p521 = pneg %p115
        %p522 = pneg %p112
        %p523 = pneg %p136
        %p524 = pneg %p133
        %p525 = pneg %p157
        %p526 = pneg %p154
        %p527 = pneg %p178
        %p528 = pneg %p175
        %p529 = pneg %p199
        %p530 = pneg %p196
        %p531 = pneg %p220
        %p532 = pneg %p217
        %p533 = pneg %p241
        %p534 = pneg %p238
        %p535 = pneg %p262
        %p536 = pneg %p259
        %p537 = pneg %p283
        %p538 = pneg %p280
        %p539 = pneg %p304
        %p540 = pneg %p301
        %p541 = pneg %p325
        %p542 = pneg %p322
        %p543 = pneg %p351
        %p544 = pneg %p348
        %s545 = sand.u32 %s338, 1
        %s546 = scalar_lea.sflag [#allocation7], %s545
        %s547 = sand.u32 %s338, 1
        %s548 = smul.addr %s547, 104
        %s549 = scalar_lea.vmem [#allocation14], %s548
        %p550 = pneg %p377
        %p551 = pneg %p374
        %s552 = sand.u32 %s364, 1
        %s553 = scalar_lea.sflag [#allocation16], %s552
        %s554 = sand.u32 %s364, 1
        %s555 = smul.addr %s554, 104
        %s556 = scalar_lea.vmem [#allocation15], %s555
        %s557 = smul.u32 13, %s36
        %s558 = smul.u32 13, %s36
        %s560 = smul.u32 %s36, 104
        %s561 = scalar_lea.vmem [#allocation5], %s560
        %v562 = vld [vmem:[%s561] sm:$0xff]
        %v563 = vld [vmem:[%s561 + $0x8] sm:$0xff]
        %v564 = vld [vmem:[%s561 + $0x10] sm:$0xff]
        %v565 = vld [vmem:[%s561 + $0x18] sm:$0xff]
        %v566 = vld [vmem:[%s561 + $0x20] sm:$0xff]
        %v567 = vld [vmem:[%s561 + $0x28] sm:$0xff]
        %v568 = vld [vmem:[%s561 + $0x30] sm:$0xff]
        %v569 = vld [vmem:[%s561 + $0x38] sm:$0xff]
        %v570 = vld [vmem:[%s561 + $0x40] sm:$0xff]
        %v571 = vld [vmem:[%s561 + $0x48] sm:$0xff]
        %v572 = vld [vmem:[%s561 + $0x50] sm:$0xff]
        %v573 = vld [vmem:[%s561 + $0x58] sm:$0xff]
        %v574 = vld [vmem:[%s561 + $0x60] sm:$0xff]
        %v575 = vld [vmem:[%s561 + $0x68] sm:$0xff]
        %v576 = vld [vmem:[%s561 + $0x70] sm:$0xff]
        %s577 = scalar_lea.vmem %s1, %s560
        %v578 = vld [vmem:[%s577] sm:$0xff]
        %v579 = vld [vmem:[%s577 + $0x8] sm:$0xff]
        %v580 = vld [vmem:[%s577 + $0x10] sm:$0xff]
        %v581 = vld [vmem:[%s577 + $0x18] sm:$0xff]
        %v582 = vld [vmem:[%s577 + $0x20] sm:$0xff]
        %v583 = vld [vmem:[%s577 + $0x28] sm:$0xff]
        %v584 = vld [vmem:[%s577 + $0x30] sm:$0xff]
        %v585 = vld [vmem:[%s577 + $0x38] sm:$0xff]
        %v586 = vld [vmem:[%s577 + $0x40] sm:$0xff]
        %v587 = vld [vmem:[%s577 + $0x48] sm:$0xff]
        %v588 = vld [vmem:[%s577 + $0x50] sm:$0xff]
        %v589 = vld [vmem:[%s577 + $0x58] sm:$0xff]
        %v590 = vld [vmem:[%s577 + $0x60] sm:$0xff]
        %v591 = vld [vmem:[%s577 + $0x68] sm:$0xff]
        %v592 = vld [vmem:[%s577 + $0x70] sm:$0xff]
        %vm593 = vcmask 269312
        %v594 = vsel %vm593, %v578, -inf
        %595 = vmax.xlane.f32.xlu0 %v594
        %v596 = vpop.xlane.xlu0 %595
        %v597 = vsel %vm593, %v579, -inf
        %598 = vmax.xlane.f32.xlu0 %v597
        %v599 = vpop.xlane.xlu0 %598
        %v600 = vsel %vm593, %v580, -inf
        %601 = vmax.xlane.f32.xlu0 %v600
        %v602 = vpop.xlane.xlu0 %601
        %v603 = vsel %vm593, %v581, -inf
        %604 = vmax.xlane.f32.xlu0 %v603
        %v605 = vpop.xlane.xlu0 %604
        %v606 = vsel %vm593, %v582, -inf
        %607 = vmax.xlane.f32.xlu0 %v606
        %v608 = vpop.xlane.xlu0 %607
        %v609 = vsel %vm593, %v583, -inf
        %610 = vmax.xlane.f32.xlu0 %v609
        %v611 = vpop.xlane.xlu0 %610
        %v612 = vsel %vm593, %v584, -inf
        %613 = vmax.xlane.f32.xlu0 %v612
        %v614 = vpop.xlane.xlu0 %613
        %v615 = vsel %vm593, %v585, -inf
        %616 = vmax.xlane.f32.xlu0 %v615
        %v617 = vpop.xlane.xlu0 %616
        %v618 = vsel %vm593, %v586, -inf
        %619 = vmax.xlane.f32.xlu0 %v618
        %v620 = vpop.xlane.xlu0 %619
        %v621 = vsel %vm593, %v587, -inf
        %622 = vmax.xlane.f32.xlu0 %v621
        %v623 = vpop.xlane.xlu0 %622
        %v624 = vsel %vm593, %v588, -inf
        %625 = vmax.xlane.f32.xlu0 %v624
        %v626 = vpop.xlane.xlu0 %625
        %v627 = vsel %vm593, %v589, -inf
        %628 = vmax.xlane.f32.xlu0 %v627
        %v629 = vpop.xlane.xlu0 %628
        %v630 = vsel %vm593, %v590, -inf
        %631 = vmax.xlane.f32.xlu0 %v630
        %v632 = vpop.xlane.xlu0 %631
        %v633 = vsel %vm593, %v591, -inf
        %634 = vmax.xlane.f32.xlu0 %v633
        %v635 = vpop.xlane.xlu0 %634
        %v636 = vsel %vm593, %v592, -inf
        %637 = vmax.xlane.f32.xlu0 %v636
        %v638 = vpop.xlane.xlu0 %637
        %vm639 = vcmp.eq.f32.partialorder %v578, %v596
        %vm640 = vcmp.eq.f32.partialorder %v579, %v599
        %vm641 = vcmp.eq.f32.partialorder %v580, %v602
        %vm642 = vcmp.eq.f32.partialorder %v581, %v605
        %vm643 = vcmp.eq.f32.partialorder %v582, %v608
        %vm644 = vcmp.eq.f32.partialorder %v583, %v611
        %vm645 = vcmp.eq.f32.partialorder %v584, %v614
        %vm646 = vcmp.eq.f32.partialorder %v585, %v617
        %vm647 = vcmp.eq.f32.partialorder %v586, %v620
        %vm648 = vcmp.eq.f32.partialorder %v587, %v623
        %vm649 = vcmp.eq.f32.partialorder %v588, %v626
        %vm650 = vcmp.eq.f32.partialorder %v589, %v629
        %vm651 = vcmp.eq.f32.partialorder %v590, %v632
        %vm652 = vcmp.eq.f32.partialorder %v591, %v635
        %vm653 = vcmp.eq.f32.partialorder %v592, %v638
        %v654 = vsel %vm639, 1, 0
        %v655 = vsel %vm640, 1, 0
        %v656 = vsel %vm641, 1, 0
        %v657 = vsel %vm642, 1, 0
        %v658 = vsel %vm643, 1, 0
        %v659 = vsel %vm644, 1, 0
        %v660 = vsel %vm645, 1, 0
        %v661 = vsel %vm646, 1, 0
        %v662 = vsel %vm647, 1, 0
        %v663 = vsel %vm648, 1, 0
        %v664 = vsel %vm649, 1, 0
        %v665 = vsel %vm650, 1, 0
        %v666 = vsel %vm651, 1, 0
        %v667 = vsel %vm652, 1, 0
        %v668 = vsel %vm653, 1, 0
        %v669 = vcvt.s32.f32 %v654
        %v670 = vcvt.s32.f32 %v655
        %v671 = vcvt.s32.f32 %v656
        %v672 = vcvt.s32.f32 %v657
        %v673 = vcvt.s32.f32 %v658
        %v674 = vcvt.s32.f32 %v659
        %v675 = vcvt.s32.f32 %v660
        %v676 = vcvt.s32.f32 %v661
        %v677 = vcvt.s32.f32 %v662
        %v678 = vcvt.s32.f32 %v663
        %v679 = vcvt.s32.f32 %v664
        %v680 = vcvt.s32.f32 %v665
        %v681 = vcvt.s32.f32 %v666
        %v682 = vcvt.s32.f32 %v667
        %v683 = vcvt.s32.f32 %v668
        %v684 = vsel %vm593, %v669, 0.0
        %685 = vadd.xlane.f32.xlu0 %v684
        %v686 = vpop.xlane.xlu0 %685
        %v687 = vsel %vm593, %v670, 0.0
        %688 = vadd.xlane.f32.xlu0 %v687
        %v689 = vpop.xlane.xlu0 %688
        %v690 = vsel %vm593, %v671, 0.0
        %691 = vadd.xlane.f32.xlu0 %v690
        %v692 = vpop.xlane.xlu0 %691
        %v693 = vsel %vm593, %v672, 0.0
        %694 = vadd.xlane.f32.xlu0 %v693
        %v695 = vpop.xlane.xlu0 %694
        %v696 = vsel %vm593, %v673, 0.0
        %697 = vadd.xlane.f32.xlu0 %v696
        %v698 = vpop.xlane.xlu0 %697
        %v699 = vsel %vm593, %v674, 0.0
        %700 = vadd.xlane.f32.xlu0 %v699
        %v701 = vpop.xlane.xlu0 %700
        %v702 = vsel %vm593, %v675, 0.0
        %703 = vadd.xlane.f32.xlu0 %v702
        %v704 = vpop.xlane.xlu0 %703
        %v705 = vsel %vm593, %v676, 0.0
        %706 = vadd.xlane.f32.xlu0 %v705
        %v707 = vpop.xlane.xlu0 %706
        %v708 = vsel %vm593, %v677, 0.0
        %709 = vadd.xlane.f32.xlu0 %v708
        %v710 = vpop.xlane.xlu0 %709
        %v711 = vsel %vm593, %v678, 0.0
        %712 = vadd.xlane.f32.xlu0 %v711
        %v713 = vpop.xlane.xlu0 %712
        %v714 = vsel %vm593, %v679, 0.0
        %715 = vadd.xlane.f32.xlu0 %v714
        %v716 = vpop.xlane.xlu0 %715
        %v717 = vsel %vm593, %v680, 0.0
        %718 = vadd.xlane.f32.xlu0 %v717
        %v719 = vpop.xlane.xlu0 %718
        %v720 = vsel %vm593, %v681, 0.0
        %721 = vadd.xlane.f32.xlu0 %v720
        %v722 = vpop.xlane.xlu0 %721
        %v723 = vsel %vm593, %v682, 0.0
        %724 = vadd.xlane.f32.xlu0 %v723
        %v725 = vpop.xlane.xlu0 %724
        %v726 = vsel %vm593, %v683, 0.0
        %727 = vadd.xlane.f32.xlu0 %v726
        %v728 = vpop.xlane.xlu0 %727
        %v729 = vsel %vm639, -inf, %v578
        %v730 = vsel %vm640, -inf, %v579
        %v731 = vsel %vm641, -inf, %v580
        %v732 = vsel %vm642, -inf, %v581
        %v733 = vsel %vm643, -inf, %v582
        %v734 = vsel %vm644, -inf, %v583
        %v735 = vsel %vm645, -inf, %v584
        %v736 = vsel %vm646, -inf, %v585
        %v737 = vsel %vm647, -inf, %v586
        %v738 = vsel %vm648, -inf, %v587
        %v739 = vsel %vm649, -inf, %v588
        %v740 = vsel %vm650, -inf, %v589
        %v741 = vsel %vm651, -inf, %v590
        %v742 = vsel %vm652, -inf, %v591
        %v743 = vsel %vm653, -inf, %v592
        %v744 = vsel %vm593, %v729, -inf
        %745 = vmax.xlane.f32.xlu0 %v744
        %v746 = vpop.xlane.xlu0 %745
        %v747 = vsel %vm593, %v730, -inf
        %748 = vmax.xlane.f32.xlu0 %v747
        %v749 = vpop.xlane.xlu0 %748
        %v750 = vsel %vm593, %v731, -inf
        %751 = vmax.xlane.f32.xlu0 %v750
        %v752 = vpop.xlane.xlu0 %751
        %v753 = vsel %vm593, %v732, -inf
        %754 = vmax.xlane.f32.xlu0 %v753
        %v755 = vpop.xlane.xlu0 %754
        %v756 = vsel %vm593, %v733, -inf
        %757 = vmax.xlane.f32.xlu0 %v756
        %v758 = vpop.xlane.xlu0 %757
        %v759 = vsel %vm593, %v734, -inf
        %760 = vmax.xlane.f32.xlu0 %v759
        %v761 = vpop.xlane.xlu0 %760
        %v762 = vsel %vm593, %v735, -inf
        %763 = vmax.xlane.f32.xlu0 %v762
        %v764 = vpop.xlane.xlu0 %763
        %v765 = vsel %vm593, %v736, -inf
        %766 = vmax.xlane.f32.xlu0 %v765
        %v767 = vpop.xlane.xlu0 %766
        %v768 = vsel %vm593, %v737, -inf
        %769 = vmax.xlane.f32.xlu0 %v768
        %v770 = vpop.xlane.xlu0 %769
        %v771 = vsel %vm593, %v738, -inf
        %772 = vmax.xlane.f32.xlu0 %v771
        %v773 = vpop.xlane.xlu0 %772
        %v774 = vsel %vm593, %v739, -inf
        %775 = vmax.xlane.f32.xlu0 %v774
        %v776 = vpop.xlane.xlu0 %775
        %v777 = vsel %vm593, %v740, -inf
        %778 = vmax.xlane.f32.xlu0 %v777
        %v779 = vpop.xlane.xlu0 %778
        %v780 = vsel %vm593, %v741, -inf
        %781 = vmax.xlane.f32.xlu0 %v780
        %v782 = vpop.xlane.xlu0 %781
        %v783 = vsel %vm593, %v742, -inf
        %784 = vmax.xlane.f32.xlu0 %v783
        %v785 = vpop.xlane.xlu0 %784
        %v786 = vsel %vm593, %v743, -inf
        %787 = vmax.xlane.f32.xlu0 %v786
        %v788 = vpop.xlane.xlu0 %787
        %vm789 = vcmp.gt.f32.partialorder %v686, 1.5
        %vm790 = vcmp.gt.f32.partialorder %v689, 1.5
        %vm791 = vcmp.gt.f32.partialorder %v692, 1.5
        %vm792 = vcmp.gt.f32.partialorder %v695, 1.5
        %vm793 = vcmp.gt.f32.partialorder %v698, 1.5
        %vm794 = vcmp.gt.f32.partialorder %v701, 1.5
        %vm795 = vcmp.gt.f32.partialorder %v704, 1.5
        %vm796 = vcmp.gt.f32.partialorder %v707, 1.5
        %vm797 = vcmp.gt.f32.partialorder %v710, 1.5
        %vm798 = vcmp.gt.f32.partialorder %v713, 1.5
        %vm799 = vcmp.gt.f32.partialorder %v716, 1.5
        %vm800 = vcmp.gt.f32.partialorder %v719, 1.5
        %vm801 = vcmp.gt.f32.partialorder %v722, 1.5
        %vm802 = vcmp.gt.f32.partialorder %v725, 1.5
        %vm803 = vcmp.gt.f32.partialorder %v728, 1.5
        %v804 = vsel %vm789, %v596, %v746
        %v805 = vsel %vm790, %v599, %v749
        %v806 = vsel %vm791, %v602, %v752
        %v807 = vsel %vm792, %v605, %v755
        %v808 = vsel %vm793, %v608, %v758
        %v809 = vsel %vm794, %v611, %v761
        %v810 = vsel %vm795, %v614, %v764
        %v811 = vsel %vm796, %v617, %v767
        %v812 = vsel %vm797, %v620, %v770
        %v813 = vsel %vm798, %v623, %v773
        %v814 = vsel %vm799, %v626, %v776
        %v815 = vsel %vm800, %v629, %v779
        %v816 = vsel %vm801, %v632, %v782
        %v817 = vsel %vm802, %v635, %v785
        %v818 = vsel %vm803, %v638, %v788
        %v819 = vadd.f32 %v804, 1e-05
        %v820 = vadd.f32 %v805, 1e-05
        %v821 = vadd.f32 %v806, 1e-05
        %v822 = vadd.f32 %v807, 1e-05
        %v823 = vadd.f32 %v808, 1e-05
        %v824 = vadd.f32 %v809, 1e-05
        %v825 = vadd.f32 %v810, 1e-05
        %v826 = vadd.f32 %v811, 1e-05
        %v827 = vadd.f32 %v812, 1e-05
        %v828 = vadd.f32 %v813, 1e-05
        %v829 = vadd.f32 %v814, 1e-05
        %v830 = vadd.f32 %v815, 1e-05
        %v831 = vadd.f32 %v816, 1e-05
        %v832 = vadd.f32 %v817, 1e-05
        %v833 = vadd.f32 %v818, 1e-05
        %v834 = vrcp.pop %v819
        %v835 = vmul.f32 %v596, %v834
        %v836 = vrcp.pop %v820
        %v837 = vmul.f32 %v599, %v836
        %v838 = vrcp.pop %v821
        %v839 = vmul.f32 %v602, %v838
        %v840 = vrcp.pop %v822
        %v841 = vmul.f32 %v605, %v840
        %v842 = vrcp.pop %v823
        %v843 = vmul.f32 %v608, %v842
        %v844 = vrcp.pop %v824
        %v845 = vmul.f32 %v611, %v844
        %v846 = vrcp.pop %v825
        %v847 = vmul.f32 %v614, %v846
        %v848 = vrcp.pop %v826
        %v849 = vmul.f32 %v617, %v848
        %v850 = vrcp.pop %v827
        %v851 = vmul.f32 %v620, %v850
        %v852 = vrcp.pop %v828
        %v853 = vmul.f32 %v623, %v852
        %v854 = vrcp.pop %v829
        %v855 = vmul.f32 %v626, %v854
        %v856 = vrcp.pop %v830
        %v857 = vmul.f32 %v629, %v856
        %v858 = vrcp.pop %v831
        %v859 = vmul.f32 %v632, %v858
        %v860 = vrcp.pop %v832
        %v861 = vmul.f32 %v635, %v860
        %v862 = vrcp.pop %v833
        %v863 = vmul.f32 %v638, %v862
        %vm864 = vcmp.ne.f32.partialorder %v835, %v835
        %vm865 = vcmp.ne.f32.partialorder %v837, %v837
        %vm866 = vcmp.ne.f32.partialorder %v839, %v839
        %vm867 = vcmp.ne.f32.partialorder %v841, %v841
        %vm868 = vcmp.ne.f32.partialorder %v843, %v843
        %vm869 = vcmp.ne.f32.partialorder %v845, %v845
        %vm870 = vcmp.ne.f32.partialorder %v847, %v847
        %vm871 = vcmp.ne.f32.partialorder %v849, %v849
        %vm872 = vcmp.ne.f32.partialorder %v851, %v851
        %vm873 = vcmp.ne.f32.partialorder %v853, %v853
        %vm874 = vcmp.ne.f32.partialorder %v855, %v855
        %vm875 = vcmp.ne.f32.partialorder %v857, %v857
        %vm876 = vcmp.ne.f32.partialorder %v859, %v859
        %vm877 = vcmp.ne.f32.partialorder %v861, %v861
        %vm878 = vcmp.ne.f32.partialorder %v863, %v863
        %v879 = vsel %vm864, 0.0, %v835
        %v880 = vsel %vm865, 0.0, %v837
        %v881 = vsel %vm866, 0.0, %v839
        %v882 = vsel %vm867, 0.0, %v841
        %v883 = vsel %vm868, 0.0, %v843
        %v884 = vsel %vm869, 0.0, %v845
        %v885 = vsel %vm870, 0.0, %v847
        %v886 = vsel %vm871, 0.0, %v849
        %v887 = vsel %vm872, 0.0, %v851
        %v888 = vsel %vm873, 0.0, %v853
        %v889 = vsel %vm874, 0.0, %v855
        %v890 = vsel %vm875, 0.0, %v857
        %v891 = vsel %vm876, 0.0, %v859
        %v892 = vsel %vm877, 0.0, %v861
        %v893 = vsel %vm878, 0.0, %v863
        %v894 = vmax.f32 %v879, 0.0
        %v895 = vmax.f32 %v880, 0.0
        %v896 = vmax.f32 %v881, 0.0
        %v897 = vmax.f32 %v882, 0.0
        %v898 = vmax.f32 %v883, 0.0
        %v899 = vmax.f32 %v884, 0.0
        %v900 = vmax.f32 %v885, 0.0
        %v901 = vmax.f32 %v886, 0.0
        %v902 = vmax.f32 %v887, 0.0
        %v903 = vmax.f32 %v888, 0.0
        %v904 = vmax.f32 %v889, 0.0
        %v905 = vmax.f32 %v890, 0.0
        %v906 = vmax.f32 %v891, 0.0
        %v907 = vmax.f32 %v892, 0.0
        %v908 = vmax.f32 %v893, 0.0
        %v909 = vmin.f32 %v894, 49.0
        %v910 = vmin.f32 %v895, 49.0
        %v911 = vmin.f32 %v896, 49.0
        %v912 = vmin.f32 %v897, 49.0
        %v913 = vmin.f32 %v898, 49.0
        %v914 = vmin.f32 %v899, 49.0
        %v915 = vmin.f32 %v900, 49.0
        %v916 = vmin.f32 %v901, 49.0
        %v917 = vmin.f32 %v902, 49.0
        %v918 = vmin.f32 %v903, 49.0
        %v919 = vmin.f32 %v904, 49.0
        %v920 = vmin.f32 %v905, 49.0
        %v921 = vmin.f32 %v906, 49.0
        %v922 = vmin.f32 %v907, 49.0
        %v923 = vmin.f32 %v908, 49.0
        %v924 = vcvt.f32.s32.to.zero.pseudo %v909
        %v925 = vcvt.f32.s32.to.zero.pseudo %v910
        %v926 = vcvt.f32.s32.to.zero.pseudo %v911
        %v927 = vcvt.f32.s32.to.zero.pseudo %v912
        %v928 = vcvt.f32.s32.to.zero.pseudo %v913
        %v929 = vcvt.f32.s32.to.zero.pseudo %v914
        %v930 = vcvt.f32.s32.to.zero.pseudo %v915
        %v931 = vcvt.f32.s32.to.zero.pseudo %v916
        %v932 = vcvt.f32.s32.to.zero.pseudo %v917
        %v933 = vcvt.f32.s32.to.zero.pseudo %v918
        %v934 = vcvt.f32.s32.to.zero.pseudo %v919
        %v935 = vcvt.f32.s32.to.zero.pseudo %v920
        %v936 = vcvt.f32.s32.to.zero.pseudo %v921
        %v937 = vcvt.f32.s32.to.zero.pseudo %v922
        %v938 = vcvt.f32.s32.to.zero.pseudo %v923
        %v939 = vlaneseq
        %v940 = vand.u32 %v939, 127
        %vm941 = vcmp.eq.s32.totalorder %v940, %v924
        %vm942 = vcmp.eq.s32.totalorder %v940, %v925
        %vm943 = vcmp.eq.s32.totalorder %v940, %v926
        %vm944 = vcmp.eq.s32.totalorder %v940, %v927
        %vm945 = vcmp.eq.s32.totalorder %v940, %v928
        %vm946 = vcmp.eq.s32.totalorder %v940, %v929
        %vm947 = vcmp.eq.s32.totalorder %v940, %v930
        %vm948 = vcmp.eq.s32.totalorder %v940, %v931
        %vm949 = vcmp.eq.s32.totalorder %v940, %v932
        %vm950 = vcmp.eq.s32.totalorder %v940, %v933
        %vm951 = vcmp.eq.s32.totalorder %v940, %v934
        %vm952 = vcmp.eq.s32.totalorder %v940, %v935
        %vm953 = vcmp.eq.s32.totalorder %v940, %v936
        %vm954 = vcmp.eq.s32.totalorder %v940, %v937
        %vm955 = vcmp.eq.s32.totalorder %v940, %v938
        %v956 = vsel %vm941, 1, 0
        %v957 = vsel %vm942, 1, 0
        %v958 = vsel %vm943, 1, 0
        %v959 = vsel %vm944, 1, 0
        %v960 = vsel %vm945, 1, 0
        %v961 = vsel %vm946, 1, 0
        %v962 = vsel %vm947, 1, 0
        %v963 = vsel %vm948, 1, 0
        %v964 = vsel %vm949, 1, 0
        %v965 = vsel %vm950, 1, 0
        %v966 = vsel %vm951, 1, 0
        %v967 = vsel %vm952, 1, 0
        %v968 = vsel %vm953, 1, 0
        %v969 = vsel %vm954, 1, 0
        %v970 = vsel %vm955, 1, 0
        %v971 = vcvt.s32.f32 %v956
        %v972 = vcvt.s32.f32 %v957
        %v973 = vcvt.s32.f32 %v958
        %v974 = vcvt.s32.f32 %v959
        %v975 = vcvt.s32.f32 %v960
        %v976 = vcvt.s32.f32 %v961
        %v977 = vcvt.s32.f32 %v962
        %v978 = vcvt.s32.f32 %v963
        %v979 = vcvt.s32.f32 %v964
        %v980 = vcvt.s32.f32 %v965
        %v981 = vcvt.s32.f32 %v966
        %v982 = vcvt.s32.f32 %v967
        %v983 = vcvt.s32.f32 %v968
        %v984 = vcvt.s32.f32 %v969
        %v985 = vcvt.s32.f32 %v970
        %v986 = vpack.c.bf16 %v972, %v971
        %v987 = vpack.c.bf16 %v974, %v973
        %v988 = vpack.c.bf16 %v976, %v975
        %v989 = vpack.c.bf16 %v978, %v977
        %v990 = vpack.c.bf16 %v980, %v979
        %v991 = vpack.c.bf16 %v982, %v981
        %v992 = vpack.c.bf16 %v984, %v983
        %v993 = vpack.c.bf16 %v985, %v985
        %v994 = vld [vmem:[#allocation8] sm:$0xf]
        %v995 = vld [vmem:[#allocation8 + $0x4] sm:$0xf]
        %v996 = vld [vmem:[#allocation8 + $0x8] sm:$0xf]
        %v997 = vld [vmem:[#allocation8 + $0xc] sm:$0xf]
        %v998 = vld [vmem:[#allocation8 + $0x10] sm:$0xf]
        %v999 = vld [vmem:[#allocation8 + $0x14] sm:$0xf]
        %v1000 = vld [vmem:[#allocation8 + $0x18] sm:$0xf]
        %v1001 = vld [vmem:[#allocation8 + $0x1c] sm:$0xf]
        %v1010 = vunpack.c.l.b16 %v994
        %v1011 = vunpack.c.l.b16 %v995
        %v1012 = vunpack.c.l.b16 %v996
        %v1013 = vunpack.c.l.b16 %v997
        %v1014 = vunpack.c.l.b16 %v998
        %v1015 = vunpack.c.l.b16 %v999
        %v1016 = vunpack.c.l.b16 %v1000
        %v1017 = vunpack.c.l.b16 %v1001
        %v1018 = vpack.c.b16 %v1011, %v1010
        %v1019 = vpack.c.b16 %v1013, %v1012
        %v1020 = vpack.c.b16 %v1015, %v1014
        %v1021 = vpack.c.b16 %v1017, %v1016
        %vm1026 = vcmask 523264
        %v1028 = vsel %vm1026, %v986, 0
        %v1031 = vsel %vm1026, %v987, 0
        %v1034 = vsel %vm1026, %v988, 0
        %v1037 = vsel %vm1026, %v989, 0
        %v1040 = vsel %vm1026, %v990, 0
        %v1043 = vsel %vm1026, %v991, 0
        %v1046 = vsel %vm1026, %v992, 0
        %v1049 = vsel %vm1026, %v993, 0
        %1051 = vmatprep.subr.bf16.mxu0 0
        %1052 = vmatpush1.bf16.msra.mxu0 %v1018
        %1053 = vmatprep.subr.bf16.mxu0 0
        %1054 = vmatpush1.bf16.msra.mxu0 %v1019
        %1055 = vmatprep.subr.bf16.mxu0 0
        %1056 = vmatpush1.bf16.msra.mxu0 %v1020
        %1057 = vmatprep.subr.bf16.mxu0 0
        %1058 = vmatpush1.bf16.msra.mxu0 %v1021
        %1059 = vmatprep.subr.bf16.mxu0 0
        %1060 = vmatpush1.bf16.msra.mxu0 0
        %1061 = vmatprep.subr.bf16.mxu0 0
        %1062 = vmatpush1.bf16.msra.mxu0 0
        %1063 = vmatprep.subr.bf16.mxu0 0
        %1064 = vmatpush1.bf16.msra.mxu0 0
        %1065 = vmatprep.subr.bf16.mxu0 0
        %1066 = vmatpush1.bf16.msra.mxu0 0
        %1067 = vmatprep.subr.bf16.mxu0 0
        %1068 = vmatpush1.bf16.msra.mxu0 0
        %1069 = vmatprep.subr.bf16.mxu0 0
        %1070 = vmatpush1.bf16.msra.mxu0 0
        %1071 = vmatprep.subr.bf16.mxu0 0
        %1072 = vmatpush1.bf16.msra.mxu0 0
        %1073 = vmatprep.subr.bf16.mxu0 0
        %1074 = vmatpush1.bf16.msra.mxu0 0
        %1075 = vmatprep.subr.bf16.mxu0 0
        %1076 = vmatpush1.bf16.msra.mxu0 0
        %1077 = vmatprep.subr.bf16.mxu0 0
        %1078 = vmatpush1.bf16.msra.mxu0 0
        %1079 = vmatprep.subr.bf16.mxu0 0
        %1080 = vmatpush1.bf16.msra.mxu0 0
        %1081 = vmatprep.subr.bf16.mxu0 0
        %1082 = vmatpush1.bf16.msra.mxu0 0
        %1083 = vmatprep.mubr.bf16.mxu0 0
        %1084 = vmatmul.mubr.bf16.gmra.mrb[0].mxu0 %v1028
        %v1085 = vpop.f32.mrb[0].mxu0
        %v1086 = vadd.f32 0.0, %v1085
        %v1087 = vpop.f32.mrb[0].mxu0
        %v1088 = vpop.f32.mrb[0].mxu0
        %v1089 = vadd.f32 0.0, %v1088
        %v1090 = vpop.f32.mrb[0].mxu0
        %1091 = vmatprep.mubr.bf16.mxu0 0
        %1092 = vmatmul.mubr.bf16.gmra.mrb[0].mxu0 %v1031
        %v1093 = vpop.f32.mrb[0].mxu0
        %v1094 = vadd.f32 0.0, %v1093
        %v1095 = vpop.f32.mrb[0].mxu0
        %v1096 = vpop.f32.mrb[0].mxu0
        %v1097 = vadd.f32 0.0, %v1096
        %v1098 = vpop.f32.mrb[0].mxu0
        %1099 = vmatprep.mubr.bf16.mxu0 0
        %1100 = vmatmul.mubr.bf16.gmra.mrb[0].mxu0 %v1034
        %v1101 = vpop.f32.mrb[0].mxu0
        %v1102 = vadd.f32 0.0, %v1101
        %v1103 = vpop.f32.mrb[0].mxu0
        %v1104 = vpop.f32.mrb[0].mxu0
        %v1105 = vadd.f32 0.0, %v1104
        %v1106 = vpop.f32.mrb[0].mxu0
        %1107 = vmatprep.mubr.bf16.mxu0 0
        %1108 = vmatmul.mubr.bf16.gmra.mrb[0].mxu0 %v1037
        %v1109 = vpop.f32.mrb[0].mxu0
        %v1110 = vadd.f32 0.0, %v1109
        %v1111 = vpop.f32.mrb[0].mxu0
        %v1112 = vpop.f32.mrb[0].mxu0
        %v1113 = vadd.f32 0.0, %v1112
        %v1114 = vpop.f32.mrb[0].mxu0
        %1115 = vmatprep.mubr.bf16.mxu0 0
        %1116 = vmatmul.mubr.bf16.gmra.mrb[0].mxu0 %v1040
        %v1117 = vpop.f32.mrb[0].mxu0
        %v1118 = vadd.f32 0.0, %v1117
        %v1119 = vpop.f32.mrb[0].mxu0
        %v1120 = vpop.f32.mrb[0].mxu0
        %v1121 = vadd.f32 0.0, %v1120
        %v1122 = vpop.f32.mrb[0].mxu0
        %1123 = vmatprep.mubr.bf16.mxu0 0
        %1124 = vmatmul.mubr.bf16.gmra.mrb[0].mxu0 %v1043
        %v1125 = vpop.f32.mrb[0].mxu0
        %v1126 = vadd.f32 0.0, %v1125
        %v1127 = vpop.f32.mrb[0].mxu0
        %v1128 = vpop.f32.mrb[0].mxu0
        %v1129 = vadd.f32 0.0, %v1128
        %v1130 = vpop.f32.mrb[0].mxu0
        %1131 = vmatprep.mubr.bf16.mxu0 0
        %1132 = vmatmul.mubr.bf16.gmra.mrb[0].mxu0 %v1046
        %v1133 = vpop.f32.mrb[0].mxu0
        %v1134 = vadd.f32 0.0, %v1133
        %v1135 = vpop.f32.mrb[0].mxu0
        %v1136 = vpop.f32.mrb[0].mxu0
        %v1137 = vadd.f32 0.0, %v1136
        %v1138 = vpop.f32.mrb[0].mxu0
        %1139 = vmatprep.mubr.bf16.mxu0 0
        %1140 = vmatmul.mubr.bf16.gmra.mrb[0].mxu0 %v1049
        %v1141 = vpop.f32.mrb[0].mxu0
        %v1142 = vadd.f32 0.0, %v1141
        %v1143 = vpop.f32.mrb[0].mxu0
        %v1144 = vpop.f32.mrb[0].mxu0
        %v1145 = vpop.f32.mrb[0].mxu0
        %1146 = vdwg.mxu0
        %s1147 = ssub.s32 %s560, 8
        %v1148 = vlaneseq
        %v1149 = vshrl.u32 %v1148, 7
        %v1150 = vadd.s32 %v1149, 8
        %v1151 = vadd.s32 %v1149, 16
        %v1152 = vadd.s32 %v1149, 24
        %v1153 = vadd.s32 %v1149, 32
        %v1154 = vadd.s32 %v1149, 40
        %v1155 = vadd.s32 %v1149, 48
        %v1156 = vadd.s32 %v1149, 56
        %v1157 = vadd.s32 %v1149, 64
        %v1158 = vadd.s32 %v1149, 72
        %v1159 = vadd.s32 %v1149, 80
        %v1160 = vadd.s32 %v1149, 88
        %v1161 = vadd.s32 %v1149, 96
        %v1162 = vadd.s32 %v1149, 104
        %v1163 = vadd.s32 %v1149, 112
        %v1164 = vstv %s1147
        %v1165 = vadd.s32 %v1164, %v1149
        %v1166 = vadd.s32 %v1164, %v1150
        %v1167 = vadd.s32 %v1164, %v1151
        %v1168 = vadd.s32 %v1164, %v1152
        %v1169 = vadd.s32 %v1164, %v1153
        %v1170 = vadd.s32 %v1164, %v1154
        %v1171 = vadd.s32 %v1164, %v1155
        %v1172 = vadd.s32 %v1164, %v1156
        %v1173 = vadd.s32 %v1164, %v1157
        %v1174 = vadd.s32 %v1164, %v1158
        %v1175 = vadd.s32 %v1164, %v1159
        %v1176 = vadd.s32 %v1164, %v1160
        %v1177 = vadd.s32 %v1164, %v1161
        %v1178 = vadd.s32 %v1164, %v1162
        %v1179 = vadd.s32 %v1164, %v1163
        %vm1180 = vcmp.ge.s32.totalorder %v1165, 0
        %vm1181 = vcmp.ge.s32.totalorder %v1166, 0
        %vm1182 = vcmp.ge.s32.totalorder %v1167, 0
        %vm1183 = vcmp.ge.s32.totalorder %v1168, 0
        %vm1184 = vcmp.ge.s32.totalorder %v1169, 0
        %vm1185 = vcmp.ge.s32.totalorder %v1170, 0
        %vm1186 = vcmp.ge.s32.totalorder %v1171, 0
        %vm1187 = vcmp.ge.s32.totalorder %v1172, 0
        %vm1188 = vcmp.ge.s32.totalorder %v1173, 0
        %vm1189 = vcmp.ge.s32.totalorder %v1174, 0
        %vm1190 = vcmp.ge.s32.totalorder %v1175, 0
        %vm1191 = vcmp.ge.s32.totalorder %v1176, 0
        %vm1192 = vcmp.ge.s32.totalorder %v1177, 0
        %vm1193 = vcmp.ge.s32.totalorder %v1178, 0
        %vm1194 = vcmp.ge.s32.totalorder %v1179, 0
        %vm1195 = vcmp.lt.s32.totalorder %v1165, 200
        %vm1196 = vcmp.lt.s32.totalorder %v1166, 200
        %vm1197 = vcmp.lt.s32.totalorder %v1167, 200
        %vm1198 = vcmp.lt.s32.totalorder %v1168, 200
        %vm1199 = vcmp.lt.s32.totalorder %v1169, 200
        %vm1200 = vcmp.lt.s32.totalorder %v1170, 200
        %vm1201 = vcmp.lt.s32.totalorder %v1171, 200
        %vm1202 = vcmp.lt.s32.totalorder %v1172, 200
        %vm1203 = vcmp.lt.s32.totalorder %v1173, 200
        %vm1204 = vcmp.lt.s32.totalorder %v1174, 200
        %vm1205 = vcmp.lt.s32.totalorder %v1175, 200
        %vm1206 = vcmp.lt.s32.totalorder %v1176, 200
        %vm1207 = vcmp.lt.s32.totalorder %v1177, 200
        %vm1208 = vcmp.lt.s32.totalorder %v1178, 200
        %vm1209 = vcmp.lt.s32.totalorder %v1179, 200
        %vm1210 = vmand %vm1180, %vm1195
        %vm1211 = vmand %vm1181, %vm1196
        %vm1212 = vmand %vm1182, %vm1197
        %vm1213 = vmand %vm1183, %vm1198
        %vm1214 = vmand %vm1184, %vm1199
        %vm1215 = vmand %vm1185, %vm1200
        %vm1216 = vmand %vm1186, %vm1201
        %vm1217 = vmand %vm1187, %vm1202
        %vm1218 = vmand %vm1188, %vm1203
        %vm1219 = vmand %vm1189, %vm1204
        %vm1220 = vmand %vm1190, %vm1205
        %vm1221 = vmand %vm1191, %vm1206
        %vm1222 = vmand %vm1192, %vm1207
        %vm1223 = vmand %vm1193, %vm1208
        %vm1224 = vmand %vm1194, %vm1209
        %v1225 = vsel %vm1210, 1, 0
        %v1226 = vsel %vm1211, 1, 0
        %v1227 = vsel %vm1212, 1, 0
        %v1228 = vsel %vm1213, 1, 0
        %v1229 = vsel %vm1214, 1, 0
        %v1230 = vsel %vm1215, 1, 0
        %v1231 = vsel %vm1216, 1, 0
        %v1232 = vsel %vm1217, 1, 0
        %v1233 = vsel %vm1218, 1, 0
        %v1234 = vsel %vm1219, 1, 0
        %v1235 = vsel %vm1220, 1, 0
        %v1236 = vsel %vm1221, 1, 0
        %v1237 = vsel %vm1222, 1, 0
        %v1238 = vsel %vm1223, 1, 0
        %v1239 = vsel %vm1224, 1, 0
        %vm1240 = vcmp.eq.s32.totalorder %v1225, 1
        %vm1241 = vcmp.eq.s32.totalorder %v1226, 1
        %vm1242 = vcmp.eq.s32.totalorder %v1227, 1
        %vm1243 = vcmp.eq.s32.totalorder %v1228, 1
        %vm1244 = vcmp.eq.s32.totalorder %v1229, 1
        %vm1245 = vcmp.eq.s32.totalorder %v1230, 1
        %vm1246 = vcmp.eq.s32.totalorder %v1231, 1
        %vm1247 = vcmp.eq.s32.totalorder %v1232, 1
        %vm1248 = vcmp.eq.s32.totalorder %v1233, 1
        %vm1249 = vcmp.eq.s32.totalorder %v1234, 1
        %vm1250 = vcmp.eq.s32.totalorder %v1235, 1
        %vm1251 = vcmp.eq.s32.totalorder %v1236, 1
        %vm1252 = vcmp.eq.s32.totalorder %v1237, 1
        %vm1253 = vcmp.eq.s32.totalorder %v1238, 1
        %vm1254 = vcmp.eq.s32.totalorder %v1239, 1
        %v1255 = vsel %vm1240, %v1086, 0.0
        %v1256 = vsel %vm1241, %v1089, 0.0
        %v1257 = vsel %vm1242, %v1094, 0.0
        %v1258 = vsel %vm1243, %v1097, 0.0
        %v1259 = vsel %vm1244, %v1102, 0.0
        %v1260 = vsel %vm1245, %v1105, 0.0
        %v1261 = vsel %vm1246, %v1110, 0.0
        %v1262 = vsel %vm1247, %v1113, 0.0
        %v1263 = vsel %vm1248, %v1118, 0.0
        %v1264 = vsel %vm1249, %v1121, 0.0
        %v1265 = vsel %vm1250, %v1126, 0.0
        %v1266 = vsel %vm1251, %v1129, 0.0
        %v1267 = vsel %vm1252, %v1134, 0.0
        %v1268 = vsel %vm1253, %v1137, 0.0
        %v1269 = vsel %vm1254, %v1142, 0.0
        %v1270 = vpack.c.bf16 %v563, %v562
        %v1271 = vpack.c.bf16 %v565, %v564
        %v1272 = vpack.c.bf16 %v567, %v566
        %v1273 = vpack.c.bf16 %v569, %v568
        %v1274 = vpack.c.bf16 %v571, %v570
        %v1275 = vpack.c.bf16 %v573, %v572
        %v1276 = vpack.c.bf16 %v575, %v574
        %v1277 = vpack.c.bf16 %v576, %v576
        %v1278 = vpack.c.bf16 %v1256, %v1255
        %v1279 = vpack.c.bf16 %v1258, %v1257
        %v1280 = vpack.c.bf16 %v1260, %v1259
        %v1281 = vpack.c.bf16 %v1262, %v1261
        %v1282 = vpack.c.bf16 %v1264, %v1263
        %v1283 = vpack.c.bf16 %v1266, %v1265
        %v1284 = vpack.c.bf16 %v1268, %v1267
        %v1285 = vpack.c.bf16 %v1269, %v1269
        %v1302 = vunpack.c.l.b16 %v1270
        %v1303 = vunpack.c.l.b16 %v1278
        %v1304 = vunpack.c.h.b16 %v1270
        %v1305 = vunpack.c.h.b16 %v1278
        %v1306 = vunpack.c.l.b16 %v1271
        %v1307 = vunpack.c.l.b16 %v1279
        %v1308 = vunpack.c.h.b16 %v1271
        %v1309 = vunpack.c.h.b16 %v1279
        %v1310 = vunpack.c.l.b16 %v1272
        %v1311 = vunpack.c.l.b16 %v1280
        %v1312 = vunpack.c.h.b16 %v1272
        %v1313 = vunpack.c.h.b16 %v1280
        %v1314 = vunpack.c.l.b16 %v1273
        %v1315 = vunpack.c.l.b16 %v1281
        %v1316 = vunpack.c.h.b16 %v1273
        %v1317 = vunpack.c.h.b16 %v1281
        %v1318 = vunpack.c.l.b16 %v1274
        %v1319 = vunpack.c.l.b16 %v1282
        %v1320 = vunpack.c.h.b16 %v1274
        %v1321 = vunpack.c.h.b16 %v1282
        %v1322 = vunpack.c.l.b16 %v1275
        %v1323 = vunpack.c.l.b16 %v1283
        %v1324 = vunpack.c.h.b16 %v1275
        %v1325 = vunpack.c.h.b16 %v1283
        %v1326 = vunpack.c.l.b16 %v1276
        %v1327 = vunpack.c.l.b16 %v1284
        %v1328 = vunpack.c.h.b16 %v1276
        %v1329 = vunpack.c.h.b16 %v1284
        %v1330 = vunpack.c.l.b16 %v1277
        %v1331 = vunpack.c.l.b16 %v1285
        %v1332 = vpack.c.b16 %v1303, %v1302
        %v1333 = vpack.c.b16 %v1305, %v1304
        %v1334 = vpack.c.b16 %v1307, %v1306
        %v1335 = vpack.c.b16 %v1309, %v1308
        %v1336 = vpack.c.b16 %v1311, %v1310
        %v1337 = vpack.c.b16 %v1313, %v1312
        %v1338 = vpack.c.b16 %v1315, %v1314
        %v1339 = vpack.c.b16 %v1317, %v1316
        %v1340 = vpack.c.b16 %v1319, %v1318
        %v1341 = vpack.c.b16 %v1321, %v1320
        %v1342 = vpack.c.b16 %v1323, %v1322
        %v1343 = vpack.c.b16 %v1325, %v1324
        %v1344 = vpack.c.b16 %v1327, %v1326
        %v1345 = vpack.c.b16 %v1329, %v1328
        %v1346 = vpack.c.b16 %v1331, %v1330
        %1362 = vst [vmem:[#allocation2] sm:$0xff] %v1332
        %1363 = vst [vmem:[#allocation2 + $0x8] sm:$0xff] %v1333
        %1364 = vst [vmem:[#allocation2 + $0x10] sm:$0xff] %v1334
        %1365 = vst [vmem:[#allocation2 + $0x18] sm:$0xff] %v1335
        %1366 = vst [vmem:[#allocation2 + $0x20] sm:$0xff] %v1336
        %1367 = vst [vmem:[#allocation2 + $0x28] sm:$0xff] %v1337
        %1368 = vst [vmem:[#allocation2 + $0x30] sm:$0xff] %v1338
        %1369 = vst [vmem:[#allocation2 + $0x38] sm:$0xff] %v1339
        %1370 = vst [vmem:[#allocation2 + $0x40] sm:$0xff] %v1340
        %1371 = vst [vmem:[#allocation2 + $0x48] sm:$0xff] %v1341
        %1372 = vst [vmem:[#allocation2 + $0x50] sm:$0xff] %v1342
        %1373 = vst [vmem:[#allocation2 + $0x58] sm:$0xff] %v1343
        %1374 = vst [vmem:[#allocation2 + $0x60] sm:$0xff] %v1344
        %1375 = vst [vmem:[#allocation2 + $0x68] sm:$0xff] %v1345
        %1376 = vst [vmem:[#allocation2 + $0x70] sm:$0xff] %v1346
        %s1377 = ssub.s32 %s560, 4
        %v1378 = vstv %s1377
        %v1379 = vadd.s32 %v1378, %v1149
        %v1380 = vadd.s32 %v1378, %v1150
        %v1381 = vadd.s32 %v1378, %v1151
        %v1382 = vadd.s32 %v1378, %v1152
        %v1383 = vadd.s32 %v1378, %v1153
        %v1384 = vadd.s32 %v1378, %v1154
        %v1385 = vadd.s32 %v1378, %v1155
        %v1386 = vadd.s32 %v1378, %v1156
        %v1387 = vadd.s32 %v1378, %v1157
        %v1388 = vadd.s32 %v1378, %v1158
        %v1389 = vadd.s32 %v1378, %v1159
        %v1390 = vadd.s32 %v1378, %v1160
        %v1391 = vadd.s32 %v1378, %v1161
        %v1392 = vadd.s32 %v1378, %v1162
        %vm1393 = vcmp.ge.s32.totalorder %v1379, 0
        %vm1394 = vcmp.ge.s32.totalorder %v1380, 0
        %vm1395 = vcmp.ge.s32.totalorder %v1381, 0
        %vm1396 = vcmp.ge.s32.totalorder %v1382, 0
        %vm1397 = vcmp.ge.s32.totalorder %v1383, 0
        %vm1398 = vcmp.ge.s32.totalorder %v1384, 0
        %vm1399 = vcmp.ge.s32.totalorder %v1385, 0
        %vm1400 = vcmp.ge.s32.totalorder %v1386, 0
        %vm1401 = vcmp.ge.s32.totalorder %v1387, 0
        %vm1402 = vcmp.ge.s32.totalorder %v1388, 0
        %vm1403 = vcmp.ge.s32.totalorder %v1389, 0
        %vm1404 = vcmp.ge.s32.totalorder %v1390, 0
        %vm1405 = vcmp.ge.s32.totalorder %v1391, 0
        %vm1406 = vcmp.ge.s32.totalorder %v1392, 0
        %vm1407 = vcmp.lt.s32.totalorder %v1379, 200
        %vm1408 = vcmp.lt.s32.totalorder %v1380, 200
        %vm1409 = vcmp.lt.s32.totalorder %v1381, 200
        %vm1410 = vcmp.lt.s32.totalorder %v1382, 200
        %vm1411 = vcmp.lt.s32.totalorder %v1383, 200
        %vm1412 = vcmp.lt.s32.totalorder %v1384, 200
        %vm1413 = vcmp.lt.s32.totalorder %v1385, 200
        %vm1414 = vcmp.lt.s32.totalorder %v1386, 200
        %vm1415 = vcmp.lt.s32.totalorder %v1387, 200
        %vm1416 = vcmp.lt.s32.totalorder %v1388, 200
        %vm1417 = vcmp.lt.s32.totalorder %v1389, 200
        %vm1418 = vcmp.lt.s32.totalorder %v1390, 200
        %vm1419 = vcmp.lt.s32.totalorder %v1391, 200
        %vm1420 = vcmp.lt.s32.totalorder %v1392, 200
        %vm1421 = vmand %vm1393, %vm1407
        %vm1422 = vmand %vm1394, %vm1408
        %vm1423 = vmand %vm1395, %vm1409
        %vm1424 = vmand %vm1396, %vm1410
        %vm1425 = vmand %vm1397, %vm1411
        %vm1426 = vmand %vm1398, %vm1412
        %vm1427 = vmand %vm1399, %vm1413
        %vm1428 = vmand %vm1400, %vm1414
        %vm1429 = vmand %vm1401, %vm1415
        %vm1430 = vmand %vm1402, %vm1416
        %vm1431 = vmand %vm1403, %vm1417
        %vm1432 = vmand %vm1404, %vm1418
        %vm1433 = vmand %vm1405, %vm1419
        %vm1434 = vmand %vm1406, %vm1420
        %v1435 = vld [vmem:[#allocation2] sm:$0xee]
        %v1436 = vld [vmem:[#allocation2 + $0x8] sm:$0xff]
        %v1437 = vld [vmem:[#allocation2 + $0x10] sm:$0xff]
        %v1438 = vld [vmem:[#allocation2 + $0x18] sm:$0xff]
        %v1439 = vld [vmem:[#allocation2 + $0x20] sm:$0xff]
        %v1440 = vld [vmem:[#allocation2 + $0x28] sm:$0xff]
        %v1441 = vld [vmem:[#allocation2 + $0x30] sm:$0xff]
        %v1442 = vld [vmem:[#allocation2 + $0x38] sm:$0xff]
        %v1443 = vld [vmem:[#allocation2 + $0x40] sm:$0xff]
        %v1444 = vld [vmem:[#allocation2 + $0x48] sm:$0xff]
        %v1445 = vld [vmem:[#allocation2 + $0x50] sm:$0xff]
        %v1446 = vld [vmem:[#allocation2 + $0x58] sm:$0xff]
        %v1447 = vld [vmem:[#allocation2 + $0x60] sm:$0xff]
        %v1448 = vld [vmem:[#allocation2 + $0x68] sm:$0xff]
        %v1449 = vld [vmem:[#allocation2 + $0x70] sm:$0x11]
        %v1450 = vld [vmem:[#allocation10] sm:$0xf]
        %v1451 = vld [vmem:[#allocation10 + $0x4] sm:$0xf]
        %v1452 = vld [vmem:[#allocation10 + $0x8] sm:$0xf]
        %v1453 = vld [vmem:[#allocation10 + $0xc] sm:$0xf]
        %v1454 = vld [vmem:[#allocation10 + $0x10] sm:$0xf]
        %v1455 = vld [vmem:[#allocation10 + $0x14] sm:$0xf]
        %v1456 = vld [vmem:[#allocation10 + $0x18] sm:$0xf]
        %v1457 = vld [vmem:[#allocation10 + $0x1c] sm:$0xf]
        %v1458 = vld [vmem:[#allocation10 + $0x20] sm:$0xf]
        %v1459 = vld [vmem:[#allocation10 + $0x24] sm:$0xf]
        %v1460 = vld [vmem:[#allocation10 + $0x28] sm:$0xf]
        %v1461 = vld [vmem:[#allocation10 + $0x2c] sm:$0xf]
        %v1462 = vld [vmem:[#allocation10 + $0x30] sm:$0xf]
        %v1463 = vld [vmem:[#allocation10 + $0x34] sm:$0xf]
        %v1464 = vld [vmem:[#allocation10 + $0x38] sm:$0xf]
        %v1465 = vld [vmem:[#allocation10 + $0x3c] sm:$0xf]
        %v1466 = vld [vmem:[#allocation10 + $0x40] sm:$0xf]
        %v1467 = vld [vmem:[#allocation10 + $0x44] sm:$0xf]
        %v1468 = vld [vmem:[#allocation10 + $0x48] sm:$0xf]
        %v1469 = vld [vmem:[#allocation10 + $0x4c] sm:$0xf]
        %v1470 = vld [vmem:[#allocation10 + $0x50] sm:$0xf]
        %v1471 = vld [vmem:[#allocation10 + $0x54] sm:$0xf]
        %v1472 = vld [vmem:[#allocation10 + $0x58] sm:$0xf]
        %v1473 = vld [vmem:[#allocation10 + $0x5c] sm:$0xf]
        %v1474 = vld [vmem:[#allocation10 + $0x60] sm:$0xf]
        %v1475 = vld [vmem:[#allocation10 + $0x64] sm:$0xf]
        %v1476 = vld [vmem:[#allocation10 + $0x68] sm:$0xf]
        %v1477 = vld [vmem:[#allocation10 + $0x6c] sm:$0xf]
        %v1478 = vld [vmem:[#allocation10 + $0x70] sm:$0xf]
        %v1479 = vld [vmem:[#allocation10 + $0x74] sm:$0xf]
        %v1480 = vld [vmem:[#allocation10 + $0x78] sm:$0xf]
        %v1481 = vld [vmem:[#allocation10 + $0x7c] sm:$0xf]
        %v1482 = vld [vmem:[#allocation2 + $0x70] sm:$0x33]
        %v1483 = vld [vmem:[#allocation10 + $0x80] sm:$0xf]
        %v1484 = vld [vmem:[#allocation10 + $0x84] sm:$0xf]
        %v1485 = vld [vmem:[#allocation10 + $0x88] sm:$0xf]
        %v1486 = vld [vmem:[#allocation10 + $0x8c] sm:$0xf]
        %v1487 = vld [vmem:[#allocation10 + $0x90] sm:$0xf]
        %v1488 = vld [vmem:[#allocation10 + $0x94] sm:$0xf]
        %v1489 = vld [vmem:[#allocation10 + $0x98] sm:$0xf]
        %v1490 = vld [vmem:[#allocation10 + $0x9c] sm:$0xf]
        %v1491 = vld [vmem:[#allocation10 + $0xa0] sm:$0xf]
        %v1492 = vld [vmem:[#allocation10 + $0xa4] sm:$0xf]
        %v1493 = vld [vmem:[#allocation10 + $0xa8] sm:$0xf]
        %v1494 = vld [vmem:[#allocation10 + $0xac] sm:$0xf]
        %v1495 = vld [vmem:[#allocation10 + $0xb0] sm:$0xf]
        %v1496 = vld [vmem:[#allocation10 + $0xb4] sm:$0xf]
        %v1497 = vld [vmem:[#allocation10 + $0xb8] sm:$0xf]
        %v1498 = vld [vmem:[#allocation10 + $0xbc] sm:$0xf]
        %v1499 = vld [vmem:[#allocation10 + $0xc0] sm:$0xf]
        %v1500 = vld [vmem:[#allocation10 + $0xc4] sm:$0xf]
        %v1501 = vld [vmem:[#allocation10 + $0xc8] sm:$0xf]
        %v1502 = vld [vmem:[#allocation10 + $0xcc] sm:$0xf]
        %v1503 = vld [vmem:[#allocation10 + $0xd0] sm:$0xf]
        %v1504 = vld [vmem:[#allocation10 + $0xd4] sm:$0xf]
        %v1505 = vld [vmem:[#allocation10 + $0xd8] sm:$0xf]
        %v1506 = vld [vmem:[#allocation10 + $0xdc] sm:$0xf]
        %v1507 = vld [vmem:[#allocation10 + $0xe0] sm:$0xf]
        %v1508 = vld [vmem:[#allocation10 + $0xe4] sm:$0xf]
        %v1509 = vld [vmem:[#allocation10 + $0xe8] sm:$0xf]
        %v1510 = vld [vmem:[#allocation10 + $0xec] sm:$0xf]
        %v1511 = vld [vmem:[#allocation10 + $0xf0] sm:$0xf]
        %v1512 = vld [vmem:[#allocation10 + $0xf4] sm:$0xf]
        %v1513 = vld [vmem:[#allocation10 + $0xf8] sm:$0xf]
        %v1514 = vld [vmem:[#allocation10 + $0xfc] sm:$0xf]
        %v1530 = vunpack.c.l.b16 %v1435
        %v1531 = vunpack.c.h.b16 %v1435
        %v1532 = vunpack.c.l.b16 %v1436
        %v1533 = vunpack.c.h.b16 %v1436
        %v1534 = vunpack.c.l.b16 %v1437
        %v1535 = vunpack.c.h.b16 %v1437
        %v1536 = vunpack.c.l.b16 %v1438
        %v1537 = vunpack.c.h.b16 %v1438
        %v1538 = vunpack.c.l.b16 %v1439
        %v1539 = vunpack.c.h.b16 %v1439
        %v1540 = vunpack.c.l.b16 %v1440
        %v1541 = vunpack.c.h.b16 %v1440
        %v1542 = vunpack.c.l.b16 %v1441
        %v1543 = vunpack.c.h.b16 %v1441
        %v1544 = vunpack.c.l.b16 %v1442
        %v1545 = vunpack.c.h.b16 %v1442
        %v1546 = vunpack.c.l.b16 %v1443
        %v1547 = vunpack.c.h.b16 %v1443
        %v1548 = vunpack.c.l.b16 %v1444
        %v1549 = vunpack.c.h.b16 %v1444
        %v1550 = vunpack.c.l.b16 %v1445
        %v1551 = vunpack.c.h.b16 %v1445
        %v1552 = vunpack.c.l.b16 %v1446
        %v1553 = vunpack.c.h.b16 %v1446
        %v1554 = vunpack.c.l.b16 %v1447
        %v1555 = vunpack.c.h.b16 %v1447
        %v1556 = vunpack.c.l.b16 %v1448
        %v1557 = vunpack.c.h.b16 %v1448
        %v1558 = vunpack.c.l.b16 %v1482
        %v1559 = vunpack.c.h.b16 %v1482
        %v1560 = vpack.c.b16 %v1532, %v1530
        %v1561 = vpack.c.b16 %v1533, %v1531
        %v1562 = vpack.c.b16 %v1536, %v1534
        %v1563 = vpack.c.b16 %v1537, %v1535
        %v1564 = vpack.c.b16 %v1540, %v1538
        %v1565 = vpack.c.b16 %v1541, %v1539
        %v1566 = vpack.c.b16 %v1544, %v1542
        %v1567 = vpack.c.b16 %v1545, %v1543
        %v1568 = vpack.c.b16 %v1548, %v1546
        %v1569 = vpack.c.b16 %v1549, %v1547
        %v1570 = vpack.c.b16 %v1552, %v1550
        %v1571 = vpack.c.b16 %v1553, %v1551
        %v1572 = vpack.c.b16 %v1556, %v1554
        %v1573 = vpack.c.b16 %v1557, %v1555
        %v1574 = vpack.c.b16 %v1558, %v1558
        %v1575 = vpack.c.b16 %v1559, %v1559
        %vm1576 = vsmask.f32 6400
        %v1578 = vshrl.u32 %v1560, 16
        %v1580 = vrot.slane %v1578, 1
        %v1581 = vshll.u32 %v1560, 16
        %v1583 = vrot.slane %v1581, 2
        %v1584 = vor.u32 %v1580, %v1583
        %v1586 = vshrl.u32 %v1562, 16
        %v1588 = vrot.slane %v1586, 1
        %v1589 = vshll.u32 %v1562, 16
        %v1591 = vrot.slane %v1589, 2
        %v1592 = vor.u32 %v1588, %v1591
        %v1593 = vsel %vm1576, %v1584, %v1592
        %v1595 = vshrl.u32 %v1561, 16
        %v1597 = vrot.slane %v1595, 1
        %v1598 = vshll.u32 %v1561, 16
        %v1600 = vrot.slane %v1598, 2
        %v1601 = vor.u32 %v1597, %v1600
        %v1603 = vshrl.u32 %v1563, 16
        %v1605 = vrot.slane %v1603, 1
        %v1606 = vshll.u32 %v1563, 16
        %v1608 = vrot.slane %v1606, 2
        %v1609 = vor.u32 %v1605, %v1608
        %v1610 = vsel %vm1576, %v1601, %v1609
        %v1612 = vshrl.u32 %v1564, 16
        %v1614 = vrot.slane %v1612, 1
        %v1615 = vshll.u32 %v1564, 16
        %v1617 = vrot.slane %v1615, 2
        %v1618 = vor.u32 %v1614, %v1617
        %v1619 = vsel %vm1576, %v1592, %v1618
        %v1621 = vshrl.u32 %v1565, 16
        %v1623 = vrot.slane %v1621, 1
        %v1624 = vshll.u32 %v1565, 16
        %v1626 = vrot.slane %v1624, 2
        %v1627 = vor.u32 %v1623, %v1626
        %v1628 = vsel %vm1576, %v1609, %v1627
        %v1630 = vshrl.u32 %v1566, 16
        %v1632 = vrot.slane %v1630, 1
        %v1633 = vshll.u32 %v1566, 16
        %v1635 = vrot.slane %v1633, 2
        %v1636 = vor.u32 %v1632, %v1635
        %v1637 = vsel %vm1576, %v1618, %v1636
        %v1639 = vshrl.u32 %v1567, 16
        %v1641 = vrot.slane %v1639, 1
        %v1642 = vshll.u32 %v1567, 16
        %v1644 = vrot.slane %v1642, 2
        %v1645 = vor.u32 %v1641, %v1644
        %v1646 = vsel %vm1576, %v1627, %v1645
        %v1648 = vshrl.u32 %v1568, 16
        %v1650 = vrot.slane %v1648, 1
        %v1651 = vshll.u32 %v1568, 16
        %v1653 = vrot.slane %v1651, 2
        %v1654 = vor.u32 %v1650, %v1653
        %v1655 = vsel %vm1576, %v1636, %v1654
        %v1657 = vshrl.u32 %v1569, 16
        %v1659 = vrot.slane %v1657, 1
        %v1660 = vshll.u32 %v1569, 16
        %v1662 = vrot.slane %v1660, 2
        %v1663 = vor.u32 %v1659, %v1662
        %v1664 = vsel %vm1576, %v1645, %v1663
        %v1666 = vshrl.u32 %v1570, 16
        %v1668 = vrot.slane %v1666, 1
        %v1669 = vshll.u32 %v1570, 16
        %v1671 = vrot.slane %v1669, 2
        %v1672 = vor.u32 %v1668, %v1671
        %v1673 = vsel %vm1576, %v1654, %v1672
        %v1675 = vshrl.u32 %v1571, 16
        %v1677 = vrot.slane %v1675, 1
        %v1678 = vshll.u32 %v1571, 16
        %v1680 = vrot.slane %v1678, 2
        %v1681 = vor.u32 %v1677, %v1680
        %v1682 = vsel %vm1576, %v1663, %v1681
        %v1684 = vshrl.u32 %v1572, 16
        %v1686 = vrot.slane %v1684, 1
        %v1687 = vshll.u32 %v1572, 16
        %v1689 = vrot.slane %v1687, 2
        %v1690 = vor.u32 %v1686, %v1689
        %v1691 = vsel %vm1576, %v1672, %v1690
        %v1693 = vshrl.u32 %v1573, 16
        %v1695 = vrot.slane %v1693, 1
        %v1696 = vshll.u32 %v1573, 16
        %v1698 = vrot.slane %v1696, 2
        %v1699 = vor.u32 %v1695, %v1698
        %v1700 = vsel %vm1576, %v1681, %v1699
        %v1702 = vshrl.u32 %v1574, 16
        %v1704 = vrot.slane %v1702, 1
        %v1705 = vshll.u32 %v1574, 16
        %v1707 = vrot.slane %v1705, 2
        %v1708 = vor.u32 %v1704, %v1707
        %v1709 = vsel %vm1576, %v1690, %v1708
        %v1711 = vshrl.u32 %v1575, 16
        %v1713 = vrot.slane %v1711, 1
        %v1714 = vshll.u32 %v1575, 16
        %v1716 = vrot.slane %v1714, 2
        %v1717 = vor.u32 %v1713, %v1716
        %v1718 = vsel %vm1576, %v1699, %v1717
        %v1765 = vunpack.c.l.b16 %v1483
        %v1766 = vunpack.c.l.b16 %v1484
        %v1767 = vunpack.c.l.b16 %v1485
        %v1768 = vunpack.c.l.b16 %v1486
        %v1769 = vunpack.c.l.b16 %v1487
        %v1770 = vunpack.c.l.b16 %v1488
        %v1771 = vunpack.c.l.b16 %v1489
        %v1772 = vunpack.c.l.b16 %v1490
        %v1773 = vunpack.c.l.b16 %v1491
        %v1774 = vunpack.c.l.b16 %v1492
        %v1775 = vunpack.c.l.b16 %v1493
        %v1776 = vunpack.c.l.b16 %v1494
        %v1777 = vunpack.c.l.b16 %v1495
        %v1778 = vunpack.c.l.b16 %v1496
        %v1779 = vunpack.c.l.b16 %v1497
        %v1780 = vunpack.c.l.b16 %v1498
        %v1781 = vunpack.c.l.b16 %v1499
        %v1782 = vunpack.c.l.b16 %v1500
        %v1783 = vunpack.c.l.b16 %v1501
        %v1784 = vunpack.c.l.b16 %v1502
        %v1785 = vunpack.c.l.b16 %v1503
        %v1786 = vunpack.c.l.b16 %v1504
        %v1787 = vunpack.c.l.b16 %v1505
        %v1788 = vunpack.c.l.b16 %v1506
        %v1789 = vunpack.c.l.b16 %v1507
        %v1790 = vunpack.c.l.b16 %v1508
        %v1791 = vunpack.c.l.b16 %v1509
        %v1792 = vunpack.c.l.b16 %v1510
        %v1793 = vunpack.c.l.b16 %v1511
        %v1794 = vunpack.c.l.b16 %v1512
        %v1795 = vunpack.c.l.b16 %v1513
        %v1796 = vunpack.c.l.b16 %v1514
        %v1797 = vpack.c.b16 %v1766, %v1765
        %v1798 = vpack.c.b16 %v1768, %v1767
        %v1799 = vpack.c.b16 %v1770, %v1769
        %v1800 = vpack.c.b16 %v1772, %v1771
        %v1801 = vpack.c.b16 %v1774, %v1773
        %v1802 = vpack.c.b16 %v1776, %v1775
        %v1803 = vpack.c.b16 %v1778, %v1777
        %v1804 = vpack.c.b16 %v1780, %v1779
        %v1805 = vpack.c.b16 %v1782, %v1781
        %v1806 = vpack.c.b16 %v1784, %v1783
        %v1807 = vpack.c.b16 %v1786, %v1785
        %v1808 = vpack.c.b16 %v1788, %v1787
        %v1809 = vpack.c.b16 %v1790, %v1789
        %v1810 = vpack.c.b16 %v1792, %v1791
        %v1811 = vpack.c.b16 %v1794, %v1793
        %v1812 = vpack.c.b16 %v1796, %v1795
        %1829 = vmatprep.subr.bf16.mxu0 0
        %1830 = vmatpush1.bf16.msra.mxu0 %v1797
        %1831 = vmatprep.subr.bf16.mxu0 0
        %1832 = vmatpush1.bf16.msra.mxu0 %v1798
        %1833 = vmatprep.subr.bf16.mxu0 0
        %1834 = vmatpush1.bf16.msra.mxu0 %v1799
        %1835 = vmatprep.subr.bf16.mxu0 0
        %1836 = vmatpush1.bf16.msra.mxu0 %v1800
        %1837 = vmatprep.subr.bf16.mxu0 0
        %1838 = vmatpush1.bf16.msra.mxu0 %v1801
        %1839 = vmatprep.subr.bf16.mxu0 0
        %1840 = vmatpush1.bf16.msra.mxu0 %v1802
        %1841 = vmatprep.subr.bf16.mxu0 0
        %1842 = vmatpush1.bf16.msra.mxu0 %v1803
        %1843 = vmatprep.subr.bf16.mxu0 0
        %1844 = vmatpush1.bf16.msra.mxu0 %v1804
        %1845 = vmatprep.subr.bf16.mxu0 0
        %1846 = vmatpush1.bf16.msra.mxu0 %v1805
        %1847 = vmatprep.subr.bf16.mxu0 0
        %1848 = vmatpush1.bf16.msra.mxu0 %v1806
        %1849 = vmatprep.subr.bf16.mxu0 0
        %1850 = vmatpush1.bf16.msra.mxu0 %v1807
        %1851 = vmatprep.subr.bf16.mxu0 0
        %1852 = vmatpush1.bf16.msra.mxu0 %v1808
        %1853 = vmatprep.subr.bf16.mxu0 0
        %1854 = vmatpush1.bf16.msra.mxu0 %v1809
        %1855 = vmatprep.subr.bf16.mxu0 0
        %1856 = vmatpush1.bf16.msra.mxu0 %v1810
        %1857 = vmatprep.subr.bf16.mxu0 0
        %1858 = vmatpush1.bf16.msra.mxu0 %v1811
        %1859 = vmatprep.subr.bf16.mxu0 0
        %1860 = vmatpush1.bf16.msra.mxu0 %v1812
        %1861 = vmatprep.mubr.bf16.mxu0 %v1610
        %1862 = vmatmul.mubr.bf16.gmra.mrb[0].mxu0 %v1593
        %v1863 = vpop.f32.mrb[0].mxu0
        %v1864 = vadd.f32 0.0, %v1863
        %v1865 = vpop.f32.mrb[0].mxu0
        %v1866 = vpop.f32.mrb[0].mxu0
        %v1867 = vadd.f32 0.0, %v1866
        %v1868 = vpop.f32.mrb[0].mxu0
        %1869 = vmatprep.mubr.bf16.mxu0 %v1628
        %1870 = vmatmul.mubr.bf16.gmra.mrb[0].mxu0 %v1619
        %v1871 = vpop.f32.mrb[0].mxu0
        %v1872 = vadd.f32 0.0, %v1871
        %v1873 = vpop.f32.mrb[0].mxu0
        %v1874 = vpop.f32.mrb[0].mxu0
        %v1875 = vadd.f32 0.0, %v1874
        %v1876 = vpop.f32.mrb[0].mxu0
        %1877 = vmatprep.mubr.bf16.mxu0 %v1646
        %1878 = vmatmul.mubr.bf16.gmra.mrb[0].mxu0 %v1637
        %v1879 = vpop.f32.mrb[0].mxu0
        %v1880 = vadd.f32 0.0, %v1879
        %v1881 = vpop.f32.mrb[0].mxu0
        %v1882 = vpop.f32.mrb[0].mxu0
        %v1883 = vadd.f32 0.0, %v1882
        %v1884 = vpop.f32.mrb[0].mxu0
        %1885 = vmatprep.mubr.bf16.mxu0 %v1664
        %1886 = vmatmul.mubr.bf16.gmra.mrb[0].mxu0 %v1655
        %v1887 = vpop.f32.mrb[0].mxu0
        %v1888 = vadd.f32 0.0, %v1887
        %v1889 = vpop.f32.mrb[0].mxu0
        %v1890 = vpop.f32.mrb[0].mxu0
        %v1891 = vadd.f32 0.0, %v1890
        %v1892 = vpop.f32.mrb[0].mxu0
        %1893 = vmatprep.mubr.bf16.mxu0 %v1682
        %1894 = vmatmul.mubr.bf16.gmra.mrb[0].mxu0 %v1673
        %v1895 = vpop.f32.mrb[0].mxu0
        %v1896 = vadd.f32 0.0, %v1895
        %v1897 = vpop.f32.mrb[0].mxu0
        %v1898 = vpop.f32.mrb[0].mxu0
        %v1899 = vadd.f32 0.0, %v1898
        %v1900 = vpop.f32.mrb[0].mxu0
        %1901 = vmatprep.mubr.bf16.mxu0 %v1700
        %1902 = vmatmul.mubr.bf16.gmra.mrb[0].mxu0 %v1691
        %v1903 = vpop.f32.mrb[0].mxu0
        %v1904 = vadd.f32 0.0, %v1903
        %v1905 = vpop.f32.mrb[0].mxu0
        %v1906 = vpop.f32.mrb[0].mxu0
        %v1907 = vadd.f32 0.0, %v1906
        %v1908 = vpop.f32.mrb[0].mxu0
        %1909 = vmatprep.mubr.bf16.mxu0 %v1718
        %1910 = vmatmul.mubr.bf16.gmra.mrb[0].mxu0 %v1709
        %v1911 = vpop.f32.mrb[0].mxu0
        %v1912 = vadd.f32 0.0, %v1911
        %v1913 = vpop.f32.mrb[0].mxu0
        %v1914 = vpop.f32.mrb[0].mxu0
        %v1915 = vadd.f32 0.0, %v1914
        %v1916 = vpop.f32.mrb[0].mxu0
        %1917 = vdwg.mxu0
        %v1919 = vunpack.c.l.b16 %v1449
        %v1920 = vunpack.c.h.b16 %v1449
        %v1921 = vpack.c.b16 %v1919, %v1919
        %v1922 = vpack.c.b16 %v1920, %v1920
        %vm1923 = vcmask 1046528
        %v1924 = vrot.slane %v1560, 1
        %v1925 = vrot.slane %v1562, 1
        %v1926 = vsel %vm1923, %v1924, %v1925
        %v1927 = vrot.slane %v1561, 1
        %v1928 = vrot.slane %v1563, 1
        %v1929 = vsel %vm1923, %v1927, %v1928
        %v1930 = vrot.slane %v1564, 1
        %v1931 = vsel %vm1923, %v1925, %v1930
        %v1932 = vrot.slane %v1565, 1
        %v1933 = vsel %vm1923, %v1928, %v1932
        %v1934 = vrot.slane %v1566, 1
        %v1935 = vsel %vm1923, %v1930, %v1934
        %v1936 = vrot.slane %v1567, 1
        %v1937 = vsel %vm1923, %v1932, %v1936
        %v1938 = vrot.slane %v1568, 1
        %v1939 = vsel %vm1923, %v1934, %v1938
        %v1940 = vrot.slane %v1569, 1
        %v1941 = vsel %vm1923, %v1936, %v1940
        %v1942 = vrot.slane %v1570, 1
        %v1943 = vsel %vm1923, %v1938, %v1942
        %v1944 = vrot.slane %v1571, 1
        %v1945 = vsel %vm1923, %v1940, %v1944
        %v1946 = vrot.slane %v1572, 1
        %v1947 = vsel %vm1923, %v1942, %v1946
        %v1948 = vrot.slane %v1573, 1
        %v1949 = vsel %vm1923, %v1944, %v1948
        %v1950 = vrot.slane %v1921, 1
        %v1951 = vsel %vm1923, %v1946, %v1950
        %v1952 = vrot.slane %v1922, 1
        %v1953 = vsel %vm1923, %v1948, %v1952
        %v2000 = vunpack.c.l.b16 %v1450
        %v2001 = vunpack.c.l.b16 %v1451
        %v2002 = vunpack.c.l.b16 %v1452
        %v2003 = vunpack.c.l.b16 %v1453
        %v2004 = vunpack.c.l.b16 %v1454
        %v2005 = vunpack.c.l.b16 %v1455
        %v2006 = vunpack.c.l.b16 %v1456
        %v2007 = vunpack.c.l.b16 %v1457
        %v2008 = vunpack.c.l.b16 %v1458
        %v2009 = vunpack.c.l.b16 %v1459
        %v2010 = vunpack.c.l.b16 %v1460
        %v2011 = vunpack.c.l.b16 %v1461
        %v2012 = vunpack.c.l.b16 %v1462
        %v2013 = vunpack.c.l.b16 %v1463
        %v2014 = vunpack.c.l.b16 %v1464
        %v2015 = vunpack.c.l.b16 %v1465
        %v2016 = vunpack.c.l.b16 %v1466
        %v2017 = vunpack.c.l.b16 %v1467
        %v2018 = vunpack.c.l.b16 %v1468
        %v2019 = vunpack.c.l.b16 %v1469
        %v2020 = vunpack.c.l.b16 %v1470
        %v2021 = vunpack.c.l.b16 %v1471
        %v2022 = vunpack.c.l.b16 %v1472
        %v2023 = vunpack.c.l.b16 %v1473
        %v2024 = vunpack.c.l.b16 %v1474
        %v2025 = vunpack.c.l.b16 %v1475
        %v2026 = vunpack.c.l.b16 %v1476
        %v2027 = vunpack.c.l.b16 %v1477
        %v2028 = vunpack.c.l.b16 %v1478
        %v2029 = vunpack.c.l.b16 %v1479
        %v2030 = vunpack.c.l.b16 %v1480
        %v2031 = vunpack.c.l.b16 %v1481
        %v2032 = vpack.c.b16 %v2001, %v2000
        %v2033 = vpack.c.b16 %v2003, %v2002
        %v2034 = vpack.c.b16 %v2005, %v2004
        %v2035 = vpack.c.b16 %v2007, %v2006
        %v2036 = vpack.c.b16 %v2009, %v2008
        %v2037 = vpack.c.b16 %v2011, %v2010
        %v2038 = vpack.c.b16 %v2013, %v2012
        %v2039 = vpack.c.b16 %v2015, %v2014
        %v2040 = vpack.c.b16 %v2017, %v2016
        %v2041 = vpack.c.b16 %v2019, %v2018
        %v2042 = vpack.c.b16 %v2021, %v2020
        %v2043 = vpack.c.b16 %v2023, %v2022
        %v2044 = vpack.c.b16 %v2025, %v2024
        %v2045 = vpack.c.b16 %v2027, %v2026
        %v2046 = vpack.c.b16 %v2029, %v2028
        %v2047 = vpack.c.b16 %v2031, %v2030
        %2064 = vmatprep.subr.bf16.mxu0 0
        %2065 = vmatpush1.bf16.msra.mxu0 %v2032
        %2066 = vmatprep.subr.bf16.mxu0 0
        %2067 = vmatpush1.bf16.msra.mxu0 %v2033
        %2068 = vmatprep.subr.bf16.mxu0 0
        %2069 = vmatpush1.bf16.msra.mxu0 %v2034
        %2070 = vmatprep.subr.bf16.mxu0 0
        %2071 = vmatpush1.bf16.msra.mxu0 %v2035
        %2072 = vmatprep.subr.bf16.mxu0 0
        %2073 = vmatpush1.bf16.msra.mxu0 %v2036
        %2074 = vmatprep.subr.bf16.mxu0 0
        %2075 = vmatpush1.bf16.msra.mxu0 %v2037
        %2076 = vmatprep.subr.bf16.mxu0 0
        %2077 = vmatpush1.bf16.msra.mxu0 %v2038
        %2078 = vmatprep.subr.bf16.mxu0 0
        %2079 = vmatpush1.bf16.msra.mxu0 %v2039
        %2080 = vmatprep.subr.bf16.mxu0 0
        %2081 = vmatpush1.bf16.msra.mxu0 %v2040
        %2082 = vmatprep.subr.bf16.mxu0 0
        %2083 = vmatpush1.bf16.msra.mxu0 %v2041
        %2084 = vmatprep.subr.bf16.mxu0 0
        %2085 = vmatpush1.bf16.msra.mxu0 %v2042
        %2086 = vmatprep.subr.bf16.mxu0 0
        %2087 = vmatpush1.bf16.msra.mxu0 %v2043
        %2088 = vmatprep.subr.bf16.mxu0 0
        %2089 = vmatpush1.bf16.msra.mxu0 %v2044
        %2090 = vmatprep.subr.bf16.mxu0 0
        %2091 = vmatpush1.bf16.msra.mxu0 %v2045
        %2092 = vmatprep.subr.bf16.mxu0 0
        %2093 = vmatpush1.bf16.msra.mxu0 %v2046
        %2094 = vmatprep.subr.bf16.mxu0 0
        %2095 = vmatpush1.bf16.msra.mxu0 %v2047
        %2096 = vmatprep.mubr.bf16.mxu0 %v1929
        %2097 = vmatmul.mubr.bf16.gmra.mrb[0].mxu0 %v1926
        %v2098 = vpop.f32.mrb[0].mxu0
        %v2099 = vadd.f32 %v1864, %v2098
        %v2100 = vpop.f32.mrb[0].mxu0
        %v2101 = vpop.f32.mrb[0].mxu0
        %v2102 = vadd.f32 %v1867, %v2101
        %v2103 = vpop.f32.mrb[0].mxu0
        %2104 = vmatprep.mubr.bf16.mxu0 %v1933
        %2105 = vmatmul.mubr.bf16.gmra.mrb[0].mxu0 %v1931
        %v2106 = vpop.f32.mrb[0].mxu0
        %v2107 = vadd.f32 %v1872, %v2106
        %v2108 = vpop.f32.mrb[0].mxu0
        %v2109 = vpop.f32.mrb[0].mxu0
        %v2110 = vadd.f32 %v1875, %v2109
        %v2111 = vpop.f32.mrb[0].mxu0
        %2112 = vmatprep.mubr.bf16.mxu0 %v1937
        %2113 = vmatmul.mubr.bf16.gmra.mrb[0].mxu0 %v1935
        %v2114 = vpop.f32.mrb[0].mxu0
        %v2115 = vadd.f32 %v1880, %v2114
        %v2116 = vpop.f32.mrb[0].mxu0
        %v2117 = vpop.f32.mrb[0].mxu0
        %v2118 = vadd.f32 %v1883, %v2117
        %v2119 = vpop.f32.mrb[0].mxu0
        %2120 = vmatprep.mubr.bf16.mxu0 %v1941
        %2121 = vmatmul.mubr.bf16.gmra.mrb[0].mxu0 %v1939
        %v2122 = vpop.f32.mrb[0].mxu0
        %v2123 = vadd.f32 %v1888, %v2122
        %v2124 = vpop.f32.mrb[0].mxu0
        %v2125 = vpop.f32.mrb[0].mxu0
        %v2126 = vadd.f32 %v1891, %v2125
        %v2127 = vpop.f32.mrb[0].mxu0
        %2128 = vmatprep.mubr.bf16.mxu0 %v1945
        %2129 = vmatmul.mubr.bf16.gmra.mrb[0].mxu0 %v1943
        %v2130 = vpop.f32.mrb[0].mxu0
        %v2131 = vadd.f32 %v1896, %v2130
        %v2132 = vpop.f32.mrb[0].mxu0
        %v2133 = vpop.f32.mrb[0].mxu0
        %v2134 = vadd.f32 %v1899, %v2133
        %v2135 = vpop.f32.mrb[0].mxu0
        %2136 = vmatprep.mubr.bf16.mxu0 %v1949
        %2137 = vmatmul.mubr.bf16.gmra.mrb[0].mxu0 %v1947
        %v2138 = vpop.f32.mrb[0].mxu0
        %v2139 = vadd.f32 %v1904, %v2138
        %v2140 = vpop.f32.mrb[0].mxu0
        %v2141 = vpop.f32.mrb[0].mxu0
        %v2142 = vadd.f32 %v1907, %v2141
        %v2143 = vpop.f32.mrb[0].mxu0
        %2144 = vmatprep.mubr.bf16.mxu0 %v1953
        %2145 = vmatmul.mubr.bf16.gmra.mrb[0].mxu0 %v1951
        %v2146 = vpop.f32.mrb[0].mxu0
        %v2147 = vadd.f32 %v1912, %v2146
        %v2148 = vpop.f32.mrb[0].mxu0
        %v2149 = vpop.f32.mrb[0].mxu0
        %v2150 = vadd.f32 %v1915, %v2149
        %v2151 = vpop.f32.mrb[0].mxu0
        %2152 = vdwg.mxu0
        %v2153 = vld [vmem:[#allocation2] sm:$0xcc]
        %v2154 = vld [vmem:[#allocation10 + $0x100] sm:$0xf]
        %v2155 = vld [vmem:[#allocation10 + $0x104] sm:$0xf]
        %v2156 = vld [vmem:[#allocation10 + $0x108] sm:$0xf]
        %v2157 = vld [vmem:[#allocation10 + $0x10c] sm:$0xf]
        %v2158 = vld [vmem:[#allocation10 + $0x110] sm:$0xf]
        %v2159 = vld [vmem:[#allocation10 + $0x114] sm:$0xf]
        %v2160 = vld [vmem:[#allocation10 + $0x118] sm:$0xf]
        %v2161 = vld [vmem:[#allocation10 + $0x11c] sm:$0xf]
        %v2162 = vld [vmem:[#allocation10 + $0x120] sm:$0xf]
        %v2163 = vld [vmem:[#allocation10 + $0x124] sm:$0xf]
        %v2164 = vld [vmem:[#allocation10 + $0x128] sm:$0xf]
        %v2165 = vld [vmem:[#allocation10 + $0x12c] sm:$0xf]
        %v2166 = vld [vmem:[#allocation10 + $0x130] sm:$0xf]
        %v2167 = vld [vmem:[#allocation10 + $0x134] sm:$0xf]
        %v2168 = vld [vmem:[#allocation10 + $0x138] sm:$0xf]
        %v2169 = vld [vmem:[#allocation10 + $0x13c] sm:$0xf]
        %v2170 = vld [vmem:[#allocation10 + $0x140] sm:$0xf]
        %v2171 = vld [vmem:[#allocation10 + $0x144] sm:$0xf]
        %v2172 = vld [vmem:[#allocation10 + $0x148] sm:$0xf]
        %v2173 = vld [vmem:[#allocation10 + $0x14c] sm:$0xf]
        %v2174 = vld [vmem:[#allocation10 + $0x150] sm:$0xf]
        %v2175 = vld [vmem:[#allocation10 + $0x154] sm:$0xf]
        %v2176 = vld [vmem:[#allocation10 + $0x158] sm:$0xf]
        %v2177 = vld [vmem:[#allocation10 + $0x15c] sm:$0xf]
        %v2178 = vld [vmem:[#allocation10 + $0x160] sm:$0xf]
        %v2179 = vld [vmem:[#allocation10 + $0x164] sm:$0xf]
        %v2180 = vld [vmem:[#allocation10 + $0x168] sm:$0xf]
        %v2181 = vld [vmem:[#allocation10 + $0x16c] sm:$0xf]
        %v2182 = vld [vmem:[#allocation10 + $0x170] sm:$0xf]
        %v2183 = vld [vmem:[#allocation10 + $0x174] sm:$0xf]
        %v2184 = vld [vmem:[#allocation10 + $0x178] sm:$0xf]
        %v2185 = vld [vmem:[#allocation10 + $0x17c] sm:$0xf]
        %v2187 = vunpack.c.l.b16 %v2153
        %v2188 = vunpack.c.h.b16 %v2153
        %v2189 = vpack.c.b16 %v1532, %v2187
        %v2190 = vpack.c.b16 %v1533, %v2188
        %vm2191 = vcmask 1045504
        %v2192 = vrot.slane %v2189, 2
        %v2193 = vrot.slane %v1562, 2
        %v2194 = vsel %vm2191, %v2192, %v2193
        %v2195 = vrot.slane %v2190, 2
        %v2196 = vrot.slane %v1563, 2
        %v2197 = vsel %vm2191, %v2195, %v2196
        %v2198 = vrot.slane %v1564, 2
        %v2199 = vsel %vm2191, %v2193, %v2198
        %v2200 = vrot.slane %v1565, 2
        %v2201 = vsel %vm2191, %v2196, %v2200
        %v2202 = vrot.slane %v1566, 2
        %v2203 = vsel %vm2191, %v2198, %v2202
        %v2204 = vrot.slane %v1567, 2
        %v2205 = vsel %vm2191, %v2200, %v2204
        %v2206 = vrot.slane %v1568, 2
        %v2207 = vsel %vm2191, %v2202, %v2206
        %v2208 = vrot.slane %v1569, 2
        %v2209 = vsel %vm2191, %v2204, %v2208
        %v2210 = vrot.slane %v1570, 2
        %v2211 = vsel %vm2191, %v2206, %v2210
        %v2212 = vrot.slane %v1571, 2
        %v2213 = vsel %vm2191, %v2208, %v2212
        %v2214 = vrot.slane %v1572, 2
        %v2215 = vsel %vm2191, %v2210, %v2214
        %v2216 = vrot.slane %v1573, 2
        %v2217 = vsel %vm2191, %v2212, %v2216
        %v2218 = vrot.slane %v1574, 2
        %v2219 = vsel %vm2191, %v2214, %v2218
        %v2220 = vrot.slane %v1575, 2
        %v2221 = vsel %vm2191, %v2216, %v2220
        %v2268 = vunpack.c.l.b16 %v2154
        %v2269 = vunpack.c.l.b16 %v2155
        %v2270 = vunpack.c.l.b16 %v2156
        %v2271 = vunpack.c.l.b16 %v2157
        %v2272 = vunpack.c.l.b16 %v2158
        %v2273 = vunpack.c.l.b16 %v2159
        %v2274 = vunpack.c.l.b16 %v2160
        %v2275 = vunpack.c.l.b16 %v2161
        %v2276 = vunpack.c.l.b16 %v2162
        %v2277 = vunpack.c.l.b16 %v2163
        %v2278 = vunpack.c.l.b16 %v2164
        %v2279 = vunpack.c.l.b16 %v2165
        %v2280 = vunpack.c.l.b16 %v2166
        %v2281 = vunpack.c.l.b16 %v2167
        %v2282 = vunpack.c.l.b16 %v2168
        %v2283 = vunpack.c.l.b16 %v2169
        %v2284 = vunpack.c.l.b16 %v2170
        %v2285 = vunpack.c.l.b16 %v2171
        %v2286 = vunpack.c.l.b16 %v2172
        %v2287 = vunpack.c.l.b16 %v2173
        %v2288 = vunpack.c.l.b16 %v2174
        %v2289 = vunpack.c.l.b16 %v2175
        %v2290 = vunpack.c.l.b16 %v2176
        %v2291 = vunpack.c.l.b16 %v2177
        %v2292 = vunpack.c.l.b16 %v2178
        %v2293 = vunpack.c.l.b16 %v2179
        %v2294 = vunpack.c.l.b16 %v2180
        %v2295 = vunpack.c.l.b16 %v2181
        %v2296 = vunpack.c.l.b16 %v2182
        %v2297 = vunpack.c.l.b16 %v2183
        %v2298 = vunpack.c.l.b16 %v2184
        %v2299 = vunpack.c.l.b16 %v2185
        %v2300 = vpack.c.b16 %v2269, %v2268
        %v2301 = vpack.c.b16 %v2271, %v2270
        %v2302 = vpack.c.b16 %v2273, %v2272
        %v2303 = vpack.c.b16 %v2275, %v2274
        %v2304 = vpack.c.b16 %v2277, %v2276
        %v2305 = vpack.c.b16 %v2279, %v2278
        %v2306 = vpack.c.b16 %v2281, %v2280
        %v2307 = vpack.c.b16 %v2283, %v2282
        %v2308 = vpack.c.b16 %v2285, %v2284
        %v2309 = vpack.c.b16 %v2287, %v2286
        %v2310 = vpack.c.b16 %v2289, %v2288
        %v2311 = vpack.c.b16 %v2291, %v2290
        %v2312 = vpack.c.b16 %v2293, %v2292
        %v2313 = vpack.c.b16 %v2295, %v2294
        %v2314 = vpack.c.b16 %v2297, %v2296
        %v2315 = vpack.c.b16 %v2299, %v2298
        %2332 = vmatprep.subr.bf16.mxu0 0
        %2333 = vmatpush1.bf16.msra.mxu0 %v2300
        %2334 = vmatprep.subr.bf16.mxu0 0
        %2335 = vmatpush1.bf16.msra.mxu0 %v2301
        %2336 = vmatprep.subr.bf16.mxu0 0
        %2337 = vmatpush1.bf16.msra.mxu0 %v2302
        %2338 = vmatprep.subr.bf16.mxu0 0
        %2339 = vmatpush1.bf16.msra.mxu0 %v2303
        %2340 = vmatprep.subr.bf16.mxu0 0
        %2341 = vmatpush1.bf16.msra.mxu0 %v2304
        %2342 = vmatprep.subr.bf16.mxu0 0
        %2343 = vmatpush1.bf16.msra.mxu0 %v2305
        %2344 = vmatprep.subr.bf16.mxu0 0
        %2345 = vmatpush1.bf16.msra.mxu0 %v2306
        %2346 = vmatprep.subr.bf16.mxu0 0
        %2347 = vmatpush1.bf16.msra.mxu0 %v2307
        %2348 = vmatprep.subr.bf16.mxu0 0
        %2349 = vmatpush1.bf16.msra.mxu0 %v2308
        %2350 = vmatprep.subr.bf16.mxu0 0
        %2351 = vmatpush1.bf16.msra.mxu0 %v2309
        %2352 = vmatprep.subr.bf16.mxu0 0
        %2353 = vmatpush1.bf16.msra.mxu0 %v2310
        %2354 = vmatprep.subr.bf16.mxu0 0
        %2355 = vmatpush1.bf16.msra.mxu0 %v2311
        %2356 = vmatprep.subr.bf16.mxu0 0
        %2357 = vmatpush1.bf16.msra.mxu0 %v2312
        %2358 = vmatprep.subr.bf16.mxu0 0
        %2359 = vmatpush1.bf16.msra.mxu0 %v2313
        %2360 = vmatprep.subr.bf16.mxu0 0
        %2361 = vmatpush1.bf16.msra.mxu0 %v2314
        %2362 = vmatprep.subr.bf16.mxu0 0
        %2363 = vmatpush1.bf16.msra.mxu0 %v2315
        %2364 = vmatprep.mubr.bf16.mxu0 %v2197
        %2365 = vmatmul.mubr.bf16.gmra.mrb[0].mxu0 %v2194
        %v2366 = vpop.f32.mrb[0].mxu0
        %v2367 = vadd.f32 0.0, %v2366
        %v2368 = vpop.f32.mrb[0].mxu0
        %v2369 = vpop.f32.mrb[0].mxu0
        %v2370 = vadd.f32 0.0, %v2369
        %v2371 = vpop.f32.mrb[0].mxu0
        %2372 = vmatprep.mubr.bf16.mxu0 %v2201
        %2373 = vmatmul.mubr.bf16.gmra.mrb[0].mxu0 %v2199
        %v2374 = vpop.f32.mrb[0].mxu0
        %v2375 = vadd.f32 0.0, %v2374
        %v2376 = vpop.f32.mrb[0].mxu0
        %v2377 = vpop.f32.mrb[0].mxu0
        %v2378 = vadd.f32 0.0, %v2377
        %v2379 = vpop.f32.mrb[0].mxu0
        %2380 = vmatprep.mubr.bf16.mxu0 %v2205
        %2381 = vmatmul.mubr.bf16.gmra.mrb[0].mxu0 %v2203
        %v2382 = vpop.f32.mrb[0].mxu0
        %v2383 = vadd.f32 0.0, %v2382
        %v2384 = vpop.f32.mrb[0].mxu0
        %v2385 = vpop.f32.mrb[0].mxu0
        %v2386 = vadd.f32 0.0, %v2385
        %v2387 = vpop.f32.mrb[0].mxu0
        %2388 = vmatprep.mubr.bf16.mxu0 %v2209
        %2389 = vmatmul.mubr.bf16.gmra.mrb[0].mxu0 %v2207
        %v2390 = vpop.f32.mrb[0].mxu0
        %v2391 = vadd.f32 0.0, %v2390
        %v2392 = vpop.f32.mrb[0].mxu0
        %v2393 = vpop.f32.mrb[0].mxu0
        %v2394 = vadd.f32 0.0, %v2393
        %v2395 = vpop.f32.mrb[0].mxu0
        %2396 = vmatprep.mubr.bf16.mxu0 %v2213
        %2397 = vmatmul.mubr.bf16.gmra.mrb[0].mxu0 %v2211
        %v2398 = vpop.f32.mrb[0].mxu0
        %v2399 = vadd.f32 0.0, %v2398
        %v2400 = vpop.f32.mrb[0].mxu0
        %v2401 = vpop.f32.mrb[0].mxu0
        %v2402 = vadd.f32 0.0, %v2401
        %v2403 = vpop.f32.mrb[0].mxu0
        %2404 = vmatprep.mubr.bf16.mxu0 %v2217
        %2405 = vmatmul.mubr.bf16.gmra.mrb[0].mxu0 %v2215
        %v2406 = vpop.f32.mrb[0].mxu0
        %v2407 = vadd.f32 0.0, %v2406
        %v2408 = vpop.f32.mrb[0].mxu0
        %v2409 = vpop.f32.mrb[0].mxu0
        %v2410 = vadd.f32 0.0, %v2409
        %v2411 = vpop.f32.mrb[0].mxu0
        %2412 = vmatprep.mubr.bf16.mxu0 %v2221
        %2413 = vmatmul.mubr.bf16.gmra.mrb[0].mxu0 %v2219
        %v2414 = vpop.f32.mrb[0].mxu0
        %v2415 = vadd.f32 0.0, %v2414
        %v2416 = vpop.f32.mrb[0].mxu0
        %v2417 = vpop.f32.mrb[0].mxu0
        %v2418 = vadd.f32 0.0, %v2417
        %v2419 = vpop.f32.mrb[0].mxu0
        %2420 = vdwg.mxu0
        %v2421 = vadd.f32 %v2099, %v2367
        %v2422 = vadd.f32 %v2102, %v2370
        %v2423 = vadd.f32 %v2107, %v2375
        %v2424 = vadd.f32 %v2110, %v2378
        %v2425 = vadd.f32 %v2115, %v2383
        %v2426 = vadd.f32 %v2118, %v2386
        %v2427 = vadd.f32 %v2123, %v2391
        %v2428 = vadd.f32 %v2126, %v2394
        %v2429 = vadd.f32 %v2131, %v2399
        %v2430 = vadd.f32 %v2134, %v2402
        %v2431 = vadd.f32 %v2139, %v2407
        %v2432 = vadd.f32 %v2142, %v2410
        %v2433 = vadd.f32 %v2147, %v2415
        %v2434 = vadd.f32 %v2150, %v2418
        %v2435 = vld [vmem:[#allocation2 + $0x70] sm:$0x77]
        %v2436 = vld [vmem:[#allocation10 + $0x180] sm:$0xf]
        %v2437 = vld [vmem:[#allocation10 + $0x184] sm:$0xf]
        %v2438 = vld [vmem:[#allocation10 + $0x188] sm:$0xf]
        %v2439 = vld [vmem:[#allocation10 + $0x18c] sm:$0xf]
        %v2440 = vld [vmem:[#allocation10 + $0x190] sm:$0xf]
        %v2441 = vld [vmem:[#allocation10 + $0x194] sm:$0xf]
        %v2442 = vld [vmem:[#allocation10 + $0x198] sm:$0xf]
        %v2443 = vld [vmem:[#allocation10 + $0x19c] sm:$0xf]
        %v2444 = vld [vmem:[#allocation10 + $0x1a0] sm:$0xf]
        %v2445 = vld [vmem:[#allocation10 + $0x1a4] sm:$0xf]
        %v2446 = vld [vmem:[#allocation10 + $0x1a8] sm:$0xf]
        %v2447 = vld [vmem:[#allocation10 + $0x1ac] sm:$0xf]
        %v2448 = vld [vmem:[#allocation10 + $0x1b0] sm:$0xf]
        %v2449 = vld [vmem:[#allocation10 + $0x1b4] sm:$0xf]
        %v2450 = vld [vmem:[#allocation10 + $0x1b8] sm:$0xf]
        %v2451 = vld [vmem:[#allocation10 + $0x1bc] sm:$0xf]
        %v2452 = vld [vmem:[#allocation10 + $0x1c0] sm:$0xf]
        %v2453 = vld [vmem:[#allocation10 + $0x1c4] sm:$0xf]
        %v2454 = vld [vmem:[#allocation10 + $0x1c8] sm:$0xf]
        %v2455 = vld [vmem:[#allocation10 + $0x1cc] sm:$0xf]
        %v2456 = vld [vmem:[#allocation10 + $0x1d0] sm:$0xf]
        %v2457 = vld [vmem:[#allocation10 + $0x1d4] sm:$0xf]
        %v2458 = vld [vmem:[#allocation10 + $0x1d8] sm:$0xf]
        %v2459 = vld [vmem:[#allocation10 + $0x1dc] sm:$0xf]
        %v2460 = vld [vmem:[#allocation10 + $0x1e0] sm:$0xf]
        %v2461 = vld [vmem:[#allocation10 + $0x1e4] sm:$0xf]
        %v2462 = vld [vmem:[#allocation10 + $0x1e8] sm:$0xf]
        %v2463 = vld [vmem:[#allocation10 + $0x1ec] sm:$0xf]
        %v2464 = vld [vmem:[#allocation10 + $0x1f0] sm:$0xf]
        %v2465 = vld [vmem:[#allocation10 + $0x1f4] sm:$0xf]
        %v2466 = vld [vmem:[#allocation10 + $0x1f8] sm:$0xf]
        %v2467 = vld [vmem:[#allocation10 + $0x1fc] sm:$0xf]
        %v2469 = vunpack.c.l.b16 %v2435
        %v2470 = vunpack.c.h.b16 %v2435
        %v2471 = vpack.c.b16 %v2469, %v2469
        %v2472 = vpack.c.b16 %v2470, %v2470
        %vm2473 = vsmask.f32 5376
        %v2475 = vshrl.u32 %v2189, 16
        %v2477 = vrot.slane %v2475, 2
        %v2478 = vshll.u32 %v2189, 16
        %v2480 = vrot.slane %v2478, 3
        %v2481 = vor.u32 %v2477, %v2480
        %v2482 = vrot.slane %v1586, 2
        %v2483 = vrot.slane %v1589, 3
        %v2484 = vor.u32 %v2482, %v2483
        %v2485 = vsel %vm2473, %v2481, %v2484
        %v2487 = vshrl.u32 %v2190, 16
        %v2489 = vrot.slane %v2487, 2
        %v2490 = vshll.u32 %v2190, 16
        %v2492 = vrot.slane %v2490, 3
        %v2493 = vor.u32 %v2489, %v2492
        %v2494 = vrot.slane %v1603, 2
        %v2495 = vrot.slane %v1606, 3
        %v2496 = vor.u32 %v2494, %v2495
        %v2497 = vsel %vm2473, %v2493, %v2496
        %v2498 = vrot.slane %v1612, 2
        %v2499 = vrot.slane %v1615, 3
        %v2500 = vor.u32 %v2498, %v2499
        %v2501 = vsel %vm2473, %v2484, %v2500
        %v2502 = vrot.slane %v1621, 2
        %v2503 = vrot.slane %v1624, 3
        %v2504 = vor.u32 %v2502, %v2503
        %v2505 = vsel %vm2473, %v2496, %v2504
        %v2506 = vrot.slane %v1630, 2
        %v2507 = vrot.slane %v1633, 3
        %v2508 = vor.u32 %v2506, %v2507
        %v2509 = vsel %vm2473, %v2500, %v2508
        %v2510 = vrot.slane %v1639, 2
        %v2511 = vrot.slane %v1642, 3
        %v2512 = vor.u32 %v2510, %v2511
        %v2513 = vsel %vm2473, %v2504, %v2512
        %v2514 = vrot.slane %v1648, 2
        %v2515 = vrot.slane %v1651, 3
        %v2516 = vor.u32 %v2514, %v2515
        %v2517 = vsel %vm2473, %v2508, %v2516
        %v2518 = vrot.slane %v1657, 2
        %v2519 = vrot.slane %v1660, 3
        %v2520 = vor.u32 %v2518, %v2519
        %v2521 = vsel %vm2473, %v2512, %v2520
        %v2522 = vrot.slane %v1666, 2
        %v2523 = vrot.slane %v1669, 3
        %v2524 = vor.u32 %v2522, %v2523
        %v2525 = vsel %vm2473, %v2516, %v2524
        %v2526 = vrot.slane %v1675, 2
        %v2527 = vrot.slane %v1678, 3
        %v2528 = vor.u32 %v2526, %v2527
        %v2529 = vsel %vm2473, %v2520, %v2528
        %v2530 = vrot.slane %v1684, 2
        %v2531 = vrot.slane %v1687, 3
        %v2532 = vor.u32 %v2530, %v2531
        %v2533 = vsel %vm2473, %v2524, %v2532
        %v2534 = vrot.slane %v1693, 2
        %v2535 = vrot.slane %v1696, 3
        %v2536 = vor.u32 %v2534, %v2535
        %v2537 = vsel %vm2473, %v2528, %v2536
        %v2539 = vshrl.u32 %v2471, 16
        %v2541 = vrot.slane %v2539, 2
        %v2542 = vshll.u32 %v2471, 16
        %v2544 = vrot.slane %v2542, 3
        %v2545 = vor.u32 %v2541, %v2544
        %v2546 = vsel %vm2473, %v2532, %v2545
        %v2548 = vshrl.u32 %v2472, 16
        %v2550 = vrot.slane %v2548, 2
        %v2551 = vshll.u32 %v2472, 16
        %v2553 = vrot.slane %v2551, 3
        %v2554 = vor.u32 %v2550, %v2553
        %v2555 = vsel %vm2473, %v2536, %v2554
        %v2602 = vunpack.c.l.b16 %v2436
        %v2603 = vunpack.c.l.b16 %v2437
        %v2604 = vunpack.c.l.b16 %v2438
        %v2605 = vunpack.c.l.b16 %v2439
        %v2606 = vunpack.c.l.b16 %v2440
        %v2607 = vunpack.c.l.b16 %v2441
        %v2608 = vunpack.c.l.b16 %v2442
        %v2609 = vunpack.c.l.b16 %v2443
        %v2610 = vunpack.c.l.b16 %v2444
        %v2611 = vunpack.c.l.b16 %v2445
        %v2612 = vunpack.c.l.b16 %v2446
        %v2613 = vunpack.c.l.b16 %v2447
        %v2614 = vunpack.c.l.b16 %v2448
        %v2615 = vunpack.c.l.b16 %v2449
        %v2616 = vunpack.c.l.b16 %v2450
        %v2617 = vunpack.c.l.b16 %v2451
        %v2618 = vunpack.c.l.b16 %v2452
        %v2619 = vunpack.c.l.b16 %v2453
        %v2620 = vunpack.c.l.b16 %v2454
        %v2621 = vunpack.c.l.b16 %v2455
        %v2622 = vunpack.c.l.b16 %v2456
        %v2623 = vunpack.c.l.b16 %v2457
        %v2624 = vunpack.c.l.b16 %v2458
        %v2625 = vunpack.c.l.b16 %v2459
        %v2626 = vunpack.c.l.b16 %v2460
        %v2627 = vunpack.c.l.b16 %v2461
        %v2628 = vunpack.c.l.b16 %v2462
        %v2629 = vunpack.c.l.b16 %v2463
        %v2630 = vunpack.c.l.b16 %v2464
        %v2631 = vunpack.c.l.b16 %v2465
        %v2632 = vunpack.c.l.b16 %v2466
        %v2633 = vunpack.c.l.b16 %v2467
        %v2634 = vpack.c.b16 %v2603, %v2602
        %v2635 = vpack.c.b16 %v2605, %v2604
        %v2636 = vpack.c.b16 %v2607, %v2606
        %v2637 = vpack.c.b16 %v2609, %v2608
        %v2638 = vpack.c.b16 %v2611, %v2610
        %v2639 = vpack.c.b16 %v2613, %v2612
        %v2640 = vpack.c.b16 %v2615, %v2614
        %v2641 = vpack.c.b16 %v2617, %v2616
        %v2642 = vpack.c.b16 %v2619, %v2618
        %v2643 = vpack.c.b16 %v2621, %v2620
        %v2644 = vpack.c.b16 %v2623, %v2622
        %v2645 = vpack.c.b16 %v2625, %v2624
        %v2646 = vpack.c.b16 %v2627, %v2626
        %v2647 = vpack.c.b16 %v2629, %v2628
        %v2648 = vpack.c.b16 %v2631, %v2630
        %v2649 = vpack.c.b16 %v2633, %v2632
        %2666 = vmatprep.subr.bf16.mxu0 0
        %2667 = vmatpush1.bf16.msra.mxu0 %v2634
        %2668 = vmatprep.subr.bf16.mxu0 0
        %2669 = vmatpush1.bf16.msra.mxu0 %v2635
        %2670 = vmatprep.subr.bf16.mxu0 0
        %2671 = vmatpush1.bf16.msra.mxu0 %v2636
        %2672 = vmatprep.subr.bf16.mxu0 0
        %2673 = vmatpush1.bf16.msra.mxu0 %v2637
        %2674 = vmatprep.subr.bf16.mxu0 0
        %2675 = vmatpush1.bf16.msra.mxu0 %v2638
        %2676 = vmatprep.subr.bf16.mxu0 0
        %2677 = vmatpush1.bf16.msra.mxu0 %v2639
        %2678 = vmatprep.subr.bf16.mxu0 0
        %2679 = vmatpush1.bf16.msra.mxu0 %v2640
        %2680 = vmatprep.subr.bf16.mxu0 0
        %2681 = vmatpush1.bf16.msra.mxu0 %v2641
        %2682 = vmatprep.subr.bf16.mxu0 0
        %2683 = vmatpush1.bf16.msra.mxu0 %v2642
        %2684 = vmatprep.subr.bf16.mxu0 0
        %2685 = vmatpush1.bf16.msra.mxu0 %v2643
        %2686 = vmatprep.subr.bf16.mxu0 0
        %2687 = vmatpush1.bf16.msra.mxu0 %v2644
        %2688 = vmatprep.subr.bf16.mxu0 0
        %2689 = vmatpush1.bf16.msra.mxu0 %v2645
        %2690 = vmatprep.subr.bf16.mxu0 0
        %2691 = vmatpush1.bf16.msra.mxu0 %v2646
        %2692 = vmatprep.subr.bf16.mxu0 0
        %2693 = vmatpush1.bf16.msra.mxu0 %v2647
        %2694 = vmatprep.subr.bf16.mxu0 0
        %2695 = vmatpush1.bf16.msra.mxu0 %v2648
        %2696 = vmatprep.subr.bf16.mxu0 0
        %2697 = vmatpush1.bf16.msra.mxu0 %v2649
        %2698 = vmatprep.mubr.bf16.mxu0 %v2497
        %2699 = vmatmul.mubr.bf16.gmra.mrb[0].mxu0 %v2485
        %v2700 = vpop.f32.mrb[0].mxu0
        %v2701 = vadd.f32 0.0, %v2700
        %v2702 = vpop.f32.mrb[0].mxu0
        %v2703 = vpop.f32.mrb[0].mxu0
        %v2704 = vadd.f32 0.0, %v2703
        %v2705 = vpop.f32.mrb[0].mxu0
        %2706 = vmatprep.mubr.bf16.mxu0 %v2505
        %2707 = vmatmul.mubr.bf16.gmra.mrb[0].mxu0 %v2501
        %v2708 = vpop.f32.mrb[0].mxu0
        %v2709 = vadd.f32 0.0, %v2708
        %v2710 = vpop.f32.mrb[0].mxu0
        %v2711 = vpop.f32.mrb[0].mxu0
        %v2712 = vadd.f32 0.0, %v2711
        %v2713 = vpop.f32.mrb[0].mxu0
        %2714 = vmatprep.mubr.bf16.mxu0 %v2513
        %2715 = vmatmul.mubr.bf16.gmra.mrb[0].mxu0 %v2509
        %v2716 = vpop.f32.mrb[0].mxu0
        %v2717 = vadd.f32 0.0, %v2716
        %v2718 = vpop.f32.mrb[0].mxu0
        %v2719 = vpop.f32.mrb[0].mxu0
        %v2720 = vadd.f32 0.0, %v2719
        %v2721 = vpop.f32.mrb[0].mxu0
        %2722 = vmatprep.mubr.bf16.mxu0 %v2521
        %2723 = vmatmul.mubr.bf16.gmra.mrb[0].mxu0 %v2517
        %v2724 = vpop.f32.mrb[0].mxu0
        %v2725 = vadd.f32 0.0, %v2724
        %v2726 = vpop.f32.mrb[0].mxu0
        %v2727 = vpop.f32.mrb[0].mxu0
        %v2728 = vadd.f32 0.0, %v2727
        %v2729 = vpop.f32.mrb[0].mxu0
        %2730 = vmatprep.mubr.bf16.mxu0 %v2529
        %2731 = vmatmul.mubr.bf16.gmra.mrb[0].mxu0 %v2525
        %v2732 = vpop.f32.mrb[0].mxu0
        %v2733 = vadd.f32 0.0, %v2732
        %v2734 = vpop.f32.mrb[0].mxu0
        %v2735 = vpop.f32.mrb[0].mxu0
        %v2736 = vadd.f32 0.0, %v2735
        %v2737 = vpop.f32.mrb[0].mxu0
        %2738 = vmatprep.mubr.bf16.mxu0 %v2537
        %2739 = vmatmul.mubr.bf16.gmra.mrb[0].mxu0 %v2533
        %v2740 = vpop.f32.mrb[0].mxu0
        %v2741 = vadd.f32 0.0, %v2740
        %v2742 = vpop.f32.mrb[0].mxu0
        %v2743 = vpop.f32.mrb[0].mxu0
        %v2744 = vadd.f32 0.0, %v2743
        %v2745 = vpop.f32.mrb[0].mxu0
        %2746 = vmatprep.mubr.bf16.mxu0 %v2555
        %2747 = vmatmul.mubr.bf16.gmra.mrb[0].mxu0 %v2546
        %v2748 = vpop.f32.mrb[0].mxu0
        %v2749 = vadd.f32 0.0, %v2748
        %v2750 = vpop.f32.mrb[0].mxu0
        %v2751 = vpop.f32.mrb[0].mxu0
        %v2752 = vadd.f32 0.0, %v2751
        %v2753 = vpop.f32.mrb[0].mxu0
        %2754 = vdwg.mxu0
        %v2755 = vadd.f32 %v2421, %v2701
        %v2756 = vadd.f32 %v2422, %v2704
        %v2757 = vadd.f32 %v2423, %v2709
        %v2758 = vadd.f32 %v2424, %v2712
        %v2759 = vadd.f32 %v2425, %v2717
        %v2760 = vadd.f32 %v2426, %v2720
        %v2761 = vadd.f32 %v2427, %v2725
        %v2762 = vadd.f32 %v2428, %v2728
        %v2763 = vadd.f32 %v2429, %v2733
        %v2764 = vadd.f32 %v2430, %v2736
        %v2765 = vadd.f32 %v2431, %v2741
        %v2766 = vadd.f32 %v2432, %v2744
        %v2767 = vadd.f32 %v2433, %v2749
        %v2768 = vadd.f32 %v2434, %v2752
        %v2769 = vld [vmem:[#allocation2] sm:$0x88]
        %v2770 = vld [vmem:[#allocation10 + $0x200] sm:$0xf]
        %v2771 = vld [vmem:[#allocation10 + $0x204] sm:$0xf]
        %v2772 = vld [vmem:[#allocation10 + $0x208] sm:$0xf]
        %v2773 = vld [vmem:[#allocation10 + $0x20c] sm:$0xf]
        %v2774 = vld [vmem:[#allocation10 + $0x210] sm:$0xf]
        %v2775 = vld [vmem:[#allocation10 + $0x214] sm:$0xf]
        %v2776 = vld [vmem:[#allocation10 + $0x218] sm:$0xf]
        %v2777 = vld [vmem:[#allocation10 + $0x21c] sm:$0xf]
        %v2778 = vld [vmem:[#allocation10 + $0x220] sm:$0xf]
        %v2779 = vld [vmem:[#allocation10 + $0x224] sm:$0xf]
        %v2780 = vld [vmem:[#allocation10 + $0x228] sm:$0xf]
        %v2781 = vld [vmem:[#allocation10 + $0x22c] sm:$0xf]
        %v2782 = vld [vmem:[#allocation10 + $0x230] sm:$0xf]
        %v2783 = vld [vmem:[#allocation10 + $0x234] sm:$0xf]
        %v2784 = vld [vmem:[#allocation10 + $0x238] sm:$0xf]
        %v2785 = vld [vmem:[#allocation10 + $0x23c] sm:$0xf]
        %v2786 = vld [vmem:[#allocation10 + $0x240] sm:$0xf]
        %v2787 = vld [vmem:[#allocation10 + $0x244] sm:$0xf]
        %v2788 = vld [vmem:[#allocation10 + $0x248] sm:$0xf]
        %v2789 = vld [vmem:[#allocation10 + $0x24c] sm:$0xf]
        %v2790 = vld [vmem:[#allocation10 + $0x250] sm:$0xf]
        %v2791 = vld [vmem:[#allocation10 + $0x254] sm:$0xf]
        %v2792 = vld [vmem:[#allocation10 + $0x258] sm:$0xf]
        %v2793 = vld [vmem:[#allocation10 + $0x25c] sm:$0xf]
        %v2794 = vld [vmem:[#allocation10 + $0x260] sm:$0xf]
        %v2795 = vld [vmem:[#allocation10 + $0x264] sm:$0xf]
        %v2796 = vld [vmem:[#allocation10 + $0x268] sm:$0xf]
        %v2797 = vld [vmem:[#allocation10 + $0x26c] sm:$0xf]
        %v2798 = vld [vmem:[#allocation10 + $0x270] sm:$0xf]
        %v2799 = vld [vmem:[#allocation10 + $0x274] sm:$0xf]
        %v2800 = vld [vmem:[#allocation10 + $0x278] sm:$0xf]
        %v2801 = vld [vmem:[#allocation10 + $0x27c] sm:$0xf]
        %v2803 = vunpack.c.l.b16 %v2769
        %v2804 = vunpack.c.h.b16 %v2769
        %v2805 = vpack.c.b16 %v1532, %v2803
        %v2806 = vpack.c.b16 %v1533, %v2804
        %vm2807 = vcmask 1044480
        %v2808 = vrot.slane %v2805, 3
        %v2809 = vrot.slane %v1562, 3
        %v2810 = vsel %vm2807, %v2808, %v2809
        %v2811 = vrot.slane %v2806, 3
        %v2812 = vrot.slane %v1563, 3
        %v2813 = vsel %vm2807, %v2811, %v2812
        %v2814 = vrot.slane %v1564, 3
        %v2815 = vsel %vm2807, %v2809, %v2814
        %v2816 = vrot.slane %v1565, 3
        %v2817 = vsel %vm2807, %v2812, %v2816
        %v2818 = vrot.slane %v1566, 3
        %v2819 = vsel %vm2807, %v2814, %v2818
        %v2820 = vrot.slane %v1567, 3
        %v2821 = vsel %vm2807, %v2816, %v2820
        %v2822 = vrot.slane %v1568, 3
        %v2823 = vsel %vm2807, %v2818, %v2822
        %v2824 = vrot.slane %v1569, 3
        %v2825 = vsel %vm2807, %v2820, %v2824
        %v2826 = vrot.slane %v1570, 3
        %v2827 = vsel %vm2807, %v2822, %v2826
        %v2828 = vrot.slane %v1571, 3
        %v2829 = vsel %vm2807, %v2824, %v2828
        %v2830 = vrot.slane %v1572, 3
        %v2831 = vsel %vm2807, %v2826, %v2830
        %v2832 = vrot.slane %v1573, 3
        %v2833 = vsel %vm2807, %v2828, %v2832
        %v2834 = vrot.slane %v2471, 3
        %v2835 = vsel %vm2807, %v2830, %v2834
        %v2836 = vrot.slane %v2472, 3
        %v2837 = vsel %vm2807, %v2832, %v2836
        %v2884 = vunpack.c.l.b16 %v2770
        %v2885 = vunpack.c.l.b16 %v2771
        %v2886 = vunpack.c.l.b16 %v2772
        %v2887 = vunpack.c.l.b16 %v2773
        %v2888 = vunpack.c.l.b16 %v2774
        %v2889 = vunpack.c.l.b16 %v2775
        %v2890 = vunpack.c.l.b16 %v2776
        %v2891 = vunpack.c.l.b16 %v2777
        %v2892 = vunpack.c.l.b16 %v2778
        %v2893 = vunpack.c.l.b16 %v2779
        %v2894 = vunpack.c.l.b16 %v2780
        %v2895 = vunpack.c.l.b16 %v2781
        %v2896 = vunpack.c.l.b16 %v2782
        %v2897 = vunpack.c.l.b16 %v2783
        %v2898 = vunpack.c.l.b16 %v2784
        %v2899 = vunpack.c.l.b16 %v2785
        %v2900 = vunpack.c.l.b16 %v2786
        %v2901 = vunpack.c.l.b16 %v2787
        %v2902 = vunpack.c.l.b16 %v2788
        %v2903 = vunpack.c.l.b16 %v2789
        %v2904 = vunpack.c.l.b16 %v2790
        %v2905 = vunpack.c.l.b16 %v2791
        %v2906 = vunpack.c.l.b16 %v2792
        %v2907 = vunpack.c.l.b16 %v2793
        %v2908 = vunpack.c.l.b16 %v2794
        %v2909 = vunpack.c.l.b16 %v2795
        %v2910 = vunpack.c.l.b16 %v2796
        %v2911 = vunpack.c.l.b16 %v2797
        %v2912 = vunpack.c.l.b16 %v2798
        %v2913 = vunpack.c.l.b16 %v2799
        %v2914 = vunpack.c.l.b16 %v2800
        %v2915 = vunpack.c.l.b16 %v2801
        %v2916 = vpack.c.b16 %v2885, %v2884
        %v2917 = vpack.c.b16 %v2887, %v2886
        %v2918 = vpack.c.b16 %v2889, %v2888
        %v2919 = vpack.c.b16 %v2891, %v2890
        %v2920 = vpack.c.b16 %v2893, %v2892
        %v2921 = vpack.c.b16 %v2895, %v2894
        %v2922 = vpack.c.b16 %v2897, %v2896
        %v2923 = vpack.c.b16 %v2899, %v2898
        %v2924 = vpack.c.b16 %v2901, %v2900
        %v2925 = vpack.c.b16 %v2903, %v2902
        %v2926 = vpack.c.b16 %v2905, %v2904
        %v2927 = vpack.c.b16 %v2907, %v2906
        %v2928 = vpack.c.b16 %v2909, %v2908
        %v2929 = vpack.c.b16 %v2911, %v2910
        %v2930 = vpack.c.b16 %v2913, %v2912
        %v2931 = vpack.c.b16 %v2915, %v2914
        %2948 = vmatprep.subr.bf16.mxu0 0
        %2949 = vmatpush1.bf16.msra.mxu0 %v2916
        %2950 = vmatprep.subr.bf16.mxu0 0
        %2951 = vmatpush1.bf16.msra.mxu0 %v2917
        %2952 = vmatprep.subr.bf16.mxu0 0
        %2953 = vmatpush1.bf16.msra.mxu0 %v2918
        %2954 = vmatprep.subr.bf16.mxu0 0
        %2955 = vmatpush1.bf16.msra.mxu0 %v2919
        %2956 = vmatprep.subr.bf16.mxu0 0
        %2957 = vmatpush1.bf16.msra.mxu0 %v2920
        %2958 = vmatprep.subr.bf16.mxu0 0
        %2959 = vmatpush1.bf16.msra.mxu0 %v2921
        %2960 = vmatprep.subr.bf16.mxu0 0
        %2961 = vmatpush1.bf16.msra.mxu0 %v2922
        %2962 = vmatprep.subr.bf16.mxu0 0
        %2963 = vmatpush1.bf16.msra.mxu0 %v2923
        %2964 = vmatprep.subr.bf16.mxu0 0
        %2965 = vmatpush1.bf16.msra.mxu0 %v2924
        %2966 = vmatprep.subr.bf16.mxu0 0
        %2967 = vmatpush1.bf16.msra.mxu0 %v2925
        %2968 = vmatprep.subr.bf16.mxu0 0
        %2969 = vmatpush1.bf16.msra.mxu0 %v2926
        %2970 = vmatprep.subr.bf16.mxu0 0
        %2971 = vmatpush1.bf16.msra.mxu0 %v2927
        %2972 = vmatprep.subr.bf16.mxu0 0
        %2973 = vmatpush1.bf16.msra.mxu0 %v2928
        %2974 = vmatprep.subr.bf16.mxu0 0
        %2975 = vmatpush1.bf16.msra.mxu0 %v2929
        %2976 = vmatprep.subr.bf16.mxu0 0
        %2977 = vmatpush1.bf16.msra.mxu0 %v2930
        %2978 = vmatprep.subr.bf16.mxu0 0
        %2979 = vmatpush1.bf16.msra.mxu0 %v2931
        %2980 = vmatprep.mubr.bf16.mxu0 %v2813
        %2981 = vmatmul.mubr.bf16.gmra.mrb[0].mxu0 %v2810
        %v2982 = vpop.f32.mrb[0].mxu0
        %v2983 = vadd.f32 0.0, %v2982
        %v2984 = vpop.f32.mrb[0].mxu0
        %v2985 = vpop.f32.mrb[0].mxu0
        %v2986 = vadd.f32 0.0, %v2985
        %v2987 = vpop.f32.mrb[0].mxu0
        %2988 = vmatprep.mubr.bf16.mxu0 %v2817
        %2989 = vmatmul.mubr.bf16.gmra.mrb[0].mxu0 %v2815
        %v2990 = vpop.f32.mrb[0].mxu0
        %v2991 = vadd.f32 0.0, %v2990
        %v2992 = vpop.f32.mrb[0].mxu0
        %v2993 = vpop.f32.mrb[0].mxu0
        %v2994 = vadd.f32 0.0, %v2993
        %v2995 = vpop.f32.mrb[0].mxu0
        %2996 = vmatprep.mubr.bf16.mxu0 %v2821
        %2997 = vmatmul.mubr.bf16.gmra.mrb[0].mxu0 %v2819
        %v2998 = vpop.f32.mrb[0].mxu0
        %v2999 = vadd.f32 0.0, %v2998
        %v3000 = vpop.f32.mrb[0].mxu0
        %v3001 = vpop.f32.mrb[0].mxu0
        %v3002 = vadd.f32 0.0, %v3001
        %v3003 = vpop.f32.mrb[0].mxu0
        %3004 = vmatprep.mubr.bf16.mxu0 %v2825
        %3005 = vmatmul.mubr.bf16.gmra.mrb[0].mxu0 %v2823
        %v3006 = vpop.f32.mrb[0].mxu0
        %v3007 = vadd.f32 0.0, %v3006
        %v3008 = vpop.f32.mrb[0].mxu0
        %v3009 = vpop.f32.mrb[0].mxu0
        %v3010 = vadd.f32 0.0, %v3009
        %v3011 = vpop.f32.mrb[0].mxu0
        %3012 = vmatprep.mubr.bf16.mxu0 %v2829
        %3013 = vmatmul.mubr.bf16.gmra.mrb[0].mxu0 %v2827
        %v3014 = vpop.f32.mrb[0].mxu0
        %v3015 = vadd.f32 0.0, %v3014
        %v3016 = vpop.f32.mrb[0].mxu0
        %v3017 = vpop.f32.mrb[0].mxu0
        %v3018 = vadd.f32 0.0, %v3017
        %v3019 = vpop.f32.mrb[0].mxu0
        %3020 = vmatprep.mubr.bf16.mxu0 %v2833
        %3021 = vmatmul.mubr.bf16.gmra.mrb[0].mxu0 %v2831
        %v3022 = vpop.f32.mrb[0].mxu0
        %v3023 = vadd.f32 0.0, %v3022
        %v3024 = vpop.f32.mrb[0].mxu0
        %v3025 = vpop.f32.mrb[0].mxu0
        %v3026 = vadd.f32 0.0, %v3025
        %v3027 = vpop.f32.mrb[0].mxu0
        %3028 = vmatprep.mubr.bf16.mxu0 %v2837
        %3029 = vmatmul.mubr.bf16.gmra.mrb[0].mxu0 %v2835
        %v3030 = vpop.f32.mrb[0].mxu0
        %v3031 = vadd.f32 0.0, %v3030
        %v3032 = vpop.f32.mrb[0].mxu0
        %v3033 = vpop.f32.mrb[0].mxu0
        %v3034 = vadd.f32 0.0, %v3033
        %v3035 = vpop.f32.mrb[0].mxu0
        %3036 = vdwg.mxu0
        %v3037 = vadd.f32 %v2755, %v2983
        %v3038 = vadd.f32 %v2756, %v2986
        %v3039 = vadd.f32 %v2757, %v2991
        %v3040 = vadd.f32 %v2758, %v2994
        %v3041 = vadd.f32 %v2759, %v2999
        %v3042 = vadd.f32 %v2760, %v3002
        %v3043 = vadd.f32 %v2761, %v3007
        %v3044 = vadd.f32 %v2762, %v3010
        %v3045 = vadd.f32 %v2763, %v3015
        %v3046 = vadd.f32 %v2764, %v3018
        %v3047 = vadd.f32 %v2765, %v3023
        %v3048 = vadd.f32 %v2766, %v3026
        %v3049 = vadd.f32 %v2767, %v3031
        %v3050 = vadd.f32 %v2768, %v3034
        %v3051 = vld [vmem:[%s4] sm:$0x1]
        %v3053 = vlaneseq
        %v3054 = vshrl.u32 %v3053, 7
        %v3055 = vsub.s32 0, %v3054
        %v3056 = vrot.slane %v3051, %v3055
        %v3058 = vmul.f32 %v3037, %v3056
        %v3059 = vmul.f32 %v3038, %v3056
        %v3060 = vmul.f32 %v3039, %v3056
        %v3061 = vmul.f32 %v3040, %v3056
        %v3062 = vmul.f32 %v3041, %v3056
        %v3063 = vmul.f32 %v3042, %v3056
        %v3064 = vmul.f32 %v3043, %v3056
        %v3065 = vmul.f32 %v3044, %v3056
        %v3066 = vmul.f32 %v3045, %v3056
        %v3067 = vmul.f32 %v3046, %v3056
        %v3068 = vmul.f32 %v3047, %v3056
        %v3069 = vmul.f32 %v3048, %v3056
        %v3070 = vmul.f32 %v3049, %v3056
        %v3071 = vmul.f32 %v3050, %v3056
        %v3072 = vld [vmem:[%s5] sm:$0x1]
        %v3074 = vlaneseq
        %v3075 = vshrl.u32 %v3074, 7
        %v3076 = vsub.s32 0, %v3075
        %v3077 = vrot.slane %v3072, %v3076
        %v3079 = vadd.f32 %v3058, %v3077
        %v3080 = vadd.f32 %v3059, %v3077
        %v3081 = vadd.f32 %v3060, %v3077
        %v3082 = vadd.f32 %v3061, %v3077
        %v3083 = vadd.f32 %v3062, %v3077
        %v3084 = vadd.f32 %v3063, %v3077
        %v3085 = vadd.f32 %v3064, %v3077
        %v3086 = vadd.f32 %v3065, %v3077
        %v3087 = vadd.f32 %v3066, %v3077
        %v3088 = vadd.f32 %v3067, %v3077
        %v3089 = vadd.f32 %v3068, %v3077
        %v3090 = vadd.f32 %v3069, %v3077
        %v3091 = vadd.f32 %v3070, %v3077
        %v3092 = vadd.f32 %v3071, %v3077
        %v3093 = vmax.f32 %v3079, 0.0
        %v3094 = vmax.f32 %v3080, 0.0
        %v3095 = vmax.f32 %v3081, 0.0
        %v3096 = vmax.f32 %v3082, 0.0
        %v3097 = vmax.f32 %v3083, 0.0
        %v3098 = vmax.f32 %v3084, 0.0
        %v3099 = vmax.f32 %v3085, 0.0
        %v3100 = vmax.f32 %v3086, 0.0
        %v3101 = vmax.f32 %v3087, 0.0
        %v3102 = vmax.f32 %v3088, 0.0
        %v3103 = vmax.f32 %v3089, 0.0
        %v3104 = vmax.f32 %v3090, 0.0
        %v3105 = vmax.f32 %v3091, 0.0
        %v3106 = vmax.f32 %v3092, 0.0
        %v3107 = vsel %vm1421, 1, 0
        %v3108 = vsel %vm1422, 1, 0
        %v3109 = vsel %vm1423, 1, 0
        %v3110 = vsel %vm1424, 1, 0
        %v3111 = vsel %vm1425, 1, 0
        %v3112 = vsel %vm1426, 1, 0
        %v3113 = vsel %vm1427, 1, 0
        %v3114 = vsel %vm1428, 1, 0
        %v3115 = vsel %vm1429, 1, 0
        %v3116 = vsel %vm1430, 1, 0
        %v3117 = vsel %vm1431, 1, 0
        %v3118 = vsel %vm1432, 1, 0
        %v3119 = vsel %vm1433, 1, 0
        %v3120 = vsel %vm1434, 1, 0
        %vm3121 = vcmp.eq.s32.totalorder %v3107, 1
        %vm3122 = vcmp.eq.s32.totalorder %v3108, 1
        %vm3123 = vcmp.eq.s32.totalorder %v3109, 1
        %vm3124 = vcmp.eq.s32.totalorder %v3110, 1
        %vm3125 = vcmp.eq.s32.totalorder %v3111, 1
        %vm3126 = vcmp.eq.s32.totalorder %v3112, 1
        %vm3127 = vcmp.eq.s32.totalorder %v3113, 1
        %vm3128 = vcmp.eq.s32.totalorder %v3114, 1
        %vm3129 = vcmp.eq.s32.totalorder %v3115, 1
        %vm3130 = vcmp.eq.s32.totalorder %v3116, 1
        %vm3131 = vcmp.eq.s32.totalorder %v3117, 1
        %vm3132 = vcmp.eq.s32.totalorder %v3118, 1
        %vm3133 = vcmp.eq.s32.totalorder %v3119, 1
        %vm3134 = vcmp.eq.s32.totalorder %v3120, 1
        %v3135 = vsel %vm3121, %v3093, 0.0
        %v3136 = vsel %vm3122, %v3094, 0.0
        %v3137 = vsel %vm3123, %v3095, 0.0
        %v3138 = vsel %vm3124, %v3096, 0.0
        %v3139 = vsel %vm3125, %v3097, 0.0
        %v3140 = vsel %vm3126, %v3098, 0.0
        %v3141 = vsel %vm3127, %v3099, 0.0
        %v3142 = vsel %vm3128, %v3100, 0.0
        %v3143 = vsel %vm3129, %v3101, 0.0
        %v3144 = vsel %vm3130, %v3102, 0.0
        %v3145 = vsel %vm3131, %v3103, 0.0
        %v3146 = vsel %vm3132, %v3104, 0.0
        %v3147 = vsel %vm3133, %v3105, 0.0
        %v3148 = vsel %vm3134, %v3106, 0.0
        %v3149 = vpack.c.bf16 %v3136, %v3135
        %v3150 = vpack.c.bf16 %v3138, %v3137
        %v3151 = vpack.c.bf16 %v3140, %v3139
        %v3152 = vpack.c.bf16 %v3142, %v3141
        %v3153 = vpack.c.bf16 %v3144, %v3143
        %v3154 = vpack.c.bf16 %v3146, %v3145
        %v3155 = vpack.c.bf16 %v3148, %v3147
        %3156 = vst [vmem:[#allocation3] sm:$0xff] %v3149
        %3157 = vst [vmem:[#allocation3 + $0x8] sm:$0xff] %v3150
        %3158 = vst [vmem:[#allocation3 + $0x10] sm:$0xff] %v3151
        %3159 = vst [vmem:[#allocation3 + $0x18] sm:$0xff] %v3152
        %3160 = vst [vmem:[#allocation3 + $0x20] sm:$0xff] %v3153
        %3161 = vst [vmem:[#allocation3 + $0x28] sm:$0xff] %v3154
        %3162 = vst [vmem:[#allocation3 + $0x30] sm:$0xff] %v3155
        %s3163 = ssub.s32 %s560, 2
        %v3164 = vstv %s3163
        %v3165 = vadd.s32 %v3164, %v1149
        %v3166 = vadd.s32 %v3164, %v1150
        %v3167 = vadd.s32 %v3164, %v1151
        %v3168 = vadd.s32 %v3164, %v1152
        %v3169 = vadd.s32 %v3164, %v1153
        %v3170 = vadd.s32 %v3164, %v1154
        %v3171 = vadd.s32 %v3164, %v1155
        %v3172 = vadd.s32 %v3164, %v1156
        %v3173 = vadd.s32 %v3164, %v1157
        %v3174 = vadd.s32 %v3164, %v1158
        %v3175 = vadd.s32 %v3164, %v1159
        %v3176 = vadd.s32 %v3164, %v1160
        %v3177 = vadd.s32 %v3164, %v1161
        %v3178 = vadd.s32 %v3164, %v1162
        %vm3179 = vcmp.ge.s32.totalorder %v3165, 0
        %vm3180 = vcmp.ge.s32.totalorder %v3166, 0
        %vm3181 = vcmp.ge.s32.totalorder %v3167, 0
        %vm3182 = vcmp.ge.s32.totalorder %v3168, 0
        %vm3183 = vcmp.ge.s32.totalorder %v3169, 0
        %vm3184 = vcmp.ge.s32.totalorder %v3170, 0
        %vm3185 = vcmp.ge.s32.totalorder %v3171, 0
        %vm3186 = vcmp.ge.s32.totalorder %v3172, 0
        %vm3187 = vcmp.ge.s32.totalorder %v3173, 0
        %vm3188 = vcmp.ge.s32.totalorder %v3174, 0
        %vm3189 = vcmp.ge.s32.totalorder %v3175, 0
        %vm3190 = vcmp.ge.s32.totalorder %v3176, 0
        %vm3191 = vcmp.ge.s32.totalorder %v3177, 0
        %vm3192 = vcmp.ge.s32.totalorder %v3178, 0
        %vm3193 = vcmp.lt.s32.totalorder %v3165, 200
        %vm3194 = vcmp.lt.s32.totalorder %v3166, 200
        %vm3195 = vcmp.lt.s32.totalorder %v3167, 200
        %vm3196 = vcmp.lt.s32.totalorder %v3168, 200
        %vm3197 = vcmp.lt.s32.totalorder %v3169, 200
        %vm3198 = vcmp.lt.s32.totalorder %v3170, 200
        %vm3199 = vcmp.lt.s32.totalorder %v3171, 200
        %vm3200 = vcmp.lt.s32.totalorder %v3172, 200
        %vm3201 = vcmp.lt.s32.totalorder %v3173, 200
        %vm3202 = vcmp.lt.s32.totalorder %v3174, 200
        %vm3203 = vcmp.lt.s32.totalorder %v3175, 200
        %vm3204 = vcmp.lt.s32.totalorder %v3176, 200
        %vm3205 = vcmp.lt.s32.totalorder %v3177, 200
        %vm3206 = vcmp.lt.s32.totalorder %v3178, 200
        %vm3207 = vmand %vm3179, %vm3193
        %vm3208 = vmand %vm3180, %vm3194
        %vm3209 = vmand %vm3181, %vm3195
        %vm3210 = vmand %vm3182, %vm3196
        %vm3211 = vmand %vm3183, %vm3197
        %vm3212 = vmand %vm3184, %vm3198
        %vm3213 = vmand %vm3185, %vm3199
        %vm3214 = vmand %vm3186, %vm3200
        %vm3215 = vmand %vm3187, %vm3201
        %vm3216 = vmand %vm3188, %vm3202
        %vm3217 = vmand %vm3189, %vm3203
        %vm3218 = vmand %vm3190, %vm3204
        %vm3219 = vmand %vm3191, %vm3205
        %vm3220 = vmand %vm3192, %vm3206
        %v3221 = vld [vmem:[#allocation3] sm:$0xff]
        %v3222 = vld [vmem:[#allocation3 + $0x8] sm:$0xff]
        %v3223 = vld [vmem:[#allocation3 + $0x10] sm:$0xff]
        %v3224 = vld [vmem:[#allocation3 + $0x18] sm:$0xff]
        %v3225 = vld [vmem:[#allocation3 + $0x20] sm:$0xff]
        %v3226 = vld [vmem:[#allocation3 + $0x28] sm:$0xff]
        %v3227 = vld [vmem:[#allocation3 + $0x30] sm:$0x3f]
        %v3228 = vld [vmem:[#allocation3 + $0x30] sm:$0x7f]
        %vm3229 = vsmask.f32 7424
        %v3231 = vshrl.u32 %v3221, 16
        %v3233 = vshll.u32 %v3221, 16
        %v3235 = vrot.slane %v3233, 1
        %v3236 = vor.u32 %v3231, %v3235
        %v3238 = vshll.u32 %v3222, 16
        %v3240 = vrot.slane %v3238, 1
        %v3241 = vsel %vm3229, %v3236, %v3240
        %v3242 = vshrl.u32 %v3222, 16
        %v3244 = vor.u32 %v3242, %v3240
        %v3246 = vshll.u32 %v3223, 16
        %v3248 = vrot.slane %v3246, 1
        %v3249 = vsel %vm3229, %v3244, %v3248
        %v3250 = vshrl.u32 %v3223, 16
        %v3252 = vor.u32 %v3250, %v3248
        %v3254 = vshll.u32 %v3224, 16
        %v3256 = vrot.slane %v3254, 1
        %v3257 = vsel %vm3229, %v3252, %v3256
        %v3258 = vshrl.u32 %v3224, 16
        %v3260 = vor.u32 %v3258, %v3256
        %v3262 = vshll.u32 %v3225, 16
        %v3264 = vrot.slane %v3262, 1
        %v3265 = vsel %vm3229, %v3260, %v3264
        %v3266 = vshrl.u32 %v3225, 16
        %v3268 = vor.u32 %v3266, %v3264
        %v3270 = vshll.u32 %v3226, 16
        %v3272 = vrot.slane %v3270, 1
        %v3273 = vsel %vm3229, %v3268, %v3272
        %v3274 = vshrl.u32 %v3226, 16
        %v3276 = vor.u32 %v3274, %v3272
        %v3278 = vshll.u32 %v3228, 16
        %v3280 = vrot.slane %v3278, 1
        %v3281 = vsel %vm3229, %v3276, %v3280
        %v3282 = vshrl.u32 %v3228, 16
        %v3284 = vor.u32 %v3282, %v3280
        %v3292 = vld [vmem:[%s6] sm:$0xf]
        %v3293 = vld [vmem:[%s6 + $0x4] sm:$0xf]
        %v3294 = vld [vmem:[%s6 + $0x8] sm:$0xf]
        %v3295 = vld [vmem:[%s6 + $0xc] sm:$0xf]
        %v3296 = vld [vmem:[%s6 + $0x10] sm:$0xf]
        %v3297 = vld [vmem:[%s6 + $0x14] sm:$0xf]
        %v3298 = vld [vmem:[%s6 + $0x18] sm:$0xf]
        %v3299 = vld [vmem:[%s6 + $0x1c] sm:$0xf]
        %v3300 = vld [vmem:[%s6 + $0x20] sm:$0xf]
        %v3301 = vld [vmem:[%s6 + $0x24] sm:$0xf]
        %v3302 = vld [vmem:[%s6 + $0x28] sm:$0xf]
        %v3303 = vld [vmem:[%s6 + $0x2c] sm:$0xf]
        %v3304 = vld [vmem:[%s6 + $0x30] sm:$0xf]
        %v3305 = vld [vmem:[%s6 + $0x34] sm:$0xf]
        %v3306 = vld [vmem:[%s6 + $0x38] sm:$0xf]
        %v3307 = vld [vmem:[%s6 + $0x3c] sm:$0xf]
        %v3308 = vld [vmem:[%s6 + $0x40] sm:$0xf]
        %v3309 = vld [vmem:[%s6 + $0x44] sm:$0xf]
        %v3310 = vld [vmem:[%s6 + $0x48] sm:$0xf]
        %v3311 = vld [vmem:[%s6 + $0x4c] sm:$0xf]
        %v3312 = vld [vmem:[%s6 + $0x50] sm:$0xf]
        %v3313 = vld [vmem:[%s6 + $0x54] sm:$0xf]
        %v3314 = vld [vmem:[%s6 + $0x58] sm:$0xf]
        %v3315 = vld [vmem:[%s6 + $0x5c] sm:$0xf]
        %v3316 = vld [vmem:[%s6 + $0x60] sm:$0xf]
        %v3317 = vld [vmem:[%s6 + $0x64] sm:$0xf]
        %v3318 = vld [vmem:[%s6 + $0x68] sm:$0xf]
        %v3319 = vld [vmem:[%s6 + $0x6c] sm:$0xf]
        %v3320 = vld [vmem:[%s6 + $0x70] sm:$0xf]
        %v3321 = vld [vmem:[%s6 + $0x74] sm:$0xf]
        %v3322 = vld [vmem:[%s6 + $0x78] sm:$0xf]
        %v3323 = vld [vmem:[%s6 + $0x7c] sm:$0xf]
        %v3324 = vld [vmem:[#allocation3] sm:$0xfe]
        %v3325 = vld [vmem:[#allocation3 + $0x30] sm:$0xff]
        %v3327 = vshrl.u32 %v3324, 16
        %v3329 = vshll.u32 %v3324, 16
        %v3331 = vrot.slane %v3329, 1
        %v3332 = vor.u32 %v3327, %v3331
        %v3333 = vsel %vm3229, %v3332, %v3240
        %v3335 = vshll.u32 %v3325, 16
        %v3337 = vrot.slane %v3335, 1
        %v3338 = vsel %vm3229, %v3276, %v3337
        %v3339 = vshrl.u32 %v3325, 16
        %v3341 = vor.u32 %v3339, %v3337
        %v3342 = vld [vmem:[%s6 + $0x80] sm:$0xf]
        %v3343 = vld [vmem:[%s6 + $0x84] sm:$0xf]
        %v3344 = vld [vmem:[%s6 + $0x88] sm:$0xf]
        %v3345 = vld [vmem:[%s6 + $0x8c] sm:$0xf]
        %v3346 = vld [vmem:[%s6 + $0x90] sm:$0xf]
        %v3347 = vld [vmem:[%s6 + $0x94] sm:$0xf]
        %v3348 = vld [vmem:[%s6 + $0x98] sm:$0xf]
        %v3349 = vld [vmem:[%s6 + $0x9c] sm:$0xf]
        %v3350 = vld [vmem:[%s6 + $0xa0] sm:$0xf]
        %v3351 = vld [vmem:[%s6 + $0xa4] sm:$0xf]
        %v3352 = vld [vmem:[%s6 + $0xa8] sm:$0xf]
        %v3353 = vld [vmem:[%s6 + $0xac] sm:$0xf]
        %v3354 = vld [vmem:[%s6 + $0xb0] sm:$0xf]
        %v3355 = vld [vmem:[%s6 + $0xb4] sm:$0xf]
        %v3356 = vld [vmem:[%s6 + $0xb8] sm:$0xf]
        %v3357 = vld [vmem:[%s6 + $0xbc] sm:$0xf]
        %v3358 = vld [vmem:[%s6 + $0xc0] sm:$0xf]
        %v3359 = vld [vmem:[%s6 + $0xc4] sm:$0xf]
        %v3360 = vld [vmem:[%s6 + $0xc8] sm:$0xf]
        %v3361 = vld [vmem:[%s6 + $0xcc] sm:$0xf]
        %v3362 = vld [vmem:[%s6 + $0xd0] sm:$0xf]
        %v3363 = vld [vmem:[%s6 + $0xd4] sm:$0xf]
        %v3364 = vld [vmem:[%s6 + $0xd8] sm:$0xf]
        %v3365 = vld [vmem:[%s6 + $0xdc] sm:$0xf]
        %v3366 = vld [vmem:[%s6 + $0xe0] sm:$0xf]
        %v3367 = vld [vmem:[%s6 + $0xe4] sm:$0xf]
        %v3368 = vld [vmem:[%s6 + $0xe8] sm:$0xf]
        %v3369 = vld [vmem:[%s6 + $0xec] sm:$0xf]
        %v3370 = vld [vmem:[%s6 + $0xf0] sm:$0xf]
        %v3371 = vld [vmem:[%s6 + $0xf4] sm:$0xf]
        %v3372 = vld [vmem:[%s6 + $0xf8] sm:$0xf]
        %v3373 = vld [vmem:[%s6 + $0xfc] sm:$0xf]
        %v3381 = vrot.slane %v3324, 1
        %v3382 = vrot.slane %v3222, 1
        %v3383 = vsel %vm1923, %v3381, %v3382
        %v3384 = vrot.slane %v3333, 1
        %v3385 = vrot.slane %v3249, 1
        %v3386 = vsel %vm1923, %v3384, %v3385
        %v3387 = vrot.slane %v3223, 1
        %v3388 = vsel %vm1923, %v3382, %v3387
        %v3389 = vrot.slane %v3257, 1
        %v3390 = vsel %vm1923, %v3385, %v3389
        %v3391 = vrot.slane %v3224, 1
        %v3392 = vsel %vm1923, %v3387, %v3391
        %v3393 = vrot.slane %v3265, 1
        %v3394 = vsel %vm1923, %v3389, %v3393
        %v3395 = vrot.slane %v3225, 1
        %v3396 = vsel %vm1923, %v3391, %v3395
        %v3397 = vrot.slane %v3273, 1
        %v3398 = vsel %vm1923, %v3393, %v3397
        %v3399 = vrot.slane %v3226, 1
        %v3400 = vsel %vm1923, %v3395, %v3399
        %v3401 = vrot.slane %v3338, 1
        %v3402 = vsel %vm1923, %v3397, %v3401
        %v3403 = vrot.slane %v3228, 1
        %v3404 = vsel %vm1923, %v3399, %v3403
        %v3405 = vrot.slane %v3341, 1
        %v3406 = vsel %vm1923, %v3401, %v3405
        %v3453 = vunpack.c.l.b16 %v3342
        %v3454 = vunpack.c.l.b16 %v3343
        %v3455 = vunpack.c.l.b16 %v3344
        %v3456 = vunpack.c.l.b16 %v3345
        %v3457 = vunpack.c.l.b16 %v3346
        %v3458 = vunpack.c.l.b16 %v3347
        %v3459 = vunpack.c.l.b16 %v3348
        %v3460 = vunpack.c.l.b16 %v3349
        %v3461 = vunpack.c.l.b16 %v3350
        %v3462 = vunpack.c.l.b16 %v3351
        %v3463 = vunpack.c.l.b16 %v3352
        %v3464 = vunpack.c.l.b16 %v3353
        %v3465 = vunpack.c.l.b16 %v3354
        %v3466 = vunpack.c.l.b16 %v3355
        %v3467 = vunpack.c.l.b16 %v3356
        %v3468 = vunpack.c.l.b16 %v3357
        %v3469 = vunpack.c.l.b16 %v3358
        %v3470 = vunpack.c.l.b16 %v3359
        %v3471 = vunpack.c.l.b16 %v3360
        %v3472 = vunpack.c.l.b16 %v3361
        %v3473 = vunpack.c.l.b16 %v3362
        %v3474 = vunpack.c.l.b16 %v3363
        %v3475 = vunpack.c.l.b16 %v3364
        %v3476 = vunpack.c.l.b16 %v3365
        %v3477 = vunpack.c.l.b16 %v3366
        %v3478 = vunpack.c.l.b16 %v3367
        %v3479 = vunpack.c.l.b16 %v3368
        %v3480 = vunpack.c.l.b16 %v3369
        %v3481 = vunpack.c.l.b16 %v3370
        %v3482 = vunpack.c.l.b16 %v3371
        %v3483 = vunpack.c.l.b16 %v3372
        %v3484 = vunpack.c.l.b16 %v3373
        %v3485 = vpack.c.b16 %v3454, %v3453
        %v3486 = vpack.c.b16 %v3456, %v3455
        %v3487 = vpack.c.b16 %v3458, %v3457
        %v3488 = vpack.c.b16 %v3460, %v3459
        %v3489 = vpack.c.b16 %v3462, %v3461
        %v3490 = vpack.c.b16 %v3464, %v3463
        %v3491 = vpack.c.b16 %v3466, %v3465
        %v3492 = vpack.c.b16 %v3468, %v3467
        %v3493 = vpack.c.b16 %v3470, %v3469
        %v3494 = vpack.c.b16 %v3472, %v3471
        %v3495 = vpack.c.b16 %v3474, %v3473
        %v3496 = vpack.c.b16 %v3476, %v3475
        %v3497 = vpack.c.b16 %v3478, %v3477
        %v3498 = vpack.c.b16 %v3480, %v3479
        %v3499 = vpack.c.b16 %v3482, %v3481
        %v3500 = vpack.c.b16 %v3484, %v3483
        %3517 = vmatprep.subr.bf16.mxu0 0
        %3518 = vmatpush1.bf16.msra.mxu0 %v3485
        %3519 = vmatprep.subr.bf16.mxu0 0
        %3520 = vmatpush1.bf16.msra.mxu0 %v3486
        %3521 = vmatprep.subr.bf16.mxu0 0
        %3522 = vmatpush1.bf16.msra.mxu0 %v3487
        %3523 = vmatprep.subr.bf16.mxu0 0
        %3524 = vmatpush1.bf16.msra.mxu0 %v3488
        %3525 = vmatprep.subr.bf16.mxu0 0
        %3526 = vmatpush1.bf16.msra.mxu0 %v3489
        %3527 = vmatprep.subr.bf16.mxu0 0
        %3528 = vmatpush1.bf16.msra.mxu0 %v3490
        %3529 = vmatprep.subr.bf16.mxu0 0
        %3530 = vmatpush1.bf16.msra.mxu0 %v3491
        %3531 = vmatprep.subr.bf16.mxu0 0
        %3532 = vmatpush1.bf16.msra.mxu0 %v3492
        %3533 = vmatprep.subr.bf16.mxu0 0
        %3534 = vmatpush1.bf16.msra.mxu0 %v3493
        %3535 = vmatprep.subr.bf16.mxu0 0
        %3536 = vmatpush1.bf16.msra.mxu0 %v3494
        %3537 = vmatprep.subr.bf16.mxu0 0
        %3538 = vmatpush1.bf16.msra.mxu0 %v3495
        %3539 = vmatprep.subr.bf16.mxu0 0
        %3540 = vmatpush1.bf16.msra.mxu0 %v3496
        %3541 = vmatprep.subr.bf16.mxu0 0
        %3542 = vmatpush1.bf16.msra.mxu0 %v3497
        %3543 = vmatprep.subr.bf16.mxu0 0
        %3544 = vmatpush1.bf16.msra.mxu0 %v3498
        %3545 = vmatprep.subr.bf16.mxu0 0
        %3546 = vmatpush1.bf16.msra.mxu0 %v3499
        %3547 = vmatprep.subr.bf16.mxu0 0
        %3548 = vmatpush1.bf16.msra.mxu0 %v3500
        %3549 = vmatprep.mubr.bf16.mxu0 %v3386
        %3550 = vmatmul.mubr.bf16.gmra.mrb[0].mxu0 %v3383
        %v3551 = vpop.f32.mrb[0].mxu0
        %v3552 = vadd.f32 0.0, %v3551
        %v3553 = vpop.f32.mrb[0].mxu0
        %v3554 = vpop.f32.mrb[0].mxu0
        %v3555 = vadd.f32 0.0, %v3554
        %v3556 = vpop.f32.mrb[0].mxu0
        %3557 = vmatprep.mubr.bf16.mxu0 %v3390
        %3558 = vmatmul.mubr.bf16.gmra.mrb[0].mxu0 %v3388
        %v3559 = vpop.f32.mrb[0].mxu0
        %v3560 = vadd.f32 0.0, %v3559
        %v3561 = vpop.f32.mrb[0].mxu0
        %v3562 = vpop.f32.mrb[0].mxu0
        %v3563 = vadd.f32 0.0, %v3562
        %v3564 = vpop.f32.mrb[0].mxu0
        %3565 = vmatprep.mubr.bf16.mxu0 %v3394
        %3566 = vmatmul.mubr.bf16.gmra.mrb[0].mxu0 %v3392
        %v3567 = vpop.f32.mrb[0].mxu0
        %v3568 = vadd.f32 0.0, %v3567
        %v3569 = vpop.f32.mrb[0].mxu0
        %v3570 = vpop.f32.mrb[0].mxu0
        %v3571 = vadd.f32 0.0, %v3570
        %v3572 = vpop.f32.mrb[0].mxu0
        %3573 = vmatprep.mubr.bf16.mxu0 %v3398
        %3574 = vmatmul.mubr.bf16.gmra.mrb[0].mxu0 %v3396
        %v3575 = vpop.f32.mrb[0].mxu0
        %v3576 = vadd.f32 0.0, %v3575
        %v3577 = vpop.f32.mrb[0].mxu0
        %v3578 = vpop.f32.mrb[0].mxu0
        %v3579 = vadd.f32 0.0, %v3578
        %v3580 = vpop.f32.mrb[0].mxu0
        %3581 = vmatprep.mubr.bf16.mxu0 %v3402
        %3582 = vmatmul.mubr.bf16.gmra.mrb[0].mxu0 %v3400
        %v3583 = vpop.f32.mrb[0].mxu0
        %v3584 = vadd.f32 0.0, %v3583
        %v3585 = vpop.f32.mrb[0].mxu0
        %v3586 = vpop.f32.mrb[0].mxu0
        %v3587 = vadd.f32 0.0, %v3586
        %v3588 = vpop.f32.mrb[0].mxu0
        %3589 = vmatprep.mubr.bf16.mxu0 %v3406
        %3590 = vmatmul.mubr.bf16.gmra.mrb[0].mxu0 %v3404
        %v3591 = vpop.f32.mrb[0].mxu0
        %v3592 = vadd.f32 0.0, %v3591
        %v3593 = vpop.f32.mrb[0].mxu0
        %v3594 = vpop.f32.mrb[0].mxu0
        %v3595 = vadd.f32 0.0, %v3594
        %v3596 = vpop.f32.mrb[0].mxu0
        %3597 = vmatprep.mubr.bf16.mxu0 %v3405
        %3598 = vmatmul.mubr.bf16.gmra.mrb[0].mxu0 %v3403
        %v3599 = vpop.f32.mrb[0].mxu0
        %v3600 = vadd.f32 0.0, %v3599
        %v3601 = vpop.f32.mrb[0].mxu0
        %v3602 = vpop.f32.mrb[0].mxu0
        %v3603 = vadd.f32 0.0, %v3602
        %v3604 = vpop.f32.mrb[0].mxu0
        %3605 = vdwg.mxu0
        %v3638 = vunpack.c.l.b16 %v3292
        %v3639 = vunpack.c.l.b16 %v3293
        %v3640 = vunpack.c.l.b16 %v3294
        %v3641 = vunpack.c.l.b16 %v3295
        %v3642 = vunpack.c.l.b16 %v3296
        %v3643 = vunpack.c.l.b16 %v3297
        %v3644 = vunpack.c.l.b16 %v3298
        %v3645 = vunpack.c.l.b16 %v3299
        %v3646 = vunpack.c.l.b16 %v3300
        %v3647 = vunpack.c.l.b16 %v3301
        %v3648 = vunpack.c.l.b16 %v3302
        %v3649 = vunpack.c.l.b16 %v3303
        %v3650 = vunpack.c.l.b16 %v3304
        %v3651 = vunpack.c.l.b16 %v3305
        %v3652 = vunpack.c.l.b16 %v3306
        %v3653 = vunpack.c.l.b16 %v3307
        %v3654 = vunpack.c.l.b16 %v3308
        %v3655 = vunpack.c.l.b16 %v3309
        %v3656 = vunpack.c.l.b16 %v3310
        %v3657 = vunpack.c.l.b16 %v3311
        %v3658 = vunpack.c.l.b16 %v3312
        %v3659 = vunpack.c.l.b16 %v3313
        %v3660 = vunpack.c.l.b16 %v3314
        %v3661 = vunpack.c.l.b16 %v3315
        %v3662 = vunpack.c.l.b16 %v3316
        %v3663 = vunpack.c.l.b16 %v3317
        %v3664 = vunpack.c.l.b16 %v3318
        %v3665 = vunpack.c.l.b16 %v3319
        %v3666 = vunpack.c.l.b16 %v3320
        %v3667 = vunpack.c.l.b16 %v3321
        %v3668 = vunpack.c.l.b16 %v3322
        %v3669 = vunpack.c.l.b16 %v3323
        %v3670 = vpack.c.b16 %v3639, %v3638
        %v3671 = vpack.c.b16 %v3641, %v3640
        %v3672 = vpack.c.b16 %v3643, %v3642
        %v3673 = vpack.c.b16 %v3645, %v3644
        %v3674 = vpack.c.b16 %v3647, %v3646
        %v3675 = vpack.c.b16 %v3649, %v3648
        %v3676 = vpack.c.b16 %v3651, %v3650
        %v3677 = vpack.c.b16 %v3653, %v3652
        %v3678 = vpack.c.b16 %v3655, %v3654
        %v3679 = vpack.c.b16 %v3657, %v3656
        %v3680 = vpack.c.b16 %v3659, %v3658
        %v3681 = vpack.c.b16 %v3661, %v3660
        %v3682 = vpack.c.b16 %v3663, %v3662
        %v3683 = vpack.c.b16 %v3665, %v3664
        %v3684 = vpack.c.b16 %v3667, %v3666
        %v3685 = vpack.c.b16 %v3669, %v3668
        %3702 = vmatprep.subr.bf16.mxu0 0
        %3703 = vmatpush1.bf16.msra.mxu0 %v3670
        %3704 = vmatprep.subr.bf16.mxu0 0
        %3705 = vmatpush1.bf16.msra.mxu0 %v3671
        %3706 = vmatprep.subr.bf16.mxu0 0
        %3707 = vmatpush1.bf16.msra.mxu0 %v3672
        %3708 = vmatprep.subr.bf16.mxu0 0
        %3709 = vmatpush1.bf16.msra.mxu0 %v3673
        %3710 = vmatprep.subr.bf16.mxu0 0
        %3711 = vmatpush1.bf16.msra.mxu0 %v3674
        %3712 = vmatprep.subr.bf16.mxu0 0
        %3713 = vmatpush1.bf16.msra.mxu0 %v3675
        %3714 = vmatprep.subr.bf16.mxu0 0
        %3715 = vmatpush1.bf16.msra.mxu0 %v3676
        %3716 = vmatprep.subr.bf16.mxu0 0
        %3717 = vmatpush1.bf16.msra.mxu0 %v3677
        %3718 = vmatprep.subr.bf16.mxu0 0
        %3719 = vmatpush1.bf16.msra.mxu0 %v3678
        %3720 = vmatprep.subr.bf16.mxu0 0
        %3721 = vmatpush1.bf16.msra.mxu0 %v3679
        %3722 = vmatprep.subr.bf16.mxu0 0
        %3723 = vmatpush1.bf16.msra.mxu0 %v3680
        %3724 = vmatprep.subr.bf16.mxu0 0
        %3725 = vmatpush1.bf16.msra.mxu0 %v3681
        %3726 = vmatprep.subr.bf16.mxu0 0
        %3727 = vmatpush1.bf16.msra.mxu0 %v3682
        %3728 = vmatprep.subr.bf16.mxu0 0
        %3729 = vmatpush1.bf16.msra.mxu0 %v3683
        %3730 = vmatprep.subr.bf16.mxu0 0
        %3731 = vmatpush1.bf16.msra.mxu0 %v3684
        %3732 = vmatprep.subr.bf16.mxu0 0
        %3733 = vmatpush1.bf16.msra.mxu0 %v3685
        %3734 = vmatprep.mubr.bf16.mxu0 %v3241
        %3735 = vmatmul.mubr.bf16.gmra.mrb[0].mxu0 %v3221
        %v3736 = vpop.f32.mrb[0].mxu0
        %v3737 = vadd.f32 %v3552, %v3736
        %v3738 = vpop.f32.mrb[0].mxu0
        %v3739 = vpop.f32.mrb[0].mxu0
        %v3740 = vadd.f32 %v3555, %v3739
        %v3741 = vpop.f32.mrb[0].mxu0
        %3742 = vmatprep.mubr.bf16.mxu0 %v3249
        %3743 = vmatmul.mubr.bf16.gmra.mrb[0].mxu0 %v3222
        %v3744 = vpop.f32.mrb[0].mxu0
        %v3745 = vadd.f32 %v3560, %v3744
        %v3746 = vpop.f32.mrb[0].mxu0
        %v3747 = vpop.f32.mrb[0].mxu0
        %v3748 = vadd.f32 %v3563, %v3747
        %v3749 = vpop.f32.mrb[0].mxu0
        %3750 = vmatprep.mubr.bf16.mxu0 %v3257
        %3751 = vmatmul.mubr.bf16.gmra.mrb[0].mxu0 %v3223
        %v3752 = vpop.f32.mrb[0].mxu0
        %v3753 = vadd.f32 %v3568, %v3752
        %v3754 = vpop.f32.mrb[0].mxu0
        %v3755 = vpop.f32.mrb[0].mxu0
        %v3756 = vadd.f32 %v3571, %v3755
        %v3757 = vpop.f32.mrb[0].mxu0
        %3758 = vmatprep.mubr.bf16.mxu0 %v3265
        %3759 = vmatmul.mubr.bf16.gmra.mrb[0].mxu0 %v3224
        %v3760 = vpop.f32.mrb[0].mxu0
        %v3761 = vadd.f32 %v3576, %v3760
        %v3762 = vpop.f32.mrb[0].mxu0
        %v3763 = vpop.f32.mrb[0].mxu0
        %v3764 = vadd.f32 %v3579, %v3763
        %v3765 = vpop.f32.mrb[0].mxu0
        %3766 = vmatprep.mubr.bf16.mxu0 %v3273
        %3767 = vmatmul.mubr.bf16.gmra.mrb[0].mxu0 %v3225
        %v3768 = vpop.f32.mrb[0].mxu0
        %v3769 = vadd.f32 %v3584, %v3768
        %v3770 = vpop.f32.mrb[0].mxu0
        %v3771 = vpop.f32.mrb[0].mxu0
        %v3772 = vadd.f32 %v3587, %v3771
        %v3773 = vpop.f32.mrb[0].mxu0
        %3774 = vmatprep.mubr.bf16.mxu0 %v3281
        %3775 = vmatmul.mubr.bf16.gmra.mrb[0].mxu0 %v3226
        %v3776 = vpop.f32.mrb[0].mxu0
        %v3777 = vadd.f32 %v3592, %v3776
        %v3778 = vpop.f32.mrb[0].mxu0
        %v3779 = vpop.f32.mrb[0].mxu0
        %v3780 = vadd.f32 %v3595, %v3779
        %v3781 = vpop.f32.mrb[0].mxu0
        %3782 = vmatprep.mubr.bf16.mxu0 %v3284
        %3783 = vmatmul.mubr.bf16.gmra.mrb[0].mxu0 %v3227
        %v3784 = vpop.f32.mrb[0].mxu0
        %v3785 = vadd.f32 %v3600, %v3784
        %v3786 = vpop.f32.mrb[0].mxu0
        %v3787 = vpop.f32.mrb[0].mxu0
        %v3788 = vadd.f32 %v3603, %v3787
        %v3789 = vpop.f32.mrb[0].mxu0
        %3790 = vdwg.mxu0
        %v3791 = vld [vmem:[#allocation3] sm:$0xfc]
        %v3792 = vld [vmem:[%s6 + $0x100] sm:$0xf]
        %v3793 = vld [vmem:[%s6 + $0x104] sm:$0xf]
        %v3794 = vld [vmem:[%s6 + $0x108] sm:$0xf]
        %v3795 = vld [vmem:[%s6 + $0x10c] sm:$0xf]
        %v3796 = vld [vmem:[%s6 + $0x110] sm:$0xf]
        %v3797 = vld [vmem:[%s6 + $0x114] sm:$0xf]
        %v3798 = vld [vmem:[%s6 + $0x118] sm:$0xf]
        %v3799 = vld [vmem:[%s6 + $0x11c] sm:$0xf]
        %v3800 = vld [vmem:[%s6 + $0x120] sm:$0xf]
        %v3801 = vld [vmem:[%s6 + $0x124] sm:$0xf]
        %v3802 = vld [vmem:[%s6 + $0x128] sm:$0xf]
        %v3803 = vld [vmem:[%s6 + $0x12c] sm:$0xf]
        %v3804 = vld [vmem:[%s6 + $0x130] sm:$0xf]
        %v3805 = vld [vmem:[%s6 + $0x134] sm:$0xf]
        %v3806 = vld [vmem:[%s6 + $0x138] sm:$0xf]
        %v3807 = vld [vmem:[%s6 + $0x13c] sm:$0xf]
        %v3810 = vrot.slane %v3791, 2
        %v3811 = vrot.slane %v3222, 2
        %v3812 = vsel %vm2191, %v3810, %v3811
        %v3813 = vrot.slane %v3223, 2
        %v3814 = vsel %vm2191, %v3811, %v3813
        %v3815 = vrot.slane %v3224, 2
        %v3816 = vsel %vm2191, %v3813, %v3815
        %v3817 = vrot.slane %v3225, 2
        %v3818 = vsel %vm2191, %v3815, %v3817
        %v3819 = vrot.slane %v3226, 2
        %v3820 = vsel %vm2191, %v3817, %v3819
        %v3821 = vrot.slane %v3325, 2
        %v3822 = vsel %vm2191, %v3819, %v3821
        %v3846 = vunpack.c.l.b16 %v3792
        %v3847 = vunpack.c.l.b16 %v3793
        %v3848 = vunpack.c.l.b16 %v3794
        %v3849 = vunpack.c.l.b16 %v3795
        %v3850 = vunpack.c.l.b16 %v3796
        %v3851 = vunpack.c.l.b16 %v3797
        %v3852 = vunpack.c.l.b16 %v3798
        %v3853 = vunpack.c.l.b16 %v3799
        %v3854 = vunpack.c.l.b16 %v3800
        %v3855 = vunpack.c.l.b16 %v3801
        %v3856 = vunpack.c.l.b16 %v3802
        %v3857 = vunpack.c.l.b16 %v3803
        %v3858 = vunpack.c.l.b16 %v3804
        %v3859 = vunpack.c.l.b16 %v3805
        %v3860 = vunpack.c.l.b16 %v3806
        %v3861 = vunpack.c.l.b16 %v3807
        %v3862 = vpack.c.b16 %v3847, %v3846
        %v3863 = vpack.c.b16 %v3849, %v3848
        %v3864 = vpack.c.b16 %v3851, %v3850
        %v3865 = vpack.c.b16 %v3853, %v3852
        %v3866 = vpack.c.b16 %v3855, %v3854
        %v3867 = vpack.c.b16 %v3857, %v3856
        %v3868 = vpack.c.b16 %v3859, %v3858
        %v3869 = vpack.c.b16 %v3861, %v3860
        %3878 = vmatprep.subr.bf16.mxu0 0
        %3879 = vmatpush1.bf16.msra.mxu0 %v3862
        %3880 = vmatprep.subr.bf16.mxu0 0
        %3881 = vmatpush1.bf16.msra.mxu0 %v3863
        %3882 = vmatprep.subr.bf16.mxu0 0
        %3883 = vmatpush1.bf16.msra.mxu0 %v3864
        %3884 = vmatprep.subr.bf16.mxu0 0
        %3885 = vmatpush1.bf16.msra.mxu0 %v3865
        %3886 = vmatprep.subr.bf16.mxu0 0
        %3887 = vmatpush1.bf16.msra.mxu0 %v3866
        %3888 = vmatprep.subr.bf16.mxu0 0
        %3889 = vmatpush1.bf16.msra.mxu0 %v3867
        %3890 = vmatprep.subr.bf16.mxu0 0
        %3891 = vmatpush1.bf16.msra.mxu0 %v3868
        %3892 = vmatprep.subr.bf16.mxu0 0
        %3893 = vmatpush1.bf16.msra.mxu0 %v3869
        %3894 = vmatprep.subr.bf16.mxu0 0
        %3895 = vmatpush1.bf16.msra.mxu0 0
        %3896 = vmatprep.subr.bf16.mxu0 0
        %3897 = vmatpush1.bf16.msra.mxu0 0
        %3898 = vmatprep.subr.bf16.mxu0 0
        %3899 = vmatpush1.bf16.msra.mxu0 0
        %3900 = vmatprep.subr.bf16.mxu0 0
        %3901 = vmatpush1.bf16.msra.mxu0 0
        %3902 = vmatprep.subr.bf16.mxu0 0
        %3903 = vmatpush1.bf16.msra.mxu0 0
        %3904 = vmatprep.subr.bf16.mxu0 0
        %3905 = vmatpush1.bf16.msra.mxu0 0
        %3906 = vmatprep.subr.bf16.mxu0 0
        %3907 = vmatpush1.bf16.msra.mxu0 0
        %3908 = vmatprep.subr.bf16.mxu0 0
        %3909 = vmatpush1.bf16.msra.mxu0 0
        %3910 = vmatprep.mubr.bf16.mxu0 0
        %3911 = vmatmul.mubr.bf16.gmra.mrb[0].mxu0 %v3812
        %v3912 = vpop.f32.mrb[0].mxu0
        %v3913 = vadd.f32 0.0, %v3912
        %v3914 = vpop.f32.mrb[0].mxu0
        %v3915 = vpop.f32.mrb[0].mxu0
        %v3916 = vadd.f32 0.0, %v3915
        %v3917 = vpop.f32.mrb[0].mxu0
        %3918 = vmatprep.mubr.bf16.mxu0 0
        %3919 = vmatmul.mubr.bf16.gmra.mrb[0].mxu0 %v3814
        %v3920 = vpop.f32.mrb[0].mxu0
        %v3921 = vadd.f32 0.0, %v3920
        %v3922 = vpop.f32.mrb[0].mxu0
        %v3923 = vpop.f32.mrb[0].mxu0
        %v3924 = vadd.f32 0.0, %v3923
        %v3925 = vpop.f32.mrb[0].mxu0
        %3926 = vmatprep.mubr.bf16.mxu0 0
        %3927 = vmatmul.mubr.bf16.gmra.mrb[0].mxu0 %v3816
        %v3928 = vpop.f32.mrb[0].mxu0
        %v3929 = vadd.f32 0.0, %v3928
        %v3930 = vpop.f32.mrb[0].mxu0
        %v3931 = vpop.f32.mrb[0].mxu0
        %v3932 = vadd.f32 0.0, %v3931
        %v3933 = vpop.f32.mrb[0].mxu0
        %3934 = vmatprep.mubr.bf16.mxu0 0
        %3935 = vmatmul.mubr.bf16.gmra.mrb[0].mxu0 %v3818
        %v3936 = vpop.f32.mrb[0].mxu0
        %v3937 = vadd.f32 0.0, %v3936
        %v3938 = vpop.f32.mrb[0].mxu0
        %v3939 = vpop.f32.mrb[0].mxu0
        %v3940 = vadd.f32 0.0, %v3939
        %v3941 = vpop.f32.mrb[0].mxu0
        %3942 = vmatprep.mubr.bf16.mxu0 0
        %3943 = vmatmul.mubr.bf16.gmra.mrb[0].mxu0 %v3820
        %v3944 = vpop.f32.mrb[0].mxu0
        %v3945 = vadd.f32 0.0, %v3944
        %v3946 = vpop.f32.mrb[0].mxu0
        %v3947 = vpop.f32.mrb[0].mxu0
        %v3948 = vadd.f32 0.0, %v3947
        %v3949 = vpop.f32.mrb[0].mxu0
        %3950 = vmatprep.mubr.bf16.mxu0 0
        %3951 = vmatmul.mubr.bf16.gmra.mrb[0].mxu0 %v3822
        %v3952 = vpop.f32.mrb[0].mxu0
        %v3953 = vadd.f32 0.0, %v3952
        %v3954 = vpop.f32.mrb[0].mxu0
        %v3955 = vpop.f32.mrb[0].mxu0
        %v3956 = vadd.f32 0.0, %v3955
        %v3957 = vpop.f32.mrb[0].mxu0
        %3958 = vmatprep.mubr.bf16.mxu0 0
        %3959 = vmatmul.mubr.bf16.gmra.mrb[0].mxu0 %v3821
        %v3960 = vpop.f32.mrb[0].mxu0
        %v3961 = vadd.f32 0.0, %v3960
        %v3962 = vpop.f32.mrb[0].mxu0
        %v3963 = vpop.f32.mrb[0].mxu0
        %v3964 = vadd.f32 0.0, %v3963
        %v3965 = vpop.f32.mrb[0].mxu0
        %3966 = vdwg.mxu0
        %v3967 = vadd.f32 %v3737, %v3913
        %v3968 = vadd.f32 %v3740, %v3916
        %v3969 = vadd.f32 %v3745, %v3921
        %v3970 = vadd.f32 %v3748, %v3924
        %v3971 = vadd.f32 %v3753, %v3929
        %v3972 = vadd.f32 %v3756, %v3932
        %v3973 = vadd.f32 %v3761, %v3937
        %v3974 = vadd.f32 %v3764, %v3940
        %v3975 = vadd.f32 %v3769, %v3945
        %v3976 = vadd.f32 %v3772, %v3948
        %v3977 = vadd.f32 %v3777, %v3953
        %v3978 = vadd.f32 %v3780, %v3956
        %v3979 = vadd.f32 %v3785, %v3961
        %v3980 = vadd.f32 %v3788, %v3964
        %v3981 = vld [vmem:[%s7] sm:$0x1]
        %v3983 = vlaneseq
        %v3984 = vshrl.u32 %v3983, 7
        %v3985 = vsub.s32 0, %v3984
        %v3986 = vrot.slane %v3981, %v3985
        %v3988 = vmul.f32 %v3967, %v3986
        %v3989 = vmul.f32 %v3968, %v3986
        %v3990 = vmul.f32 %v3969, %v3986
        %v3991 = vmul.f32 %v3970, %v3986
        %v3992 = vmul.f32 %v3971, %v3986
        %v3993 = vmul.f32 %v3972, %v3986
        %v3994 = vmul.f32 %v3973, %v3986
        %v3995 = vmul.f32 %v3974, %v3986
        %v3996 = vmul.f32 %v3975, %v3986
        %v3997 = vmul.f32 %v3976, %v3986
        %v3998 = vmul.f32 %v3977, %v3986
        %v3999 = vmul.f32 %v3978, %v3986
        %v4000 = vmul.f32 %v3979, %v3986
        %v4001 = vmul.f32 %v3980, %v3986
        %v4002 = vld [vmem:[%s8] sm:$0x1]
        %v4004 = vlaneseq
        %v4005 = vshrl.u32 %v4004, 7
        %v4006 = vsub.s32 0, %v4005
        %v4007 = vrot.slane %v4002, %v4006
        %v4009 = vadd.f32 %v3988, %v4007
        %v4010 = vadd.f32 %v3989, %v4007
        %v4011 = vadd.f32 %v3990, %v4007
        %v4012 = vadd.f32 %v3991, %v4007
        %v4013 = vadd.f32 %v3992, %v4007
        %v4014 = vadd.f32 %v3993, %v4007
        %v4015 = vadd.f32 %v3994, %v4007
        %v4016 = vadd.f32 %v3995, %v4007
        %v4017 = vadd.f32 %v3996, %v4007
        %v4018 = vadd.f32 %v3997, %v4007
        %v4019 = vadd.f32 %v3998, %v4007
        %v4020 = vadd.f32 %v3999, %v4007
        %v4021 = vadd.f32 %v4000, %v4007
        %v4022 = vadd.f32 %v4001, %v4007
        %v4023 = vmax.f32 %v4009, 0.0
        %v4024 = vmax.f32 %v4010, 0.0
        %v4025 = vmax.f32 %v4011, 0.0
        %v4026 = vmax.f32 %v4012, 0.0
        %v4027 = vmax.f32 %v4013, 0.0
        %v4028 = vmax.f32 %v4014, 0.0
        %v4029 = vmax.f32 %v4015, 0.0
        %v4030 = vmax.f32 %v4016, 0.0
        %v4031 = vmax.f32 %v4017, 0.0
        %v4032 = vmax.f32 %v4018, 0.0
        %v4033 = vmax.f32 %v4019, 0.0
        %v4034 = vmax.f32 %v4020, 0.0
        %v4035 = vmax.f32 %v4021, 0.0
        %v4036 = vmax.f32 %v4022, 0.0
        %v4037 = vsel %vm3207, 1, 0
        %v4038 = vsel %vm3208, 1, 0
        %v4039 = vsel %vm3209, 1, 0
        %v4040 = vsel %vm3210, 1, 0
        %v4041 = vsel %vm3211, 1, 0
        %v4042 = vsel %vm3212, 1, 0
        %v4043 = vsel %vm3213, 1, 0
        %v4044 = vsel %vm3214, 1, 0
        %v4045 = vsel %vm3215, 1, 0
        %v4046 = vsel %vm3216, 1, 0
        %v4047 = vsel %vm3217, 1, 0
        %v4048 = vsel %vm3218, 1, 0
        %v4049 = vsel %vm3219, 1, 0
        %v4050 = vsel %vm3220, 1, 0
        %vm4051 = vcmp.eq.s32.totalorder %v4037, 1
        %vm4052 = vcmp.eq.s32.totalorder %v4038, 1
        %vm4053 = vcmp.eq.s32.totalorder %v4039, 1
        %vm4054 = vcmp.eq.s32.totalorder %v4040, 1
        %vm4055 = vcmp.eq.s32.totalorder %v4041, 1
        %vm4056 = vcmp.eq.s32.totalorder %v4042, 1
        %vm4057 = vcmp.eq.s32.totalorder %v4043, 1
        %vm4058 = vcmp.eq.s32.totalorder %v4044, 1
        %vm4059 = vcmp.eq.s32.totalorder %v4045, 1
        %vm4060 = vcmp.eq.s32.totalorder %v4046, 1
        %vm4061 = vcmp.eq.s32.totalorder %v4047, 1
        %vm4062 = vcmp.eq.s32.totalorder %v4048, 1
        %vm4063 = vcmp.eq.s32.totalorder %v4049, 1
        %vm4064 = vcmp.eq.s32.totalorder %v4050, 1
        %v4065 = vsel %vm4051, %v4023, 0.0
        %v4066 = vsel %vm4052, %v4024, 0.0
        %v4067 = vsel %vm4053, %v4025, 0.0
        %v4068 = vsel %vm4054, %v4026, 0.0
        %v4069 = vsel %vm4055, %v4027, 0.0
        %v4070 = vsel %vm4056, %v4028, 0.0
        %v4071 = vsel %vm4057, %v4029, 0.0
        %v4072 = vsel %vm4058, %v4030, 0.0
        %v4073 = vsel %vm4059, %v4031, 0.0
        %v4074 = vsel %vm4060, %v4032, 0.0
        %v4075 = vsel %vm4061, %v4033, 0.0
        %v4076 = vsel %vm4062, %v4034, 0.0
        %v4077 = vsel %vm4063, %v4035, 0.0
        %v4078 = vsel %vm4064, %v4036, 0.0
        %v4079 = vpack.c.bf16 %v4066, %v4065
        %v4080 = vpack.c.bf16 %v4068, %v4067
        %v4081 = vpack.c.bf16 %v4070, %v4069
        %v4082 = vpack.c.bf16 %v4072, %v4071
        %v4083 = vpack.c.bf16 %v4074, %v4073
        %v4084 = vpack.c.bf16 %v4076, %v4075
        %v4085 = vpack.c.bf16 %v4078, %v4077
        %4086 = vst [vmem:[#allocation4] sm:$0xff] %v4079
        %4087 = vst [vmem:[#allocation4 + $0x8] sm:$0xff] %v4080
        %4088 = vst [vmem:[#allocation4 + $0x10] sm:$0xff] %v4081
        %4089 = vst [vmem:[#allocation4 + $0x18] sm:$0xff] %v4082
        %4090 = vst [vmem:[#allocation4 + $0x20] sm:$0xff] %v4083
        %4091 = vst [vmem:[#allocation4 + $0x28] sm:$0xff] %v4084
        %4092 = vst [vmem:[#allocation4 + $0x30] sm:$0x3f] %v4085
        %v4093 = vld [vmem:[#allocation4] sm:$0xff]
        %v4094 = vld [vmem:[#allocation4 + $0x8] sm:$0xff]
        %v4095 = vld [vmem:[#allocation4 + $0x10] sm:$0xff]
        %v4096 = vld [vmem:[#allocation4 + $0x18] sm:$0xff]
        %v4097 = vld [vmem:[#allocation4 + $0x20] sm:$0xff]
        %v4098 = vld [vmem:[#allocation4 + $0x28] sm:$0xff]
        %v4099 = vld [vmem:[#allocation4 + $0x30] sm:$0xf]
        %v4100 = vld [vmem:[#allocation4 + $0x30] sm:$0x1f]
        %v4102 = vshrl.u32 %v4093, 16
        %v4104 = vshll.u32 %v4093, 16
        %v4106 = vrot.slane %v4104, 1
        %v4107 = vor.u32 %v4102, %v4106
        %v4109 = vshll.u32 %v4094, 16
        %v4111 = vrot.slane %v4109, 1
        %v4112 = vsel %vm3229, %v4107, %v4111
        %v4113 = vshrl.u32 %v4094, 16
        %v4115 = vor.u32 %v4113, %v4111
        %v4117 = vshll.u32 %v4095, 16
        %v4119 = vrot.slane %v4117, 1
        %v4120 = vsel %vm3229, %v4115, %v4119
        %v4121 = vshrl.u32 %v4095, 16
        %v4123 = vor.u32 %v4121, %v4119
        %v4125 = vshll.u32 %v4096, 16
        %v4127 = vrot.slane %v4125, 1
        %v4128 = vsel %vm3229, %v4123, %v4127
        %v4129 = vshrl.u32 %v4096, 16
        %v4131 = vor.u32 %v4129, %v4127
        %v4133 = vshll.u32 %v4097, 16
        %v4135 = vrot.slane %v4133, 1
        %v4136 = vsel %vm3229, %v4131, %v4135
        %v4137 = vshrl.u32 %v4097, 16
        %v4139 = vor.u32 %v4137, %v4135
        %v4141 = vshll.u32 %v4098, 16
        %v4143 = vrot.slane %v4141, 1
        %v4144 = vsel %vm3229, %v4139, %v4143
        %v4145 = vshrl.u32 %v4098, 16
        %v4147 = vor.u32 %v4145, %v4143
        %v4149 = vshll.u32 %v4100, 16
        %v4151 = vrot.slane %v4149, 1
        %v4152 = vsel %vm3229, %v4147, %v4151
        %v4153 = vshrl.u32 %v4100, 16
        %v4155 = vor.u32 %v4153, %v4151
        %v4163 = vld [vmem:[#allocation11] sm:$0xf]
        %v4164 = vld [vmem:[#allocation11 + $0x4] sm:$0xf]
        %v4165 = vld [vmem:[#allocation11 + $0x8] sm:$0xf]
        %v4166 = vld [vmem:[#allocation11 + $0xc] sm:$0xf]
        %v4167 = vld [vmem:[#allocation11 + $0x10] sm:$0xf]
        %v4168 = vld [vmem:[#allocation11 + $0x14] sm:$0xf]
        %v4169 = vld [vmem:[#allocation11 + $0x18] sm:$0xf]
        %v4170 = vld [vmem:[#allocation11 + $0x1c] sm:$0xf]
        %v4171 = vld [vmem:[#allocation11 + $0x20] sm:$0xf]
        %v4172 = vld [vmem:[#allocation11 + $0x24] sm:$0xf]
        %v4173 = vld [vmem:[#allocation11 + $0x28] sm:$0xf]
        %v4174 = vld [vmem:[#allocation11 + $0x2c] sm:$0xf]
        %v4175 = vld [vmem:[#allocation11 + $0x30] sm:$0xf]
        %v4176 = vld [vmem:[#allocation11 + $0x34] sm:$0xf]
        %v4177 = vld [vmem:[#allocation11 + $0x38] sm:$0xf]
        %v4178 = vld [vmem:[#allocation11 + $0x3c] sm:$0xf]
        %v4179 = vld [vmem:[#allocation11 + $0x40] sm:$0xf]
        %v4180 = vld [vmem:[#allocation11 + $0x44] sm:$0xf]
        %v4181 = vld [vmem:[#allocation11 + $0x48] sm:$0xf]
        %v4182 = vld [vmem:[#allocation11 + $0x4c] sm:$0xf]
        %v4183 = vld [vmem:[#allocation11 + $0x50] sm:$0xf]
        %v4184 = vld [vmem:[#allocation11 + $0x54] sm:$0xf]
        %v4185 = vld [vmem:[#allocation11 + $0x58] sm:$0xf]
        %v4186 = vld [vmem:[#allocation11 + $0x5c] sm:$0xf]
        %v4187 = vld [vmem:[#allocation11 + $0x60] sm:$0xf]
        %v4188 = vld [vmem:[#allocation11 + $0x64] sm:$0xf]
        %v4189 = vld [vmem:[#allocation11 + $0x68] sm:$0xf]
        %v4190 = vld [vmem:[#allocation11 + $0x6c] sm:$0xf]
        %v4191 = vld [vmem:[#allocation11 + $0x70] sm:$0xf]
        %v4192 = vld [vmem:[#allocation11 + $0x74] sm:$0xf]
        %v4193 = vld [vmem:[#allocation11 + $0x78] sm:$0xf]
        %v4194 = vld [vmem:[#allocation11 + $0x7c] sm:$0xf]
        %v4195 = vld [vmem:[#allocation4] sm:$0xfe]
        %v4196 = vld [vmem:[#allocation4 + $0x30] sm:$0x3f]
        %v4198 = vshrl.u32 %v4195, 16
        %v4200 = vshll.u32 %v4195, 16
        %v4202 = vrot.slane %v4200, 1
        %v4203 = vor.u32 %v4198, %v4202
        %v4204 = vsel %vm3229, %v4203, %v4111
        %v4206 = vshll.u32 %v4196, 16
        %v4208 = vrot.slane %v4206, 1
        %v4209 = vsel %vm3229, %v4147, %v4208
        %v4210 = vshrl.u32 %v4196, 16
        %v4212 = vor.u32 %v4210, %v4208
        %v4213 = vld [vmem:[#allocation11 + $0x80] sm:$0xf]
        %v4214 = vld [vmem:[#allocation11 + $0x84] sm:$0xf]
        %v4215 = vld [vmem:[#allocation11 + $0x88] sm:$0xf]
        %v4216 = vld [vmem:[#allocation11 + $0x8c] sm:$0xf]
        %v4217 = vld [vmem:[#allocation11 + $0x90] sm:$0xf]
        %v4218 = vld [vmem:[#allocation11 + $0x94] sm:$0xf]
        %v4219 = vld [vmem:[#allocation11 + $0x98] sm:$0xf]
        %v4220 = vld [vmem:[#allocation11 + $0x9c] sm:$0xf]
        %v4221 = vld [vmem:[#allocation11 + $0xa0] sm:$0xf]
        %v4222 = vld [vmem:[#allocation11 + $0xa4] sm:$0xf]
        %v4223 = vld [vmem:[#allocation11 + $0xa8] sm:$0xf]
        %v4224 = vld [vmem:[#allocation11 + $0xac] sm:$0xf]
        %v4225 = vld [vmem:[#allocation11 + $0xb0] sm:$0xf]
        %v4226 = vld [vmem:[#allocation11 + $0xb4] sm:$0xf]
        %v4227 = vld [vmem:[#allocation11 + $0xb8] sm:$0xf]
        %v4228 = vld [vmem:[#allocation11 + $0xbc] sm:$0xf]
        %v4229 = vld [vmem:[#allocation11 + $0xc0] sm:$0xf]
        %v4230 = vld [vmem:[#allocation11 + $0xc4] sm:$0xf]
        %v4231 = vld [vmem:[#allocation11 + $0xc8] sm:$0xf]
        %v4232 = vld [vmem:[#allocation11 + $0xcc] sm:$0xf]
        %v4233 = vld [vmem:[#allocation11 + $0xd0] sm:$0xf]
        %v4234 = vld [vmem:[#allocation11 + $0xd4] sm:$0xf]
        %v4235 = vld [vmem:[#allocation11 + $0xd8] sm:$0xf]
        %v4236 = vld [vmem:[#allocation11 + $0xdc] sm:$0xf]
        %v4237 = vld [vmem:[#allocation11 + $0xe0] sm:$0xf]
        %v4238 = vld [vmem:[#allocation11 + $0xe4] sm:$0xf]
        %v4239 = vld [vmem:[#allocation11 + $0xe8] sm:$0xf]
        %v4240 = vld [vmem:[#allocation11 + $0xec] sm:$0xf]
        %v4241 = vld [vmem:[#allocation11 + $0xf0] sm:$0xf]
        %v4242 = vld [vmem:[#allocation11 + $0xf4] sm:$0xf]
        %v4243 = vld [vmem:[#allocation11 + $0xf8] sm:$0xf]
        %v4244 = vld [vmem:[#allocation11 + $0xfc] sm:$0xf]
        %v4252 = vrot.slane %v4195, 1
        %v4253 = vrot.slane %v4094, 1
        %v4254 = vsel %vm1923, %v4252, %v4253
        %v4255 = vrot.slane %v4204, 1
        %v4256 = vrot.slane %v4120, 1
        %v4257 = vsel %vm1923, %v4255, %v4256
        %v4258 = vrot.slane %v4095, 1
        %v4259 = vsel %vm1923, %v4253, %v4258
        %v4260 = vrot.slane %v4128, 1
        %v4261 = vsel %vm1923, %v4256, %v4260
        %v4262 = vrot.slane %v4096, 1
        %v4263 = vsel %vm1923, %v4258, %v4262
        %v4264 = vrot.slane %v4136, 1
        %v4265 = vsel %vm1923, %v4260, %v4264
        %v4266 = vrot.slane %v4097, 1
        %v4267 = vsel %vm1923, %v4262, %v4266
        %v4268 = vrot.slane %v4144, 1
        %v4269 = vsel %vm1923, %v4264, %v4268
        %v4270 = vrot.slane %v4098, 1
        %v4271 = vsel %vm1923, %v4266, %v4270
        %v4272 = vrot.slane %v4209, 1
        %v4273 = vsel %vm1923, %v4268, %v4272
        %v4274 = vrot.slane %v4100, 1
        %v4275 = vsel %vm1923, %v4270, %v4274
        %v4276 = vrot.slane %v4212, 1
        %v4277 = vsel %vm1923, %v4272, %v4276
        %v4324 = vunpack.c.l.b16 %v4213
        %v4325 = vunpack.c.l.b16 %v4214
        %v4326 = vunpack.c.l.b16 %v4215
        %v4327 = vunpack.c.l.b16 %v4216
        %v4328 = vunpack.c.l.b16 %v4217
        %v4329 = vunpack.c.l.b16 %v4218
        %v4330 = vunpack.c.l.b16 %v4219
        %v4331 = vunpack.c.l.b16 %v4220
        %v4332 = vunpack.c.l.b16 %v4221
        %v4333 = vunpack.c.l.b16 %v4222
        %v4334 = vunpack.c.l.b16 %v4223
        %v4335 = vunpack.c.l.b16 %v4224
        %v4336 = vunpack.c.l.b16 %v4225
        %v4337 = vunpack.c.l.b16 %v4226
        %v4338 = vunpack.c.l.b16 %v4227
        %v4339 = vunpack.c.l.b16 %v4228
        %v4340 = vunpack.c.l.b16 %v4229
        %v4341 = vunpack.c.l.b16 %v4230
        %v4342 = vunpack.c.l.b16 %v4231
        %v4343 = vunpack.c.l.b16 %v4232
        %v4344 = vunpack.c.l.b16 %v4233
        %v4345 = vunpack.c.l.b16 %v4234
        %v4346 = vunpack.c.l.b16 %v4235
        %v4347 = vunpack.c.l.b16 %v4236
        %v4348 = vunpack.c.l.b16 %v4237
        %v4349 = vunpack.c.l.b16 %v4238
        %v4350 = vunpack.c.l.b16 %v4239
        %v4351 = vunpack.c.l.b16 %v4240
        %v4352 = vunpack.c.l.b16 %v4241
        %v4353 = vunpack.c.l.b16 %v4242
        %v4354 = vunpack.c.l.b16 %v4243
        %v4355 = vunpack.c.l.b16 %v4244
        %v4356 = vpack.c.b16 %v4325, %v4324
        %v4357 = vpack.c.b16 %v4327, %v4326
        %v4358 = vpack.c.b16 %v4329, %v4328
        %v4359 = vpack.c.b16 %v4331, %v4330
        %v4360 = vpack.c.b16 %v4333, %v4332
        %v4361 = vpack.c.b16 %v4335, %v4334
        %v4362 = vpack.c.b16 %v4337, %v4336
        %v4363 = vpack.c.b16 %v4339, %v4338
        %v4364 = vpack.c.b16 %v4341, %v4340
        %v4365 = vpack.c.b16 %v4343, %v4342
        %v4366 = vpack.c.b16 %v4345, %v4344
        %v4367 = vpack.c.b16 %v4347, %v4346
        %v4368 = vpack.c.b16 %v4349, %v4348
        %v4369 = vpack.c.b16 %v4351, %v4350
        %v4370 = vpack.c.b16 %v4353, %v4352
        %v4371 = vpack.c.b16 %v4355, %v4354
        %4388 = vmatprep.subr.bf16.mxu0 0
        %4389 = vmatpush1.bf16.msra.mxu0 %v4356
        %4390 = vmatprep.subr.bf16.mxu0 0
        %4391 = vmatpush1.bf16.msra.mxu0 %v4357
        %4392 = vmatprep.subr.bf16.mxu0 0
        %4393 = vmatpush1.bf16.msra.mxu0 %v4358
        %4394 = vmatprep.subr.bf16.mxu0 0
        %4395 = vmatpush1.bf16.msra.mxu0 %v4359
        %4396 = vmatprep.subr.bf16.mxu0 0
        %4397 = vmatpush1.bf16.msra.mxu0 %v4360
        %4398 = vmatprep.subr.bf16.mxu0 0
        %4399 = vmatpush1.bf16.msra.mxu0 %v4361
        %4400 = vmatprep.subr.bf16.mxu0 0
        %4401 = vmatpush1.bf16.msra.mxu0 %v4362
        %4402 = vmatprep.subr.bf16.mxu0 0
        %4403 = vmatpush1.bf16.msra.mxu0 %v4363
        %4404 = vmatprep.subr.bf16.mxu0 0
        %4405 = vmatpush1.bf16.msra.mxu0 %v4364
        %4406 = vmatprep.subr.bf16.mxu0 0
        %4407 = vmatpush1.bf16.msra.mxu0 %v4365
        %4408 = vmatprep.subr.bf16.mxu0 0
        %4409 = vmatpush1.bf16.msra.mxu0 %v4366
        %4410 = vmatprep.subr.bf16.mxu0 0
        %4411 = vmatpush1.bf16.msra.mxu0 %v4367
        %4412 = vmatprep.subr.bf16.mxu0 0
        %4413 = vmatpush1.bf16.msra.mxu0 %v4368
        %4414 = vmatprep.subr.bf16.mxu0 0
        %4415 = vmatpush1.bf16.msra.mxu0 %v4369
        %4416 = vmatprep.subr.bf16.mxu0 0
        %4417 = vmatpush1.bf16.msra.mxu0 %v4370
        %4418 = vmatprep.subr.bf16.mxu0 0
        %4419 = vmatpush1.bf16.msra.mxu0 %v4371
        %4420 = vmatprep.mubr.bf16.mxu0 %v4257
        %4421 = vmatmul.mubr.bf16.gmra.mrb[0].mxu0 %v4254
        %v4422 = vpop.f32.mrb[0].mxu0
        %v4423 = vadd.f32 0.0, %v4422
        %v4424 = vpop.f32.mrb[0].mxu0
        %v4425 = vpop.f32.mrb[0].mxu0
        %v4426 = vadd.f32 0.0, %v4425
        %v4427 = vpop.f32.mrb[0].mxu0
        %4428 = vmatprep.mubr.bf16.mxu0 %v4261
        %4429 = vmatmul.mubr.bf16.gmra.mrb[0].mxu0 %v4259
        %v4430 = vpop.f32.mrb[0].mxu0
        %v4431 = vadd.f32 0.0, %v4430
        %v4432 = vpop.f32.mrb[0].mxu0
        %v4433 = vpop.f32.mrb[0].mxu0
        %v4434 = vadd.f32 0.0, %v4433
        %v4435 = vpop.f32.mrb[0].mxu0
        %4436 = vmatprep.mubr.bf16.mxu0 %v4265
        %4437 = vmatmul.mubr.bf16.gmra.mrb[0].mxu0 %v4263
        %v4438 = vpop.f32.mrb[0].mxu0
        %v4439 = vadd.f32 0.0, %v4438
        %v4440 = vpop.f32.mrb[0].mxu0
        %v4441 = vpop.f32.mrb[0].mxu0
        %v4442 = vadd.f32 0.0, %v4441
        %v4443 = vpop.f32.mrb[0].mxu0
        %4444 = vmatprep.mubr.bf16.mxu0 %v4269
        %4445 = vmatmul.mubr.bf16.gmra.mrb[0].mxu0 %v4267
        %v4446 = vpop.f32.mrb[0].mxu0
        %v4447 = vadd.f32 0.0, %v4446
        %v4448 = vpop.f32.mrb[0].mxu0
        %v4449 = vpop.f32.mrb[0].mxu0
        %v4450 = vadd.f32 0.0, %v4449
        %v4451 = vpop.f32.mrb[0].mxu0
        %4452 = vmatprep.mubr.bf16.mxu0 %v4273
        %4453 = vmatmul.mubr.bf16.gmra.mrb[0].mxu0 %v4271
        %v4454 = vpop.f32.mrb[0].mxu0
        %v4455 = vadd.f32 0.0, %v4454
        %v4456 = vpop.f32.mrb[0].mxu0
        %v4457 = vpop.f32.mrb[0].mxu0
        %v4458 = vadd.f32 0.0, %v4457
        %v4459 = vpop.f32.mrb[0].mxu0
        %4460 = vmatprep.mubr.bf16.mxu0 %v4277
        %4461 = vmatmul.mubr.bf16.gmra.mrb[0].mxu0 %v4275
        %v4462 = vpop.f32.mrb[0].mxu0
        %v4463 = vadd.f32 0.0, %v4462
        %v4464 = vpop.f32.mrb[0].mxu0
        %v4465 = vpop.f32.mrb[0].mxu0
        %v4466 = vadd.f32 0.0, %v4465
        %v4467 = vpop.f32.mrb[0].mxu0
        %4468 = vmatprep.mubr.bf16.mxu0 %v4276
        %4469 = vmatmul.mubr.bf16.gmra.mrb[0].mxu0 %v4274
        %v4470 = vpop.f32.mrb[0].mxu0
        %v4471 = vadd.f32 0.0, %v4470
        %v4472 = vpop.f32.mrb[0].mxu0
        %v4473 = vpop.f32.mrb[0].mxu0
        %v4474 = vpop.f32.mrb[0].mxu0
        %4475 = vdwg.mxu0
        %v4508 = vunpack.c.l.b16 %v4163
        %v4509 = vunpack.c.l.b16 %v4164
        %v4510 = vunpack.c.l.b16 %v4165
        %v4511 = vunpack.c.l.b16 %v4166
        %v4512 = vunpack.c.l.b16 %v4167
        %v4513 = vunpack.c.l.b16 %v4168
        %v4514 = vunpack.c.l.b16 %v4169
        %v4515 = vunpack.c.l.b16 %v4170
        %v4516 = vunpack.c.l.b16 %v4171
        %v4517 = vunpack.c.l.b16 %v4172
        %v4518 = vunpack.c.l.b16 %v4173
        %v4519 = vunpack.c.l.b16 %v4174
        %v4520 = vunpack.c.l.b16 %v4175
        %v4521 = vunpack.c.l.b16 %v4176
        %v4522 = vunpack.c.l.b16 %v4177
        %v4523 = vunpack.c.l.b16 %v4178
        %v4524 = vunpack.c.l.b16 %v4179
        %v4525 = vunpack.c.l.b16 %v4180
        %v4526 = vunpack.c.l.b16 %v4181
        %v4527 = vunpack.c.l.b16 %v4182
        %v4528 = vunpack.c.l.b16 %v4183
        %v4529 = vunpack.c.l.b16 %v4184
        %v4530 = vunpack.c.l.b16 %v4185
        %v4531 = vunpack.c.l.b16 %v4186
        %v4532 = vunpack.c.l.b16 %v4187
        %v4533 = vunpack.c.l.b16 %v4188
        %v4534 = vunpack.c.l.b16 %v4189
        %v4535 = vunpack.c.l.b16 %v4190
        %v4536 = vunpack.c.l.b16 %v4191
        %v4537 = vunpack.c.l.b16 %v4192
        %v4538 = vunpack.c.l.b16 %v4193
        %v4539 = vunpack.c.l.b16 %v4194
        %v4540 = vpack.c.b16 %v4509, %v4508
        %v4541 = vpack.c.b16 %v4511, %v4510
        %v4542 = vpack.c.b16 %v4513, %v4512
        %v4543 = vpack.c.b16 %v4515, %v4514
        %v4544 = vpack.c.b16 %v4517, %v4516
        %v4545 = vpack.c.b16 %v4519, %v4518
        %v4546 = vpack.c.b16 %v4521, %v4520
        %v4547 = vpack.c.b16 %v4523, %v4522
        %v4548 = vpack.c.b16 %v4525, %v4524
        %v4549 = vpack.c.b16 %v4527, %v4526
        %v4550 = vpack.c.b16 %v4529, %v4528
        %v4551 = vpack.c.b16 %v4531, %v4530
        %v4552 = vpack.c.b16 %v4533, %v4532
        %v4553 = vpack.c.b16 %v4535, %v4534
        %v4554 = vpack.c.b16 %v4537, %v4536
        %v4555 = vpack.c.b16 %v4539, %v4538
        %4572 = vmatprep.subr.bf16.mxu0 0
        %4573 = vmatpush1.bf16.msra.mxu0 %v4540
        %4574 = vmatprep.subr.bf16.mxu0 0
        %4575 = vmatpush1.bf16.msra.mxu0 %v4541
        %4576 = vmatprep.subr.bf16.mxu0 0
        %4577 = vmatpush1.bf16.msra.mxu0 %v4542
        %4578 = vmatprep.subr.bf16.mxu0 0
        %4579 = vmatpush1.bf16.msra.mxu0 %v4543
        %4580 = vmatprep.subr.bf16.mxu0 0
        %4581 = vmatpush1.bf16.msra.mxu0 %v4544
        %4582 = vmatprep.subr.bf16.mxu0 0
        %4583 = vmatpush1.bf16.msra.mxu0 %v4545
        %4584 = vmatprep.subr.bf16.mxu0 0
        %4585 = vmatpush1.bf16.msra.mxu0 %v4546
        %4586 = vmatprep.subr.bf16.mxu0 0
        %4587 = vmatpush1.bf16.msra.mxu0 %v4547
        %4588 = vmatprep.subr.bf16.mxu0 0
        %4589 = vmatpush1.bf16.msra.mxu0 %v4548
        %4590 = vmatprep.subr.bf16.mxu0 0
        %4591 = vmatpush1.bf16.msra.mxu0 %v4549
        %4592 = vmatprep.subr.bf16.mxu0 0
        %4593 = vmatpush1.bf16.msra.mxu0 %v4550
        %4594 = vmatprep.subr.bf16.mxu0 0
        %4595 = vmatpush1.bf16.msra.mxu0 %v4551
        %4596 = vmatprep.subr.bf16.mxu0 0
        %4597 = vmatpush1.bf16.msra.mxu0 %v4552
        %4598 = vmatprep.subr.bf16.mxu0 0
        %4599 = vmatpush1.bf16.msra.mxu0 %v4553
        %4600 = vmatprep.subr.bf16.mxu0 0
        %4601 = vmatpush1.bf16.msra.mxu0 %v4554
        %4602 = vmatprep.subr.bf16.mxu0 0
        %4603 = vmatpush1.bf16.msra.mxu0 %v4555
        %4604 = vmatprep.mubr.bf16.mxu0 %v4112
        %4605 = vmatmul.mubr.bf16.gmra.mrb[0].mxu0 %v4093
        %v4606 = vpop.f32.mrb[0].mxu0
        %v4607 = vadd.f32 %v4423, %v4606
        %v4608 = vpop.f32.mrb[0].mxu0
        %v4609 = vpop.f32.mrb[0].mxu0
        %v4610 = vadd.f32 %v4426, %v4609
        %v4611 = vpop.f32.mrb[0].mxu0
        %4612 = vmatprep.mubr.bf16.mxu0 %v4120
        %4613 = vmatmul.mubr.bf16.gmra.mrb[0].mxu0 %v4094
        %v4614 = vpop.f32.mrb[0].mxu0
        %v4615 = vadd.f32 %v4431, %v4614
        %v4616 = vpop.f32.mrb[0].mxu0
        %v4617 = vpop.f32.mrb[0].mxu0
        %v4618 = vadd.f32 %v4434, %v4617
        %v4619 = vpop.f32.mrb[0].mxu0
        %4620 = vmatprep.mubr.bf16.mxu0 %v4128
        %4621 = vmatmul.mubr.bf16.gmra.mrb[0].mxu0 %v4095
        %v4622 = vpop.f32.mrb[0].mxu0
        %v4623 = vadd.f32 %v4439, %v4622
        %v4624 = vpop.f32.mrb[0].mxu0
        %v4625 = vpop.f32.mrb[0].mxu0
        %v4626 = vadd.f32 %v4442, %v4625
        %v4627 = vpop.f32.mrb[0].mxu0
        %4628 = vmatprep.mubr.bf16.mxu0 %v4136
        %4629 = vmatmul.mubr.bf16.gmra.mrb[0].mxu0 %v4096
        %v4630 = vpop.f32.mrb[0].mxu0
        %v4631 = vadd.f32 %v4447, %v4630
        %v4632 = vpop.f32.mrb[0].mxu0
        %v4633 = vpop.f32.mrb[0].mxu0
        %v4634 = vadd.f32 %v4450, %v4633
        %v4635 = vpop.f32.mrb[0].mxu0
        %4636 = vmatprep.mubr.bf16.mxu0 %v4144
        %4637 = vmatmul.mubr.bf16.gmra.mrb[0].mxu0 %v4097
        %v4638 = vpop.f32.mrb[0].mxu0
        %v4639 = vadd.f32 %v4455, %v4638
        %v4640 = vpop.f32.mrb[0].mxu0
        %v4641 = vpop.f32.mrb[0].mxu0
        %v4642 = vadd.f32 %v4458, %v4641
        %v4643 = vpop.f32.mrb[0].mxu0
        %4644 = vmatprep.mubr.bf16.mxu0 %v4152
        %4645 = vmatmul.mubr.bf16.gmra.mrb[0].mxu0 %v4098
        %v4646 = vpop.f32.mrb[0].mxu0
        %v4647 = vadd.f32 %v4463, %v4646
        %v4648 = vpop.f32.mrb[0].mxu0
        %v4649 = vpop.f32.mrb[0].mxu0
        %v4650 = vadd.f32 %v4466, %v4649
        %v4651 = vpop.f32.mrb[0].mxu0
        %4652 = vmatprep.mubr.bf16.mxu0 %v4155
        %4653 = vmatmul.mubr.bf16.gmra.mrb[0].mxu0 %v4099
        %v4654 = vpop.f32.mrb[0].mxu0
        %v4655 = vadd.f32 %v4471, %v4654
        %v4656 = vpop.f32.mrb[0].mxu0
        %v4657 = vpop.f32.mrb[0].mxu0
        %v4658 = vpop.f32.mrb[0].mxu0
        %4659 = vdwg.mxu0
        %v4660 = vld [vmem:[#allocation4] sm:$0xfc]
        %v4661 = vld [vmem:[#allocation11 + $0x100] sm:$0xf]
        %v4662 = vld [vmem:[#allocation11 + $0x104] sm:$0xf]
        %v4663 = vld [vmem:[#allocation11 + $0x108] sm:$0xf]
        %v4664 = vld [vmem:[#allocation11 + $0x10c] sm:$0xf]
        %v4665 = vld [vmem:[#allocation11 + $0x110] sm:$0xf]
        %v4666 = vld [vmem:[#allocation11 + $0x114] sm:$0xf]
        %v4667 = vld [vmem:[#allocation11 + $0x118] sm:$0xf]
        %v4668 = vld [vmem:[#allocation11 + $0x11c] sm:$0xf]
        %v4669 = vld [vmem:[#allocation11 + $0x120] sm:$0xf]
        %v4670 = vld [vmem:[#allocation11 + $0x124] sm:$0xf]
        %v4671 = vld [vmem:[#allocation11 + $0x128] sm:$0xf]
        %v4672 = vld [vmem:[#allocation11 + $0x12c] sm:$0xf]
        %v4673 = vld [vmem:[#allocation11 + $0x130] sm:$0xf]
        %v4674 = vld [vmem:[#allocation11 + $0x134] sm:$0xf]
        %v4675 = vld [vmem:[#allocation11 + $0x138] sm:$0xf]
        %v4676 = vld [vmem:[#allocation11 + $0x13c] sm:$0xf]
        %v4679 = vrot.slane %v4660, 2
        %v4680 = vrot.slane %v4094, 2
        %v4681 = vsel %vm2191, %v4679, %v4680
        %v4682 = vrot.slane %v4095, 2
        %v4683 = vsel %vm2191, %v4680, %v4682
        %v4684 = vrot.slane %v4096, 2
        %v4685 = vsel %vm2191, %v4682, %v4684
        %v4686 = vrot.slane %v4097, 2
        %v4687 = vsel %vm2191, %v4684, %v4686
        %v4688 = vrot.slane %v4098, 2
        %v4689 = vsel %vm2191, %v4686, %v4688
        %v4690 = vrot.slane %v4196, 2
        %v4691 = vsel %vm2191, %v4688, %v4690
        %v4715 = vunpack.c.l.b16 %v4661
        %v4716 = vunpack.c.l.b16 %v4662
        %v4717 = vunpack.c.l.b16 %v4663
        %v4718 = vunpack.c.l.b16 %v4664
        %v4719 = vunpack.c.l.b16 %v4665
        %v4720 = vunpack.c.l.b16 %v4666
        %v4721 = vunpack.c.l.b16 %v4667
        %v4722 = vunpack.c.l.b16 %v4668
        %v4723 = vunpack.c.l.b16 %v4669
        %v4724 = vunpack.c.l.b16 %v4670
        %v4725 = vunpack.c.l.b16 %v4671
        %v4726 = vunpack.c.l.b16 %v4672
        %v4727 = vunpack.c.l.b16 %v4673
        %v4728 = vunpack.c.l.b16 %v4674
        %v4729 = vunpack.c.l.b16 %v4675
        %v4730 = vunpack.c.l.b16 %v4676
        %v4731 = vpack.c.b16 %v4716, %v4715
        %v4732 = vpack.c.b16 %v4718, %v4717
        %v4733 = vpack.c.b16 %v4720, %v4719
        %v4734 = vpack.c.b16 %v4722, %v4721
        %v4735 = vpack.c.b16 %v4724, %v4723
        %v4736 = vpack.c.b16 %v4726, %v4725
        %v4737 = vpack.c.b16 %v4728, %v4727
        %v4738 = vpack.c.b16 %v4730, %v4729
        %4747 = vmatprep.subr.bf16.mxu0 0
        %4748 = vmatpush1.bf16.msra.mxu0 %v4731
        %4749 = vmatprep.subr.bf16.mxu0 0
        %4750 = vmatpush1.bf16.msra.mxu0 %v4732
        %4751 = vmatprep.subr.bf16.mxu0 0
        %4752 = vmatpush1.bf16.msra.mxu0 %v4733
        %4753 = vmatprep.subr.bf16.mxu0 0
        %4754 = vmatpush1.bf16.msra.mxu0 %v4734
        %4755 = vmatprep.subr.bf16.mxu0 0
        %4756 = vmatpush1.bf16.msra.mxu0 %v4735
        %4757 = vmatprep.subr.bf16.mxu0 0
        %4758 = vmatpush1.bf16.msra.mxu0 %v4736
        %4759 = vmatprep.subr.bf16.mxu0 0
        %4760 = vmatpush1.bf16.msra.mxu0 %v4737
        %4761 = vmatprep.subr.bf16.mxu0 0
        %4762 = vmatpush1.bf16.msra.mxu0 %v4738
        %4763 = vmatprep.subr.bf16.mxu0 0
        %4764 = vmatpush1.bf16.msra.mxu0 0
        %4765 = vmatprep.subr.bf16.mxu0 0
        %4766 = vmatpush1.bf16.msra.mxu0 0
        %4767 = vmatprep.subr.bf16.mxu0 0
        %4768 = vmatpush1.bf16.msra.mxu0 0
        %4769 = vmatprep.subr.bf16.mxu0 0
        %4770 = vmatpush1.bf16.msra.mxu0 0
        %4771 = vmatprep.subr.bf16.mxu0 0
        %4772 = vmatpush1.bf16.msra.mxu0 0
        %4773 = vmatprep.subr.bf16.mxu0 0
        %4774 = vmatpush1.bf16.msra.mxu0 0
        %4775 = vmatprep.subr.bf16.mxu0 0
        %4776 = vmatpush1.bf16.msra.mxu0 0
        %4777 = vmatprep.subr.bf16.mxu0 0
        %4778 = vmatpush1.bf16.msra.mxu0 0
        %4779 = vmatprep.mubr.bf16.mxu0 0
        %4780 = vmatmul.mubr.bf16.gmra.mrb[0].mxu0 %v4681
        %v4781 = vpop.f32.mrb[0].mxu0
        %v4782 = vadd.f32 0.0, %v4781
        %v4783 = vpop.f32.mrb[0].mxu0
        %v4784 = vpop.f32.mrb[0].mxu0
        %v4785 = vadd.f32 0.0, %v4784
        %v4786 = vpop.f32.mrb[0].mxu0
        %4787 = vmatprep.mubr.bf16.mxu0 0
        %4788 = vmatmul.mubr.bf16.gmra.mrb[0].mxu0 %v4683
        %v4789 = vpop.f32.mrb[0].mxu0
        %v4790 = vadd.f32 0.0, %v4789
        %v4791 = vpop.f32.mrb[0].mxu0
        %v4792 = vpop.f32.mrb[0].mxu0
        %v4793 = vadd.f32 0.0, %v4792
        %v4794 = vpop.f32.mrb[0].mxu0
        %4795 = vmatprep.mubr.bf16.mxu0 0
        %4796 = vmatmul.mubr.bf16.gmra.mrb[0].mxu0 %v4685
        %v4797 = vpop.f32.mrb[0].mxu0
        %v4798 = vadd.f32 0.0, %v4797
        %v4799 = vpop.f32.mrb[0].mxu0
        %v4800 = vpop.f32.mrb[0].mxu0
        %v4801 = vadd.f32 0.0, %v4800
        %v4802 = vpop.f32.mrb[0].mxu0
        %4803 = vmatprep.mubr.bf16.mxu0 0
        %4804 = vmatmul.mubr.bf16.gmra.mrb[0].mxu0 %v4687
        %v4805 = vpop.f32.mrb[0].mxu0
        %v4806 = vadd.f32 0.0, %v4805
        %v4807 = vpop.f32.mrb[0].mxu0
        %v4808 = vpop.f32.mrb[0].mxu0
        %v4809 = vadd.f32 0.0, %v4808
        %v4810 = vpop.f32.mrb[0].mxu0
        %4811 = vmatprep.mubr.bf16.mxu0 0
        %4812 = vmatmul.mubr.bf16.gmra.mrb[0].mxu0 %v4689
        %v4813 = vpop.f32.mrb[0].mxu0
        %v4814 = vadd.f32 0.0, %v4813
        %v4815 = vpop.f32.mrb[0].mxu0
        %v4816 = vpop.f32.mrb[0].mxu0
        %v4817 = vadd.f32 0.0, %v4816
        %v4818 = vpop.f32.mrb[0].mxu0
        %4819 = vmatprep.mubr.bf16.mxu0 0
        %4820 = vmatmul.mubr.bf16.gmra.mrb[0].mxu0 %v4691
        %v4821 = vpop.f32.mrb[0].mxu0
        %v4822 = vadd.f32 0.0, %v4821
        %v4823 = vpop.f32.mrb[0].mxu0
        %v4824 = vpop.f32.mrb[0].mxu0
        %v4825 = vadd.f32 0.0, %v4824
        %v4826 = vpop.f32.mrb[0].mxu0
        %4827 = vmatprep.mubr.bf16.mxu0 0
        %4828 = vmatmul.mubr.bf16.gmra.mrb[0].mxu0 %v4690
        %v4829 = vpop.f32.mrb[0].mxu0
        %v4830 = vadd.f32 0.0, %v4829
        %v4831 = vpop.f32.mrb[0].mxu0
        %v4832 = vpop.f32.mrb[0].mxu0
        %v4833 = vpop.f32.mrb[0].mxu0
        %4834 = vdwg.mxu0
        %v4835 = vadd.f32 %v4607, %v4782
        %v4836 = vadd.f32 %v4610, %v4785
        %v4837 = vadd.f32 %v4615, %v4790
        %v4838 = vadd.f32 %v4618, %v4793
        %v4839 = vadd.f32 %v4623, %v4798
        %v4840 = vadd.f32 %v4626, %v4801
        %v4841 = vadd.f32 %v4631, %v4806
        %v4842 = vadd.f32 %v4634, %v4809
        %v4843 = vadd.f32 %v4639, %v4814
        %v4844 = vadd.f32 %v4642, %v4817
        %v4845 = vadd.f32 %v4647, %v4822
        %v4846 = vadd.f32 %v4650, %v4825
        %v4847 = vadd.f32 %v4655, %v4830
        %v4848 = vld [vmem:[%s10] sm:$0x1]
        %v4850 = vlaneseq
        %v4851 = vshrl.u32 %v4850, 7
        %v4852 = vsub.s32 0, %v4851
        %v4853 = vrot.slane %v4848, %v4852
        %v4855 = vmul.f32 %v4835, %v4853
        %v4856 = vmul.f32 %v4836, %v4853
        %v4857 = vmul.f32 %v4837, %v4853
        %v4858 = vmul.f32 %v4838, %v4853
        %v4859 = vmul.f32 %v4839, %v4853
        %v4860 = vmul.f32 %v4840, %v4853
        %v4861 = vmul.f32 %v4841, %v4853
        %v4862 = vmul.f32 %v4842, %v4853
        %v4863 = vmul.f32 %v4843, %v4853
        %v4864 = vmul.f32 %v4844, %v4853
        %v4865 = vmul.f32 %v4845, %v4853
        %v4866 = vmul.f32 %v4846, %v4853
        %v4867 = vmul.f32 %v4847, %v4853
        %v4868 = vld [vmem:[%s11] sm:$0x1]
        %v4870 = vlaneseq
        %v4871 = vshrl.u32 %v4870, 7
        %v4872 = vsub.s32 0, %v4871
        %v4873 = vrot.slane %v4868, %v4872
        %v4875 = vadd.f32 %v4855, %v4873
        %v4876 = vadd.f32 %v4856, %v4873
        %v4877 = vadd.f32 %v4857, %v4873
        %v4878 = vadd.f32 %v4858, %v4873
        %v4879 = vadd.f32 %v4859, %v4873
        %v4880 = vadd.f32 %v4860, %v4873
        %v4881 = vadd.f32 %v4861, %v4873
        %v4882 = vadd.f32 %v4862, %v4873
        %v4883 = vadd.f32 %v4863, %v4873
        %v4884 = vadd.f32 %v4864, %v4873
        %v4885 = vadd.f32 %v4865, %v4873
        %v4886 = vadd.f32 %v4866, %v4873
        %v4887 = vadd.f32 %v4867, %v4873
        %v4888 = vpack.c.bf16 %v4876, %v4875
        %v4889 = vpack.c.bf16 %v4878, %v4877
        %v4890 = vpack.c.bf16 %v4880, %v4879
        %v4891 = vpack.c.bf16 %v4882, %v4881
        %v4892 = vpack.c.bf16 %v4884, %v4883
        %v4893 = vpack.c.bf16 %v4886, %v4885
        %v4894 = vpack.c.bf16 %v4887, %v4887
        %v4895 = vld [vmem:[#allocation13] sm:$0xf]
        %v4896 = vld [vmem:[#allocation13 + $0x4] sm:$0xf]
        %v4897 = vld [vmem:[#allocation13 + $0x8] sm:$0xf]
        %v4898 = vld [vmem:[#allocation13 + $0xc] sm:$0xf]
        %v4899 = vld [vmem:[#allocation13 + $0x10] sm:$0xf]
        %v4900 = vld [vmem:[#allocation13 + $0x14] sm:$0xf]
        %v4901 = vld [vmem:[#allocation13 + $0x18] sm:$0xf]
        %v4902 = vld [vmem:[#allocation13 + $0x1c] sm:$0xf]
        %v4903 = vld [vmem:[#allocation13 + $0x20] sm:$0xf]
        %v4904 = vld [vmem:[#allocation13 + $0x24] sm:$0xf]
        %v4905 = vld [vmem:[#allocation13 + $0x28] sm:$0xf]
        %v4906 = vld [vmem:[#allocation13 + $0x2c] sm:$0xf]
        %v4907 = vld [vmem:[#allocation13 + $0x30] sm:$0xf]
        %v4908 = vld [vmem:[#allocation13 + $0x34] sm:$0xf]
        %v4909 = vld [vmem:[#allocation13 + $0x38] sm:$0xf]
        %v4910 = vld [vmem:[#allocation13 + $0x3c] sm:$0xf]
        %v4911 = vld [vmem:[%s13] sm:$0x1]
        %v4913 = vlaneseq
        %v4914 = vshrl.u32 %v4913, 7
        %v4915 = vsub.s32 0, %v4914
        %v4916 = vrot.slane %v4911, %v4915
        %v4934 = vunpack.c.l.b16 %v4895
        %v4935 = vunpack.c.l.b16 %v4896
        %v4936 = vunpack.c.l.b16 %v4897
        %v4937 = vunpack.c.l.b16 %v4898
        %v4938 = vunpack.c.l.b16 %v4899
        %v4939 = vunpack.c.l.b16 %v4900
        %v4940 = vunpack.c.l.b16 %v4901
        %v4941 = vunpack.c.l.b16 %v4902
        %v4942 = vunpack.c.l.b16 %v4903
        %v4943 = vunpack.c.l.b16 %v4904
        %v4944 = vunpack.c.l.b16 %v4905
        %v4945 = vunpack.c.l.b16 %v4906
        %v4946 = vunpack.c.l.b16 %v4907
        %v4947 = vunpack.c.l.b16 %v4908
        %v4948 = vunpack.c.l.b16 %v4909
        %v4949 = vunpack.c.l.b16 %v4910
        %v4950 = vpack.c.b16 %v4935, %v4934
        %v4951 = vpack.c.b16 %v4937, %v4936
        %v4952 = vpack.c.b16 %v4939, %v4938
        %v4953 = vpack.c.b16 %v4941, %v4940
        %v4954 = vpack.c.b16 %v4943, %v4942
        %v4955 = vpack.c.b16 %v4945, %v4944
        %v4956 = vpack.c.b16 %v4947, %v4946
        %v4957 = vpack.c.b16 %v4949, %v4948
        %4966 = vmatprep.subr.bf16.mxu0 0
        %4967 = vmatpush1.bf16.msra.mxu0 %v4950
        %4968 = vmatprep.subr.bf16.mxu0 0
        %4969 = vmatpush1.bf16.msra.mxu0 %v4951
        %4970 = vmatprep.subr.bf16.mxu0 0
        %4971 = vmatpush1.bf16.msra.mxu0 %v4952
        %4972 = vmatprep.subr.bf16.mxu0 0
        %4973 = vmatpush1.bf16.msra.mxu0 %v4953
        %4974 = vmatprep.subr.bf16.mxu0 0
        %4975 = vmatpush1.bf16.msra.mxu0 %v4954
        %4976 = vmatprep.subr.bf16.mxu0 0
        %4977 = vmatpush1.bf16.msra.mxu0 %v4955
        %4978 = vmatprep.subr.bf16.mxu0 0
        %4979 = vmatpush1.bf16.msra.mxu0 %v4956
        %4980 = vmatprep.subr.bf16.mxu0 0
        %4981 = vmatpush1.bf16.msra.mxu0 %v4957
        %4982 = vmatprep.subr.bf16.mxu0 0
        %4983 = vmatpush1.bf16.msra.mxu0 0
        %4984 = vmatprep.subr.bf16.mxu0 0
        %4985 = vmatpush1.bf16.msra.mxu0 0
        %4986 = vmatprep.subr.bf16.mxu0 0
        %4987 = vmatpush1.bf16.msra.mxu0 0
        %4988 = vmatprep.subr.bf16.mxu0 0
        %4989 = vmatpush1.bf16.msra.mxu0 0
        %4990 = vmatprep.subr.bf16.mxu0 0
        %4991 = vmatpush1.bf16.msra.mxu0 0
        %4992 = vmatprep.subr.bf16.mxu0 0
        %4993 = vmatpush1.bf16.msra.mxu0 0
        %4994 = vmatprep.subr.bf16.mxu0 0
        %4995 = vmatpush1.bf16.msra.mxu0 0
        %4996 = vmatprep.subr.bf16.mxu0 0
        %4997 = vmatpush1.bf16.msra.mxu0 0
        %4998 = vmatprep.mubr.bf16.mxu0 0
        %4999 = vmatmul.mubr.bf16.gmra.mrb[0].mxu0 %v4888
        %v5000 = vpop.f32.mrb[0].mxu0
        %v5001 = vadd.f32 %v4916, %v5000
        %v5002 = vpop.f32.mrb[0].mxu0
        %v5003 = vpop.f32.mrb[0].mxu0
        %v5004 = vadd.f32 %v4916, %v5003
        %v5005 = vpop.f32.mrb[0].mxu0
        %5006 = vmatprep.mubr.bf16.mxu0 0
        %5007 = vmatmul.mubr.bf16.gmra.mrb[0].mxu0 %v4889
        %v5008 = vpop.f32.mrb[0].mxu0
        %v5009 = vadd.f32 %v4916, %v5008
        %v5010 = vpop.f32.mrb[0].mxu0
        %v5011 = vpop.f32.mrb[0].mxu0
        %v5012 = vadd.f32 %v4916, %v5011
        %v5013 = vpop.f32.mrb[0].mxu0
        %5014 = vmatprep.mubr.bf16.mxu0 0
        %5015 = vmatmul.mubr.bf16.gmra.mrb[0].mxu0 %v4890
        %v5016 = vpop.f32.mrb[0].mxu0
        %v5017 = vadd.f32 %v4916, %v5016
        %v5018 = vpop.f32.mrb[0].mxu0
        %v5019 = vpop.f32.mrb[0].mxu0
        %v5020 = vadd.f32 %v4916, %v5019
        %v5021 = vpop.f32.mrb[0].mxu0
        %5022 = vmatprep.mubr.bf16.mxu0 0
        %5023 = vmatmul.mubr.bf16.gmra.mrb[0].mxu0 %v4891
        %v5024 = vpop.f32.mrb[0].mxu0
        %v5025 = vadd.f32 %v4916, %v5024
        %v5026 = vpop.f32.mrb[0].mxu0
        %v5027 = vpop.f32.mrb[0].mxu0
        %v5028 = vadd.f32 %v4916, %v5027
        %v5029 = vpop.f32.mrb[0].mxu0
        %5030 = vmatprep.mubr.bf16.mxu0 0
        %5031 = vmatmul.mubr.bf16.gmra.mrb[0].mxu0 %v4892
        %v5032 = vpop.f32.mrb[0].mxu0
        %v5033 = vadd.f32 %v4916, %v5032
        %v5034 = vpop.f32.mrb[0].mxu0
        %v5035 = vpop.f32.mrb[0].mxu0
        %v5036 = vadd.f32 %v4916, %v5035
        %v5037 = vpop.f32.mrb[0].mxu0
        %5038 = vmatprep.mubr.bf16.mxu0 0
        %5039 = vmatmul.mubr.bf16.gmra.mrb[0].mxu0 %v4893
        %v5040 = vpop.f32.mrb[0].mxu0
        %v5041 = vadd.f32 %v4916, %v5040
        %v5042 = vpop.f32.mrb[0].mxu0
        %v5043 = vpop.f32.mrb[0].mxu0
        %v5044 = vadd.f32 %v4916, %v5043
        %v5045 = vpop.f32.mrb[0].mxu0
        %5046 = vmatprep.mubr.bf16.mxu0 0
        %5047 = vmatmul.mubr.bf16.gmra.mrb[0].mxu0 %v4894
        %v5048 = vpop.f32.mrb[0].mxu0
        %v5049 = vadd.f32 %v4916, %v5048
        %v5050 = vpop.f32.mrb[0].mxu0
        %v5051 = vpop.f32.mrb[0].mxu0
        %v5052 = vpop.f32.mrb[0].mxu0
        %5053 = vdwg.mxu0
        %5054 = vst [vmem:[%s549] sm:$0xff] %v5001
        %5055 = vst [vmem:[%s549 + $0x8] sm:$0xff] %v5004
        %5056 = vst [vmem:[%s549 + $0x10] sm:$0xff] %v5009
        %5057 = vst [vmem:[%s549 + $0x18] sm:$0xff] %v5012
        %5058 = vst [vmem:[%s549 + $0x20] sm:$0xff] %v5017
        %5059 = vst [vmem:[%s549 + $0x28] sm:$0xff] %v5020
        %5060 = vst [vmem:[%s549 + $0x30] sm:$0xff] %v5025
        %5061 = vst [vmem:[%s549 + $0x38] sm:$0xff] %v5028
        %5062 = vst [vmem:[%s549 + $0x40] sm:$0xff] %v5033
        %5063 = vst [vmem:[%s549 + $0x48] sm:$0xff] %v5036
        %5064 = vst [vmem:[%s549 + $0x50] sm:$0xff] %v5041
        %5065 = vst [vmem:[%s549 + $0x58] sm:$0xff] %v5044
        %5066 = vst [vmem:[%s549 + $0x60] sm:$0xff] %v5049
        %5067 = vmax.xlane.f32.xlu0 %v5001
        %v5068 = vpop.xlane.xlu0 %5067
        %5069 = vmax.xlane.f32.xlu0 %v5004
        %v5070 = vpop.xlane.xlu0 %5069
        %5071 = vmax.xlane.f32.xlu0 %v5009
        %v5072 = vpop.xlane.xlu0 %5071
        %5073 = vmax.xlane.f32.xlu0 %v5012
        %v5074 = vpop.xlane.xlu0 %5073
        %5075 = vmax.xlane.f32.xlu0 %v5017
        %v5076 = vpop.xlane.xlu0 %5075
        %5077 = vmax.xlane.f32.xlu0 %v5020
        %v5078 = vpop.xlane.xlu0 %5077
        %5079 = vmax.xlane.f32.xlu0 %v5025
        %v5080 = vpop.xlane.xlu0 %5079
        %5081 = vmax.xlane.f32.xlu0 %v5028
        %v5082 = vpop.xlane.xlu0 %5081
        %5083 = vmax.xlane.f32.xlu0 %v5033
        %v5084 = vpop.xlane.xlu0 %5083
        %5085 = vmax.xlane.f32.xlu0 %v5036
        %v5086 = vpop.xlane.xlu0 %5085
        %5087 = vmax.xlane.f32.xlu0 %v5041
        %v5088 = vpop.xlane.xlu0 %5087
        %5089 = vmax.xlane.f32.xlu0 %v5044
        %v5090 = vpop.xlane.xlu0 %5089
        %5091 = vmax.xlane.f32.xlu0 %v5049
        %v5092 = vpop.xlane.xlu0 %5091
        %v5093 = vsub.f32 %v5001, %v5068
        %v5094 = vsub.f32 %v5004, %v5070
        %v5095 = vsub.f32 %v5009, %v5072
        %v5096 = vsub.f32 %v5012, %v5074
        %v5097 = vsub.f32 %v5017, %v5076
        %v5098 = vsub.f32 %v5020, %v5078
        %v5099 = vsub.f32 %v5025, %v5080
        %v5100 = vsub.f32 %v5028, %v5082
        %v5101 = vsub.f32 %v5033, %v5084
        %v5102 = vsub.f32 %v5036, %v5086
        %v5103 = vsub.f32 %v5041, %v5088
        %v5104 = vsub.f32 %v5044, %v5090
        %v5105 = vsub.f32 %v5049, %v5092
        %v5106 = vmul.f32 %v5093, 1.442695
        %v5107 = vpow.pop %v5106
        %v5108 = vmul.f32 %v5094, 1.442695
        %v5109 = vpow.pop %v5108
        %v5110 = vmul.f32 %v5095, 1.442695
        %v5111 = vpow.pop %v5110
        %v5112 = vmul.f32 %v5096, 1.442695
        %v5113 = vpow.pop %v5112
        %v5114 = vmul.f32 %v5097, 1.442695
        %v5115 = vpow.pop %v5114
        %v5116 = vmul.f32 %v5098, 1.442695
        %v5117 = vpow.pop %v5116
        %v5118 = vmul.f32 %v5099, 1.442695
        %v5119 = vpow.pop %v5118
        %v5120 = vmul.f32 %v5100, 1.442695
        %v5121 = vpow.pop %v5120
        %v5122 = vmul.f32 %v5101, 1.442695
        %v5123 = vpow.pop %v5122
        %v5124 = vmul.f32 %v5102, 1.442695
        %v5125 = vpow.pop %v5124
        %v5126 = vmul.f32 %v5103, 1.442695
        %v5127 = vpow.pop %v5126
        %v5128 = vmul.f32 %v5104, 1.442695
        %v5129 = vpow.pop %v5128
        %v5130 = vmul.f32 %v5105, 1.442695
        %v5131 = vpow.pop %v5130
        %5132 = vadd.xlane.f32.xlu0 %v5107
        %v5133 = vpop.xlane.xlu0 %5132
        %5134 = vadd.xlane.f32.xlu0 %v5109
        %v5135 = vpop.xlane.xlu0 %5134
        %5136 = vadd.xlane.f32.xlu0 %v5111
        %v5137 = vpop.xlane.xlu0 %5136
        %5138 = vadd.xlane.f32.xlu0 %v5113
        %v5139 = vpop.xlane.xlu0 %5138
        %5140 = vadd.xlane.f32.xlu0 %v5115
        %v5141 = vpop.xlane.xlu0 %5140
        %5142 = vadd.xlane.f32.xlu0 %v5117
        %v5143 = vpop.xlane.xlu0 %5142
        %5144 = vadd.xlane.f32.xlu0 %v5119
        %v5145 = vpop.xlane.xlu0 %5144
        %5146 = vadd.xlane.f32.xlu0 %v5121
        %v5147 = vpop.xlane.xlu0 %5146
        %5148 = vadd.xlane.f32.xlu0 %v5123
        %v5149 = vpop.xlane.xlu0 %5148
        %5150 = vadd.xlane.f32.xlu0 %v5125
        %v5151 = vpop.xlane.xlu0 %5150
        %5152 = vadd.xlane.f32.xlu0 %v5127
        %v5153 = vpop.xlane.xlu0 %5152
        %5154 = vadd.xlane.f32.xlu0 %v5129
        %v5155 = vpop.xlane.xlu0 %5154
        %5156 = vadd.xlane.f32.xlu0 %v5131
        %v5157 = vpop.xlane.xlu0 %5156
        %v5158 = vlog2.pop %v5133
        %v5159 = vmul.f32 %v5158, 0.6931472
        %v5160 = vlog2.pop %v5135
        %v5161 = vmul.f32 %v5160, 0.6931472
        %v5162 = vlog2.pop %v5137
        %v5163 = vmul.f32 %v5162, 0.6931472
        %v5164 = vlog2.pop %v5139
        %v5165 = vmul.f32 %v5164, 0.6931472
        %v5166 = vlog2.pop %v5141
        %v5167 = vmul.f32 %v5166, 0.6931472
        %v5168 = vlog2.pop %v5143
        %v5169 = vmul.f32 %v5168, 0.6931472
        %v5170 = vlog2.pop %v5145
        %v5171 = vmul.f32 %v5170, 0.6931472
        %v5172 = vlog2.pop %v5147
        %v5173 = vmul.f32 %v5172, 0.6931472
        %v5174 = vlog2.pop %v5149
        %v5175 = vmul.f32 %v5174, 0.6931472
        %v5176 = vlog2.pop %v5151
        %v5177 = vmul.f32 %v5176, 0.6931472
        %v5178 = vlog2.pop %v5153
        %v5179 = vmul.f32 %v5178, 0.6931472
        %v5180 = vlog2.pop %v5155
        %v5181 = vmul.f32 %v5180, 0.6931472
        %v5182 = vlog2.pop %v5157
        %v5183 = vmul.f32 %v5182, 0.6931472
        %v5184 = vadd.f32 %v5068, %v5159
        %v5185 = vadd.f32 %v5070, %v5161
        %v5186 = vadd.f32 %v5072, %v5163
        %v5187 = vadd.f32 %v5074, %v5165
        %v5188 = vadd.f32 %v5076, %v5167
        %v5189 = vadd.f32 %v5078, %v5169
        %v5190 = vadd.f32 %v5080, %v5171
        %v5191 = vadd.f32 %v5082, %v5173
        %v5192 = vadd.f32 %v5084, %v5175
        %v5193 = vadd.f32 %v5086, %v5177
        %v5194 = vadd.f32 %v5088, %v5179
        %v5195 = vadd.f32 %v5090, %v5181
        %v5196 = vadd.f32 %v5092, %v5183
        %v5197 = vsub.f32 %v5001, %v5184
        %v5198 = vsub.f32 %v5004, %v5185
        %v5199 = vsub.f32 %v5009, %v5186
        %v5200 = vsub.f32 %v5012, %v5187
        %v5201 = vsub.f32 %v5017, %v5188
        %v5202 = vsub.f32 %v5020, %v5189
        %v5203 = vsub.f32 %v5025, %v5190
        %v5204 = vsub.f32 %v5028, %v5191
        %v5205 = vsub.f32 %v5033, %v5192
        %v5206 = vsub.f32 %v5036, %v5193
        %v5207 = vsub.f32 %v5041, %v5194
        %v5208 = vsub.f32 %v5044, %v5195
        %v5209 = vsub.f32 %v5049, %v5196
        %5210 = vst [vmem:[%s556] sm:$0xff] %v5197
        %5211 = vst [vmem:[%s556 + $0x8] sm:$0xff] %v5198
        %5212 = vst [vmem:[%s556 + $0x10] sm:$0xff] %v5199
        %5213 = vst [vmem:[%s556 + $0x18] sm:$0xff] %v5200
        %5214 = vst [vmem:[%s556 + $0x20] sm:$0xff] %v5201
        %5215 = vst [vmem:[%s556 + $0x28] sm:$0xff] %v5202
        %5216 = vst [vmem:[%s556 + $0x30] sm:$0xff] %v5203
        %5217 = vst [vmem:[%s556 + $0x38] sm:$0xff] %v5204
        %5218 = vst [vmem:[%s556 + $0x40] sm:$0xff] %v5205
        %5219 = vst [vmem:[%s556 + $0x48] sm:$0xff] %v5206
        %5220 = vst [vmem:[%s556 + $0x50] sm:$0xff] %v5207
        %5221 = vst [vmem:[%s556 + $0x58] sm:$0xff] %v5208
        %5222 = vst [vmem:[%s556 + $0x60] sm:$0xff] %v5209
        %s5223 = sand.u32 %s338, 1
        %s5224 = scalar_lea.sflag [#allocation7], %s5223
        %s5225 = sand.u32 %s338, 1
        %s5226 = smul.addr %s5225, 104
        %s5227 = scalar_lea.vmem [#allocation14], %s5226
        %s5228 = sand.u32 %s364, 1
        %s5229 = scalar_lea.sflag [#allocation16], %s5228
        %s5230 = sand.u32 %s364, 1
        %s5231 = smul.addr %s5230, 104
        %s5232 = scalar_lea.vmem [#allocation15], %s5231
        // Predicated region
        $region97: #{tpu_custom_call.1} parent=75 // pred_check
          %p5233 = pneg %p348
        $region98: #{tpu_custom_call.1} parent=75 // pred_check_branch
          %5235 = sbr.rel (%p5233) target = $region100
        $region99: #{tpu_custom_call.1} parent=75 // pred_region
          %s5236 = smul.u32 13, %s36
          %s5238 = ssub.s32 1664, 1664
          %5239 = vsyncadd %s5224, %s5238
          %s5240 = smul.addr %s5236, 128
          %s5241 = scalar_lea.hbm %s14, %s5240
          %s5242 = sshll.u32 %s5227, 4
          %s5243 = int_to_ptr.vmem [resolvable:$true] %s5242
          %5248 = dma.vmem_to_hbm [thread:$0]  %s5243, 1664, %s5241, %s5224, 128, 128, 8
        $region100: #{tpu_custom_call.1} parent=75 // pred_fallthru
          _
        // Predicated region
        $region101: #{tpu_custom_call.1} parent=75 // pred_check
          %p5249 = pneg %p374
        $region102: #{tpu_custom_call.1} parent=75 // pred_check_branch
          %5251 = sbr.rel (%p5249) target = $region104
        $region103: #{tpu_custom_call.1} parent=75 // pred_region
          %s5252 = smul.u32 13, %s36
          %s5254 = ssub.s32 1664, 1664
          %5255 = vsyncadd %s5229, %s5254
          %s5256 = smul.addr %s5252, 128
          %s5257 = scalar_lea.hbm %s15, %s5256
          %s5258 = sshll.u32 %s5232, 4
          %s5259 = int_to_ptr.vmem [resolvable:$true] %s5258
          %5264 = dma.vmem_to_hbm [thread:$0]  %s5259, 1664, %s5257, %s5229, 128, 128, 8
        $region104: #{tpu_custom_call.1} parent=75 // pred_fallthru
          _
      $region76: #{tpu_custom_call.1} parent=5 // pred_fallthru
        _
      %p5265 = scmp.le.s32.totalorder 2, %s31
      // Predicated region
      $region105: #{tpu_custom_call.1} parent=5 // pred_check
        %p5266 = pneg %p5265
      $region106: #{tpu_custom_call.1} parent=5 // pred_check_branch
        %5268 = sbr.rel (%p5266) target = $region108
      $region107: #{tpu_custom_call.1} parent=5 // pred_region
        %s5269 = ssub.s32 %s31, 2
        // Predicated region
        $region109: #{tpu_custom_call.1} parent=107 // pred_check
          %p5270 = pneg %p354
        $region110: #{tpu_custom_call.1} parent=107 // pred_check_branch
          %5272 = sbr.rel (%p5270) target = $region112
        $region111: #{tpu_custom_call.1} parent=107 // pred_region
          %s5273 = sand.u32 %s339, 1
          %s5274 = scalar_lea.sflag [#allocation7], %s5273
          %s5275 = sand.u32 %s339, 1
          %s5276 = smul.addr %s5275, 104
          %s5277 = scalar_lea.vmem [#allocation14], %s5276
          %5278 = dma.done %s5274, 1664
        $region112: #{tpu_custom_call.1} parent=107 // pred_fallthru
          _
        // Predicated region
        $region113: #{tpu_custom_call.1} parent=107 // pred_check
          %p5279 = pneg %p380
        $region114: #{tpu_custom_call.1} parent=107 // pred_check_branch
          %5281 = sbr.rel (%p5279) target = $region116
        $region115: #{tpu_custom_call.1} parent=107 // pred_region
          %s5282 = sand.u32 %s365, 1
          %s5283 = scalar_lea.sflag [#allocation16], %s5282
          %s5284 = sand.u32 %s365, 1
          %s5285 = smul.addr %s5284, 104
          %s5286 = scalar_lea.vmem [#allocation15], %s5285
          %5287 = dma.done %s5283, 1664
        $region116: #{tpu_custom_call.1} parent=107 // pred_fallthru
          _
      $region108: #{tpu_custom_call.1} parent=5 // pred_fallthru
        _
    $region6: #{tpu_custom_call.1} parent=1 // loop_footer
      %s35 = sadd.s32 1, %s31
    $region7: #{tpu_custom_call.1} parent=1 // loop_footer_branch
      %30 = sbr.rel target = $region3
    $region8: #{tpu_custom_call.1} parent=1 // loop_exit
      _
    %5288 = vsyncpa [#allocation6], 1
    %s5289 = scalar_lea.sflag [#allocation6], 1
    %5290 = vsyncpa %s5289, 1
    %5291 = vsyncpa [#allocation9], 1
    %5292 = vsyncpa [#allocation12], 1
    %5293 = vsyncpa [#allocation7], 1
    %s5294 = scalar_lea.sflag [#allocation7], 1
    %5295 = vsyncpa %s5294, 1
    %5296 = vsyncpa [#allocation16], 1
    %s5297 = scalar_lea.sflag [#allocation16], 1
    %5298 = vsyncpa %s5297, 1

</llo_original>
